<compile_context>
chip_gen: v5e
topology: v5e:2x2
jax: 0.10.0
libtpu: 0.0.40
codegen_flags: <defaults>
</compile_context>

<pallas_src>
import functools

import jax
import jax.numpy as jnp
from jax.experimental import pallas as pl
from jax.experimental.pallas import tpu as pltpu

# bf16 operands + f32 accumulation on the MXU for the im2col conv matmuls and
# the one-hot gather matmul.  Gram normalization / comparisons / fold / scales
# stay in f32.
MATMUL_COMPUTE_DTYPE = jnp.bfloat16


# ------------------------- feature (conv) path ------------------------------

def _mm_bias_kernel(w_ref, b_ref, u_ref, o_ref, *, relu):
    # (M, K) @ (K, TN) + bias; bf16 operands, f32 accumulation.
    out = jnp.dot(w_ref[...], u_ref[...], preferred_element_type=jnp.float32)
    out = out + b_ref[...]
    if relu:
        out = jnp.maximum(out, 0.0)
    o_ref[...] = out.astype(o_ref.dtype)


def matmul_bias(w, b, u, relu=False, out_dtype=jnp.float32):
    """o = w @ u + bias (optionally ReLU).  u: (K, N) with N = B*H*W lane-dense."""
    M, K = w.shape
    K2, N = u.shape
    assert K == K2
    block_n = N
    for cand in (2048, 1024, 512, 256, 128):      # biggest lane tile that divides N
        if N % cand == 0:
            block_n = cand
            break
    grid_n = N // block_n
    out_bytes = 2 if out_dtype == jnp.bfloat16 else 4
    kernel = functools.partial(_mm_bias_kernel, relu=relu)
    cost = pl.CostEstimate(flops=2 * M * K * N, transcendentals=0,
                           bytes_accessed=M * K * 2 + K * N * 2 + M * N * out_bytes + M * 4)
    return pl.pallas_call(
        kernel,
        out_shape=jax.ShapeDtypeStruct((M, N), out_dtype),
        grid=(grid_n,),
        in_specs=[
            pl.BlockSpec((M, K), lambda n: (0, 0)),        # weights resident (bf16)
            pl.BlockSpec((M, 1), lambda n: (0, 0)),        # bias resident (f32)
            pl.BlockSpec((K, block_n), lambda n: (0, n)),
        ],
        out_specs=pl.BlockSpec((M, block_n), lambda n: (0, n)),
        compiler_params=pltpu.CompilerParams(
            dimension_semantics=("parallel",),
            vmem_limit_bytes=48 * 1024 * 1024),
        cost_estimate=cost,
    )(w.astype(MATMUL_COMPUTE_DTYPE), b.reshape(M, 1).astype(jnp.float32),
      u.astype(MATMUL_COMPUTE_DTYPE))


# --------------------------- Gram + top-k kernel ----------------------------

def _gram_topk_kernel(xk_ref, v_ref, i_ref, kn_ref, *, topk, topk_pad, tq):
    qt = pl.program_id(1)

    # Normalize the key slab ONCE per batch into VMEM scratch (hoisted out of
    # the query-tile loop); query tiles are sliced from this scratch, so the
    # input is streamed from HBM exactly once per batch.
    @pl.when(qt == 0)
    def _():
        k = xk_ref[...]                                               # (P, L) f32
        inv = jax.lax.rsqrt(jnp.maximum(jnp.sum(k * k, axis=0, keepdims=True), 1e-24))
        kn_ref[...] = k * inv

    q0 = qt * tq
    if tq % 128 == 0:
        q0 = pl.multiple_of(q0, 128)
    qn = kn_ref[:, pl.ds(q0, tq)]                                     # (P, tq)
    # TODO(synk): verify (bundle dump) whether contracting dim 0 of the (P, L)
    # slab inserts a per-tile XLU transpose; if so keep an (L, P) transposed
    # copy of the normalized keys in a second scratch instead.
    s = jax.lax.dot_general(kn_ref[...], qn, (((0,), (0,)), ((), ())),
                            preferred_element_type=jnp.float32)       # (L, tq)

    L = s.shape[0]
    row_ids = jax.lax.broadcasted_iota(jnp.int32, s.shape, 0)
    vals, idxs = [], []
    work = s
    for _ in range(topk):
        m = jnp.max(work, axis=0, keepdims=True)                                 # (1, tq)
        idx = jnp.min(jnp.where(work == m, row_ids, L), axis=0, keepdims=True)   # (1, tq)
        vals.append(m)
        idxs.append(idx)
        work = jnp.where(row_ids == idx, jnp.float32(-jnp.inf), work)
    for _ in range(topk_pad - topk):                     # pad sublanes to 8 -> unmasked store
        vals.append(jnp.zeros((1, tq), jnp.float32))
        idxs.append(jnp.zeros((1, tq), jnp.int32))
    v_ref[...] = jnp.concatenate(vals, axis=0)
    i_ref[...] = jnp.concatenate(idxs, axis=0)


def gram_topk(x_unf, topk):
    """Fused cosine-similarity Gram + top-k over keys.  x_unf: (B, P, L).
    Returns (B, 8, L) values / indices (rows >= topk are zero padding)."""
    B, P, L = x_unf.shape
    topk_pad = ((topk + 7) // 8) * 8
    if L % 256 == 0:
        tq = 256                      # fills the 256-wide MXU on v6e/v7x
    elif L % 128 == 0:
        tq = 128
    else:
        tq = L
    n_qt = L // tq
    kernel = functools.partial(_gram_topk_kernel, topk=topk, topk_pad=topk_pad, tq=tq)
    return pl.pallas_call(
        kernel,
        out_shape=(jax.ShapeDtypeStruct((B, topk_pad, L), jnp.float32),
                   jax.ShapeDtypeStruct((B, topk_pad, L), jnp.int32)),
        grid=(B, n_qt),
        in_specs=[pl.BlockSpec((None, P, L), lambda b, qt: (b, 0, 0))],   # key slab, 1 DMA / batch
        out_specs=(pl.BlockSpec((None, topk_pad, tq), lambda b, qt: (b, 0, qt)),
                   pl.BlockSpec((None, topk_pad, tq), lambda b, qt: (b, 0, qt))),
        scratch_shapes=[pltpu.VMEM((P, L), jnp.float32)],                 # normalized keys
        compiler_params=pltpu.CompilerParams(
            dimension_semantics=("parallel", "arbitrary"),
            vmem_limit_bytes=48 * 1024 * 1024),
    )(x_unf)


# -------------------- gather + fold + texture convs kernel ------------------

def _texture_output_kernel(xu_ref, idx_ref, rmax_ref, feat_ref, x_ref, mask_ref,
                           wt1_ref, bt1_ref, wt2_ref, bt2_ref, y_ref,
                           *, C, topk, H, W):
    # xu: (9*C, L) reflection-padded patches, rows ordered (patch-slot k, channel c).
    # gather-by-index == ONE bf16 one-hot selection matmul (MXU);
    # fold(kernel=3, pad=1) == static boundary mask + pltpu.roll along the lane
    # axis (XLU) per patch slot; texture_conv1/texture_conv2 are K-panel dots.
    L = H * W
    xu = xu_ref[...].astype(jnp.bfloat16)                             # cast once per batch
    key_ids = jax.lax.broadcasted_iota(jnp.int32, (L, L), 0)
    # TODO(synk): for large L (v7x 64 MiB VMEM) tile the query/output L axis
    # (with a +/- (W+1) halo for the fold rolls) so the (L, L) selection stays bounded.

    tex = jnp.zeros((C, L), jnp.float32)
    for i in range(1, topk):
        idx_row = idx_ref[i:i + 1, :]                                 # (1, L) int32
        sel = (key_ids == idx_row).astype(jnp.bfloat16)               # (L, L) one-hot cols (exact)
        t_unf = jnp.dot(xu, sel, preferred_element_type=jnp.float32)  # (9C, L) gather of all slots
        t_fold = jnp.zeros((C, L), jnp.float32)
        for k in range(9):                                            # fold via mask + lane roll
            dy, dx = divmod(k, 3)
            t_k = t_unf[k * C:(k + 1) * C, :]
            if dy == 1 and dx == 1:
                t_fold = t_fold + t_k                                 # center slot: no shift/mask
            else:
                t_k = t_k * mask_ref[k:k + 1, :]
                shift = ((dy - 1) * W + (dx - 1)) % L
                t_fold = t_fold + pltpu.roll(t_k, shift, axis=1)
        ts_i = t_fold * rmax_ref[i:i + 1, :]                          # S scale (1/9 folded into wt1)
        tex = tex + jnp.dot(wt1_ref[:, (i - 1) * C:i * C], ts_i,
                            preferred_element_type=jnp.float32)
    tex = tex + bt1_ref[...]

    # texture_conv2 on cat([feature, x, texture]) via three K-panels of wt2.
    y = jnp.dot(wt2_ref[:, 0:C], feat_ref[...], preferred_element_type=jnp.float32)
    y = y + jnp.dot(wt2_ref[:, C:2 * C], x_ref[...], preferred_element_type=jnp.float32)
    y = y + jnp.dot(wt2_ref[:, 2 * C:3 * C], tex, preferred_element_type=jnp.float32)
    y_ref[...] = y + bt2_ref[...]


def texture_output(x_unf, r_idxs, r_maxs, feature, x_flat, fold_masks,
                   wt1, bt1, wt2, bt2, *, topk, H, W):
    B, P, L = x_unf.shape
    C = x_flat.shape[1]
    TKP = r_idxs.shape[1]
    kernel = functools.partial(_texture_output_kernel, C=C, topk=topk, H=H, W=W)
    return pl.pallas_call(
        kernel,
        out_shape=jax.ShapeDtypeStruct((B, C, L), jnp.float32),
        grid=(B,),
        in_specs=[
            pl.BlockSpec((None, P, L), lambda b: (b, 0, 0)),        # x_unf
            pl.BlockSpec((None, TKP, L), lambda b: (b, 0, 0)),      # top-k indices (padded to 8)
            pl.BlockSpec((None, TKP, L), lambda b: (b, 0, 0)),      # top-k scores  (padded to 8)
            pl.BlockSpec((None, C, L), lambda b: (b, 0, 0)),        # feature
            pl.BlockSpec((None, C, L), lambda b: (b, 0, 0)),        # x
            pl.BlockSpec((9, L), lambda b: (0, 0)),                 # fold boundary masks (resident)
            pl.BlockSpec((C, C * (topk - 1)), lambda b: (0, 0)),    # wt1 (pre-scaled by 1/9)
            pl.BlockSpec((C, 1), lambda b: (0, 0)),                 # bt1
            pl.BlockSpec((C, 3 * C), lambda b: (0, 0)),             # wt2
            pl.BlockSpec((C, 1), lambda b: (0, 0)),                 # bt2
        ],
        out_specs=pl.BlockSpec((None, C, L), lambda b: (b, 0, 0)),
        compiler_params=pltpu.CompilerParams(
            dimension_semantics=("parallel",),
            vmem_limit_bytes=48 * 1024 * 1024),
    )(x_unf, r_idxs, r_maxs, feature.astype(jnp.float32), x_flat.astype(jnp.float32),
      fold_masks,
      (wt1 * (1.0 / 9.0)).astype(jnp.float32), bt1.reshape(C, 1).astype(jnp.float32),
      wt2.astype(jnp.float32), bt2.reshape(C, 1).astype(jnp.float32))


# ------------------------------- JAX glue ----------------------------------

def _pad1(a, mode):
    cfg = [(0, 0)] * (a.ndim - 2) + [(1, 1), (1, 1)]
    return jnp.pad(a, cfg, mode=mode)


def _unfold3_conv(xp):
    # xp: (C, B, H+2, W+2) -> (C*9, B*H*W); row order (c, dy, dx) matches the
    # PyTorch Conv2d weight flatten; lane axis is the batched spatial axis.
    C, B, Hp, Wp = xp.shape
    H, W = Hp - 2, Wp - 2
    patches = [xp[:, :, dy:dy + H, dx:dx + W] for dy in range(3) for dx in range(3)]
    return jnp.stack(patches, axis=1).reshape(C * 9, B * H * W)


def _unfold3_attn(xp):
    # xp: (B, C, H+2, W+2) -> (B, 9*C, H*W); row order (dy, dx, c) so the rows
    # of one patch slot are contiguous for the in-kernel fold rolls.
    B, C, Hp, Wp = xp.shape
    H, W = Hp - 2, Wp - 2
    patches = [xp[:, :, dy:dy + H, dx:dx + W] for dy in range(3) for dx in range(3)]
    return jnp.stack(patches, axis=1).reshape(B, 9 * C, H * W)


def _make_fold_masks(H, W):
    # mask[k, l] = 1 iff patch slot k=(dy,dx) of unfold column l=(y,x) lands on a
    # valid output pixel under F.fold(output=(H,W), kernel=3, padding=1).
    L = H * W
    ids = jnp.arange(L, dtype=jnp.int32)
    y = ids // W
    x = ids % W
    masks = []
    for dy in range(3):
        for dx in range(3):
            ty, tx = y + dy - 1, x + dx - 1
            valid = (ty >= 0) & (ty < H) & (tx >= 0) & (tx < W)
            masks.append(valid.astype(jnp.float32))
    return jnp.stack(masks, axis=0)                                   # (9, L)


def transformer_v5_forward(params, x, topk=5):
    B, C, H, W = x.shape
    L = H * W
    assert 2 <= topk <= L

    # feature = Conv3x3 -> ReLU -> Conv3x3 (zero pad 1), each as ONE batched
    # (C, C*9) @ (C*9, B*H*W) Pallas matmul; the 9x-expanded im2col operands and
    # the intermediate f1 stay bf16 end-to-end (conv path is HBM-bound).
    # TODO(synk): at large H*W move the im2col in-kernel (shifted reads of a
    # padded x kept in HBM/VMEM) and fuse conv1+ReLU+conv2 so f1 never hits HBM.
    x_cb = jnp.transpose(x, (1, 0, 2, 3)).astype(MATMUL_COMPUTE_DTYPE)
    u1 = _unfold3_conv(_pad1(x_cb, "constant"))
    f1 = matmul_bias(params["w1"], params["b1"], u1, relu=True,
                     out_dtype=MATMUL_COMPUTE_DTYPE).reshape(C, B, H, W)
    u2 = _unfold3_conv(_pad1(f1, "constant"))
    feature = matmul_bias(params["w2"], params["b2"], u2, out_dtype=jnp.float32)
    feature_bcl = jnp.transpose(feature.reshape(C, B, L), (1, 0, 2))   # (B, C, L)

    # q == k == x: one reflection-padded unfold feeds Gram/top-k and the gather.
    x_unf = _unfold3_attn(_pad1(x, "reflect")).astype(jnp.float32)     # (B, 9C, L)
    r_maxs, r_idxs = gram_topk(x_unf, topk)                            # (B, 8, L), rows>=topk unused

    fold_masks = _make_fold_masks(H, W)                                # (9, L)
    y = texture_output(x_unf, r_idxs, r_maxs, feature_bcl, x.reshape(B, C, L),
                       fold_masks, params["wt1"], params["bt1"],
                       params["wt2"], params["bt2"], topk=topk, H=H, W=W)
    return y.reshape(B, C, H, W)


def init_params(key, C, topk):
    ks = jax.random.split(key, 8)
    rnd = lambda k, shp: 0.1 * jax.random.normal(k, shp, jnp.float32)
    return {
        # feature: Conv2d(C, C, 3) weights flattened to (C_out, C_in*9)
        "w1": rnd(ks[0], (C, C * 9)), "b1": rnd(ks[1], (C,)),
        "w2": rnd(ks[2], (C, C * 9)), "b2": rnd(ks[3], (C,)),
        # texture_conv1: Conv2d(C*(topk-1), C, 1) -> (C, C*(topk-1))
        "wt1": rnd(ks[4], (C, C * (topk - 1))), "bt1": rnd(ks[5], (C,)),
        # texture_conv2: Conv2d(C*3, C, 1) -> (C, 3C)
        "wt2": rnd(ks[6], (C, 3 * C)), "bt2": rnd(ks[7], (C,)),
    }


if __name__ == "__main__":
    B, C, H, W = 2, 4, 16, 16
    TOPK = 5
    key = jax.random.PRNGKey(0)
    kx, kp = jax.random.split(key)
    x = jax.random.normal(kx, (B, C, H, W), jnp.float32)
    params = init_params(kp, C, TOPK)

    fwd = jax.jit(functools.partial(transformer_v5_forward, topk=TOPK))
    y = fwd(params, x)
    y = jax.block_until_ready(y)
    assert y.shape == (B, C, H, W) and y.dtype == jnp.float32
    print("KERNEL_OK")
</pallas_src>

<mosaic_0001>
module attributes {stable_mosaic.version = 11 : i64} {
  func.func @_gram_topk_kernel(%arg0: i32, %arg1: i32, %arg2: memref<1x36x256xf32, #tpu.memory_space<vmem>>, %arg3: memref<1x8x256xf32, #tpu.memory_space<vmem>>, %arg4: memref<1x8x256xi32, #tpu.memory_space<vmem>>, %arg5: memref<36x256xf32, #tpu.memory_space<vmem>>) attributes {dimension_semantics = [#tpu.dimension_semantics<parallel>, #tpu.dimension_semantics<arbitrary>], iteration_bounds = array<i64: 2, 1>, scalar_prefetch = 0 : i64, scratch_operands = 1 : i64, tpu.core_type = #tpu.core_type<tc>, window_params = [{transform_indices = @transform_0, window_bounds = array<i64: 1, 36, 256>}, {transform_indices = @transform_1, window_bounds = array<i64: 1, 8, 256>}, {transform_indices = @transform_2, window_bounds = array<i64: 1, 8, 256>}]} {
    %c0_i32 = arith.constant 0 : i32
    %0 = arith.cmpi eq, %arg1, %c0_i32 : i32
    %1 = arith.extui %0 : i1 to i32
    %c0_i32_0 = arith.constant 0 : i32
    %2 = arith.cmpi ne, %1, %c0_i32_0 : i32
    scf.if %2 {
      %c0_34 = arith.constant 0 : index
      %c0_35 = arith.constant 0 : index
      %c0_36 = arith.constant 0 : index
      %80 = vector.load %arg2[%c0_34, %c0_35, %c0_36] : memref<1x36x256xf32, #tpu.memory_space<vmem>>, vector<1x36x256xf32>
      %81 = vector.shape_cast %80 : vector<1x36x256xf32> to vector<36x256xf32>
      %82 = arith.mulf %81, %81 : vector<36x256xf32>
      %cst_37 = arith.constant dense<0.000000e+00> : vector<256xf32>
      %83 = vector.multi_reduction <add>, %82, %cst_37 [0] : vector<36x256xf32> to vector<256xf32>
      %84 = vector.shape_cast %83 : vector<256xf32> to vector<1x256xf32>
      %cst_38 = arith.constant 1.000000e-24 : f32
      %85 = vector.broadcast %cst_38 : f32 to vector<1x256xf32>
      %86 = arith.maximumf %84, %85 : vector<1x256xf32>
      %87 = math.rsqrt %86 : vector<1x256xf32>
      %88 = vector.broadcast %87 : vector<1x256xf32> to vector<36x256xf32>
      %89 = arith.mulf %81, %88 : vector<36x256xf32>
      %c0_39 = arith.constant 0 : index
      %c0_40 = arith.constant 0 : index
      %90 = vector.load %arg5[%c0_39, %c0_40] : memref<36x256xf32, #tpu.memory_space<vmem>>, vector<36x256xf32>
      tpu.vector_store %arg5[%c0_39, %c0_40], %89 {strides = array<i32>} : memref<36x256xf32, #tpu.memory_space<vmem>>, vector<36x256xf32>,
    } else {
    }
    %c256_i32 = arith.constant 256 : i32
    %3 = arith.muli %arg1, %c256_i32 : i32
    %4 = tpu.assume_multiple %3, 128 : i32
    %c0 = arith.constant 0 : index
    %5 = arith.index_cast %4 : i32 to index
    %6 = vector.load %arg5[%c0, %5] : memref<36x256xf32, #tpu.memory_space<vmem>>, vector<36x256xf32>
    %c0_1 = arith.constant 0 : index
    %c0_2 = arith.constant 0 : index
    %7 = vector.load %arg5[%c0_1, %c0_2] : memref<36x256xf32, #tpu.memory_space<vmem>>, vector<36x256xf32>
    %cst = arith.constant dense<0.000000e+00> : vector<256x256xf32>
    %8 = tpu.matmul %7, %6, %cst {dimension_numbers = #tpu.dot_dimension_numbers<[0], [0], [1], [1], [0, 1, 1, 1], [], []>} : vector<36x256xf32>, vector<36x256xf32>, vector<256x256xf32> -> vector<256x256xf32>
    %9 = tpu.iota {dimensions = array<i32: 0>} : vector<256x256xi32>
    %cst_3 = arith.constant dense<0xFF800000> : vector<256xf32>
    %10 = vector.multi_reduction <maximumf>, %8, %cst_3 [0] : vector<256x256xf32> to vector<256xf32>
    %11 = vector.shape_cast %10 : vector<256xf32> to vector<1x256xf32>
    %12 = vector.broadcast %11 : vector<1x256xf32> to vector<256x256xf32>
    %13 = arith.cmpf oeq, %8, %12 : vector<256x256xf32>
    %c256_i32_4 = arith.constant 256 : i32
    %14 = vector.broadcast %c256_i32_4 : i32 to vector<256x256xi32>
    %15 = arith.select %13, %9, %14 : vector<256x256xi1>, vector<256x256xi32>
    %cst_5 = arith.constant dense<2147483647> : vector<256xi32>
    %16 = vector.multi_reduction <minsi>, %15, %cst_5 [0] : vector<256x256xi32> to vector<256xi32>
    %17 = vector.shape_cast %16 : vector<256xi32> to vector<1x256xi32>
    %18 = vector.broadcast %17 : vector<1x256xi32> to vector<256x256xi32>
    %19 = arith.cmpi eq, %9, %18 : vector<256x256xi32>
    %cst_6 = arith.constant 0xFF800000 : f32
    %20 = vector.broadcast %cst_6 : f32 to vector<256x256xf32>
    %21 = arith.select %19, %20, %8 : vector<256x256xi1>, vector<256x256xf32>
    %cst_7 = arith.constant dense<0xFF800000> : vector<256xf32>
    %22 = vector.multi_reduction <maximumf>, %21, %cst_7 [0] : vector<256x256xf32> to vector<256xf32>
    %23 = vector.shape_cast %22 : vector<256xf32> to vector<1x256xf32>
    %24 = vector.broadcast %23 : vector<1x256xf32> to vector<256x256xf32>
    %25 = arith.cmpf oeq, %21, %24 : vector<256x256xf32>
    %c256_i32_8 = arith.constant 256 : i32
    %26 = vector.broadcast %c256_i32_8 : i32 to vector<256x256xi32>
    %27 = arith.select %25, %9, %26 : vector<256x256xi1>, vector<256x256xi32>
    %cst_9 = arith.constant dense<2147483647> : vector<256xi32>
    %28 = vector.multi_reduction <minsi>, %27, %cst_9 [0] : vector<256x256xi32> to vector<256xi32>
    %29 = vector.shape_cast %28 : vector<256xi32> to vector<1x256xi32>
    %30 = vector.broadcast %29 : vector<1x256xi32> to vector<256x256xi32>
    %31 = arith.cmpi eq, %9, %30 : vector<256x256xi32>
    %cst_10 = arith.constant 0xFF800000 : f32
    %32 = vector.broadcast %cst_10 : f32 to vector<256x256xf32>
    %33 = arith.select %31, %32, %21 : vector<256x256xi1>, vector<256x256xf32>
    %cst_11 = arith.constant dense<0xFF800000> : vector<256xf32>
    %34 = vector.multi_reduction <maximumf>, %33, %cst_11 [0] : vector<256x256xf32> to vector<256xf32>
    %35 = vector.shape_cast %34 : vector<256xf32> to vector<1x256xf32>
    %36 = vector.broadcast %35 : vector<1x256xf32> to vector<256x256xf32>
    %37 = arith.cmpf oeq, %33, %36 : vector<256x256xf32>
    %c256_i32_12 = arith.constant 256 : i32
    %38 = vector.broadcast %c256_i32_12 : i32 to vector<256x256xi32>
    %39 = arith.select %37, %9, %38 : vector<256x256xi1>, vector<256x256xi32>
    %cst_13 = arith.constant dense<2147483647> : vector<256xi32>
    %40 = vector.multi_reduction <minsi>, %39, %cst_13 [0] : vector<256x256xi32> to vector<256xi32>
    %41 = vector.shape_cast %40 : vector<256xi32> to vector<1x256xi32>
    %42 = vector.broadcast %41 : vector<1x256xi32> to vector<256x256xi32>
    %43 = arith.cmpi eq, %9, %42 : vector<256x256xi32>
    %cst_14 = arith.constant 0xFF800000 : f32
    %44 = vector.broadcast %cst_14 : f32 to vector<256x256xf32>
    %45 = arith.select %43, %44, %33 : vector<256x256xi1>, vector<256x256xf32>
    %cst_15 = arith.constant dense<0xFF800000> : vector<256xf32>
    %46 = vector.multi_reduction <maximumf>, %45, %cst_15 [0] : vector<256x256xf32> to vector<256xf32>
    %47 = vector.shape_cast %46 : vector<256xf32> to vector<1x256xf32>
    %48 = vector.broadcast %47 : vector<1x256xf32> to vector<256x256xf32>
    %49 = arith.cmpf oeq, %45, %48 : vector<256x256xf32>
    %c256_i32_16 = arith.constant 256 : i32
    %50 = vector.broadcast %c256_i32_16 : i32 to vector<256x256xi32>
    %51 = arith.select %49, %9, %50 : vector<256x256xi1>, vector<256x256xi32>
    %cst_17 = arith.constant dense<2147483647> : vector<256xi32>
    %52 = vector.multi_reduction <minsi>, %51, %cst_17 [0] : vector<256x256xi32> to vector<256xi32>
    %53 = vector.shape_cast %52 : vector<256xi32> to vector<1x256xi32>
    %54 = vector.broadcast %53 : vector<1x256xi32> to vector<256x256xi32>
    %55 = arith.cmpi eq, %9, %54 : vector<256x256xi32>
    %cst_18 = arith.constant 0xFF800000 : f32
    %56 = vector.broadcast %cst_18 : f32 to vector<256x256xf32>
    %57 = arith.select %55, %56, %45 : vector<256x256xi1>, vector<256x256xf32>
    %cst_19 = arith.constant dense<0xFF800000> : vector<256xf32>
    %58 = vector.multi_reduction <maximumf>, %57, %cst_19 [0] : vector<256x256xf32> to vector<256xf32>
    %59 = vector.shape_cast %58 : vector<256xf32> to vector<1x256xf32>
    %60 = vector.broadcast %59 : vector<1x256xf32> to vector<256x256xf32>
    %61 = arith.cmpf oeq, %57, %60 : vector<256x256xf32>
    %c256_i32_20 = arith.constant 256 : i32
    %62 = vector.broadcast %c256_i32_20 : i32 to vector<256x256xi32>
    %63 = arith.select %61, %9, %62 : vector<256x256xi1>, vector<256x256xi32>
    %cst_21 = arith.constant dense<2147483647> : vector<256xi32>
    %64 = vector.multi_reduction <minsi>, %63, %cst_21 [0] : vector<256x256xi32> to vector<256xi32>
    %65 = vector.shape_cast %64 : vector<256xi32> to vector<1x256xi32>
    %cst_22 = arith.constant 0.000000e+00 : f32
    %66 = vector.broadcast %cst_22 : f32 to vector<1x256xf32>
    %c0_i32_23 = arith.constant 0 : i32
    %67 = vector.broadcast %c0_i32_23 : i32 to vector<1x256xi32>
    %cst_24 = arith.constant 0.000000e+00 : f32
    %68 = vector.broadcast %cst_24 : f32 to vector<1x256xf32>
    %c0_i32_25 = arith.constant 0 : i32
    %69 = vector.broadcast %c0_i32_25 : i32 to vector<1x256xi32>
    %cst_26 = arith.constant 0.000000e+00 : f32
    %70 = vector.broadcast %cst_26 : f32 to vector<1x256xf32>
    %c0_i32_27 = arith.constant 0 : i32
    %71 = vector.broadcast %c0_i32_27 : i32 to vector<1x256xi32>
    %72 = tpu.concatenate %11, %23, %35, %47, %59, %66, %68, %70 in 0 : vector<1x256xf32>, vector<1x256xf32>, vector<1x256xf32>, vector<1x256xf32>, vector<1x256xf32>, vector<1x256xf32>, vector<1x256xf32>, vector<1x256xf32> -> vector<8x256xf32>
    %c0_28 = arith.constant 0 : index
    %c0_29 = arith.constant 0 : index
    %c0_30 = arith.constant 0 : index
    %73 = vector.load %arg3[%c0_28, %c0_29, %c0_30] : memref<1x8x256xf32, #tpu.memory_space<vmem>>, vector<1x8x256xf32>
    %74 = vector.shape_cast %73 : vector<1x8x256xf32> to vector<8x256xf32>
    %75 = vector.shape_cast %72 : vector<8x256xf32> to vector<1x8x256xf32>
    tpu.vector_store %arg3[%c0_28, %c0_29, %c0_30], %75 {strides = array<i32>} : memref<1x8x256xf32, #tpu.memory_space<vmem>>, vector<1x8x256xf32>,
    %76 = tpu.concatenate %17, %29, %41, %53, %65, %67, %69, %71 in 0 : vector<1x256xi32>, vector<1x256xi32>, vector<1x256xi32>, vector<1x256xi32>, vector<1x256xi32>, vector<1x256xi32>, vector<1x256xi32>, vector<1x256xi32> -> vector<8x256xi32>
    %c0_31 = arith.constant 0 : index
    %c0_32 = arith.constant 0 : index
    %c0_33 = arith.constant 0 : index
    %77 = vector.load %arg4[%c0_31, %c0_32, %c0_33] : memref<1x8x256xi32, #tpu.memory_space<vmem>>, vector<1x8x256xi32>
    %78 = vector.shape_cast %77 : vector<1x8x256xi32> to vector<8x256xi32>
    %79 = vector.shape_cast %76 : vector<8x256xi32> to vector<1x8x256xi32>
    tpu.vector_store %arg4[%c0_31, %c0_32, %c0_33], %79 {strides = array<i32>} : memref<1x8x256xi32, #tpu.memory_space<vmem>>, vector<1x8x256xi32>,
    return
  }
  func.func @transform_0(%arg0: i32, %arg1: i32) -> (i32, i32, i32) {
    %c0_i32 = arith.constant 0 : i32
    %c0_i32_0 = arith.constant 0 : i32
    %c0_i32_1 = arith.constant 0 : i32
    return %arg0, %c0_i32, %c0_i32_0 : i32, i32, i32
  }
  func.func @transform_1(%arg0: i32, %arg1: i32) -> (i32, i32, i32) {
    %c0_i32 = arith.constant 0 : i32
    %c0_i32_0 = arith.constant 0 : i32
    return %arg0, %c0_i32, %arg1 : i32, i32, i32
  }
  func.func @transform_2(%arg0: i32, %arg1: i32) -> (i32, i32, i32) {
    %c0_i32 = arith.constant 0 : i32
    %c0_i32_0 = arith.constant 0 : i32
    return %arg0, %c0_i32, %arg1 : i32, i32, i32
  }
}

module attributes {stable_mosaic.version = 11 : i64} {
  func.func @_mm_bias_kernel(%arg0: i32, %arg1: memref<4x36xbf16, #tpu.memory_space<vmem>>, %arg2: memref<4x1xf32, #tpu.memory_space<vmem>>, %arg3: memref<36x512xbf16, #tpu.memory_space<vmem>>, %arg4: memref<4x512xbf16, #tpu.memory_space<vmem>>) attributes {dimension_semantics = [#tpu.dimension_semantics<parallel>], iteration_bounds = array<i64: 1>, scalar_prefetch = 0 : i64, scratch_operands = 0 : i64, tpu.core_type = #tpu.core_type<tc>, window_params = [{pipeline_mode = #tpu.pipeline_mode<synchronous>, transform_indices = @transform_0, window_bounds = array<i64: 4, 36>}, {pipeline_mode = #tpu.pipeline_mode<synchronous>, transform_indices = @transform_1, window_bounds = array<i64: 4, 1>}, {transform_indices = @transform_2, window_bounds = array<i64: 36, 512>}, {transform_indices = @transform_3, window_bounds = array<i64: 4, 512>}]} {
    %c0 = arith.constant 0 : index
    %c0_0 = arith.constant 0 : index
    %0 = vector.load %arg1[%c0, %c0_0] : memref<4x36xbf16, #tpu.memory_space<vmem>>, vector<4x36xbf16>
    %c0_1 = arith.constant 0 : index
    %c0_2 = arith.constant 0 : index
    %1 = vector.load %arg3[%c0_1, %c0_2] : memref<36x512xbf16, #tpu.memory_space<vmem>>, vector<36x512xbf16>
    %cst = arith.constant dense<0.000000e+00> : vector<4x512xf32>
    %2 = tpu.matmul %0, %1, %cst {dimension_numbers = #tpu.dot_dimension_numbers<[1], [0], [0], [1], [0, 0, 1, 1], [], []>} : vector<4x36xbf16>, vector<36x512xbf16>, vector<4x512xf32> -> vector<4x512xf32>
    %c0_3 = arith.constant 0 : index
    %c0_4 = arith.constant 0 : index
    %3 = vector.load %arg2[%c0_3, %c0_4] : memref<4x1xf32, #tpu.memory_space<vmem>>, vector<4x1xf32>
    %4 = vector.broadcast %3 : vector<4x1xf32> to vector<4x512xf32>
    %5 = arith.addf %2, %4 : vector<4x512xf32>
    %cst_5 = arith.constant 0.000000e+00 : f32
    %6 = vector.broadcast %cst_5 : f32 to vector<4x512xf32>
    %7 = arith.maximumf %5, %6 : vector<4x512xf32>
    %8 = arith.truncf %7 : vector<4x512xf32> to vector<4x512xbf16>
    %c0_6 = arith.constant 0 : index
    %c0_7 = arith.constant 0 : index
    %9 = vector.load %arg4[%c0_6, %c0_7] : memref<4x512xbf16, #tpu.memory_space<vmem>>, vector<4x512xbf16>
    tpu.vector_store %arg4[%c0_6, %c0_7], %8 {strides = array<i32>} : memref<4x512xbf16, #tpu.memory_space<vmem>>, vector<4x512xbf16>,
    return
  }
  func.func @transform_0(%arg0: i32) -> (i32, i32) {
    %c0_i32 = arith.constant 0 : i32
    %c0_i32_0 = arith.constant 0 : i32
    %c0_i32_1 = arith.constant 0 : i32
    return %c0_i32, %c0_i32_0 : i32, i32
  }
  func.func @transform_1(%arg0: i32) -> (i32, i32) {
    %c0_i32 = arith.constant 0 : i32
    %c0_i32_0 = arith.constant 0 : i32
    %c0_i32_1 = arith.constant 0 : i32
    return %c0_i32, %c0_i32_0 : i32, i32
  }
  func.func @transform_2(%arg0: i32) -> (i32, i32) {
    %c0_i32 = arith.constant 0 : i32
    %c0_i32_0 = arith.constant 0 : i32
    return %c0_i32, %arg0 : i32, i32
  }
  func.func @transform_3(%arg0: i32) -> (i32, i32) {
    %c0_i32 = arith.constant 0 : i32
    %c0_i32_0 = arith.constant 0 : i32
    return %c0_i32, %arg0 : i32, i32
  }
}

module attributes {stable_mosaic.version = 11 : i64} {
  func.func @_mm_bias_kernel(%arg0: i32, %arg1: memref<4x36xbf16, #tpu.memory_space<vmem>>, %arg2: memref<4x1xf32, #tpu.memory_space<vmem>>, %arg3: memref<36x512xbf16, #tpu.memory_space<vmem>>, %arg4: memref<4x512xf32, #tpu.memory_space<vmem>>) attributes {dimension_semantics = [#tpu.dimension_semantics<parallel>], iteration_bounds = array<i64: 1>, scalar_prefetch = 0 : i64, scratch_operands = 0 : i64, tpu.core_type = #tpu.core_type<tc>, window_params = [{pipeline_mode = #tpu.pipeline_mode<synchronous>, transform_indices = @transform_0, window_bounds = array<i64: 4, 36>}, {pipeline_mode = #tpu.pipeline_mode<synchronous>, transform_indices = @transform_1, window_bounds = array<i64: 4, 1>}, {transform_indices = @transform_2, window_bounds = array<i64: 36, 512>}, {transform_indices = @transform_3, window_bounds = array<i64: 4, 512>}]} {
    %c0 = arith.constant 0 : index
    %c0_0 = arith.constant 0 : index
    %0 = vector.load %arg1[%c0, %c0_0] : memref<4x36xbf16, #tpu.memory_space<vmem>>, vector<4x36xbf16>
    %c0_1 = arith.constant 0 : index
    %c0_2 = arith.constant 0 : index
    %1 = vector.load %arg3[%c0_1, %c0_2] : memref<36x512xbf16, #tpu.memory_space<vmem>>, vector<36x512xbf16>
    %cst = arith.constant dense<0.000000e+00> : vector<4x512xf32>
    %2 = tpu.matmul %0, %1, %cst {dimension_numbers = #tpu.dot_dimension_numbers<[1], [0], [0], [1], [0, 0, 1, 1], [], []>} : vector<4x36xbf16>, vector<36x512xbf16>, vector<4x512xf32> -> vector<4x512xf32>
    %c0_3 = arith.constant 0 : index
    %c0_4 = arith.constant 0 : index
    %3 = vector.load %arg2[%c0_3, %c0_4] : memref<4x1xf32, #tpu.memory_space<vmem>>, vector<4x1xf32>
    %4 = vector.broadcast %3 : vector<4x1xf32> to vector<4x512xf32>
    %5 = arith.addf %2, %4 : vector<4x512xf32>
    %c0_5 = arith.constant 0 : index
    %c0_6 = arith.constant 0 : index
    %6 = vector.load %arg4[%c0_5, %c0_6] : memref<4x512xf32, #tpu.memory_space<vmem>>, vector<4x512xf32>
    tpu.vector_store %arg4[%c0_5, %c0_6], %5 {strides = array<i32>} : memref<4x512xf32, #tpu.memory_space<vmem>>, vector<4x512xf32>,
    return
  }
  func.func @transform_0(%arg0: i32) -> (i32, i32) {
    %c0_i32 = arith.constant 0 : i32
    %c0_i32_0 = arith.constant 0 : i32
    %c0_i32_1 = arith.constant 0 : i32
    return %c0_i32, %c0_i32_0 : i32, i32
  }
  func.func @transform_1(%arg0: i32) -> (i32, i32) {
    %c0_i32 = arith.constant 0 : i32
    %c0_i32_0 = arith.constant 0 : i32
    %c0_i32_1 = arith.constant 0 : i32
    return %c0_i32, %c0_i32_0 : i32, i32
  }
  func.func @transform_2(%arg0: i32) -> (i32, i32) {
    %c0_i32 = arith.constant 0 : i32
    %c0_i32_0 = arith.constant 0 : i32
    return %c0_i32, %arg0 : i32, i32
  }
  func.func @transform_3(%arg0: i32) -> (i32, i32) {
    %c0_i32 = arith.constant 0 : i32
    %c0_i32_0 = arith.constant 0 : i32
    return %c0_i32, %arg0 : i32, i32
  }
}

module attributes {stable_mosaic.version = 11 : i64} {
  func.func @_texture_output_kernel(%arg0: i32, %arg1: memref<1x36x256xf32, #tpu.memory_space<vmem>>, %arg2: memref<1x8x256xi32, #tpu.memory_space<vmem>>, %arg3: memref<1x8x256xf32, #tpu.memory_space<vmem>>, %arg4: memref<1x4x256xf32, #tpu.memory_space<vmem>>, %arg5: memref<1x4x256xf32, #tpu.memory_space<vmem>>, %arg6: memref<9x256xf32, #tpu.memory_space<vmem>>, %arg7: memref<4x16xf32, #tpu.memory_space<vmem>>, %arg8: memref<4x1xf32, #tpu.memory_space<vmem>>, %arg9: memref<4x12xf32, #tpu.memory_space<vmem>>, %arg10: memref<4x1xf32, #tpu.memory_space<vmem>>, %arg11: memref<1x4x256xf32, #tpu.memory_space<vmem>>) attributes {dimension_semantics = [#tpu.dimension_semantics<parallel>], iteration_bounds = array<i64: 2>, scalar_prefetch = 0 : i64, scratch_operands = 0 : i64, tpu.core_type = #tpu.core_type<tc>, window_params = [{transform_indices = @transform_0, window_bounds = array<i64: 1, 36, 256>}, {transform_indices = @transform_1, window_bounds = array<i64: 1, 8, 256>}, {transform_indices = @transform_2, window_bounds = array<i64: 1, 8, 256>}, {transform_indices = @transform_3, window_bounds = array<i64: 1, 4, 256>}, {transform_indices = @transform_4, window_bounds = array<i64: 1, 4, 256>}, {pipeline_mode = #tpu.pipeline_mode<synchronous>, transform_indices = @transform_5, window_bounds = array<i64: 9, 256>}, {pipeline_mode = #tpu.pipeline_mode<synchronous>, transform_indices = @transform_6, window_bounds = array<i64: 4, 16>}, {pipeline_mode = #tpu.pipeline_mode<synchronous>, transform_indices = @transform_7, window_bounds = array<i64: 4, 1>}, {pipeline_mode = #tpu.pipeline_mode<synchronous>, transform_indices = @transform_8, window_bounds = array<i64: 4, 12>}, {pipeline_mode = #tpu.pipeline_mode<synchronous>, transform_indices = @transform_9, window_bounds = array<i64: 4, 1>}, {transform_indices = @transform_10, window_bounds = array<i64: 1, 4, 256>}]} {
    %c0 = arith.constant 0 : index
    %c0_0 = arith.constant 0 : index
    %c0_1 = arith.constant 0 : index
    %0 = vector.load %arg1[%c0, %c0_0, %c0_1] : memref<1x36x256xf32, #tpu.memory_space<vmem>>, vector<1x36x256xf32>
    %1 = vector.shape_cast %0 : vector<1x36x256xf32> to vector<36x256xf32>
    %2 = arith.truncf %1 : vector<36x256xf32> to vector<36x256xbf16>
    %3 = tpu.iota {dimensions = array<i32: 0>} : vector<256x256xi32>
    %cst = arith.constant 0.000000e+00 : f32
    %4 = vector.broadcast %cst : f32 to vector<4x256xf32>
    %c0_2 = arith.constant 0 : index
    %c1 = arith.constant 1 : index
    %c0_3 = arith.constant 0 : index
    %5 = vector.load %arg2[%c0_2, %c1, %c0_3] : memref<1x8x256xi32, #tpu.memory_space<vmem>>, vector<1x1x256xi32>
    %6 = vector.shape_cast %5 : vector<1x1x256xi32> to vector<1x256xi32>
    %7 = vector.broadcast %6 : vector<1x256xi32> to vector<256x256xi32>
    %8 = arith.cmpi eq, %3, %7 : vector<256x256xi32>
    %9 = arith.extui %8 : vector<256x256xi1> to vector<256x256xi32>
    %10 = arith.sitofp %9 : vector<256x256xi32> to vector<256x256xf32>
    %11 = arith.truncf %10 : vector<256x256xf32> to vector<256x256xbf16>
    %cst_4 = arith.constant dense<0.000000e+00> : vector<36x256xf32>
    %12 = tpu.matmul %2, %11, %cst_4 {dimension_numbers = #tpu.dot_dimension_numbers<[1], [0], [0], [1], [0, 0, 1, 1], [], []>} : vector<36x256xbf16>, vector<256x256xbf16>, vector<36x256xf32> -> vector<36x256xf32>
    %cst_5 = arith.constant 0.000000e+00 : f32
    %13 = vector.broadcast %cst_5 : f32 to vector<4x256xf32>
    %14 = vector.extract_strided_slice %12 {offsets = [0, 0], sizes = [4, 256], strides = [1, 1]} : vector<36x256xf32> to vector<4x256xf32>
    %c0_6 = arith.constant 0 : index
    %c0_7 = arith.constant 0 : index
    %15 = vector.load %arg6[%c0_6, %c0_7] : memref<9x256xf32, #tpu.memory_space<vmem>>, vector<1x256xf32>
    %16 = vector.broadcast %15 : vector<1x256xf32> to vector<4x256xf32>
    %17 = arith.mulf %14, %16 : vector<4x256xf32>
    %c239_i32 = arith.constant 239 : i32
    %18 = tpu.dynamic_rotate %17 by %c239_i32 dim 1 : vector<4x256xf32>, i32 -> vector<4x256xf32>
    %19 = arith.addf %13, %18 : vector<4x256xf32>
    %20 = vector.extract_strided_slice %12 {offsets = [4, 0], sizes = [4, 256], strides = [1, 1]} : vector<36x256xf32> to vector<4x256xf32>
    %c1_8 = arith.constant 1 : index
    %c0_9 = arith.constant 0 : index
    %21 = vector.load %arg6[%c1_8, %c0_9] : memref<9x256xf32, #tpu.memory_space<vmem>>, vector<1x256xf32>
    %22 = vector.broadcast %21 : vector<1x256xf32> to vector<4x256xf32>
    %23 = arith.mulf %20, %22 : vector<4x256xf32>
    %c240_i32 = arith.constant 240 : i32
    %24 = tpu.dynamic_rotate %23 by %c240_i32 dim 1 : vector<4x256xf32>, i32 -> vector<4x256xf32>
    %25 = arith.addf %19, %24 : vector<4x256xf32>
    %26 = vector.extract_strided_slice %12 {offsets = [8, 0], sizes = [4, 256], strides = [1, 1]} : vector<36x256xf32> to vector<4x256xf32>
    %c2 = arith.constant 2 : index
    %c0_10 = arith.constant 0 : index
    %27 = vector.load %arg6[%c2, %c0_10] : memref<9x256xf32, #tpu.memory_space<vmem>>, vector<1x256xf32>
    %28 = vector.broadcast %27 : vector<1x256xf32> to vector<4x256xf32>
    %29 = arith.mulf %26, %28 : vector<4x256xf32>
    %c241_i32 = arith.constant 241 : i32
    %30 = tpu.dynamic_rotate %29 by %c241_i32 dim 1 : vector<4x256xf32>, i32 -> vector<4x256xf32>
    %31 = arith.addf %25, %30 : vector<4x256xf32>
    %32 = vector.extract_strided_slice %12 {offsets = [12, 0], sizes = [4, 256], strides = [1, 1]} : vector<36x256xf32> to vector<4x256xf32>
    %c3 = arith.constant 3 : index
    %c0_11 = arith.constant 0 : index
    %33 = vector.load %arg6[%c3, %c0_11] : memref<9x256xf32, #tpu.memory_space<vmem>>, vector<1x256xf32>
    %34 = vector.broadcast %33 : vector<1x256xf32> to vector<4x256xf32>
    %35 = arith.mulf %32, %34 : vector<4x256xf32>
    %c255_i32 = arith.constant 255 : i32
    %36 = tpu.dynamic_rotate %35 by %c255_i32 dim 1 : vector<4x256xf32>, i32 -> vector<4x256xf32>
    %37 = arith.addf %31, %36 : vector<4x256xf32>
    %38 = vector.extract_strided_slice %12 {offsets = [16, 0], sizes = [4, 256], strides = [1, 1]} : vector<36x256xf32> to vector<4x256xf32>
    %39 = arith.addf %37, %38 : vector<4x256xf32>
    %40 = vector.extract_strided_slice %12 {offsets = [20, 0], sizes = [4, 256], strides = [1, 1]} : vector<36x256xf32> to vector<4x256xf32>
    %c5 = arith.constant 5 : index
    %c0_12 = arith.constant 0 : index
    %41 = vector.load %arg6[%c5, %c0_12] : memref<9x256xf32, #tpu.memory_space<vmem>>, vector<1x256xf32>
    %42 = vector.broadcast %41 : vector<1x256xf32> to vector<4x256xf32>
    %43 = arith.mulf %40, %42 : vector<4x256xf32>
    %c1_i32 = arith.constant 1 : i32
    %44 = tpu.dynamic_rotate %43 by %c1_i32 dim 1 : vector<4x256xf32>, i32 -> vector<4x256xf32>
    %45 = arith.addf %39, %44 : vector<4x256xf32>
    %46 = vector.extract_strided_slice %12 {offsets = [24, 0], sizes = [4, 256], strides = [1, 1]} : vector<36x256xf32> to vector<4x256xf32>
    %c6 = arith.constant 6 : index
    %c0_13 = arith.constant 0 : index
    %47 = vector.load %arg6[%c6, %c0_13] : memref<9x256xf32, #tpu.memory_space<vmem>>, vector<1x256xf32>
    %48 = vector.broadcast %47 : vector<1x256xf32> to vector<4x256xf32>
    %49 = arith.mulf %46, %48 : vector<4x256xf32>
    %c15_i32 = arith.constant 15 : i32
    %50 = tpu.dynamic_rotate %49 by %c15_i32 dim 1 : vector<4x256xf32>, i32 -> vector<4x256xf32>
    %51 = arith.addf %45, %50 : vector<4x256xf32>
    %52 = vector.extract_strided_slice %12 {offsets = [28, 0], sizes = [4, 256], strides = [1, 1]} : vector<36x256xf32> to vector<4x256xf32>
    %c7 = arith.constant 7 : index
    %c0_14 = arith.constant 0 : index
    %53 = vector.load %arg6[%c7, %c0_14] : memref<9x256xf32, #tpu.memory_space<vmem>>, vector<1x256xf32>
    %54 = vector.broadcast %53 : vector<1x256xf32> to vector<4x256xf32>
    %55 = arith.mulf %52, %54 : vector<4x256xf32>
    %c16_i32 = arith.constant 16 : i32
    %56 = tpu.dynamic_rotate %55 by %c16_i32 dim 1 : vector<4x256xf32>, i32 -> vector<4x256xf32>
    %57 = arith.addf %51, %56 : vector<4x256xf32>
    %58 = vector.extract_strided_slice %12 {offsets = [32, 0], sizes = [4, 256], strides = [1, 1]} : vector<36x256xf32> to vector<4x256xf32>
    %c8 = arith.constant 8 : index
    %c0_15 = arith.constant 0 : index
    %59 = vector.load %arg6[%c8, %c0_15] : memref<9x256xf32, #tpu.memory_space<vmem>>, vector<1x256xf32>
    %60 = vector.broadcast %59 : vector<1x256xf32> to vector<4x256xf32>
    %61 = arith.mulf %58, %60 : vector<4x256xf32>
    %c17_i32 = arith.constant 17 : i32
    %62 = tpu.dynamic_rotate %61 by %c17_i32 dim 1 : vector<4x256xf32>, i32 -> vector<4x256xf32>
    %63 = arith.addf %57, %62 : vector<4x256xf32>
    %c0_16 = arith.constant 0 : index
    %c1_17 = arith.constant 1 : index
    %c0_18 = arith.constant 0 : index
    %64 = vector.load %arg3[%c0_16, %c1_17, %c0_18] : memref<1x8x256xf32, #tpu.memory_space<vmem>>, vector<1x1x256xf32>
    %65 = vector.shape_cast %64 : vector<1x1x256xf32> to vector<1x256xf32>
    %66 = vector.broadcast %65 : vector<1x256xf32> to vector<4x256xf32>
    %67 = arith.mulf %63, %66 : vector<4x256xf32>
    %c0_19 = arith.constant 0 : index
    %c0_20 = arith.constant 0 : index
    %68 = vector.load %arg7[%c0_19, %c0_20] : memref<4x16xf32, #tpu.memory_space<vmem>>, vector<4x4xf32>
    %cst_21 = arith.constant dense<0.000000e+00> : vector<4x256xf32>
    %69 = tpu.matmul %68, %67, %cst_21 {dimension_numbers = #tpu.dot_dimension_numbers<[1], [0], [0], [1], [0, 0, 1, 1], [], []>} : vector<4x4xf32>, vector<4x256xf32>, vector<4x256xf32> -> vector<4x256xf32>
    %70 = arith.addf %4, %69 : vector<4x256xf32>
    %c0_22 = arith.constant 0 : index
    %c2_23 = arith.constant 2 : index
    %c0_24 = arith.constant 0 : index
    %71 = vector.load %arg2[%c0_22, %c2_23, %c0_24] : memref<1x8x256xi32, #tpu.memory_space<vmem>>, vector<1x1x256xi32>
    %72 = vector.shape_cast %71 : vector<1x1x256xi32> to vector<1x256xi32>
    %73 = vector.broadcast %72 : vector<1x256xi32> to vector<256x256xi32>
    %74 = arith.cmpi eq, %3, %73 : vector<256x256xi32>
    %75 = arith.extui %74 : vector<256x256xi1> to vector<256x256xi32>
    %76 = arith.sitofp %75 : vector<256x256xi32> to vector<256x256xf32>
    %77 = arith.truncf %76 : vector<256x256xf32> to vector<256x256xbf16>
    %cst_25 = arith.constant dense<0.000000e+00> : vector<36x256xf32>
    %78 = tpu.matmul %2, %77, %cst_25 {dimension_numbers = #tpu.dot_dimension_numbers<[1], [0], [0], [1], [0, 0, 1, 1], [], []>} : vector<36x256xbf16>, vector<256x256xbf16>, vector<36x256xf32> -> vector<36x256xf32>
    %cst_26 = arith.constant 0.000000e+00 : f32
    %79 = vector.broadcast %cst_26 : f32 to vector<4x256xf32>
    %80 = vector.extract_strided_slice %78 {offsets = [0, 0], sizes = [4, 256], strides = [1, 1]} : vector<36x256xf32> to vector<4x256xf32>
    %c0_27 = arith.constant 0 : index
    %c0_28 = arith.constant 0 : index
    %81 = vector.load %arg6[%c0_27, %c0_28] : memref<9x256xf32, #tpu.memory_space<vmem>>, vector<1x256xf32>
    %82 = vector.broadcast %81 : vector<1x256xf32> to vector<4x256xf32>
    %83 = arith.mulf %80, %82 : vector<4x256xf32>
    %c239_i32_29 = arith.constant 239 : i32
    %84 = tpu.dynamic_rotate %83 by %c239_i32_29 dim 1 : vector<4x256xf32>, i32 -> vector<4x256xf32>
    %85 = arith.addf %79, %84 : vector<4x256xf32>
    %86 = vector.extract_strided_slice %78 {offsets = [4, 0], sizes = [4, 256], strides = [1, 1]} : vector<36x256xf32> to vector<4x256xf32>
    %c1_30 = arith.constant 1 : index
    %c0_31 = arith.constant 0 : index
    %87 = vector.load %arg6[%c1_30, %c0_31] : memref<9x256xf32, #tpu.memory_space<vmem>>, vector<1x256xf32>
    %88 = vector.broadcast %87 : vector<1x256xf32> to vector<4x256xf32>
    %89 = arith.mulf %86, %88 : vector<4x256xf32>
    %c240_i32_32 = arith.constant 240 : i32
    %90 = tpu.dynamic_rotate %89 by %c240_i32_32 dim 1 : vector<4x256xf32>, i32 -> vector<4x256xf32>
    %91 = arith.addf %85, %90 : vector<4x256xf32>
    %92 = vector.extract_strided_slice %78 {offsets = [8, 0], sizes = [4, 256], strides = [1, 1]} : vector<36x256xf32> to vector<4x256xf32>
    %c2_33 = arith.constant 2 : index
    %c0_34 = arith.constant 0 : index
    %93 = vector.load %arg6[%c2_33, %c0_34] : memref<9x256xf32, #tpu.memory_space<vmem>>, vector<1x256xf32>
    %94 = vector.broadcast %93 : vector<1x256xf32> to vector<4x256xf32>
    %95 = arith.mulf %92, %94 : vector<4x256xf32>
    %c241_i32_35 = arith.constant 241 : i32
    %96 = tpu.dynamic_rotate %95 by %c241_i32_35 dim 1 : vector<4x256xf32>, i32 -> vector<4x256xf32>
    %97 = arith.addf %91, %96 : vector<4x256xf32>
    %98 = vector.extract_strided_slice %78 {offsets = [12, 0], sizes = [4, 256], strides = [1, 1]} : vector<36x256xf32> to vector<4x256xf32>
    %c3_36 = arith.constant 3 : index
    %c0_37 = arith.constant 0 : index
    %99 = vector.load %arg6[%c3_36, %c0_37] : memref<9x256xf32, #tpu.memory_space<vmem>>, vector<1x256xf32>
    %100 = vector.broadcast %99 : vector<1x256xf32> to vector<4x256xf32>
    %101 = arith.mulf %98, %100 : vector<4x256xf32>
    %c255_i32_38 = arith.constant 255 : i32
    %102 = tpu.dynamic_rotate %101 by %c255_i32_38 dim 1 : vector<4x256xf32>, i32 -> vector<4x256xf32>
    %103 = arith.addf %97, %102 : vector<4x256xf32>
    %104 = vector.extract_strided_slice %78 {offsets = [16, 0], sizes = [4, 256], strides = [1, 1]} : vector<36x256xf32> to vector<4x256xf32>
    %105 = arith.addf %103, %104 : vector<4x256xf32>
    %106 = vector.extract_strided_slice %78 {offsets = [20, 0], sizes = [4, 256], strides = [1, 1]} : vector<36x256xf32> to vector<4x256xf32>
    %c5_39 = arith.constant 5 : index
    %c0_40 = arith.constant 0 : index
    %107 = vector.load %arg6[%c5_39, %c0_40] : memref<9x256xf32, #tpu.memory_space<vmem>>, vector<1x256xf32>
    %108 = vector.broadcast %107 : vector<1x256xf32> to vector<4x256xf32>
    %109 = arith.mulf %106, %108 : vector<4x256xf32>
    %c1_i32_41 = arith.constant 1 : i32
    %110 = tpu.dynamic_rotate %109 by %c1_i32_41 dim 1 : vector<4x256xf32>, i32 -> vector<4x256xf32>
    %111 = arith.addf %105, %110 : vector<4x256xf32>
    %112 = vector.extract_strided_slice %78 {offsets = [24, 0], sizes = [4, 256], strides = [1, 1]} : vector<36x256xf32> to vector<4x256xf32>
    %c6_42 = arith.constant 6 : index
    %c0_43 = arith.constant 0 : index
    %113 = vector.load %arg6[%c6_42, %c0_43] : memref<9x256xf32, #tpu.memory_space<vmem>>, vector<1x256xf32>
    %114 = vector.broadcast %113 : vector<1x256xf32> to vector<4x256xf32>
    %115 = arith.mulf %112, %114 : vector<4x256xf32>
    %c15_i32_44 = arith.constant 15 : i32
    %116 = tpu.dynamic_rotate %115 by %c15_i32_44 dim 1 : vector<4x256xf32>, i32 -> vector<4x256xf32>
    %117 = arith.addf %111, %116 : vector<4x256xf32>
    %118 = vector.extract_strided_slice %78 {offsets = [28, 0], sizes = [4, 256], strides = [1, 1]} : vector<36x256xf32> to vector<4x256xf32>
    %c7_45 = arith.constant 7 : index
    %c0_46 = arith.constant 0 : index
    %119 = vector.load %arg6[%c7_45, %c0_46] : memref<9x256xf32, #tpu.memory_space<vmem>>, vector<1x256xf32>
    %120 = vector.broadcast %119 : vector<1x256xf32> to vector<4x256xf32>
    %121 = arith.mulf %118, %120 : vector<4x256xf32>
    %c16_i32_47 = arith.constant 16 : i32
    %122 = tpu.dynamic_rotate %121 by %c16_i32_47 dim 1 : vector<4x256xf32>, i32 -> vector<4x256xf32>
    %123 = arith.addf %117, %122 : vector<4x256xf32>
    %124 = vector.extract_strided_slice %78 {offsets = [32, 0], sizes = [4, 256], strides = [1, 1]} : vector<36x256xf32> to vector<4x256xf32>
    %c8_48 = arith.constant 8 : index
    %c0_49 = arith.constant 0 : index
    %125 = vector.load %arg6[%c8_48, %c0_49] : memref<9x256xf32, #tpu.memory_space<vmem>>, vector<1x256xf32>
    %126 = vector.broadcast %125 : vector<1x256xf32> to vector<4x256xf32>
    %127 = arith.mulf %124, %126 : vector<4x256xf32>
    %c17_i32_50 = arith.constant 17 : i32
    %128 = tpu.dynamic_rotate %127 by %c17_i32_50 dim 1 : vector<4x256xf32>, i32 -> vector<4x256xf32>
    %129 = arith.addf %123, %128 : vector<4x256xf32>
    %c0_51 = arith.constant 0 : index
    %c2_52 = arith.constant 2 : index
    %c0_53 = arith.constant 0 : index
    %130 = vector.load %arg3[%c0_51, %c2_52, %c0_53] : memref<1x8x256xf32, #tpu.memory_space<vmem>>, vector<1x1x256xf32>
    %131 = vector.shape_cast %130 : vector<1x1x256xf32> to vector<1x256xf32>
    %132 = vector.broadcast %131 : vector<1x256xf32> to vector<4x256xf32>
    %133 = arith.mulf %129, %132 : vector<4x256xf32>
    %c0_54 = arith.constant 0 : index
    %c4 = arith.constant 4 : index
    %134 = vector.load %arg7[%c0_54, %c4] : memref<4x16xf32, #tpu.memory_space<vmem>>, vector<4x4xf32>
    %cst_55 = arith.constant dense<0.000000e+00> : vector<4x256xf32>
    %135 = tpu.matmul %134, %133, %cst_55 {dimension_numbers = #tpu.dot_dimension_numbers<[1], [0], [0], [1], [0, 0, 1, 1], [], []>} : vector<4x4xf32>, vector<4x256xf32>, vector<4x256xf32> -> vector<4x256xf32>
    %136 = arith.addf %70, %135 : vector<4x256xf32>
    %c0_56 = arith.constant 0 : index
    %c3_57 = arith.constant 3 : index
    %c0_58 = arith.constant 0 : index
    %137 = vector.load %arg2[%c0_56, %c3_57, %c0_58] : memref<1x8x256xi32, #tpu.memory_space<vmem>>, vector<1x1x256xi32>
    %138 = vector.shape_cast %137 : vector<1x1x256xi32> to vector<1x256xi32>
    %139 = vector.broadcast %138 : vector<1x256xi32> to vector<256x256xi32>
    %140 = arith.cmpi eq, %3, %139 : vector<256x256xi32>
    %141 = arith.extui %140 : vector<256x256xi1> to vector<256x256xi32>
    %142 = arith.sitofp %141 : vector<256x256xi32> to vector<256x256xf32>
    %143 = arith.truncf %142 : vector<256x256xf32> to vector<256x256xbf16>
    %cst_59 = arith.constant dense<0.000000e+00> : vector<36x256xf32>
    %144 = tpu.matmul %2, %143, %cst_59 {dimension_numbers = #tpu.dot_dimension_numbers<[1], [0], [0], [1], [0, 0, 1, 1], [], []>} : vector<36x256xbf16>, vector<256x256xbf16>, vector<36x256xf32> -> vector<36x256xf32>
    %cst_60 = arith.constant 0.000000e+00 : f32
    %145 = vector.broadcast %cst_60 : f32 to vector<4x256xf32>
    %146 = vector.extract_strided_slice %144 {offsets = [0, 0], sizes = [4, 256], strides = [1, 1]} : vector<36x256xf32> to vector<4x256xf32>
    %c0_61 = arith.constant 0 : index
    %c0_62 = arith.constant 0 : index
    %147 = vector.load %arg6[%c0_61, %c0_62] : memref<9x256xf32, #tpu.memory_space<vmem>>, vector<1x256xf32>
    %148 = vector.broadcast %147 : vector<1x256xf32> to vector<4x256xf32>
    %149 = arith.mulf %146, %148 : vector<4x256xf32>
    %c239_i32_63 = arith.constant 239 : i32
    %150 = tpu.dynamic_rotate %149 by %c239_i32_63 dim 1 : vector<4x256xf32>, i32 -> vector<4x256xf32>
    %151 = arith.addf %145, %150 : vector<4x256xf32>
    %152 = vector.extract_strided_slice %144 {offsets = [4, 0], sizes = [4, 256], strides = [1, 1]} : vector<36x256xf32> to vector<4x256xf32>
    %c1_64 = arith.constant 1 : index
    %c0_65 = arith.constant 0 : index
    %153 = vector.load %arg6[%c1_64, %c0_65] : memref<9x256xf32, #tpu.memory_space<vmem>>, vector<1x256xf32>
    %154 = vector.broadcast %153 : vector<1x256xf32> to vector<4x256xf32>
    %155 = arith.mulf %152, %154 : vector<4x256xf32>
    %c240_i32_66 = arith.constant 240 : i32
    %156 = tpu.dynamic_rotate %155 by %c240_i32_66 dim 1 : vector<4x256xf32>, i32 -> vector<4x256xf32>
    %157 = arith.addf %151, %156 : vector<4x256xf32>
    %158 = vector.extract_strided_slice %144 {offsets = [8, 0], sizes = [4, 256], strides = [1, 1]} : vector<36x256xf32> to vector<4x256xf32>
    %c2_67 = arith.constant 2 : index
    %c0_68 = arith.constant 0 : index
    %159 = vector.load %arg6[%c2_67, %c0_68] : memref<9x256xf32, #tpu.memory_space<vmem>>, vector<1x256xf32>
    %160 = vector.broadcast %159 : vector<1x256xf32> to vector<4x256xf32>
    %161 = arith.mulf %158, %160 : vector<4x256xf32>
    %c241_i32_69 = arith.constant 241 : i32
    %162 = tpu.dynamic_rotate %161 by %c241_i32_69 dim 1 : vector<4x256xf32>, i32 -> vector<4x256xf32>
    %163 = arith.addf %157, %162 : vector<4x256xf32>
    %164 = vector.extract_strided_slice %144 {offsets = [12, 0], sizes = [4, 256], strides = [1, 1]} : vector<36x256xf32> to vector<4x256xf32>
    %c3_70 = arith.constant 3 : index
    %c0_71 = arith.constant 0 : index
    %165 = vector.load %arg6[%c3_70, %c0_71] : memref<9x256xf32, #tpu.memory_space<vmem>>, vector<1x256xf32>
    %166 = vector.broadcast %165 : vector<1x256xf32> to vector<4x256xf32>
    %167 = arith.mulf %164, %166 : vector<4x256xf32>
    %c255_i32_72 = arith.constant 255 : i32
    %168 = tpu.dynamic_rotate %167 by %c255_i32_72 dim 1 : vector<4x256xf32>, i32 -> vector<4x256xf32>
    %169 = arith.addf %163, %168 : vector<4x256xf32>
    %170 = vector.extract_strided_slice %144 {offsets = [16, 0], sizes = [4, 256], strides = [1, 1]} : vector<36x256xf32> to vector<4x256xf32>
    %171 = arith.addf %169, %170 : vector<4x256xf32>
    %172 = vector.extract_strided_slice %144 {offsets = [20, 0], sizes = [4, 256], strides = [1, 1]} : vector<36x256xf32> to vector<4x256xf32>
    %c5_73 = arith.constant 5 : index
    %c0_74 = arith.constant 0 : index
    %173 = vector.load %arg6[%c5_73, %c0_74] : memref<9x256xf32, #tpu.memory_space<vmem>>, vector<1x256xf32>
    %174 = vector.broadcast %173 : vector<1x256xf32> to vector<4x256xf32>
    %175 = arith.mulf %172, %174 : vector<4x256xf32>
    %c1_i32_75 = arith.constant 1 : i32
    %176 = tpu.dynamic_rotate %175 by %c1_i32_75 dim 1 : vector<4x256xf32>, i32 -> vector<4x256xf32>
    %177 = arith.addf %171, %176 : vector<4x256xf32>
    %178 = vector.extract_strided_slice %144 {offsets = [24, 0], sizes = [4, 256], strides = [1, 1]} : vector<36x256xf32> to vector<4x256xf32>
    %c6_76 = arith.constant 6 : index
    %c0_77 = arith.constant 0 : index
    %179 = vector.load %arg6[%c6_76, %c0_77] : memref<9x256xf32, #tpu.memory_space<vmem>>, vector<1x256xf32>
    %180 = vector.broadcast %179 : vector<1x256xf32> to vector<4x256xf32>
    %181 = arith.mulf %178, %180 : vector<4x256xf32>
    %c15_i32_78 = arith.constant 15 : i32
    %182 = tpu.dynamic_rotate %181 by %c15_i32_78 dim 1 : vector<4x256xf32>, i32 -> vector<4x256xf32>
    %183 = arith.addf %177, %182 : vector<4x256xf32>
    %184 = vector.extract_strided_slice %144 {offsets = [28, 0], sizes = [4, 256], strides = [1, 1]} : vector<36x256xf32> to vector<4x256xf32>
    %c7_79 = arith.constant 7 : index
    %c0_80 = arith.constant 0 : index
    %185 = vector.load %arg6[%c7_79, %c0_80] : memref<9x256xf32, #tpu.memory_space<vmem>>, vector<1x256xf32>
    %186 = vector.broadcast %185 : vector<1x256xf32> to vector<4x256xf32>
    %187 = arith.mulf %184, %186 : vector<4x256xf32>
    %c16_i32_81 = arith.constant 16 : i32
    %188 = tpu.dynamic_rotate %187 by %c16_i32_81 dim 1 : vector<4x256xf32>, i32 -> vector<4x256xf32>
    %189 = arith.addf %183, %188 : vector<4x256xf32>
    %190 = vector.extract_strided_slice %144 {offsets = [32, 0], sizes = [4, 256], strides = [1, 1]} : vector<36x256xf32> to vector<4x256xf32>
    %c8_82 = arith.constant 8 : index
    %c0_83 = arith.constant 0 : index
    %191 = vector.load %arg6[%c8_82, %c0_83] : memref<9x256xf32, #tpu.memory_space<vmem>>, vector<1x256xf32>
    %192 = vector.broadcast %191 : vector<1x256xf32> to vector<4x256xf32>
    %193 = arith.mulf %190, %192 : vector<4x256xf32>
    %c17_i32_84 = arith.constant 17 : i32
    %194 = tpu.dynamic_rotate %193 by %c17_i32_84 dim 1 : vector<4x256xf32>, i32 -> vector<4x256xf32>
    %195 = arith.addf %189, %194 : vector<4x256xf32>
    %c0_85 = arith.constant 0 : index
    %c3_86 = arith.constant 3 : index
    %c0_87 = arith.constant 0 : index
    %196 = vector.load %arg3[%c0_85, %c3_86, %c0_87] : memref<1x8x256xf32, #tpu.memory_space<vmem>>, vector<1x1x256xf32>
    %197 = vector.shape_cast %196 : vector<1x1x256xf32> to vector<1x256xf32>
    %198 = vector.broadcast %197 : vector<1x256xf32> to vector<4x256xf32>
    %199 = arith.mulf %195, %198 : vector<4x256xf32>
    %c0_88 = arith.constant 0 : index
    %c8_89 = arith.constant 8 : index
    %200 = vector.load %arg7[%c0_88, %c8_89] : memref<4x16xf32, #tpu.memory_space<vmem>>, vector<4x4xf32>
    %cst_90 = arith.constant dense<0.000000e+00> : vector<4x256xf32>
    %201 = tpu.matmul %200, %199, %cst_90 {dimension_numbers = #tpu.dot_dimension_numbers<[1], [0], [0], [1], [0, 0, 1, 1], [], []>} : vector<4x4xf32>, vector<4x256xf32>, vector<4x256xf32> -> vector<4x256xf32>
    %202 = arith.addf %136, %201 : vector<4x256xf32>
    %c0_91 = arith.constant 0 : index
    %c4_92 = arith.constant 4 : index
    %c0_93 = arith.constant 0 : index
    %203 = vector.load %arg2[%c0_91, %c4_92, %c0_93] : memref<1x8x256xi32, #tpu.memory_space<vmem>>, vector<1x1x256xi32>
    %204 = vector.shape_cast %203 : vector<1x1x256xi32> to vector<1x256xi32>
    %205 = vector.broadcast %204 : vector<1x256xi32> to vector<256x256xi32>
    %206 = arith.cmpi eq, %3, %205 : vector<256x256xi32>
    %207 = arith.extui %206 : vector<256x256xi1> to vector<256x256xi32>
    %208 = arith.sitofp %207 : vector<256x256xi32> to vector<256x256xf32>
    %209 = arith.truncf %208 : vector<256x256xf32> to vector<256x256xbf16>
    %cst_94 = arith.constant dense<0.000000e+00> : vector<36x256xf32>
    %210 = tpu.matmul %2, %209, %cst_94 {dimension_numbers = #tpu.dot_dimension_numbers<[1], [0], [0], [1], [0, 0, 1, 1], [], []>} : vector<36x256xbf16>, vector<256x256xbf16>, vector<36x256xf32> -> vector<36x256xf32>
    %cst_95 = arith.constant 0.000000e+00 : f32
    %211 = vector.broadcast %cst_95 : f32 to vector<4x256xf32>
    %212 = vector.extract_strided_slice %210 {offsets = [0, 0], sizes = [4, 256], strides = [1, 1]} : vector<36x256xf32> to vector<4x256xf32>
    %c0_96 = arith.constant 0 : index
    %c0_97 = arith.constant 0 : index
    %213 = vector.load %arg6[%c0_96, %c0_97] : memref<9x256xf32, #tpu.memory_space<vmem>>, vector<1x256xf32>
    %214 = vector.broadcast %213 : vector<1x256xf32> to vector<4x256xf32>
    %215 = arith.mulf %212, %214 : vector<4x256xf32>
    %c239_i32_98 = arith.constant 239 : i32
    %216 = tpu.dynamic_rotate %215 by %c239_i32_98 dim 1 : vector<4x256xf32>, i32 -> vector<4x256xf32>
    %217 = arith.addf %211, %216 : vector<4x256xf32>
    %218 = vector.extract_strided_slice %210 {offsets = [4, 0], sizes = [4, 256], strides = [1, 1]} : vector<36x256xf32> to vector<4x256xf32>
    %c1_99 = arith.constant 1 : index
    %c0_100 = arith.constant 0 : index
    %219 = vector.load %arg6[%c1_99, %c0_100] : memref<9x256xf32, #tpu.memory_space<vmem>>, vector<1x256xf32>
    %220 = vector.broadcast %219 : vector<1x256xf32> to vector<4x256xf32>
    %221 = arith.mulf %218, %220 : vector<4x256xf32>
    %c240_i32_101 = arith.constant 240 : i32
    %222 = tpu.dynamic_rotate %221 by %c240_i32_101 dim 1 : vector<4x256xf32>, i32 -> vector<4x256xf32>
    %223 = arith.addf %217, %222 : vector<4x256xf32>
    %224 = vector.extract_strided_slice %210 {offsets = [8, 0], sizes = [4, 256], strides = [1, 1]} : vector<36x256xf32> to vector<4x256xf32>
    %c2_102 = arith.constant 2 : index
    %c0_103 = arith.constant 0 : index
    %225 = vector.load %arg6[%c2_102, %c0_103] : memref<9x256xf32, #tpu.memory_space<vmem>>, vector<1x256xf32>
    %226 = vector.broadcast %225 : vector<1x256xf32> to vector<4x256xf32>
    %227 = arith.mulf %224, %226 : vector<4x256xf32>
    %c241_i32_104 = arith.constant 241 : i32
    %228 = tpu.dynamic_rotate %227 by %c241_i32_104 dim 1 : vector<4x256xf32>, i32 -> vector<4x256xf32>
    %229 = arith.addf %223, %228 : vector<4x256xf32>
    %230 = vector.extract_strided_slice %210 {offsets = [12, 0], sizes = [4, 256], strides = [1, 1]} : vector<36x256xf32> to vector<4x256xf32>
    %c3_105 = arith.constant 3 : index
    %c0_106 = arith.constant 0 : index
    %231 = vector.load %arg6[%c3_105, %c0_106] : memref<9x256xf32, #tpu.memory_space<vmem>>, vector<1x256xf32>
    %232 = vector.broadcast %231 : vector<1x256xf32> to vector<4x256xf32>
    %233 = arith.mulf %230, %232 : vector<4x256xf32>
    %c255_i32_107 = arith.constant 255 : i32
    %234 = tpu.dynamic_rotate %233 by %c255_i32_107 dim 1 : vector<4x256xf32>, i32 -> vector<4x256xf32>
    %235 = arith.addf %229, %234 : vector<4x256xf32>
    %236 = vector.extract_strided_slice %210 {offsets = [16, 0], sizes = [4, 256], strides = [1, 1]} : vector<36x256xf32> to vector<4x256xf32>
    %237 = arith.addf %235, %236 : vector<4x256xf32>
    %238 = vector.extract_strided_slice %210 {offsets = [20, 0], sizes = [4, 256], strides = [1, 1]} : vector<36x256xf32> to vector<4x256xf32>
    %c5_108 = arith.constant 5 : index
    %c0_109 = arith.constant 0 : index
    %239 = vector.load %arg6[%c5_108, %c0_109] : memref<9x256xf32, #tpu.memory_space<vmem>>, vector<1x256xf32>
    %240 = vector.broadcast %239 : vector<1x256xf32> to vector<4x256xf32>
    %241 = arith.mulf %238, %240 : vector<4x256xf32>
    %c1_i32_110 = arith.constant 1 : i32
    %242 = tpu.dynamic_rotate %241 by %c1_i32_110 dim 1 : vector<4x256xf32>, i32 -> vector<4x256xf32>
    %243 = arith.addf %237, %242 : vector<4x256xf32>
    %244 = vector.extract_strided_slice %210 {offsets = [24, 0], sizes = [4, 256], strides = [1, 1]} : vector<36x256xf32> to vector<4x256xf32>
    %c6_111 = arith.constant 6 : index
    %c0_112 = arith.constant 0 : index
    %245 = vector.load %arg6[%c6_111, %c0_112] : memref<9x256xf32, #tpu.memory_space<vmem>>, vector<1x256xf32>
    %246 = vector.broadcast %245 : vector<1x256xf32> to vector<4x256xf32>
    %247 = arith.mulf %244, %246 : vector<4x256xf32>
    %c15_i32_113 = arith.constant 15 : i32
    %248 = tpu.dynamic_rotate %247 by %c15_i32_113 dim 1 : vector<4x256xf32>, i32 -> vector<4x256xf32>
    %249 = arith.addf %243, %248 : vector<4x256xf32>
    %250 = vector.extract_strided_slice %210 {offsets = [28, 0], sizes = [4, 256], strides = [1, 1]} : vector<36x256xf32> to vector<4x256xf32>
    %c7_114 = arith.constant 7 : index
    %c0_115 = arith.constant 0 : index
    %251 = vector.load %arg6[%c7_114, %c0_115] : memref<9x256xf32, #tpu.memory_space<vmem>>, vector<1x256xf32>
    %252 = vector.broadcast %251 : vector<1x256xf32> to vector<4x256xf32>
    %253 = arith.mulf %250, %252 : vector<4x256xf32>
    %c16_i32_116 = arith.constant 16 : i32
    %254 = tpu.dynamic_rotate %253 by %c16_i32_116 dim 1 : vector<4x256xf32>, i32 -> vector<4x256xf32>
    %255 = arith.addf %249, %254 : vector<4x256xf32>
    %256 = vector.extract_strided_slice %210 {offsets = [32, 0], sizes = [4, 256], strides = [1, 1]} : vector<36x256xf32> to vector<4x256xf32>
    %c8_117 = arith.constant 8 : index
    %c0_118 = arith.constant 0 : index
    %257 = vector.load %arg6[%c8_117, %c0_118] : memref<9x256xf32, #tpu.memory_space<vmem>>, vector<1x256xf32>
    %258 = vector.broadcast %257 : vector<1x256xf32> to vector<4x256xf32>
    %259 = arith.mulf %256, %258 : vector<4x256xf32>
    %c17_i32_119 = arith.constant 17 : i32
    %260 = tpu.dynamic_rotate %259 by %c17_i32_119 dim 1 : vector<4x256xf32>, i32 -> vector<4x256xf32>
    %261 = arith.addf %255, %260 : vector<4x256xf32>
    %c0_120 = arith.constant 0 : index
    %c4_121 = arith.constant 4 : index
    %c0_122 = arith.constant 0 : index
    %262 = vector.load %arg3[%c0_120, %c4_121, %c0_122] : memref<1x8x256xf32, #tpu.memory_space<vmem>>, vector<1x1x256xf32>
    %263 = vector.shape_cast %262 : vector<1x1x256xf32> to vector<1x256xf32>
    %264 = vector.broadcast %263 : vector<1x256xf32> to vector<4x256xf32>
    %265 = arith.mulf %261, %264 : vector<4x256xf32>
    %c0_123 = arith.constant 0 : index
    %c12 = arith.constant 12 : index
    %266 = vector.load %arg7[%c0_123, %c12] : memref<4x16xf32, #tpu.memory_space<vmem>>, vector<4x4xf32>
    %cst_124 = arith.constant dense<0.000000e+00> : vector<4x256xf32>
    %267 = tpu.matmul %266, %265, %cst_124 {dimension_numbers = #tpu.dot_dimension_numbers<[1], [0], [0], [1], [0, 0, 1, 1], [], []>} : vector<4x4xf32>, vector<4x256xf32>, vector<4x256xf32> -> vector<4x256xf32>
    %268 = arith.addf %202, %267 : vector<4x256xf32>
    %c0_125 = arith.constant 0 : index
    %c0_126 = arith.constant 0 : index
    %269 = vector.load %arg8[%c0_125, %c0_126] : memref<4x1xf32, #tpu.memory_space<vmem>>, vector<4x1xf32>
    %270 = vector.broadcast %269 : vector<4x1xf32> to vector<4x256xf32>
    %271 = arith.addf %268, %270 : vector<4x256xf32>
    %c0_127 = arith.constant 0 : index
    %c0_128 = arith.constant 0 : index
    %272 = vector.load %arg9[%c0_127, %c0_128] : memref<4x12xf32, #tpu.memory_space<vmem>>, vector<4x4xf32>
    %c0_129 = arith.constant 0 : index
    %c0_130 = arith.constant 0 : index
    %c0_131 = arith.constant 0 : index
    %273 = vector.load %arg4[%c0_129, %c0_130, %c0_131] : memref<1x4x256xf32, #tpu.memory_space<vmem>>, vector<1x4x256xf32>
    %274 = vector.shape_cast %273 : vector<1x4x256xf32> to vector<4x256xf32>
    %cst_132 = arith.constant dense<0.000000e+00> : vector<4x256xf32>
    %275 = tpu.matmul %272, %274, %cst_132 {dimension_numbers = #tpu.dot_dimension_numbers<[1], [0], [0], [1], [0, 0, 1, 1], [], []>} : vector<4x4xf32>, vector<4x256xf32>, vector<4x256xf32> -> vector<4x256xf32>
    %c0_133 = arith.constant 0 : index
    %c4_134 = arith.constant 4 : index
    %276 = vector.load %arg9[%c0_133, %c4_134] : memref<4x12xf32, #tpu.memory_space<vmem>>, vector<4x4xf32>
    %c0_135 = arith.constant 0 : index
    %c0_136 = arith.constant 0 : index
    %c0_137 = arith.constant 0 : index
    %277 = vector.load %arg5[%c0_135, %c0_136, %c0_137] : memref<1x4x256xf32, #tpu.memory_space<vmem>>, vector<1x4x256xf32>
    %278 = vector.shape_cast %277 : vector<1x4x256xf32> to vector<4x256xf32>
    %cst_138 = arith.constant dense<0.000000e+00> : vector<4x256xf32>
    %279 = tpu.matmul %276, %278, %cst_138 {dimension_numbers = #tpu.dot_dimension_numbers<[1], [0], [0], [1], [0, 0, 1, 1], [], []>} : vector<4x4xf32>, vector<4x256xf32>, vector<4x256xf32> -> vector<4x256xf32>
    %280 = arith.addf %275, %279 : vector<4x256xf32>
    %c0_139 = arith.constant 0 : index
    %c8_140 = arith.constant 8 : index
    %281 = vector.load %arg9[%c0_139, %c8_140] : memref<4x12xf32, #tpu.memory_space<vmem>>, vector<4x4xf32>
    %cst_141 = arith.constant dense<0.000000e+00> : vector<4x256xf32>
    %282 = tpu.matmul %281, %271, %cst_141 {dimension_numbers = #tpu.dot_dimension_numbers<[1], [0], [0], [1], [0, 0, 1, 1], [], []>} : vector<4x4xf32>, vector<4x256xf32>, vector<4x256xf32> -> vector<4x256xf32>
    %283 = arith.addf %280, %282 : vector<4x256xf32>
    %c0_142 = arith.constant 0 : index
    %c0_143 = arith.constant 0 : index
    %284 = vector.load %arg10[%c0_142, %c0_143] : memref<4x1xf32, #tpu.memory_space<vmem>>, vector<4x1xf32>
    %285 = vector.broadcast %284 : vector<4x1xf32> to vector<4x256xf32>
    %286 = arith.addf %283, %285 : vector<4x256xf32>
    %c0_144 = arith.constant 0 : index
    %c0_145 = arith.constant 0 : index
    %c0_146 = arith.constant 0 : index
    %287 = vector.load %arg11[%c0_144, %c0_145, %c0_146] : memref<1x4x256xf32, #tpu.memory_space<vmem>>, vector<1x4x256xf32>
    %288 = vector.shape_cast %287 : vector<1x4x256xf32> to vector<4x256xf32>
    %289 = vector.shape_cast %286 : vector<4x256xf32> to vector<1x4x256xf32>
    tpu.vector_store %arg11[%c0_144, %c0_145, %c0_146], %289 {strides = array<i32>} : memref<1x4x256xf32, #tpu.memory_space<vmem>>, vector<1x4x256xf32>,
    return
  }
  func.func @transform_0(%arg0: i32) -> (i32, i32, i32) {
    %c0_i32 = arith.constant 0 : i32
    %c0_i32_0 = arith.constant 0 : i32
    %c0_i32_1 = arith.constant 0 : i32
    return %arg0, %c0_i32, %c0_i32_0 : i32, i32, i32
  }
  func.func @transform_1(%arg0: i32) -> (i32, i32, i32) {
    %c0_i32 = arith.constant 0 : i32
    %c0_i32_0 = arith.constant 0 : i32
    %c0_i32_1 = arith.constant 0 : i32
    return %arg0, %c0_i32, %c0_i32_0 : i32, i32, i32
  }
  func.func @transform_2(%arg0: i32) -> (i32, i32, i32) {
    %c0_i32 = arith.constant 0 : i32
    %c0_i32_0 = arith.constant 0 : i32
    %c0_i32_1 = arith.constant 0 : i32
    return %arg0, %c0_i32, %c0_i32_0 : i32, i32, i32
  }
  func.func @transform_3(%arg0: i32) -> (i32, i32, i32) {
    %c0_i32 = arith.constant 0 : i32
    %c0_i32_0 = arith.constant 0 : i32
    %c0_i32_1 = arith.constant 0 : i32
    return %arg0, %c0_i32, %c0_i32_0 : i32, i32, i32
  }
  func.func @transform_4(%arg0: i32) -> (i32, i32, i32) {
    %c0_i32 = arith.constant 0 : i32
    %c0_i32_0 = arith.constant 0 : i32
    %c0_i32_1 = arith.constant 0 : i32
    return %arg0, %c0_i32, %c0_i32_0 : i32, i32, i32
  }
  func.func @transform_5(%arg0: i32) -> (i32, i32) {
    %c0_i32 = arith.constant 0 : i32
    %c0_i32_0 = arith.constant 0 : i32
    %c0_i32_1 = arith.constant 0 : i32
    return %c0_i32, %c0_i32_0 : i32, i32
  }
  func.func @transform_6(%arg0: i32) -> (i32, i32) {
    %c0_i32 = arith.constant 0 : i32
    %c0_i32_0 = arith.constant 0 : i32
    %c0_i32_1 = arith.constant 0 : i32
    return %c0_i32, %c0_i32_0 : i32, i32
  }
  func.func @transform_7(%arg0: i32) -> (i32, i32) {
    %c0_i32 = arith.constant 0 : i32
    %c0_i32_0 = arith.constant 0 : i32
    %c0_i32_1 = arith.constant 0 : i32
    return %c0_i32, %c0_i32_0 : i32, i32
  }
  func.func @transform_8(%arg0: i32) -> (i32, i32) {
    %c0_i32 = arith.constant 0 : i32
    %c0_i32_0 = arith.constant 0 : i32
    %c0_i32_1 = arith.constant 0 : i32
    return %c0_i32, %c0_i32_0 : i32, i32
  }
  func.func @transform_9(%arg0: i32) -> (i32, i32) {
    %c0_i32 = arith.constant 0 : i32
    %c0_i32_0 = arith.constant 0 : i32
    %c0_i32_1 = arith.constant 0 : i32
    return %c0_i32, %c0_i32_0 : i32, i32
  }
  func.func @transform_10(%arg0: i32) -> (i32, i32, i32) {
    %c0_i32 = arith.constant 0 : i32
    %c0_i32_0 = arith.constant 0 : i32
    %c0_i32_1 = arith.constant 0 : i32
    return %arg0, %c0_i32, %c0_i32_0 : i32, i32, i32
  }
}

</mosaic_0001>

<llo_original>
// kernel: transformer_v5_forward.4
$region0: #{transformer_v5_forward.4}
  #allocation0 [shape = 'u32[]', space=smem, size = 0x4, offset = 0x4, fixed_abs, tag = 'smem constant byte address 0x4 - core index']
  #allocation1 [shape = 'u32[72,128]{1,0:T(1,128)}', space=vmem, size = 0x9000, scoped, tag = 'internal scratch']
  %s0 = inlined_call_operand.vmem [shape: bf16[4,36], index: 0, kind: input, shape index: {}]
  %s1 = inlined_call_operand.vmem [shape: f32[4,1], index: 1, kind: input, shape index: {}]
  %s2 = inlined_call_operand.vmem [shape: bf16[36,512], index: 2, kind: input, shape index: {}]
  %s3 = inlined_call_operand.vmem [shape: bf16[4,512], index: 3, kind: output, shape index: {}]
  %s4 = sld [smem:[#allocation0]]
  $region22: #{transformer_v5_forward.4} parent=0
    _
  %s6 = ssub.s32 1, %s4
  %s7 = scalar_select 0, %s6, %s4
  // Predicated region
  $region2: #{transformer_v5_forward.4} parent=0 // pred_check
    _
  $region3: #{transformer_v5_forward.4} parent=0 // pred_check_branch
    %9 = sbr.rel (0) target = $region5
  $region4: #{transformer_v5_forward.4} parent=0 // pred_region
    _
  $region5: #{transformer_v5_forward.4} parent=0 // pred_fallthru
    _
  // Predicated region
  $region6: #{transformer_v5_forward.4} parent=0 // pred_check
    _
  $region7: #{transformer_v5_forward.4} parent=0 // pred_check_branch
    %11 = sbr.rel (0) target = $region9
  $region8: #{transformer_v5_forward.4} parent=0 // pred_region
    _
  $region9: #{transformer_v5_forward.4} parent=0 // pred_fallthru
    _
  // Predicated region
  $region10: #{transformer_v5_forward.4} parent=0 // pred_check
    _
  $region11: #{transformer_v5_forward.4} parent=0 // pred_check_branch
    %13 = sbr.rel (0) target = $region13
  $region12: #{transformer_v5_forward.4} parent=0 // pred_region
    _
  $region13: #{transformer_v5_forward.4} parent=0 // pred_fallthru
    _
  %v15 = vld [vmem:[%s0] sm:$0x3]
  %v16 = vld [vmem:[%s2] sm:$0xff]
  %v17 = vld [vmem:[%s2 + $0x8] sm:$0xff]
  %v18 = vld [vmem:[%s2 + $0x10] sm:$0xff]
  %v19 = vld [vmem:[%s2 + $0x18] sm:$0xff]
  %v20 = vld [vmem:[%s2 + $0x20] sm:$0xff]
  %v21 = vld [vmem:[%s2 + $0x28] sm:$0xff]
  %v22 = vld [vmem:[%s2 + $0x30] sm:$0xff]
  %v23 = vld [vmem:[%s2 + $0x38] sm:$0xff]
  %v24 = vld [vmem:[%s2 + $0x40] sm:$0x33]
  %v25 = vld [vmem:[%s2 + $0x48] sm:$0x33]
  %v26 = vld [vmem:[%s1] sm:$0xf]
  %28 = vset.pattern.permute.xlu0 0
  %29 = vperm.xlu0 %28, %v26
  %v30 = vpop.permute.xlu0 %29
  %v42 = vunpack.c.l.b16 %v16
  %v43 = vunpack.c.h.b16 %v16
  %v44 = vunpack.c.l.b16 %v17
  %v45 = vunpack.c.h.b16 %v17
  %v46 = vunpack.c.l.b16 %v18
  %v47 = vunpack.c.h.b16 %v18
  %v48 = vunpack.c.l.b16 %v19
  %v49 = vunpack.c.h.b16 %v19
  %v50 = vunpack.c.l.b16 %v20
  %v51 = vunpack.c.h.b16 %v20
  %v52 = vunpack.c.l.b16 %v21
  %v53 = vunpack.c.h.b16 %v21
  %v54 = vunpack.c.l.b16 %v22
  %v55 = vunpack.c.h.b16 %v22
  %v56 = vunpack.c.l.b16 %v23
  %v57 = vunpack.c.h.b16 %v23
  %v58 = vunpack.c.l.b16 %v24
  %v59 = vunpack.c.h.b16 %v24
  %v60 = vunpack.c.l.b16 %v25
  %v61 = vunpack.c.h.b16 %v25
  %v62 = vpack.c.b16 %v46, %v42
  %v63 = vpack.c.b16 %v47, %v43
  %v64 = vpack.c.b16 %v48, %v44
  %v65 = vpack.c.b16 %v49, %v45
  %v66 = vpack.c.b16 %v54, %v50
  %v67 = vpack.c.b16 %v55, %v51
  %v68 = vpack.c.b16 %v56, %v52
  %v69 = vpack.c.b16 %v57, %v53
  %v70 = vpack.c.b16 %v58, %v58
  %v71 = vpack.c.b16 %v59, %v59
  %v72 = vpack.c.b16 %v60, %v60
  %v73 = vpack.c.b16 %v61, %v61
  %vm82 = vcmask 293888
  %v84 = vsel %vm82, %v15, 0
  %vm86 = vcmask 1041408
  %v88 = vsel %vm86, %v70, 0
  %v91 = vsel %vm86, %v71, 0
  %v94 = vsel %vm86, %v72, 0
  %v97 = vsel %vm86, %v73, 0
  %99 = vmatpush.bf16.msra.mxu0 0
  %100 = vmatpush.bf16.msra.mxu0 0
  %101 = vmatpush.bf16.msra.mxu0 0
  %102 = vmatpush.bf16.msra.mxu0 0
  %103 = vmatpush.bf16.msra.mxu0 0
  %104 = vmatpush.bf16.msra.mxu0 %v88
  %105 = vmatpush.bf16.msra.mxu0 %v66
  %106 = vmatpush.bf16.msra.mxu0 %v62
  %107 = vmatmul.bf16.gmra.mxu0 %v84
  %v108 = vpop.f32.mrf.mxu0
  %v109 = vadd.f32 %v30, %v108
  %v110 = vpop.f32.mrf.mxu0
  %111 = vdwg.mxu0
  %112 = vmatpush.bf16.msra.mxu0 0
  %113 = vmatpush.bf16.msra.mxu0 0
  %114 = vmatpush.bf16.msra.mxu0 0
  %115 = vmatpush.bf16.msra.mxu0 0
  %116 = vmatpush.bf16.msra.mxu0 0
  %117 = vmatpush.bf16.msra.mxu0 %v91
  %118 = vmatpush.bf16.msra.mxu0 %v67
  %119 = vmatpush.bf16.msra.mxu0 %v63
  %120 = vmatmul.bf16.gmra.mxu0 %v84
  %v121 = vpop.f32.mrf.mxu0
  %v122 = vadd.f32 %v30, %v121
  %v123 = vpop.f32.mrf.mxu0
  %124 = vdwg.mxu0
  %125 = vmatpush.bf16.msra.mxu0 0
  %126 = vmatpush.bf16.msra.mxu0 0
  %127 = vmatpush.bf16.msra.mxu0 0
  %128 = vmatpush.bf16.msra.mxu0 0
  %129 = vmatpush.bf16.msra.mxu0 0
  %130 = vmatpush.bf16.msra.mxu0 %v94
  %131 = vmatpush.bf16.msra.mxu0 %v68
  %132 = vmatpush.bf16.msra.mxu0 %v64
  %133 = vmatmul.bf16.gmra.mxu0 %v84
  %v134 = vpop.f32.mrf.mxu0
  %v135 = vadd.f32 %v30, %v134
  %v136 = vpop.f32.mrf.mxu0
  %137 = vdwg.mxu0
  %138 = vmatpush.bf16.msra.mxu0 0
  %139 = vmatpush.bf16.msra.mxu0 0
  %140 = vmatpush.bf16.msra.mxu0 0
  %141 = vmatpush.bf16.msra.mxu0 0
  %142 = vmatpush.bf16.msra.mxu0 0
  %143 = vmatpush.bf16.msra.mxu0 %v97
  %144 = vmatpush.bf16.msra.mxu0 %v69
  %145 = vmatpush.bf16.msra.mxu0 %v65
  %146 = vmatmul.bf16.gmra.mxu0 %v84
  %v147 = vpop.f32.mrf.mxu0
  %v148 = vadd.f32 %v30, %v147
  %v149 = vpop.f32.mrf.mxu0
  %150 = vdwg.mxu0
  %v151 = vmax.f32 %v109, 0.0
  %v152 = vmax.f32 %v122, 0.0
  %v153 = vmax.f32 %v135, 0.0
  %v154 = vmax.f32 %v148, 0.0
  %v155 = vpack.c.bf16 %v152, %v151
  %v156 = vpack.c.bf16 %v154, %v153
  %v159 = vrot.slane %v155, 2
  %v160 = vrot.slane %v156, 4
  %v161 = vrot.slane %v156, 6
  %v164 = vsel %vm86, %v155, %v159
  %vm165 = vcmask 1045508
  %v168 = vsel %vm165, %v160, %v161
  %vm169 = vcmask 1043456
  %v170 = vsel %vm169, %v164, %v168
  %172 = vst [vmem:[%s3] sm:$0xff] %v170
  // Predicated region
  $region14: #{transformer_v5_forward.4} parent=0 // pred_check
    _
  $region15: #{transformer_v5_forward.4} parent=0 // pred_check_branch
    %174 = sbr.rel (0) target = $region17
  $region16: #{transformer_v5_forward.4} parent=0 // pred_region
    _
  $region17: #{transformer_v5_forward.4} parent=0 // pred_fallthru
    _
  // Predicated region
  $region18: #{transformer_v5_forward.4} parent=0 // pred_check
    _
  $region19: #{transformer_v5_forward.4} parent=0 // pred_check_branch
    %176 = sbr.rel (0) target = $region21
  $region20: #{transformer_v5_forward.4} parent=0 // pred_region
    _
  $region21: #{transformer_v5_forward.4} parent=0 // pred_fallthru
    _

// kernel: transformer_v5_forward.6
$region0: #{transformer_v5_forward.6}
  #allocation0 [shape = 'u32[]', space=smem, size = 0x4, offset = 0x4, fixed_abs, tag = 'smem constant byte address 0x4 - core index']
  #allocation1 [shape = 'u32[72,128]{1,0:T(1,128)}', space=vmem, size = 0x9000, scoped, tag = 'internal scratch']
  #allocation2 [shape = 'f32[36,256]{1,0:T(8,128)}', space=vmem, size = 0xa000, scoped, tag = 'scratch operand']
  %s0 = inlined_call_operand.vmem [shape: f32[2,36,256], index: 0, kind: input, shape index: {}]
  %s1 = inlined_call_operand.vmem [shape: f32[2,8,256], index: 1, kind: output, shape index: {0}]
  %s2 = inlined_call_operand.vmem [shape: s32[2,8,256], index: 2, kind: output, shape index: {1}]
  %3 = xla_tuple %s1, %s2
  %s4 = sld [smem:[#allocation0]]
  $region49: #{transformer_v5_forward.6} parent=0
    _
  %s6 = ssub.s32 1, %s4
  %s7 = scalar_select 0, %s6, %s4
  loop: start=0, step=1, limit=4
  $region2: #{transformer_v5_forward.6} parent=0 // loop_pre_header
    _
  $region3: #{transformer_v5_forward.6} parent=0 // loop_header
    %s9 = sphi 0, %s13
    %p10 = scmp.ge.s32.totalorder %s9, 4
    %s16 = sphi 0, %s28
    %s17 = sphi 0, %s24
    %s18 = sphi 0, %s16
    %s19 = sphi 0, %s17
    %s20 = sphi 0, %s18
    %s21 = sphi 0, %s19
    %s31 = sphi 0, %s33
    %s34 = sphi 0, %s31
    %s35 = sphi 0, %s34
    %s51 = sphi 0, %s35
    %s59 = sphi 0, %s61
    %s62 = sphi 0, %s59
    %s63 = sphi 0, %s62
    %s79 = sphi 0, %s63
    %s87 = sphi 0, %s89
    %s90 = sphi 0, %s87
    %s91 = sphi 0, %s90
    %s107 = sphi 0, %s91
  $region4: #{transformer_v5_forward.6} parent=0 // loop_header_branch
    %12 = sbr.rel (%p10) target = $region8
  $region5: #{transformer_v5_forward.6} parent=0 // loop_body
    %s14 = ssub.s32 %s9, 1
    %s15 = ssub.s32 %s9, 2
    %s22 = sadd.s32 1, %s17
    %p23 = scmp.ge.s32.totalorder %s22, 1
    %s24 = scalar_select %p23, 0, %s22
    %s25 = sadd.s32 1, %s16
    %s26 = scalar_select %p23, %s25, %s16
    %p27 = scmp.ge.s32.totalorder %s26, 2
    %s28 = scalar_select %p27, 0, %s26
    %s29 = ssub.s32 %s16, %s28
    %p30 = scmp.eq.s32.totalorder %s29, 0
    %s32 = sadd.s32 %s31, 1
    %s33 = scalar_select %p30, %s31, %s32
    %p36 = pneg %p30
    %p37 = scmp.eq.s32.totalorder %s9, 1
    %p38 = por %p36, %p37
    %p39 = scmp.ne.s32.totalorder %s31, %s34
    %p40 = scmp.eq.s32.totalorder %s9, 0
    %p41 = por %p39, %p40
    %p42 = scmp.ne.s32.totalorder %s31, %s34
    %p43 = scmp.eq.s32.totalorder %s14, 1
    %p44 = por %p42, %p43
    %p45 = scmp.ne.s32.totalorder %s34, %s35
    %p46 = scmp.eq.s32.totalorder %s14, 0
    %p47 = por %p45, %p46
    %p48 = scmp.ne.s32.totalorder %s34, %s35
    %p49 = scmp.eq.s32.totalorder %s15, 1
    %p50 = por %p48, %p49
    %p52 = scmp.ne.s32.totalorder %s35, %s51
    %p53 = scmp.eq.s32.totalorder %s15, 0
    %p54 = por %p52, %p53
    %s55 = ssub.s32 %s16, %s28
    %s56 = ssub.s32 %s17, %s24
    %s57 = sor.u32 %s55, %s56
    %p58 = scmp.eq.s32.totalorder %s57, 0
    %s60 = sadd.s32 %s59, 1
    %s61 = scalar_select %p58, %s59, %s60
    %p64 = pneg %p58
    %p65 = scmp.eq.s32.totalorder %s9, 1
    %p66 = por %p64, %p65
    %p67 = scmp.ne.s32.totalorder %s59, %s62
    %p68 = scmp.eq.s32.totalorder %s9, 0
    %p69 = por %p67, %p68
    %p70 = scmp.ne.s32.totalorder %s59, %s62
    %p71 = scmp.eq.s32.totalorder %s14, 1
    %p72 = por %p70, %p71
    %p73 = scmp.ne.s32.totalorder %s62, %s63
    %p74 = scmp.eq.s32.totalorder %s14, 0
    %p75 = por %p73, %p74
    %p76 = scmp.ne.s32.totalorder %s62, %s63
    %p77 = scmp.eq.s32.totalorder %s15, 1
    %p78 = por %p76, %p77
    %p80 = scmp.ne.s32.totalorder %s63, %s79
    %p81 = scmp.eq.s32.totalorder %s15, 0
    %p82 = por %p80, %p81
    %s83 = ssub.s32 %s16, %s28
    %s84 = ssub.s32 %s17, %s24
    %s85 = sor.u32 %s83, %s84
    %p86 = scmp.eq.s32.totalorder %s85, 0
    %s88 = sadd.s32 %s87, 1
    %s89 = scalar_select %p86, %s87, %s88
    %p92 = pneg %p86
    %p93 = scmp.eq.s32.totalorder %s9, 1
    %p94 = por %p92, %p93
    %p95 = scmp.ne.s32.totalorder %s87, %s90
    %p96 = scmp.eq.s32.totalorder %s9, 0
    %p97 = por %p95, %p96
    %p98 = scmp.ne.s32.totalorder %s87, %s90
    %p99 = scmp.eq.s32.totalorder %s14, 1
    %p100 = por %p98, %p99
    %p101 = scmp.ne.s32.totalorder %s90, %s91
    %p102 = scmp.eq.s32.totalorder %s14, 0
    %p103 = por %p101, %p102
    %p104 = scmp.ne.s32.totalorder %s90, %s91
    %p105 = scmp.eq.s32.totalorder %s15, 1
    %p106 = por %p104, %p105
    %p108 = scmp.ne.s32.totalorder %s91, %s107
    %p109 = scmp.eq.s32.totalorder %s15, 0
    %p110 = por %p108, %p109
    %p111 = scmp.le.s32.totalorder 1, %s9
    %p112 = scmp.lt.s32.totalorder %s9, 3
    %p113 = pnand %p111, %p112
    %p114 = pneg %p113
    // Predicated region
    $region9: #{transformer_v5_forward.6} parent=5 // pred_check
      _
    $region10: #{transformer_v5_forward.6} parent=5 // pred_check_branch
      %116 = sbr.rel (%p113) target = $region12
    $region11: #{transformer_v5_forward.6} parent=5 // pred_region
      %s117 = ssub.s32 %s9, 1
    $region12: #{transformer_v5_forward.6} parent=5 // pred_fallthru
      _
    %p118 = scmp.lt.s32.totalorder %s9, 2
    // Predicated region
    $region13: #{transformer_v5_forward.6} parent=5 // pred_check
      %p119 = pneg %p118
    $region14: #{transformer_v5_forward.6} parent=5 // pred_check_branch
      %121 = sbr.rel (%p119) target = $region16
    $region15: #{transformer_v5_forward.6} parent=5 // pred_region
      // Predicated region
      $region17: #{transformer_v5_forward.6} parent=15 // pred_check
        %p122 = pneg %p41
      $region18: #{transformer_v5_forward.6} parent=15 // pred_check_branch
        %124 = sbr.rel (%p122) target = $region20
      $region19: #{transformer_v5_forward.6} parent=15 // pred_region
        %p125 = scmp.lt.s32.totalorder %s16, 1
        %s126 = scalar_select %p125, %s16, 1
        %s127 = smul.addr %s126, 10
        %s128 = smul.addr %s127, 8
        %s129 = scalar_lea.vmem %s0, %s128
      $region20: #{transformer_v5_forward.6} parent=15 // pred_fallthru
        _
    $region16: #{transformer_v5_forward.6} parent=5 // pred_fallthru
      _
    %p130 = scmp.le.s32.totalorder 1, %s9
    %p131 = scmp.lt.s32.totalorder %s9, 3
    %p132 = pnand %p130, %p131
    %p133 = pneg %p132
    // Predicated region
    $region21: #{transformer_v5_forward.6} parent=5 // pred_check
      _
    $region22: #{transformer_v5_forward.6} parent=5 // pred_check_branch
      %135 = sbr.rel (%p132) target = $region24
    $region23: #{transformer_v5_forward.6} parent=5 // pred_region
      %s136 = ssub.s32 %s9, 1
      %p137 = scmp.lt.s32.totalorder %s18, 1
      %s138 = scalar_select %p137, %s18, 1
      %s139 = smul.addr %s138, 10
      %s140 = smul.addr %s139, 8
      %s141 = scalar_lea.vmem %s0, %s140
      %p142 = pneg %p47
      %p143 = pneg %p44
      %p144 = pneg %p75
      %p145 = pneg %p72
      %s146 = smul.u32 2, %s19
      %p147 = scmp.lt.s32.totalorder %s18, 1
      %s148 = scalar_select %p147, %s18, 1
      %p149 = scmp.lt.s32.totalorder %s146, 1
      %s150 = scalar_select %p149, %s146, 1
      %s151 = smul.addr %s148, 2
      %s152 = sadd.s32 %s150, %s151
      %s153 = smul.addr %s152, 8
      %s154 = scalar_lea.vmem %s1, %s153
      %p155 = pneg %p103
      %p156 = pneg %p100
      %s157 = smul.u32 2, %s19
      %p158 = scmp.lt.s32.totalorder %s18, 1
      %s159 = scalar_select %p158, %s18, 1
      %p160 = scmp.lt.s32.totalorder %s157, 1
      %s161 = scalar_select %p160, %s157, 1
      %s162 = smul.addr %s159, 2
      %s163 = sadd.s32 %s161, %s162
      %s164 = smul.addr %s163, 8
      %s165 = scalar_lea.vmem %s2, %s164
      %p166 = scmp.lt.s32.totalorder %s18, 1
      %s167 = scalar_select %p166, %s18, 1
      %s168 = smul.addr %s167, 10
      %s169 = smul.addr %s168, 8
      %s170 = scalar_lea.vmem %s0, %s169
      %s171 = smul.u32 2, %s19
      %p172 = scmp.lt.s32.totalorder %s18, 1
      %s173 = scalar_select %p172, %s18, 1
      %p174 = scmp.lt.s32.totalorder %s171, 1
      %s175 = scalar_select %p174, %s171, 1
      %s176 = smul.addr %s173, 2
      %s177 = sadd.s32 %s175, %s176
      %s178 = smul.addr %s177, 8
      %s179 = scalar_lea.vmem %s1, %s178
      %s180 = smul.u32 2, %s19
      %s181 = smul.u32 2, %s19
      %p182 = scmp.lt.s32.totalorder %s18, 1
      %s183 = scalar_select %p182, %s18, 1
      %p184 = scmp.lt.s32.totalorder %s181, 1
      %s185 = scalar_select %p184, %s181, 1
      %s186 = smul.addr %s183, 2
      %s187 = sadd.s32 %s185, %s186
      %s188 = smul.addr %s187, 8
      %s189 = scalar_lea.vmem %s2, %s188
      %s190 = smul.u32 2, %s19
      %p191 = scmp.eq.s32.totalorder %s19, 0
      // Predicated region
      $region25: #{transformer_v5_forward.6} parent=23 // pred_check
        %p192 = pneg %p191
      $region26: #{transformer_v5_forward.6} parent=23 // pred_check_branch
        %194 = sbr.rel (%p192) target = $region28
      $region27: #{transformer_v5_forward.6} parent=23 // pred_region
        %v195 = vld [vmem:[%s170] sm:$0xff]
        %v196 = vld [vmem:[%s170 + $0x8] sm:$0xff]
        %v197 = vld [vmem:[%s170 + $0x10] sm:$0xff]
        %v198 = vld [vmem:[%s170 + $0x18] sm:$0xff]
        %v199 = vld [vmem:[%s170 + $0x20] sm:$0xff]
        %v200 = vld [vmem:[%s170 + $0x28] sm:$0xff]
        %v201 = vld [vmem:[%s170 + $0x30] sm:$0xff]
        %v202 = vld [vmem:[%s170 + $0x38] sm:$0xff]
        %v203 = vld [vmem:[%s170 + $0x40] sm:$0xf]
        %v204 = vld [vmem:[%s170 + $0x48] sm:$0xf]
        %v205 = vmul.f32 %v195, %v195
        %v206 = vmul.f32 %v196, %v196
        %v207 = vmul.f32 %v197, %v197
        %v208 = vmul.f32 %v198, %v198
        %v209 = vmul.f32 %v199, %v199
        %v210 = vmul.f32 %v200, %v200
        %v211 = vmul.f32 %v201, %v201
        %v212 = vmul.f32 %v202, %v202
        %v213 = vmul.f32 %v203, %v203
        %v214 = vmul.f32 %v204, %v204
        %v215 = vadd.f32 %v205, %v207
        %v216 = vadd.f32 %v215, %v209
        %v217 = vadd.f32 %v216, %v211
        %vm218 = vcmask 1043456
        %v219 = vsel %vm218, %v213, 0.0
        %v220 = vadd.f32 %v217, %v219
        %v221 = vrot.slane %v220, 4
        %v222 = vadd.f32 %v220, %v221
        %v223 = vrot.slane %v222, 2
        %v224 = vadd.f32 %v222, %v223
        %v225 = vrot.slane %v224, 1
        %v226 = vadd.f32 %v224, %v225
        %v227 = vadd.f32 %v206, %v208
        %v228 = vadd.f32 %v227, %v210
        %v229 = vadd.f32 %v228, %v212
        %v230 = vsel %vm218, %v214, 0.0
        %v231 = vadd.f32 %v229, %v230
        %v232 = vrot.slane %v231, 4
        %v233 = vadd.f32 %v231, %v232
        %v234 = vrot.slane %v233, 2
        %v235 = vadd.f32 %v233, %v234
        %v236 = vrot.slane %v235, 1
        %v237 = vadd.f32 %v235, %v236
        %v238 = vmax.f32 %v226, 1e-24
        %v239 = vmax.f32 %v237, 1e-24
        %v240 = vrsqrt.pop %v238
        %v241 = vmul.f32 %v240, %v238
        %v242 = vmul.f32 %v241, %v240
        %v243 = vmul.f32 0.5, %v242
        %v244 = vsub.f32 1.5, %v243
        %v245 = vmul.f32 %v240, %v244
        %vm246 = vweird.f32 %v238
        %vm247 = vweird.f32 %v240
        %vm248 = vmor %vm246, %vm247
        %v249 = vsel %vm248, %v240, %v245
        %v250 = vrsqrt.pop %v239
        %v251 = vmul.f32 %v250, %v239
        %v252 = vmul.f32 %v251, %v250
        %v253 = vmul.f32 0.5, %v252
        %v254 = vsub.f32 1.5, %v253
        %v255 = vmul.f32 %v250, %v254
        %vm256 = vweird.f32 %v239
        %vm257 = vweird.f32 %v250
        %vm258 = vmor %vm256, %vm257
        %v259 = vsel %vm258, %v250, %v255
        %v260 = vmul.f32 %v195, %v249
        %v261 = vmul.f32 %v196, %v259
        %v262 = vmul.f32 %v197, %v249
        %v263 = vmul.f32 %v198, %v259
        %v264 = vmul.f32 %v199, %v249
        %v265 = vmul.f32 %v200, %v259
        %v266 = vmul.f32 %v201, %v249
        %v267 = vmul.f32 %v202, %v259
        %v268 = vmul.f32 %v203, %v249
        %v269 = vmul.f32 %v204, %v259
        %270 = vst [vmem:[#allocation2] sm:$0xff] %v260
        %271 = vst [vmem:[#allocation2 + $0x8] sm:$0xff] %v261
        %272 = vst [vmem:[#allocation2 + $0x10] sm:$0xff] %v262
        %273 = vst [vmem:[#allocation2 + $0x18] sm:$0xff] %v263
        %274 = vst [vmem:[#allocation2 + $0x20] sm:$0xff] %v264
        %275 = vst [vmem:[#allocation2 + $0x28] sm:$0xff] %v265
        %276 = vst [vmem:[#allocation2 + $0x30] sm:$0xff] %v266
        %277 = vst [vmem:[#allocation2 + $0x38] sm:$0xff] %v267
        %278 = vst [vmem:[#allocation2 + $0x40] sm:$0xf] %v268
        %279 = vst [vmem:[#allocation2 + $0x48] sm:$0xf] %v269
      $region28: #{transformer_v5_forward.6} parent=23 // pred_fallthru
        _
      %s280 = smul.u32 %s19, 256
      %s281 = sshra.s32 %s280, 7
      %s282 = sand.u32 %s280, 127
      %s283 = smul.addr %s281, 8
      %s284 = scalar_lea.vmem [#allocation2], %s283
      %v285 = vld [vmem:[%s284] sm:$0xff]
      %v286 = vld [vmem:[%s284 + $0x8] sm:$0xff]
      %v287 = vld [vmem:[%s284 + $0x10] sm:$0xff]
      %v288 = vld [vmem:[%s284 + $0x18] sm:$0xff]
      %v289 = vld [vmem:[%s284 + $0x20] sm:$0xff]
      %v290 = vld [vmem:[%s284 + $0x28] sm:$0xff]
      %v291 = vld [vmem:[%s284 + $0x30] sm:$0xff]
      %v292 = vld [vmem:[%s284 + $0x38] sm:$0xff]
      %v293 = vld [vmem:[%s284 + $0x40] sm:$0xf]
      %v294 = vld [vmem:[%s284 + $0x48] sm:$0xf]
      %v295 = vld [vmem:[#allocation2] sm:$0xff]
      %v296 = vld [vmem:[#allocation2 + $0x8] sm:$0xff]
      %v297 = vld [vmem:[#allocation2 + $0x10] sm:$0xff]
      %v298 = vld [vmem:[#allocation2 + $0x18] sm:$0xff]
      %v299 = vld [vmem:[#allocation2 + $0x20] sm:$0xff]
      %v300 = vld [vmem:[#allocation2 + $0x28] sm:$0xff]
      %v301 = vld [vmem:[#allocation2 + $0x30] sm:$0xff]
      %v302 = vld [vmem:[#allocation2 + $0x38] sm:$0xff]
      %v303 = vld [vmem:[#allocation2 + $0x40] sm:$0xf]
      %v304 = vld [vmem:[#allocation2 + $0x48] sm:$0xf]
      %305 = vxpose.xlu0.b32.start [1/16] %v295, 128
      %306 = vxpose.xlu0.b32.cont [2/16] %v297, 128
      %307 = vxpose.xlu0.b32.cont [3/16] %v299, 128
      %308 = vxpose.xlu0.b32.cont [4/16] %v301, 128
      %309 = vxpose.xlu0.b32.cont [5/16] %v303, 128
      %310 = vxpose.xlu0.b32.cont [6/16] 0.0, 128
      %311 = vxpose.xlu0.b32.cont [7/16] 0.0, 128
      %312 = vxpose.xlu0.b32.cont [8/16] 0.0, 128
      %313 = vxpose.xlu0.b32.cont [9/16] 0.0, 128
      %314 = vxpose.xlu0.b32.cont [10/16] 0.0, 128
      %315 = vxpose.xlu0.b32.cont [11/16] 0.0, 128
      %316 = vxpose.xlu0.b32.cont [12/16] 0.0, 128
      %317 = vxpose.xlu0.b32.cont [13/16] 0.0, 128
      %318 = vxpose.xlu0.b32.cont [14/16] 0.0, 128
      %319 = vxpose.xlu0.b32.cont [15/16] 0.0, 128
      %320 = vxpose.xlu0.b32.end [16/16] 0.0, 128
      %v321 = vpop.trf.xlu0
      %v322 = vpop.trf.xlu0
      %v323 = vpop.trf.xlu0
      %v324 = vpop.trf.xlu0
      %v325 = vpop.trf.xlu0
      %v326 = vpop.trf.xlu0
      %v327 = vpop.trf.xlu0
      %v328 = vpop.trf.xlu0
      %v329 = vpop.trf.xlu0
      %v330 = vpop.trf.xlu0
      %v331 = vpop.trf.xlu0
      %v332 = vpop.trf.xlu0
      %v333 = vpop.trf.xlu0
      %v334 = vpop.trf.xlu0
      %v335 = vpop.trf.xlu0
      %v336 = vpop.trf.xlu0
      %337 = vxpose.xlu0.b32.start [1/16] %v296, 128
      %338 = vxpose.xlu0.b32.cont [2/16] %v298, 128
      %339 = vxpose.xlu0.b32.cont [3/16] %v300, 128
      %340 = vxpose.xlu0.b32.cont [4/16] %v302, 128
      %341 = vxpose.xlu0.b32.cont [5/16] %v304, 128
      %342 = vxpose.xlu0.b32.cont [6/16] 0.0, 128
      %343 = vxpose.xlu0.b32.cont [7/16] 0.0, 128
      %344 = vxpose.xlu0.b32.cont [8/16] 0.0, 128
      %345 = vxpose.xlu0.b32.cont [9/16] 0.0, 128
      %346 = vxpose.xlu0.b32.cont [10/16] 0.0, 128
      %347 = vxpose.xlu0.b32.cont [11/16] 0.0, 128
      %348 = vxpose.xlu0.b32.cont [12/16] 0.0, 128
      %349 = vxpose.xlu0.b32.cont [13/16] 0.0, 128
      %350 = vxpose.xlu0.b32.cont [14/16] 0.0, 128
      %351 = vxpose.xlu0.b32.cont [15/16] 0.0, 128
      %352 = vxpose.xlu0.b32.end [16/16] 0.0, 128
      %v353 = vpop.trf.xlu0
      %v354 = vpop.trf.xlu0
      %v355 = vpop.trf.xlu0
      %v356 = vpop.trf.xlu0
      %v357 = vpop.trf.xlu0
      %v358 = vpop.trf.xlu0
      %v359 = vpop.trf.xlu0
      %v360 = vpop.trf.xlu0
      %v361 = vpop.trf.xlu0
      %v362 = vpop.trf.xlu0
      %v363 = vpop.trf.xlu0
      %v364 = vpop.trf.xlu0
      %v365 = vpop.trf.xlu0
      %v366 = vpop.trf.xlu0
      %v367 = vpop.trf.xlu0
      %v368 = vpop.trf.xlu0
      %vm369 = vcmask 293888
      %v371 = vsel %vm369, %v321, 0
      %v374 = vsel %vm369, %v322, 0
      %v377 = vsel %vm369, %v323, 0
      %v380 = vsel %vm369, %v324, 0
      %v383 = vsel %vm369, %v325, 0
      %v386 = vsel %vm369, %v326, 0
      %v389 = vsel %vm369, %v327, 0
      %v392 = vsel %vm369, %v328, 0
      %v395 = vsel %vm369, %v329, 0
      %v398 = vsel %vm369, %v330, 0
      %v401 = vsel %vm369, %v331, 0
      %v404 = vsel %vm369, %v332, 0
      %v407 = vsel %vm369, %v333, 0
      %v410 = vsel %vm369, %v334, 0
      %v413 = vsel %vm369, %v335, 0
      %v416 = vsel %vm369, %v336, 0
      %v419 = vsel %vm369, %v353, 0
      %v422 = vsel %vm369, %v354, 0
      %v425 = vsel %vm369, %v355, 0
      %v428 = vsel %vm369, %v356, 0
      %v431 = vsel %vm369, %v357, 0
      %v434 = vsel %vm369, %v358, 0
      %v437 = vsel %vm369, %v359, 0
      %v440 = vsel %vm369, %v360, 0
      %v443 = vsel %vm369, %v361, 0
      %v446 = vsel %vm369, %v362, 0
      %v449 = vsel %vm369, %v363, 0
      %v452 = vsel %vm369, %v364, 0
      %v455 = vsel %vm369, %v365, 0
      %v458 = vsel %vm369, %v366, 0
      %v461 = vsel %vm369, %v367, 0
      %v464 = vsel %vm369, %v368, 0
      %vm466 = vcmask 1043456
      %v468 = vsel %vm466, %v293, 0
      %v471 = vsel %vm466, %v294, 0
      %473 = vmatpush.msra.mxu0 0.0
      %474 = vmatpush.msra.mxu0 0.0
      %475 = vmatpush.msra.mxu0 0.0
      %476 = vmatpush.msra.mxu0 0.0
      %477 = vmatpush.msra.mxu0 0.0
      %478 = vmatpush.msra.mxu0 0.0
      %479 = vmatpush.msra.mxu0 0.0
      %480 = vmatpush.msra.mxu0 0.0
      %481 = vmatpush.msra.mxu0 0.0
      %482 = vmatpush.msra.mxu0 0.0
      %483 = vmatpush.msra.mxu0 0.0
      %484 = vmatpush.msra.mxu0 %v468
      %485 = vmatpush.msra.mxu0 %v291
      %486 = vmatpush.msra.mxu0 %v289
      %487 = vmatpush.msra.mxu0 %v287
      %488 = vmatpush.msra.mxu0 %v285
      %489 = vmatmul.f32.gmra.mxu0 %v371
      %v490 = vpop.f32.mrf.mxu0
      %v491 = vadd.f32 0.0, %v490
      %492 = vmatmul.f32.gmra.mxu0 %v374
      %v493 = vpop.f32.mrf.mxu0
      %v494 = vadd.f32 0.0, %v493
      %495 = vmatmul.f32.gmra.mxu0 %v377
      %v496 = vpop.f32.mrf.mxu0
      %v497 = vadd.f32 0.0, %v496
      %498 = vmatmul.f32.gmra.mxu0 %v380
      %v499 = vpop.f32.mrf.mxu0
      %v500 = vadd.f32 0.0, %v499
      %501 = vmatmul.f32.gmra.mxu0 %v383
      %v502 = vpop.f32.mrf.mxu0
      %v503 = vadd.f32 0.0, %v502
      %504 = vmatmul.f32.gmra.mxu0 %v386
      %v505 = vpop.f32.mrf.mxu0
      %v506 = vadd.f32 0.0, %v505
      %507 = vmatmul.f32.gmra.mxu0 %v389
      %v508 = vpop.f32.mrf.mxu0
      %v509 = vadd.f32 0.0, %v508
      %510 = vmatmul.f32.gmra.mxu0 %v392
      %v511 = vpop.f32.mrf.mxu0
      %v512 = vadd.f32 0.0, %v511
      %513 = vmatmul.f32.gmra.mxu0 %v395
      %v514 = vpop.f32.mrf.mxu0
      %v515 = vadd.f32 0.0, %v514
      %516 = vmatmul.f32.gmra.mxu0 %v398
      %v517 = vpop.f32.mrf.mxu0
      %v518 = vadd.f32 0.0, %v517
      %519 = vmatmul.f32.gmra.mxu0 %v401
      %v520 = vpop.f32.mrf.mxu0
      %v521 = vadd.f32 0.0, %v520
      %522 = vmatmul.f32.gmra.mxu0 %v404
      %v523 = vpop.f32.mrf.mxu0
      %v524 = vadd.f32 0.0, %v523
      %525 = vmatmul.f32.gmra.mxu0 %v407
      %v526 = vpop.f32.mrf.mxu0
      %v527 = vadd.f32 0.0, %v526
      %528 = vmatmul.f32.gmra.mxu0 %v410
      %v529 = vpop.f32.mrf.mxu0
      %v530 = vadd.f32 0.0, %v529
      %531 = vmatmul.f32.gmra.mxu0 %v413
      %v532 = vpop.f32.mrf.mxu0
      %v533 = vadd.f32 0.0, %v532
      %534 = vmatmul.f32.gmra.mxu0 %v416
      %v535 = vpop.f32.mrf.mxu0
      %v536 = vadd.f32 0.0, %v535
      %537 = vmatmul.f32.gmra.mxu0 %v419
      %v538 = vpop.f32.mrf.mxu0
      %v539 = vadd.f32 0.0, %v538
      %540 = vmatmul.f32.gmra.mxu0 %v422
      %v541 = vpop.f32.mrf.mxu0
      %v542 = vadd.f32 0.0, %v541
      %543 = vmatmul.f32.gmra.mxu0 %v425
      %v544 = vpop.f32.mrf.mxu0
      %v545 = vadd.f32 0.0, %v544
      %546 = vmatmul.f32.gmra.mxu0 %v428
      %v547 = vpop.f32.mrf.mxu0
      %v548 = vadd.f32 0.0, %v547
      %549 = vmatmul.f32.gmra.mxu0 %v431
      %v550 = vpop.f32.mrf.mxu0
      %v551 = vadd.f32 0.0, %v550
      %552 = vmatmul.f32.gmra.mxu0 %v434
      %v553 = vpop.f32.mrf.mxu0
      %v554 = vadd.f32 0.0, %v553
      %555 = vmatmul.f32.gmra.mxu0 %v437
      %v556 = vpop.f32.mrf.mxu0
      %v557 = vadd.f32 0.0, %v556
      %558 = vmatmul.f32.gmra.mxu0 %v440
      %v559 = vpop.f32.mrf.mxu0
      %v560 = vadd.f32 0.0, %v559
      %561 = vmatmul.f32.gmra.mxu0 %v443
      %v562 = vpop.f32.mrf.mxu0
      %v563 = vadd.f32 0.0, %v562
      %564 = vmatmul.f32.gmra.mxu0 %v446
      %v565 = vpop.f32.mrf.mxu0
      %v566 = vadd.f32 0.0, %v565
      %567 = vmatmul.f32.gmra.mxu0 %v449
      %v568 = vpop.f32.mrf.mxu0
      %v569 = vadd.f32 0.0, %v568
      %570 = vmatmul.f32.gmra.mxu0 %v452
      %v571 = vpop.f32.mrf.mxu0
      %v572 = vadd.f32 0.0, %v571
      %573 = vmatmul.f32.gmra.mxu0 %v455
      %v574 = vpop.f32.mrf.mxu0
      %v575 = vadd.f32 0.0, %v574
      %576 = vmatmul.f32.gmra.mxu0 %v458
      %v577 = vpop.f32.mrf.mxu0
      %v578 = vadd.f32 0.0, %v577
      %579 = vmatmul.f32.gmra.mxu0 %v461
      %v580 = vpop.f32.mrf.mxu0
      %v581 = vadd.f32 0.0, %v580
      %582 = vmatmul.f32.gmra.mxu0 %v464
      %v583 = vpop.f32.mrf.mxu0
      %v584 = vadd.f32 0.0, %v583
      %585 = vdwg.mxu0
      %586 = vmatpush.msra.mxu0 0.0
      %587 = vmatpush.msra.mxu0 0.0
      %588 = vmatpush.msra.mxu0 0.0
      %589 = vmatpush.msra.mxu0 0.0
      %590 = vmatpush.msra.mxu0 0.0
      %591 = vmatpush.msra.mxu0 0.0
      %592 = vmatpush.msra.mxu0 0.0
      %593 = vmatpush.msra.mxu0 0.0
      %594 = vmatpush.msra.mxu0 0.0
      %595 = vmatpush.msra.mxu0 0.0
      %596 = vmatpush.msra.mxu0 0.0
      %597 = vmatpush.msra.mxu0 %v471
      %598 = vmatpush.msra.mxu0 %v292
      %599 = vmatpush.msra.mxu0 %v290
      %600 = vmatpush.msra.mxu0 %v288
      %601 = vmatpush.msra.mxu0 %v286
      %602 = vmatmul.f32.gmra.mxu0 %v371
      %v603 = vpop.f32.mrf.mxu0
      %v604 = vadd.f32 0.0, %v603
      %605 = vmatmul.f32.gmra.mxu0 %v374
      %v606 = vpop.f32.mrf.mxu0
      %v607 = vadd.f32 0.0, %v606
      %608 = vmatmul.f32.gmra.mxu0 %v377
      %v609 = vpop.f32.mrf.mxu0
      %v610 = vadd.f32 0.0, %v609
      %611 = vmatmul.f32.gmra.mxu0 %v380
      %v612 = vpop.f32.mrf.mxu0
      %v613 = vadd.f32 0.0, %v612
      %614 = vmatmul.f32.gmra.mxu0 %v383
      %v615 = vpop.f32.mrf.mxu0
      %v616 = vadd.f32 0.0, %v615
      %617 = vmatmul.f32.gmra.mxu0 %v386
      %v618 = vpop.f32.mrf.mxu0
      %v619 = vadd.f32 0.0, %v618
      %620 = vmatmul.f32.gmra.mxu0 %v389
      %v621 = vpop.f32.mrf.mxu0
      %v622 = vadd.f32 0.0, %v621
      %623 = vmatmul.f32.gmra.mxu0 %v392
      %v624 = vpop.f32.mrf.mxu0
      %v625 = vadd.f32 0.0, %v624
      %626 = vmatmul.f32.gmra.mxu0 %v395
      %v627 = vpop.f32.mrf.mxu0
      %v628 = vadd.f32 0.0, %v627
      %629 = vmatmul.f32.gmra.mxu0 %v398
      %v630 = vpop.f32.mrf.mxu0
      %v631 = vadd.f32 0.0, %v630
      %632 = vmatmul.f32.gmra.mxu0 %v401
      %v633 = vpop.f32.mrf.mxu0
      %v634 = vadd.f32 0.0, %v633
      %635 = vmatmul.f32.gmra.mxu0 %v404
      %v636 = vpop.f32.mrf.mxu0
      %v637 = vadd.f32 0.0, %v636
      %638 = vmatmul.f32.gmra.mxu0 %v407
      %v639 = vpop.f32.mrf.mxu0
      %v640 = vadd.f32 0.0, %v639
      %641 = vmatmul.f32.gmra.mxu0 %v410
      %v642 = vpop.f32.mrf.mxu0
      %v643 = vadd.f32 0.0, %v642
      %644 = vmatmul.f32.gmra.mxu0 %v413
      %v645 = vpop.f32.mrf.mxu0
      %v646 = vadd.f32 0.0, %v645
      %647 = vmatmul.f32.gmra.mxu0 %v416
      %v648 = vpop.f32.mrf.mxu0
      %v649 = vadd.f32 0.0, %v648
      %650 = vmatmul.f32.gmra.mxu0 %v419
      %v651 = vpop.f32.mrf.mxu0
      %v652 = vadd.f32 0.0, %v651
      %653 = vmatmul.f32.gmra.mxu0 %v422
      %v654 = vpop.f32.mrf.mxu0
      %v655 = vadd.f32 0.0, %v654
      %656 = vmatmul.f32.gmra.mxu0 %v425
      %v657 = vpop.f32.mrf.mxu0
      %v658 = vadd.f32 0.0, %v657
      %659 = vmatmul.f32.gmra.mxu0 %v428
      %v660 = vpop.f32.mrf.mxu0
      %v661 = vadd.f32 0.0, %v660
      %662 = vmatmul.f32.gmra.mxu0 %v431
      %v663 = vpop.f32.mrf.mxu0
      %v664 = vadd.f32 0.0, %v663
      %665 = vmatmul.f32.gmra.mxu0 %v434
      %v666 = vpop.f32.mrf.mxu0
      %v667 = vadd.f32 0.0, %v666
      %668 = vmatmul.f32.gmra.mxu0 %v437
      %v669 = vpop.f32.mrf.mxu0
      %v670 = vadd.f32 0.0, %v669
      %671 = vmatmul.f32.gmra.mxu0 %v440
      %v672 = vpop.f32.mrf.mxu0
      %v673 = vadd.f32 0.0, %v672
      %674 = vmatmul.f32.gmra.mxu0 %v443
      %v675 = vpop.f32.mrf.mxu0
      %v676 = vadd.f32 0.0, %v675
      %677 = vmatmul.f32.gmra.mxu0 %v446
      %v678 = vpop.f32.mrf.mxu0
      %v679 = vadd.f32 0.0, %v678
      %680 = vmatmul.f32.gmra.mxu0 %v449
      %v681 = vpop.f32.mrf.mxu0
      %v682 = vadd.f32 0.0, %v681
      %683 = vmatmul.f32.gmra.mxu0 %v452
      %v684 = vpop.f32.mrf.mxu0
      %v685 = vadd.f32 0.0, %v684
      %686 = vmatmul.f32.gmra.mxu0 %v455
      %v687 = vpop.f32.mrf.mxu0
      %v688 = vadd.f32 0.0, %v687
      %689 = vmatmul.f32.gmra.mxu0 %v458
      %v690 = vpop.f32.mrf.mxu0
      %v691 = vadd.f32 0.0, %v690
      %692 = vmatmul.f32.gmra.mxu0 %v461
      %v693 = vpop.f32.mrf.mxu0
      %v694 = vadd.f32 0.0, %v693
      %695 = vmatmul.f32.gmra.mxu0 %v464
      %v696 = vpop.f32.mrf.mxu0
      %v697 = vadd.f32 0.0, %v696
      %698 = vdwg.mxu0
      %v699 = vlaneseq
      %v700 = vshrl.u32 %v699, 7
      %v701 = vadd.s32 %v700, 8
      %v702 = vadd.s32 %v700, 16
      %v703 = vadd.s32 %v700, 24
      %v704 = vadd.s32 %v700, 32
      %v705 = vadd.s32 %v700, 40
      %v706 = vadd.s32 %v700, 48
      %v707 = vadd.s32 %v700, 56
      %v708 = vadd.s32 %v700, 64
      %v709 = vadd.s32 %v700, 72
      %v710 = vadd.s32 %v700, 80
      %v711 = vadd.s32 %v700, 88
      %v712 = vadd.s32 %v700, 96
      %v713 = vadd.s32 %v700, 104
      %v714 = vadd.s32 %v700, 112
      %v715 = vadd.s32 %v700, 120
      %v716 = vadd.s32 %v700, 128
      %v717 = vadd.s32 %v700, 136
      %v718 = vadd.s32 %v700, 144
      %v719 = vadd.s32 %v700, 152
      %v720 = vadd.s32 %v700, 160
      %v721 = vadd.s32 %v700, 168
      %v722 = vadd.s32 %v700, 176
      %v723 = vadd.s32 %v700, 184
      %v724 = vadd.s32 %v700, 192
      %v725 = vadd.s32 %v700, 200
      %v726 = vadd.s32 %v700, 208
      %v727 = vadd.s32 %v700, 216
      %v728 = vadd.s32 %v700, 224
      %v729 = vadd.s32 %v700, 232
      %v730 = vadd.s32 %v700, 240
      %v731 = vadd.s32 %v700, 248
      %v732 = vmax.f32 %v491, %v497
      %v733 = vmax.f32 %v494, %v500
      %v734 = vmax.f32 %v732, %v503
      %v735 = vmax.f32 %v733, %v506
      %v736 = vmax.f32 %v734, %v509
      %v737 = vmax.f32 %v735, %v512
      %v738 = vmax.f32 %v736, %v515
      %v739 = vmax.f32 %v737, %v518
      %v740 = vmax.f32 %v738, %v521
      %v741 = vmax.f32 %v739, %v524
      %v742 = vmax.f32 %v740, %v527
      %v743 = vmax.f32 %v741, %v530
      %v744 = vmax.f32 %v742, %v533
      %v745 = vmax.f32 %v743, %v536
      %v746 = vmax.f32 %v744, %v539
      %v747 = vmax.f32 %v745, %v542
      %v748 = vmax.f32 %v746, %v545
      %v749 = vmax.f32 %v747, %v548
      %v750 = vmax.f32 %v748, %v551
      %v751 = vmax.f32 %v749, %v554
      %v752 = vmax.f32 %v750, %v557
      %v753 = vmax.f32 %v751, %v560
      %v754 = vmax.f32 %v752, %v563
      %v755 = vmax.f32 %v753, %v566
      %v756 = vmax.f32 %v754, %v569
      %v757 = vmax.f32 %v755, %v572
      %v758 = vmax.f32 %v756, %v575
      %v759 = vmax.f32 %v757, %v578
      %v760 = vmax.f32 %v758, %v581
      %v761 = vmax.f32 %v759, %v584
      %v762 = vmax.f32 %v760, %v761
      %v763 = vrot.slane %v762, 4
      %v764 = vmax.f32 %v762, %v763
      %v765 = vrot.slane %v764, 2
      %v766 = vmax.f32 %v764, %v765
      %v767 = vrot.slane %v766, 1
      %v768 = vmax.f32 %v766, %v767
      %v769 = vmax.f32 %v604, %v610
      %v770 = vmax.f32 %v607, %v613
      %v771 = vmax.f32 %v769, %v616
      %v772 = vmax.f32 %v770, %v619
      %v773 = vmax.f32 %v771, %v622
      %v774 = vmax.f32 %v772, %v625
      %v775 = vmax.f32 %v773, %v628
      %v776 = vmax.f32 %v774, %v631
      %v777 = vmax.f32 %v775, %v634
      %v778 = vmax.f32 %v776, %v637
      %v779 = vmax.f32 %v777, %v640
      %v780 = vmax.f32 %v778, %v643
      %v781 = vmax.f32 %v779, %v646
      %v782 = vmax.f32 %v780, %v649
      %v783 = vmax.f32 %v781, %v652
      %v784 = vmax.f32 %v782, %v655
      %v785 = vmax.f32 %v783, %v658
      %v786 = vmax.f32 %v784, %v661
      %v787 = vmax.f32 %v785, %v664
      %v788 = vmax.f32 %v786, %v667
      %v789 = vmax.f32 %v787, %v670
      %v790 = vmax.f32 %v788, %v673
      %v791 = vmax.f32 %v789, %v676
      %v792 = vmax.f32 %v790, %v679
      %v793 = vmax.f32 %v791, %v682
      %v794 = vmax.f32 %v792, %v685
      %v795 = vmax.f32 %v793, %v688
      %v796 = vmax.f32 %v794, %v691
      %v797 = vmax.f32 %v795, %v694
      %v798 = vmax.f32 %v796, %v697
      %v799 = vmax.f32 %v797, %v798
      %v800 = vrot.slane %v799, 4
      %v801 = vmax.f32 %v799, %v800
      %v802 = vrot.slane %v801, 2
      %v803 = vmax.f32 %v801, %v802
      %v804 = vrot.slane %v803, 1
      %v805 = vmax.f32 %v803, %v804
      %vm806 = vcmp.eq.f32.partialorder %v491, %v768
      %vm807 = vcmp.eq.f32.partialorder %v604, %v805
      %vm808 = vcmp.eq.f32.partialorder %v494, %v768
      %vm809 = vcmp.eq.f32.partialorder %v607, %v805
      %vm810 = vcmp.eq.f32.partialorder %v497, %v768
      %vm811 = vcmp.eq.f32.partialorder %v610, %v805
      %vm812 = vcmp.eq.f32.partialorder %v500, %v768
      %vm813 = vcmp.eq.f32.partialorder %v613, %v805
      %vm814 = vcmp.eq.f32.partialorder %v503, %v768
      %vm815 = vcmp.eq.f32.partialorder %v616, %v805
      %vm816 = vcmp.eq.f32.partialorder %v506, %v768
      %vm817 = vcmp.eq.f32.partialorder %v619, %v805
      %vm818 = vcmp.eq.f32.partialorder %v509, %v768
      %vm819 = vcmp.eq.f32.partialorder %v622, %v805
      %vm820 = vcmp.eq.f32.partialorder %v512, %v768
      %vm821 = vcmp.eq.f32.partialorder %v625, %v805
      %vm822 = vcmp.eq.f32.partialorder %v515, %v768
      %vm823 = vcmp.eq.f32.partialorder %v628, %v805
      %vm824 = vcmp.eq.f32.partialorder %v518, %v768
      %vm825 = vcmp.eq.f32.partialorder %v631, %v805
      %vm826 = vcmp.eq.f32.partialorder %v521, %v768
      %vm827 = vcmp.eq.f32.partialorder %v634, %v805
      %vm828 = vcmp.eq.f32.partialorder %v524, %v768
      %vm829 = vcmp.eq.f32.partialorder %v637, %v805
      %vm830 = vcmp.eq.f32.partialorder %v527, %v768
      %vm831 = vcmp.eq.f32.partialorder %v640, %v805
      %vm832 = vcmp.eq.f32.partialorder %v530, %v768
      %vm833 = vcmp.eq.f32.partialorder %v643, %v805
      %vm834 = vcmp.eq.f32.partialorder %v533, %v768
      %vm835 = vcmp.eq.f32.partialorder %v646, %v805
      %vm836 = vcmp.eq.f32.partialorder %v536, %v768
      %vm837 = vcmp.eq.f32.partialorder %v649, %v805
      %vm838 = vcmp.eq.f32.partialorder %v539, %v768
      %vm839 = vcmp.eq.f32.partialorder %v652, %v805
      %vm840 = vcmp.eq.f32.partialorder %v542, %v768
      %vm841 = vcmp.eq.f32.partialorder %v655, %v805
      %vm842 = vcmp.eq.f32.partialorder %v545, %v768
      %vm843 = vcmp.eq.f32.partialorder %v658, %v805
      %vm844 = vcmp.eq.f32.partialorder %v548, %v768
      %vm845 = vcmp.eq.f32.partialorder %v661, %v805
      %vm846 = vcmp.eq.f32.partialorder %v551, %v768
      %vm847 = vcmp.eq.f32.partialorder %v664, %v805
      %vm848 = vcmp.eq.f32.partialorder %v554, %v768
      %vm849 = vcmp.eq.f32.partialorder %v667, %v805
      %vm850 = vcmp.eq.f32.partialorder %v557, %v768
      %vm851 = vcmp.eq.f32.partialorder %v670, %v805
      %vm852 = vcmp.eq.f32.partialorder %v560, %v768
      %vm853 = vcmp.eq.f32.partialorder %v673, %v805
      %vm854 = vcmp.eq.f32.partialorder %v563, %v768
      %vm855 = vcmp.eq.f32.partialorder %v676, %v805
      %vm856 = vcmp.eq.f32.partialorder %v566, %v768
      %vm857 = vcmp.eq.f32.partialorder %v679, %v805
      %vm858 = vcmp.eq.f32.partialorder %v569, %v768
      %vm859 = vcmp.eq.f32.partialorder %v682, %v805
      %vm860 = vcmp.eq.f32.partialorder %v572, %v768
      %vm861 = vcmp.eq.f32.partialorder %v685, %v805
      %vm862 = vcmp.eq.f32.partialorder %v575, %v768
      %vm863 = vcmp.eq.f32.partialorder %v688, %v805
      %vm864 = vcmp.eq.f32.partialorder %v578, %v768
      %vm865 = vcmp.eq.f32.partialorder %v691, %v805
      %vm866 = vcmp.eq.f32.partialorder %v581, %v768
      %vm867 = vcmp.eq.f32.partialorder %v694, %v805
      %vm868 = vcmp.eq.f32.partialorder %v584, %v768
      %vm869 = vcmp.eq.f32.partialorder %v697, %v805
      %v870 = vsel %vm806, %v700, 256
      %v871 = vsel %vm807, %v700, 256
      %v872 = vsel %vm808, %v701, 256
      %v873 = vsel %vm809, %v701, 256
      %v874 = vsel %vm810, %v702, 256
      %v875 = vsel %vm811, %v702, 256
      %v876 = vsel %vm812, %v703, 256
      %v877 = vsel %vm813, %v703, 256
      %v878 = vsel %vm814, %v704, 256
      %v879 = vsel %vm815, %v704, 256
      %v880 = vsel %vm816, %v705, 256
      %v881 = vsel %vm817, %v705, 256
      %v882 = vsel %vm818, %v706, 256
      %v883 = vsel %vm819, %v706, 256
      %v884 = vsel %vm820, %v707, 256
      %v885 = vsel %vm821, %v707, 256
      %v886 = vsel %vm822, %v708, 256
      %v887 = vsel %vm823, %v708, 256
      %v888 = vsel %vm824, %v709, 256
      %v889 = vsel %vm825, %v709, 256
      %v890 = vsel %vm826, %v710, 256
      %v891 = vsel %vm827, %v710, 256
      %v892 = vsel %vm828, %v711, 256
      %v893 = vsel %vm829, %v711, 256
      %v894 = vsel %vm830, %v712, 256
      %v895 = vsel %vm831, %v712, 256
      %v896 = vsel %vm832, %v713, 256
      %v897 = vsel %vm833, %v713, 256
      %v898 = vsel %vm834, %v714, 256
      %v899 = vsel %vm835, %v714, 256
      %v900 = vsel %vm836, %v715, 256
      %v901 = vsel %vm837, %v715, 256
      %v902 = vsel %vm838, %v716, 256
      %v903 = vsel %vm839, %v716, 256
      %v904 = vsel %vm840, %v717, 256
      %v905 = vsel %vm841, %v717, 256
      %v906 = vsel %vm842, %v718, 256
      %v907 = vsel %vm843, %v718, 256
      %v908 = vsel %vm844, %v719, 256
      %v909 = vsel %vm845, %v719, 256
      %v910 = vsel %vm846, %v720, 256
      %v911 = vsel %vm847, %v720, 256
      %v912 = vsel %vm848, %v721, 256
      %v913 = vsel %vm849, %v721, 256
      %v914 = vsel %vm850, %v722, 256
      %v915 = vsel %vm851, %v722, 256
      %v916 = vsel %vm852, %v723, 256
      %v917 = vsel %vm853, %v723, 256
      %v918 = vsel %vm854, %v724, 256
      %v919 = vsel %vm855, %v724, 256
      %v920 = vsel %vm856, %v725, 256
      %v921 = vsel %vm857, %v725, 256
      %v922 = vsel %vm858, %v726, 256
      %v923 = vsel %vm859, %v726, 256
      %v924 = vsel %vm860, %v727, 256
      %v925 = vsel %vm861, %v727, 256
      %v926 = vsel %vm862, %v728, 256
      %v927 = vsel %vm863, %v728, 256
      %v928 = vsel %vm864, %v729, 256
      %v929 = vsel %vm865, %v729, 256
      %v930 = vsel %vm866, %v730, 256
      %v931 = vsel %vm867, %v730, 256
      %v932 = vsel %vm868, %v731, 256
      %v933 = vsel %vm869, %v731, 256
      %vm934 = vcmp.lt.s32.totalorder %v870, %v874
      %v935 = vsel %vm934, %v870, %v874
      %vm936 = vcmp.lt.s32.totalorder %v872, %v876
      %v937 = vsel %vm936, %v872, %v876
      %vm938 = vcmp.lt.s32.totalorder %v935, %v878
      %v939 = vsel %vm938, %v935, %v878
      %vm940 = vcmp.lt.s32.totalorder %v937, %v880
      %v941 = vsel %vm940, %v937, %v880
      %vm942 = vcmp.lt.s32.totalorder %v939, %v882
      %v943 = vsel %vm942, %v939, %v882
      %vm944 = vcmp.lt.s32.totalorder %v941, %v884
      %v945 = vsel %vm944, %v941, %v884
      %vm946 = vcmp.lt.s32.totalorder %v943, %v886
      %v947 = vsel %vm946, %v943, %v886
      %vm948 = vcmp.lt.s32.totalorder %v945, %v888
      %v949 = vsel %vm948, %v945, %v888
      %vm950 = vcmp.lt.s32.totalorder %v947, %v890
      %v951 = vsel %vm950, %v947, %v890
      %vm952 = vcmp.lt.s32.totalorder %v949, %v892
      %v953 = vsel %vm952, %v949, %v892
      %vm954 = vcmp.lt.s32.totalorder %v951, %v894
      %v955 = vsel %vm954, %v951, %v894
      %vm956 = vcmp.lt.s32.totalorder %v953, %v896
      %v957 = vsel %vm956, %v953, %v896
      %vm958 = vcmp.lt.s32.totalorder %v955, %v898
      %v959 = vsel %vm958, %v955, %v898
      %vm960 = vcmp.lt.s32.totalorder %v957, %v900
      %v961 = vsel %vm960, %v957, %v900
      %vm962 = vcmp.lt.s32.totalorder %v959, %v902
      %v963 = vsel %vm962, %v959, %v902
      %vm964 = vcmp.lt.s32.totalorder %v961, %v904
      %v965 = vsel %vm964, %v961, %v904
      %vm966 = vcmp.lt.s32.totalorder %v963, %v906
      %v967 = vsel %vm966, %v963, %v906
      %vm968 = vcmp.lt.s32.totalorder %v965, %v908
      %v969 = vsel %vm968, %v965, %v908
      %vm970 = vcmp.lt.s32.totalorder %v967, %v910
      %v971 = vsel %vm970, %v967, %v910
      %vm972 = vcmp.lt.s32.totalorder %v969, %v912
      %v973 = vsel %vm972, %v969, %v912
      %vm974 = vcmp.lt.s32.totalorder %v971, %v914
      %v975 = vsel %vm974, %v971, %v914
      %vm976 = vcmp.lt.s32.totalorder %v973, %v916
      %v977 = vsel %vm976, %v973, %v916
      %vm978 = vcmp.lt.s32.totalorder %v975, %v918
      %v979 = vsel %vm978, %v975, %v918
      %vm980 = vcmp.lt.s32.totalorder %v977, %v920
      %v981 = vsel %vm980, %v977, %v920
      %vm982 = vcmp.lt.s32.totalorder %v979, %v922
      %v983 = vsel %vm982, %v979, %v922
      %vm984 = vcmp.lt.s32.totalorder %v981, %v924
      %v985 = vsel %vm984, %v981, %v924
      %vm986 = vcmp.lt.s32.totalorder %v983, %v926
      %v987 = vsel %vm986, %v983, %v926
      %vm988 = vcmp.lt.s32.totalorder %v985, %v928
      %v989 = vsel %vm988, %v985, %v928
      %vm990 = vcmp.lt.s32.totalorder %v987, %v930
      %v991 = vsel %vm990, %v987, %v930
      %vm992 = vcmp.lt.s32.totalorder %v989, %v932
      %v993 = vsel %vm992, %v989, %v932
      %vm994 = vcmp.lt.s32.totalorder %v991, %v993
      %v995 = vsel %vm994, %v991, %v993
      %v996 = vrot.slane %v995, 4
      %vm997 = vcmp.lt.s32.totalorder %v995, %v996
      %v998 = vsel %vm997, %v995, %v996
      %v999 = vrot.slane %v998, 2
      %vm1000 = vcmp.lt.s32.totalorder %v998, %v999
      %v1001 = vsel %vm1000, %v998, %v999
      %v1002 = vrot.slane %v1001, 1
      %vm1003 = vcmp.lt.s32.totalorder %v1001, %v1002
      %v1004 = vsel %vm1003, %v1001, %v1002
      %vm1005 = vcmp.lt.s32.totalorder %v871, %v875
      %v1006 = vsel %vm1005, %v871, %v875
      %vm1007 = vcmp.lt.s32.totalorder %v873, %v877
      %v1008 = vsel %vm1007, %v873, %v877
      %vm1009 = vcmp.lt.s32.totalorder %v1006, %v879
      %v1010 = vsel %vm1009, %v1006, %v879
      %vm1011 = vcmp.lt.s32.totalorder %v1008, %v881
      %v1012 = vsel %vm1011, %v1008, %v881
      %vm1013 = vcmp.lt.s32.totalorder %v1010, %v883
      %v1014 = vsel %vm1013, %v1010, %v883
      %vm1015 = vcmp.lt.s32.totalorder %v1012, %v885
      %v1016 = vsel %vm1015, %v1012, %v885
      %vm1017 = vcmp.lt.s32.totalorder %v1014, %v887
      %v1018 = vsel %vm1017, %v1014, %v887
      %vm1019 = vcmp.lt.s32.totalorder %v1016, %v889
      %v1020 = vsel %vm1019, %v1016, %v889
      %vm1021 = vcmp.lt.s32.totalorder %v1018, %v891
      %v1022 = vsel %vm1021, %v1018, %v891
      %vm1023 = vcmp.lt.s32.totalorder %v1020, %v893
      %v1024 = vsel %vm1023, %v1020, %v893
      %vm1025 = vcmp.lt.s32.totalorder %v1022, %v895
      %v1026 = vsel %vm1025, %v1022, %v895
      %vm1027 = vcmp.lt.s32.totalorder %v1024, %v897
      %v1028 = vsel %vm1027, %v1024, %v897
      %vm1029 = vcmp.lt.s32.totalorder %v1026, %v899
      %v1030 = vsel %vm1029, %v1026, %v899
      %vm1031 = vcmp.lt.s32.totalorder %v1028, %v901
      %v1032 = vsel %vm1031, %v1028, %v901
      %vm1033 = vcmp.lt.s32.totalorder %v1030, %v903
      %v1034 = vsel %vm1033, %v1030, %v903
      %vm1035 = vcmp.lt.s32.totalorder %v1032, %v905
      %v1036 = vsel %vm1035, %v1032, %v905
      %vm1037 = vcmp.lt.s32.totalorder %v1034, %v907
      %v1038 = vsel %vm1037, %v1034, %v907
      %vm1039 = vcmp.lt.s32.totalorder %v1036, %v909
      %v1040 = vsel %vm1039, %v1036, %v909
      %vm1041 = vcmp.lt.s32.totalorder %v1038, %v911
      %v1042 = vsel %vm1041, %v1038, %v911
      %vm1043 = vcmp.lt.s32.totalorder %v1040, %v913
      %v1044 = vsel %vm1043, %v1040, %v913
      %vm1045 = vcmp.lt.s32.totalorder %v1042, %v915
      %v1046 = vsel %vm1045, %v1042, %v915
      %vm1047 = vcmp.lt.s32.totalorder %v1044, %v917
      %v1048 = vsel %vm1047, %v1044, %v917
      %vm1049 = vcmp.lt.s32.totalorder %v1046, %v919
      %v1050 = vsel %vm1049, %v1046, %v919
      %vm1051 = vcmp.lt.s32.totalorder %v1048, %v921
      %v1052 = vsel %vm1051, %v1048, %v921
      %vm1053 = vcmp.lt.s32.totalorder %v1050, %v923
      %v1054 = vsel %vm1053, %v1050, %v923
      %vm1055 = vcmp.lt.s32.totalorder %v1052, %v925
      %v1056 = vsel %vm1055, %v1052, %v925
      %vm1057 = vcmp.lt.s32.totalorder %v1054, %v927
      %v1058 = vsel %vm1057, %v1054, %v927
      %vm1059 = vcmp.lt.s32.totalorder %v1056, %v929
      %v1060 = vsel %vm1059, %v1056, %v929
      %vm1061 = vcmp.lt.s32.totalorder %v1058, %v931
      %v1062 = vsel %vm1061, %v1058, %v931
      %vm1063 = vcmp.lt.s32.totalorder %v1060, %v933
      %v1064 = vsel %vm1063, %v1060, %v933
      %vm1065 = vcmp.lt.s32.totalorder %v1062, %v1064
      %v1066 = vsel %vm1065, %v1062, %v1064
      %v1067 = vrot.slane %v1066, 4
      %vm1068 = vcmp.lt.s32.totalorder %v1066, %v1067
      %v1069 = vsel %vm1068, %v1066, %v1067
      %v1070 = vrot.slane %v1069, 2
      %vm1071 = vcmp.lt.s32.totalorder %v1069, %v1070
      %v1072 = vsel %vm1071, %v1069, %v1070
      %v1073 = vrot.slane %v1072, 1
      %vm1074 = vcmp.lt.s32.totalorder %v1072, %v1073
      %v1075 = vsel %vm1074, %v1072, %v1073
      %vm1076 = vcmp.eq.s32.totalorder %v700, %v1004
      %vm1077 = vcmp.eq.s32.totalorder %v700, %v1075
      %vm1078 = vcmp.eq.s32.totalorder %v701, %v1004
      %vm1079 = vcmp.eq.s32.totalorder %v701, %v1075
      %vm1080 = vcmp.eq.s32.totalorder %v702, %v1004
      %vm1081 = vcmp.eq.s32.totalorder %v702, %v1075
      %vm1082 = vcmp.eq.s32.totalorder %v703, %v1004
      %vm1083 = vcmp.eq.s32.totalorder %v703, %v1075
      %vm1084 = vcmp.eq.s32.totalorder %v704, %v1004
      %vm1085 = vcmp.eq.s32.totalorder %v704, %v1075
      %vm1086 = vcmp.eq.s32.totalorder %v705, %v1004
      %vm1087 = vcmp.eq.s32.totalorder %v705, %v1075
      %vm1088 = vcmp.eq.s32.totalorder %v706, %v1004
      %vm1089 = vcmp.eq.s32.totalorder %v706, %v1075
      %vm1090 = vcmp.eq.s32.totalorder %v707, %v1004
      %vm1091 = vcmp.eq.s32.totalorder %v707, %v1075
      %vm1092 = vcmp.eq.s32.totalorder %v708, %v1004
      %vm1093 = vcmp.eq.s32.totalorder %v708, %v1075
      %vm1094 = vcmp.eq.s32.totalorder %v709, %v1004
      %vm1095 = vcmp.eq.s32.totalorder %v709, %v1075
      %vm1096 = vcmp.eq.s32.totalorder %v710, %v1004
      %vm1097 = vcmp.eq.s32.totalorder %v710, %v1075
      %vm1098 = vcmp.eq.s32.totalorder %v711, %v1004
      %vm1099 = vcmp.eq.s32.totalorder %v711, %v1075
      %vm1100 = vcmp.eq.s32.totalorder %v712, %v1004
      %vm1101 = vcmp.eq.s32.totalorder %v712, %v1075
      %vm1102 = vcmp.eq.s32.totalorder %v713, %v1004
      %vm1103 = vcmp.eq.s32.totalorder %v713, %v1075
      %vm1104 = vcmp.eq.s32.totalorder %v714, %v1004
      %vm1105 = vcmp.eq.s32.totalorder %v714, %v1075
      %vm1106 = vcmp.eq.s32.totalorder %v715, %v1004
      %vm1107 = vcmp.eq.s32.totalorder %v715, %v1075
      %vm1108 = vcmp.eq.s32.totalorder %v716, %v1004
      %vm1109 = vcmp.eq.s32.totalorder %v716, %v1075
      %vm1110 = vcmp.eq.s32.totalorder %v717, %v1004
      %vm1111 = vcmp.eq.s32.totalorder %v717, %v1075
      %vm1112 = vcmp.eq.s32.totalorder %v718, %v1004
      %vm1113 = vcmp.eq.s32.totalorder %v718, %v1075
      %vm1114 = vcmp.eq.s32.totalorder %v719, %v1004
      %vm1115 = vcmp.eq.s32.totalorder %v719, %v1075
      %vm1116 = vcmp.eq.s32.totalorder %v720, %v1004
      %vm1117 = vcmp.eq.s32.totalorder %v720, %v1075
      %vm1118 = vcmp.eq.s32.totalorder %v721, %v1004
      %vm1119 = vcmp.eq.s32.totalorder %v721, %v1075
      %vm1120 = vcmp.eq.s32.totalorder %v722, %v1004
      %vm1121 = vcmp.eq.s32.totalorder %v722, %v1075
      %vm1122 = vcmp.eq.s32.totalorder %v723, %v1004
      %vm1123 = vcmp.eq.s32.totalorder %v723, %v1075
      %vm1124 = vcmp.eq.s32.totalorder %v724, %v1004
      %vm1125 = vcmp.eq.s32.totalorder %v724, %v1075
      %vm1126 = vcmp.eq.s32.totalorder %v725, %v1004
      %vm1127 = vcmp.eq.s32.totalorder %v725, %v1075
      %vm1128 = vcmp.eq.s32.totalorder %v726, %v1004
      %vm1129 = vcmp.eq.s32.totalorder %v726, %v1075
      %vm1130 = vcmp.eq.s32.totalorder %v727, %v1004
      %vm1131 = vcmp.eq.s32.totalorder %v727, %v1075
      %vm1132 = vcmp.eq.s32.totalorder %v728, %v1004
      %vm1133 = vcmp.eq.s32.totalorder %v728, %v1075
      %vm1134 = vcmp.eq.s32.totalorder %v729, %v1004
      %vm1135 = vcmp.eq.s32.totalorder %v729, %v1075
      %vm1136 = vcmp.eq.s32.totalorder %v730, %v1004
      %vm1137 = vcmp.eq.s32.totalorder %v730, %v1075
      %vm1138 = vcmp.eq.s32.totalorder %v731, %v1004
      %vm1139 = vcmp.eq.s32.totalorder %v731, %v1075
      %v1140 = vsel %vm1076, -inf, %v491
      %v1141 = vsel %vm1077, -inf, %v604
      %v1142 = vsel %vm1078, -inf, %v494
      %v1143 = vsel %vm1079, -inf, %v607
      %v1144 = vsel %vm1080, -inf, %v497
      %v1145 = vsel %vm1081, -inf, %v610
      %v1146 = vsel %vm1082, -inf, %v500
      %v1147 = vsel %vm1083, -inf, %v613
      %v1148 = vsel %vm1084, -inf, %v503
      %v1149 = vsel %vm1085, -inf, %v616
      %v1150 = vsel %vm1086, -inf, %v506
      %v1151 = vsel %vm1087, -inf, %v619
      %v1152 = vsel %vm1088, -inf, %v509
      %v1153 = vsel %vm1089, -inf, %v622
      %v1154 = vsel %vm1090, -inf, %v512
      %v1155 = vsel %vm1091, -inf, %v625
      %v1156 = vsel %vm1092, -inf, %v515
      %v1157 = vsel %vm1093, -inf, %v628
      %v1158 = vsel %vm1094, -inf, %v518
      %v1159 = vsel %vm1095, -inf, %v631
      %v1160 = vsel %vm1096, -inf, %v521
      %v1161 = vsel %vm1097, -inf, %v634
      %v1162 = vsel %vm1098, -inf, %v524
      %v1163 = vsel %vm1099, -inf, %v637
      %v1164 = vsel %vm1100, -inf, %v527
      %v1165 = vsel %vm1101, -inf, %v640
      %v1166 = vsel %vm1102, -inf, %v530
      %v1167 = vsel %vm1103, -inf, %v643
      %v1168 = vsel %vm1104, -inf, %v533
      %v1169 = vsel %vm1105, -inf, %v646
      %v1170 = vsel %vm1106, -inf, %v536
      %v1171 = vsel %vm1107, -inf, %v649
      %v1172 = vsel %vm1108, -inf, %v539
      %v1173 = vsel %vm1109, -inf, %v652
      %v1174 = vsel %vm1110, -inf, %v542
      %v1175 = vsel %vm1111, -inf, %v655
      %v1176 = vsel %vm1112, -inf, %v545
      %v1177 = vsel %vm1113, -inf, %v658
      %v1178 = vsel %vm1114, -inf, %v548
      %v1179 = vsel %vm1115, -inf, %v661
      %v1180 = vsel %vm1116, -inf, %v551
      %v1181 = vsel %vm1117, -inf, %v664
      %v1182 = vsel %vm1118, -inf, %v554
      %v1183 = vsel %vm1119, -inf, %v667
      %v1184 = vsel %vm1120, -inf, %v557
      %v1185 = vsel %vm1121, -inf, %v670
      %v1186 = vsel %vm1122, -inf, %v560
      %v1187 = vsel %vm1123, -inf, %v673
      %v1188 = vsel %vm1124, -inf, %v563
      %v1189 = vsel %vm1125, -inf, %v676
      %v1190 = vsel %vm1126, -inf, %v566
      %v1191 = vsel %vm1127, -inf, %v679
      %v1192 = vsel %vm1128, -inf, %v569
      %v1193 = vsel %vm1129, -inf, %v682
      %v1194 = vsel %vm1130, -inf, %v572
      %v1195 = vsel %vm1131, -inf, %v685
      %v1196 = vsel %vm1132, -inf, %v575
      %v1197 = vsel %vm1133, -inf, %v688
      %v1198 = vsel %vm1134, -inf, %v578
      %v1199 = vsel %vm1135, -inf, %v691
      %v1200 = vsel %vm1136, -inf, %v581
      %v1201 = vsel %vm1137, -inf, %v694
      %v1202 = vsel %vm1138, -inf, %v584
      %v1203 = vsel %vm1139, -inf, %v697
      %v1204 = vmax.f32 %v1140, %v1144
      %v1205 = vmax.f32 %v1142, %v1146
      %v1206 = vmax.f32 %v1204, %v1148
      %v1207 = vmax.f32 %v1205, %v1150
      %v1208 = vmax.f32 %v1206, %v1152
      %v1209 = vmax.f32 %v1207, %v1154
      %v1210 = vmax.f32 %v1208, %v1156
      %v1211 = vmax.f32 %v1209, %v1158
      %v1212 = vmax.f32 %v1210, %v1160
      %v1213 = vmax.f32 %v1211, %v1162
      %v1214 = vmax.f32 %v1212, %v1164
      %v1215 = vmax.f32 %v1213, %v1166
      %v1216 = vmax.f32 %v1214, %v1168
      %v1217 = vmax.f32 %v1215, %v1170
      %v1218 = vmax.f32 %v1216, %v1172
      %v1219 = vmax.f32 %v1217, %v1174
      %v1220 = vmax.f32 %v1218, %v1176
      %v1221 = vmax.f32 %v1219, %v1178
      %v1222 = vmax.f32 %v1220, %v1180
      %v1223 = vmax.f32 %v1221, %v1182
      %v1224 = vmax.f32 %v1222, %v1184
      %v1225 = vmax.f32 %v1223, %v1186
      %v1226 = vmax.f32 %v1224, %v1188
      %v1227 = vmax.f32 %v1225, %v1190
      %v1228 = vmax.f32 %v1226, %v1192
      %v1229 = vmax.f32 %v1227, %v1194
      %v1230 = vmax.f32 %v1228, %v1196
      %v1231 = vmax.f32 %v1229, %v1198
      %v1232 = vmax.f32 %v1230, %v1200
      %v1233 = vmax.f32 %v1231, %v1202
      %v1234 = vmax.f32 %v1232, %v1233
      %v1235 = vrot.slane %v1234, 4
      %v1236 = vmax.f32 %v1234, %v1235
      %v1237 = vrot.slane %v1236, 2
      %v1238 = vmax.f32 %v1236, %v1237
      %v1239 = vrot.slane %v1238, 1
      %v1240 = vmax.f32 %v1238, %v1239
      %v1241 = vmax.f32 %v1141, %v1145
      %v1242 = vmax.f32 %v1143, %v1147
      %v1243 = vmax.f32 %v1241, %v1149
      %v1244 = vmax.f32 %v1242, %v1151
      %v1245 = vmax.f32 %v1243, %v1153
      %v1246 = vmax.f32 %v1244, %v1155
      %v1247 = vmax.f32 %v1245, %v1157
      %v1248 = vmax.f32 %v1246, %v1159
      %v1249 = vmax.f32 %v1247, %v1161
      %v1250 = vmax.f32 %v1248, %v1163
      %v1251 = vmax.f32 %v1249, %v1165
      %v1252 = vmax.f32 %v1250, %v1167
      %v1253 = vmax.f32 %v1251, %v1169
      %v1254 = vmax.f32 %v1252, %v1171
      %v1255 = vmax.f32 %v1253, %v1173
      %v1256 = vmax.f32 %v1254, %v1175
      %v1257 = vmax.f32 %v1255, %v1177
      %v1258 = vmax.f32 %v1256, %v1179
      %v1259 = vmax.f32 %v1257, %v1181
      %v1260 = vmax.f32 %v1258, %v1183
      %v1261 = vmax.f32 %v1259, %v1185
      %v1262 = vmax.f32 %v1260, %v1187
      %v1263 = vmax.f32 %v1261, %v1189
      %v1264 = vmax.f32 %v1262, %v1191
      %v1265 = vmax.f32 %v1263, %v1193
      %v1266 = vmax.f32 %v1264, %v1195
      %v1267 = vmax.f32 %v1265, %v1197
      %v1268 = vmax.f32 %v1266, %v1199
      %v1269 = vmax.f32 %v1267, %v1201
      %v1270 = vmax.f32 %v1268, %v1203
      %v1271 = vmax.f32 %v1269, %v1270
      %v1272 = vrot.slane %v1271, 4
      %v1273 = vmax.f32 %v1271, %v1272
      %v1274 = vrot.slane %v1273, 2
      %v1275 = vmax.f32 %v1273, %v1274
      %v1276 = vrot.slane %v1275, 1
      %v1277 = vmax.f32 %v1275, %v1276
      %vm1278 = vcmp.eq.f32.partialorder %v1140, %v1240
      %vm1279 = vcmp.eq.f32.partialorder %v1141, %v1277
      %vm1280 = vcmp.eq.f32.partialorder %v1142, %v1240
      %vm1281 = vcmp.eq.f32.partialorder %v1143, %v1277
      %vm1282 = vcmp.eq.f32.partialorder %v1144, %v1240
      %vm1283 = vcmp.eq.f32.partialorder %v1145, %v1277
      %vm1284 = vcmp.eq.f32.partialorder %v1146, %v1240
      %vm1285 = vcmp.eq.f32.partialorder %v1147, %v1277
      %vm1286 = vcmp.eq.f32.partialorder %v1148, %v1240
      %vm1287 = vcmp.eq.f32.partialorder %v1149, %v1277
      %vm1288 = vcmp.eq.f32.partialorder %v1150, %v1240
      %vm1289 = vcmp.eq.f32.partialorder %v1151, %v1277
      %vm1290 = vcmp.eq.f32.partialorder %v1152, %v1240
      %vm1291 = vcmp.eq.f32.partialorder %v1153, %v1277
      %vm1292 = vcmp.eq.f32.partialorder %v1154, %v1240
      %vm1293 = vcmp.eq.f32.partialorder %v1155, %v1277
      %vm1294 = vcmp.eq.f32.partialorder %v1156, %v1240
      %vm1295 = vcmp.eq.f32.partialorder %v1157, %v1277
      %vm1296 = vcmp.eq.f32.partialorder %v1158, %v1240
      %vm1297 = vcmp.eq.f32.partialorder %v1159, %v1277
      %vm1298 = vcmp.eq.f32.partialorder %v1160, %v1240
      %vm1299 = vcmp.eq.f32.partialorder %v1161, %v1277
      %vm1300 = vcmp.eq.f32.partialorder %v1162, %v1240
      %vm1301 = vcmp.eq.f32.partialorder %v1163, %v1277
      %vm1302 = vcmp.eq.f32.partialorder %v1164, %v1240
      %vm1303 = vcmp.eq.f32.partialorder %v1165, %v1277
      %vm1304 = vcmp.eq.f32.partialorder %v1166, %v1240
      %vm1305 = vcmp.eq.f32.partialorder %v1167, %v1277
      %vm1306 = vcmp.eq.f32.partialorder %v1168, %v1240
      %vm1307 = vcmp.eq.f32.partialorder %v1169, %v1277
      %vm1308 = vcmp.eq.f32.partialorder %v1170, %v1240
      %vm1309 = vcmp.eq.f32.partialorder %v1171, %v1277
      %vm1310 = vcmp.eq.f32.partialorder %v1172, %v1240
      %vm1311 = vcmp.eq.f32.partialorder %v1173, %v1277
      %vm1312 = vcmp.eq.f32.partialorder %v1174, %v1240
      %vm1313 = vcmp.eq.f32.partialorder %v1175, %v1277
      %vm1314 = vcmp.eq.f32.partialorder %v1176, %v1240
      %vm1315 = vcmp.eq.f32.partialorder %v1177, %v1277
      %vm1316 = vcmp.eq.f32.partialorder %v1178, %v1240
      %vm1317 = vcmp.eq.f32.partialorder %v1179, %v1277
      %vm1318 = vcmp.eq.f32.partialorder %v1180, %v1240
      %vm1319 = vcmp.eq.f32.partialorder %v1181, %v1277
      %vm1320 = vcmp.eq.f32.partialorder %v1182, %v1240
      %vm1321 = vcmp.eq.f32.partialorder %v1183, %v1277
      %vm1322 = vcmp.eq.f32.partialorder %v1184, %v1240
      %vm1323 = vcmp.eq.f32.partialorder %v1185, %v1277
      %vm1324 = vcmp.eq.f32.partialorder %v1186, %v1240
      %vm1325 = vcmp.eq.f32.partialorder %v1187, %v1277
      %vm1326 = vcmp.eq.f32.partialorder %v1188, %v1240
      %vm1327 = vcmp.eq.f32.partialorder %v1189, %v1277
      %vm1328 = vcmp.eq.f32.partialorder %v1190, %v1240
      %vm1329 = vcmp.eq.f32.partialorder %v1191, %v1277
      %vm1330 = vcmp.eq.f32.partialorder %v1192, %v1240
      %vm1331 = vcmp.eq.f32.partialorder %v1193, %v1277
      %vm1332 = vcmp.eq.f32.partialorder %v1194, %v1240
      %vm1333 = vcmp.eq.f32.partialorder %v1195, %v1277
      %vm1334 = vcmp.eq.f32.partialorder %v1196, %v1240
      %vm1335 = vcmp.eq.f32.partialorder %v1197, %v1277
      %vm1336 = vcmp.eq.f32.partialorder %v1198, %v1240
      %vm1337 = vcmp.eq.f32.partialorder %v1199, %v1277
      %vm1338 = vcmp.eq.f32.partialorder %v1200, %v1240
      %vm1339 = vcmp.eq.f32.partialorder %v1201, %v1277
      %vm1340 = vcmp.eq.f32.partialorder %v1202, %v1240
      %vm1341 = vcmp.eq.f32.partialorder %v1203, %v1277
      %v1342 = vsel %vm1278, %v700, 256
      %v1343 = vsel %vm1279, %v700, 256
      %v1344 = vsel %vm1280, %v701, 256
      %v1345 = vsel %vm1281, %v701, 256
      %v1346 = vsel %vm1282, %v702, 256
      %v1347 = vsel %vm1283, %v702, 256
      %v1348 = vsel %vm1284, %v703, 256
      %v1349 = vsel %vm1285, %v703, 256
      %v1350 = vsel %vm1286, %v704, 256
      %v1351 = vsel %vm1287, %v704, 256
      %v1352 = vsel %vm1288, %v705, 256
      %v1353 = vsel %vm1289, %v705, 256
      %v1354 = vsel %vm1290, %v706, 256
      %v1355 = vsel %vm1291, %v706, 256
      %v1356 = vsel %vm1292, %v707, 256
      %v1357 = vsel %vm1293, %v707, 256
      %v1358 = vsel %vm1294, %v708, 256
      %v1359 = vsel %vm1295, %v708, 256
      %v1360 = vsel %vm1296, %v709, 256
      %v1361 = vsel %vm1297, %v709, 256
      %v1362 = vsel %vm1298, %v710, 256
      %v1363 = vsel %vm1299, %v710, 256
      %v1364 = vsel %vm1300, %v711, 256
      %v1365 = vsel %vm1301, %v711, 256
      %v1366 = vsel %vm1302, %v712, 256
      %v1367 = vsel %vm1303, %v712, 256
      %v1368 = vsel %vm1304, %v713, 256
      %v1369 = vsel %vm1305, %v713, 256
      %v1370 = vsel %vm1306, %v714, 256
      %v1371 = vsel %vm1307, %v714, 256
      %v1372 = vsel %vm1308, %v715, 256
      %v1373 = vsel %vm1309, %v715, 256
      %v1374 = vsel %vm1310, %v716, 256
      %v1375 = vsel %vm1311, %v716, 256
      %v1376 = vsel %vm1312, %v717, 256
      %v1377 = vsel %vm1313, %v717, 256
      %v1378 = vsel %vm1314, %v718, 256
      %v1379 = vsel %vm1315, %v718, 256
      %v1380 = vsel %vm1316, %v719, 256
      %v1381 = vsel %vm1317, %v719, 256
      %v1382 = vsel %vm1318, %v720, 256
      %v1383 = vsel %vm1319, %v720, 256
      %v1384 = vsel %vm1320, %v721, 256
      %v1385 = vsel %vm1321, %v721, 256
      %v1386 = vsel %vm1322, %v722, 256
      %v1387 = vsel %vm1323, %v722, 256
      %v1388 = vsel %vm1324, %v723, 256
      %v1389 = vsel %vm1325, %v723, 256
      %v1390 = vsel %vm1326, %v724, 256
      %v1391 = vsel %vm1327, %v724, 256
      %v1392 = vsel %vm1328, %v725, 256
      %v1393 = vsel %vm1329, %v725, 256
      %v1394 = vsel %vm1330, %v726, 256
      %v1395 = vsel %vm1331, %v726, 256
      %v1396 = vsel %vm1332, %v727, 256
      %v1397 = vsel %vm1333, %v727, 256
      %v1398 = vsel %vm1334, %v728, 256
      %v1399 = vsel %vm1335, %v728, 256
      %v1400 = vsel %vm1336, %v729, 256
      %v1401 = vsel %vm1337, %v729, 256
      %v1402 = vsel %vm1338, %v730, 256
      %v1403 = vsel %vm1339, %v730, 256
      %v1404 = vsel %vm1340, %v731, 256
      %v1405 = vsel %vm1341, %v731, 256
      %vm1406 = vcmp.lt.s32.totalorder %v1342, %v1346
      %v1407 = vsel %vm1406, %v1342, %v1346
      %vm1408 = vcmp.lt.s32.totalorder %v1344, %v1348
      %v1409 = vsel %vm1408, %v1344, %v1348
      %vm1410 = vcmp.lt.s32.totalorder %v1407, %v1350
      %v1411 = vsel %vm1410, %v1407, %v1350
      %vm1412 = vcmp.lt.s32.totalorder %v1409, %v1352
      %v1413 = vsel %vm1412, %v1409, %v1352
      %vm1414 = vcmp.lt.s32.totalorder %v1411, %v1354
      %v1415 = vsel %vm1414, %v1411, %v1354
      %vm1416 = vcmp.lt.s32.totalorder %v1413, %v1356
      %v1417 = vsel %vm1416, %v1413, %v1356
      %vm1418 = vcmp.lt.s32.totalorder %v1415, %v1358
      %v1419 = vsel %vm1418, %v1415, %v1358
      %vm1420 = vcmp.lt.s32.totalorder %v1417, %v1360
      %v1421 = vsel %vm1420, %v1417, %v1360
      %vm1422 = vcmp.lt.s32.totalorder %v1419, %v1362
      %v1423 = vsel %vm1422, %v1419, %v1362
      %vm1424 = vcmp.lt.s32.totalorder %v1421, %v1364
      %v1425 = vsel %vm1424, %v1421, %v1364
      %vm1426 = vcmp.lt.s32.totalorder %v1423, %v1366
      %v1427 = vsel %vm1426, %v1423, %v1366
      %vm1428 = vcmp.lt.s32.totalorder %v1425, %v1368
      %v1429 = vsel %vm1428, %v1425, %v1368
      %vm1430 = vcmp.lt.s32.totalorder %v1427, %v1370
      %v1431 = vsel %vm1430, %v1427, %v1370
      %vm1432 = vcmp.lt.s32.totalorder %v1429, %v1372
      %v1433 = vsel %vm1432, %v1429, %v1372
      %vm1434 = vcmp.lt.s32.totalorder %v1431, %v1374
      %v1435 = vsel %vm1434, %v1431, %v1374
      %vm1436 = vcmp.lt.s32.totalorder %v1433, %v1376
      %v1437 = vsel %vm1436, %v1433, %v1376
      %vm1438 = vcmp.lt.s32.totalorder %v1435, %v1378
      %v1439 = vsel %vm1438, %v1435, %v1378
      %vm1440 = vcmp.lt.s32.totalorder %v1437, %v1380
      %v1441 = vsel %vm1440, %v1437, %v1380
      %vm1442 = vcmp.lt.s32.totalorder %v1439, %v1382
      %v1443 = vsel %vm1442, %v1439, %v1382
      %vm1444 = vcmp.lt.s32.totalorder %v1441, %v1384
      %v1445 = vsel %vm1444, %v1441, %v1384
      %vm1446 = vcmp.lt.s32.totalorder %v1443, %v1386
      %v1447 = vsel %vm1446, %v1443, %v1386
      %vm1448 = vcmp.lt.s32.totalorder %v1445, %v1388
      %v1449 = vsel %vm1448, %v1445, %v1388
      %vm1450 = vcmp.lt.s32.totalorder %v1447, %v1390
      %v1451 = vsel %vm1450, %v1447, %v1390
      %vm1452 = vcmp.lt.s32.totalorder %v1449, %v1392
      %v1453 = vsel %vm1452, %v1449, %v1392
      %vm1454 = vcmp.lt.s32.totalorder %v1451, %v1394
      %v1455 = vsel %vm1454, %v1451, %v1394
      %vm1456 = vcmp.lt.s32.totalorder %v1453, %v1396
      %v1457 = vsel %vm1456, %v1453, %v1396
      %vm1458 = vcmp.lt.s32.totalorder %v1455, %v1398
      %v1459 = vsel %vm1458, %v1455, %v1398
      %vm1460 = vcmp.lt.s32.totalorder %v1457, %v1400
      %v1461 = vsel %vm1460, %v1457, %v1400
      %vm1462 = vcmp.lt.s32.totalorder %v1459, %v1402
      %v1463 = vsel %vm1462, %v1459, %v1402
      %vm1464 = vcmp.lt.s32.totalorder %v1461, %v1404
      %v1465 = vsel %vm1464, %v1461, %v1404
      %vm1466 = vcmp.lt.s32.totalorder %v1463, %v1465
      %v1467 = vsel %vm1466, %v1463, %v1465
      %v1468 = vrot.slane %v1467, 4
      %vm1469 = vcmp.lt.s32.totalorder %v1467, %v1468
      %v1470 = vsel %vm1469, %v1467, %v1468
      %v1471 = vrot.slane %v1470, 2
      %vm1472 = vcmp.lt.s32.totalorder %v1470, %v1471
      %v1473 = vsel %vm1472, %v1470, %v1471
      %v1474 = vrot.slane %v1473, 1
      %vm1475 = vcmp.lt.s32.totalorder %v1473, %v1474
      %v1476 = vsel %vm1475, %v1473, %v1474
      %vm1477 = vcmp.lt.s32.totalorder %v1343, %v1347
      %v1478 = vsel %vm1477, %v1343, %v1347
      %vm1479 = vcmp.lt.s32.totalorder %v1345, %v1349
      %v1480 = vsel %vm1479, %v1345, %v1349
      %vm1481 = vcmp.lt.s32.totalorder %v1478, %v1351
      %v1482 = vsel %vm1481, %v1478, %v1351
      %vm1483 = vcmp.lt.s32.totalorder %v1480, %v1353
      %v1484 = vsel %vm1483, %v1480, %v1353
      %vm1485 = vcmp.lt.s32.totalorder %v1482, %v1355
      %v1486 = vsel %vm1485, %v1482, %v1355
      %vm1487 = vcmp.lt.s32.totalorder %v1484, %v1357
      %v1488 = vsel %vm1487, %v1484, %v1357
      %vm1489 = vcmp.lt.s32.totalorder %v1486, %v1359
      %v1490 = vsel %vm1489, %v1486, %v1359
      %vm1491 = vcmp.lt.s32.totalorder %v1488, %v1361
      %v1492 = vsel %vm1491, %v1488, %v1361
      %vm1493 = vcmp.lt.s32.totalorder %v1490, %v1363
      %v1494 = vsel %vm1493, %v1490, %v1363
      %vm1495 = vcmp.lt.s32.totalorder %v1492, %v1365
      %v1496 = vsel %vm1495, %v1492, %v1365
      %vm1497 = vcmp.lt.s32.totalorder %v1494, %v1367
      %v1498 = vsel %vm1497, %v1494, %v1367
      %vm1499 = vcmp.lt.s32.totalorder %v1496, %v1369
      %v1500 = vsel %vm1499, %v1496, %v1369
      %vm1501 = vcmp.lt.s32.totalorder %v1498, %v1371
      %v1502 = vsel %vm1501, %v1498, %v1371
      %vm1503 = vcmp.lt.s32.totalorder %v1500, %v1373
      %v1504 = vsel %vm1503, %v1500, %v1373
      %vm1505 = vcmp.lt.s32.totalorder %v1502, %v1375
      %v1506 = vsel %vm1505, %v1502, %v1375
      %vm1507 = vcmp.lt.s32.totalorder %v1504, %v1377
      %v1508 = vsel %vm1507, %v1504, %v1377
      %vm1509 = vcmp.lt.s32.totalorder %v1506, %v1379
      %v1510 = vsel %vm1509, %v1506, %v1379
      %vm1511 = vcmp.lt.s32.totalorder %v1508, %v1381
      %v1512 = vsel %vm1511, %v1508, %v1381
      %vm1513 = vcmp.lt.s32.totalorder %v1510, %v1383
      %v1514 = vsel %vm1513, %v1510, %v1383
      %vm1515 = vcmp.lt.s32.totalorder %v1512, %v1385
      %v1516 = vsel %vm1515, %v1512, %v1385
      %vm1517 = vcmp.lt.s32.totalorder %v1514, %v1387
      %v1518 = vsel %vm1517, %v1514, %v1387
      %vm1519 = vcmp.lt.s32.totalorder %v1516, %v1389
      %v1520 = vsel %vm1519, %v1516, %v1389
      %vm1521 = vcmp.lt.s32.totalorder %v1518, %v1391
      %v1522 = vsel %vm1521, %v1518, %v1391
      %vm1523 = vcmp.lt.s32.totalorder %v1520, %v1393
      %v1524 = vsel %vm1523, %v1520, %v1393
      %vm1525 = vcmp.lt.s32.totalorder %v1522, %v1395
      %v1526 = vsel %vm1525, %v1522, %v1395
      %vm1527 = vcmp.lt.s32.totalorder %v1524, %v1397
      %v1528 = vsel %vm1527, %v1524, %v1397
      %vm1529 = vcmp.lt.s32.totalorder %v1526, %v1399
      %v1530 = vsel %vm1529, %v1526, %v1399
      %vm1531 = vcmp.lt.s32.totalorder %v1528, %v1401
      %v1532 = vsel %vm1531, %v1528, %v1401
      %vm1533 = vcmp.lt.s32.totalorder %v1530, %v1403
      %v1534 = vsel %vm1533, %v1530, %v1403
      %vm1535 = vcmp.lt.s32.totalorder %v1532, %v1405
      %v1536 = vsel %vm1535, %v1532, %v1405
      %vm1537 = vcmp.lt.s32.totalorder %v1534, %v1536
      %v1538 = vsel %vm1537, %v1534, %v1536
      %v1539 = vrot.slane %v1538, 4
      %vm1540 = vcmp.lt.s32.totalorder %v1538, %v1539
      %v1541 = vsel %vm1540, %v1538, %v1539
      %v1542 = vrot.slane %v1541, 2
      %vm1543 = vcmp.lt.s32.totalorder %v1541, %v1542
      %v1544 = vsel %vm1543, %v1541, %v1542
      %v1545 = vrot.slane %v1544, 1
      %vm1546 = vcmp.lt.s32.totalorder %v1544, %v1545
      %v1547 = vsel %vm1546, %v1544, %v1545
      %vm1548 = vcmp.eq.s32.totalorder %v700, %v1476
      %vm1549 = vcmp.eq.s32.totalorder %v700, %v1547
      %vm1550 = vcmp.eq.s32.totalorder %v701, %v1476
      %vm1551 = vcmp.eq.s32.totalorder %v701, %v1547
      %vm1552 = vcmp.eq.s32.totalorder %v702, %v1476
      %vm1553 = vcmp.eq.s32.totalorder %v702, %v1547
      %vm1554 = vcmp.eq.s32.totalorder %v703, %v1476
      %vm1555 = vcmp.eq.s32.totalorder %v703, %v1547
      %vm1556 = vcmp.eq.s32.totalorder %v704, %v1476
      %vm1557 = vcmp.eq.s32.totalorder %v704, %v1547
      %vm1558 = vcmp.eq.s32.totalorder %v705, %v1476
      %vm1559 = vcmp.eq.s32.totalorder %v705, %v1547
      %vm1560 = vcmp.eq.s32.totalorder %v706, %v1476
      %vm1561 = vcmp.eq.s32.totalorder %v706, %v1547
      %vm1562 = vcmp.eq.s32.totalorder %v707, %v1476
      %vm1563 = vcmp.eq.s32.totalorder %v707, %v1547
      %vm1564 = vcmp.eq.s32.totalorder %v708, %v1476
      %vm1565 = vcmp.eq.s32.totalorder %v708, %v1547
      %vm1566 = vcmp.eq.s32.totalorder %v709, %v1476
      %vm1567 = vcmp.eq.s32.totalorder %v709, %v1547
      %vm1568 = vcmp.eq.s32.totalorder %v710, %v1476
      %vm1569 = vcmp.eq.s32.totalorder %v710, %v1547
      %vm1570 = vcmp.eq.s32.totalorder %v711, %v1476
      %vm1571 = vcmp.eq.s32.totalorder %v711, %v1547
      %vm1572 = vcmp.eq.s32.totalorder %v712, %v1476
      %vm1573 = vcmp.eq.s32.totalorder %v712, %v1547
      %vm1574 = vcmp.eq.s32.totalorder %v713, %v1476
      %vm1575 = vcmp.eq.s32.totalorder %v713, %v1547
      %vm1576 = vcmp.eq.s32.totalorder %v714, %v1476
      %vm1577 = vcmp.eq.s32.totalorder %v714, %v1547
      %vm1578 = vcmp.eq.s32.totalorder %v715, %v1476
      %vm1579 = vcmp.eq.s32.totalorder %v715, %v1547
      %vm1580 = vcmp.eq.s32.totalorder %v716, %v1476
      %vm1581 = vcmp.eq.s32.totalorder %v716, %v1547
      %vm1582 = vcmp.eq.s32.totalorder %v717, %v1476
      %vm1583 = vcmp.eq.s32.totalorder %v717, %v1547
      %vm1584 = vcmp.eq.s32.totalorder %v718, %v1476
      %vm1585 = vcmp.eq.s32.totalorder %v718, %v1547
      %vm1586 = vcmp.eq.s32.totalorder %v719, %v1476
      %vm1587 = vcmp.eq.s32.totalorder %v719, %v1547
      %vm1588 = vcmp.eq.s32.totalorder %v720, %v1476
      %vm1589 = vcmp.eq.s32.totalorder %v720, %v1547
      %vm1590 = vcmp.eq.s32.totalorder %v721, %v1476
      %vm1591 = vcmp.eq.s32.totalorder %v721, %v1547
      %vm1592 = vcmp.eq.s32.totalorder %v722, %v1476
      %vm1593 = vcmp.eq.s32.totalorder %v722, %v1547
      %vm1594 = vcmp.eq.s32.totalorder %v723, %v1476
      %vm1595 = vcmp.eq.s32.totalorder %v723, %v1547
      %vm1596 = vcmp.eq.s32.totalorder %v724, %v1476
      %vm1597 = vcmp.eq.s32.totalorder %v724, %v1547
      %vm1598 = vcmp.eq.s32.totalorder %v725, %v1476
      %vm1599 = vcmp.eq.s32.totalorder %v725, %v1547
      %vm1600 = vcmp.eq.s32.totalorder %v726, %v1476
      %vm1601 = vcmp.eq.s32.totalorder %v726, %v1547
      %vm1602 = vcmp.eq.s32.totalorder %v727, %v1476
      %vm1603 = vcmp.eq.s32.totalorder %v727, %v1547
      %vm1604 = vcmp.eq.s32.totalorder %v728, %v1476
      %vm1605 = vcmp.eq.s32.totalorder %v728, %v1547
      %vm1606 = vcmp.eq.s32.totalorder %v729, %v1476
      %vm1607 = vcmp.eq.s32.totalorder %v729, %v1547
      %vm1608 = vcmp.eq.s32.totalorder %v730, %v1476
      %vm1609 = vcmp.eq.s32.totalorder %v730, %v1547
      %vm1610 = vcmp.eq.s32.totalorder %v731, %v1476
      %vm1611 = vcmp.eq.s32.totalorder %v731, %v1547
      %v1612 = vsel %vm1548, -inf, %v1140
      %v1613 = vsel %vm1549, -inf, %v1141
      %v1614 = vsel %vm1550, -inf, %v1142
      %v1615 = vsel %vm1551, -inf, %v1143
      %v1616 = vsel %vm1552, -inf, %v1144
      %v1617 = vsel %vm1553, -inf, %v1145
      %v1618 = vsel %vm1554, -inf, %v1146
      %v1619 = vsel %vm1555, -inf, %v1147
      %v1620 = vsel %vm1556, -inf, %v1148
      %v1621 = vsel %vm1557, -inf, %v1149
      %v1622 = vsel %vm1558, -inf, %v1150
      %v1623 = vsel %vm1559, -inf, %v1151
      %v1624 = vsel %vm1560, -inf, %v1152
      %v1625 = vsel %vm1561, -inf, %v1153
      %v1626 = vsel %vm1562, -inf, %v1154
      %v1627 = vsel %vm1563, -inf, %v1155
      %v1628 = vsel %vm1564, -inf, %v1156
      %v1629 = vsel %vm1565, -inf, %v1157
      %v1630 = vsel %vm1566, -inf, %v1158
      %v1631 = vsel %vm1567, -inf, %v1159
      %v1632 = vsel %vm1568, -inf, %v1160
      %v1633 = vsel %vm1569, -inf, %v1161
      %v1634 = vsel %vm1570, -inf, %v1162
      %v1635 = vsel %vm1571, -inf, %v1163
      %v1636 = vsel %vm1572, -inf, %v1164
      %v1637 = vsel %vm1573, -inf, %v1165
      %v1638 = vsel %vm1574, -inf, %v1166
      %v1639 = vsel %vm1575, -inf, %v1167
      %v1640 = vsel %vm1576, -inf, %v1168
      %v1641 = vsel %vm1577, -inf, %v1169
      %v1642 = vsel %vm1578, -inf, %v1170
      %v1643 = vsel %vm1579, -inf, %v1171
      %v1644 = vsel %vm1580, -inf, %v1172
      %v1645 = vsel %vm1581, -inf, %v1173
      %v1646 = vsel %vm1582, -inf, %v1174
      %v1647 = vsel %vm1583, -inf, %v1175
      %v1648 = vsel %vm1584, -inf, %v1176
      %v1649 = vsel %vm1585, -inf, %v1177
      %v1650 = vsel %vm1586, -inf, %v1178
      %v1651 = vsel %vm1587, -inf, %v1179
      %v1652 = vsel %vm1588, -inf, %v1180
      %v1653 = vsel %vm1589, -inf, %v1181
      %v1654 = vsel %vm1590, -inf, %v1182
      %v1655 = vsel %vm1591, -inf, %v1183
      %v1656 = vsel %vm1592, -inf, %v1184
      %v1657 = vsel %vm1593, -inf, %v1185
      %v1658 = vsel %vm1594, -inf, %v1186
      %v1659 = vsel %vm1595, -inf, %v1187
      %v1660 = vsel %vm1596, -inf, %v1188
      %v1661 = vsel %vm1597, -inf, %v1189
      %v1662 = vsel %vm1598, -inf, %v1190
      %v1663 = vsel %vm1599, -inf, %v1191
      %v1664 = vsel %vm1600, -inf, %v1192
      %v1665 = vsel %vm1601, -inf, %v1193
      %v1666 = vsel %vm1602, -inf, %v1194
      %v1667 = vsel %vm1603, -inf, %v1195
      %v1668 = vsel %vm1604, -inf, %v1196
      %v1669 = vsel %vm1605, -inf, %v1197
      %v1670 = vsel %vm1606, -inf, %v1198
      %v1671 = vsel %vm1607, -inf, %v1199
      %v1672 = vsel %vm1608, -inf, %v1200
      %v1673 = vsel %vm1609, -inf, %v1201
      %v1674 = vsel %vm1610, -inf, %v1202
      %v1675 = vsel %vm1611, -inf, %v1203
      %v1676 = vmax.f32 %v1612, %v1616
      %v1677 = vmax.f32 %v1614, %v1618
      %v1678 = vmax.f32 %v1676, %v1620
      %v1679 = vmax.f32 %v1677, %v1622
      %v1680 = vmax.f32 %v1678, %v1624
      %v1681 = vmax.f32 %v1679, %v1626
      %v1682 = vmax.f32 %v1680, %v1628
      %v1683 = vmax.f32 %v1681, %v1630
      %v1684 = vmax.f32 %v1682, %v1632
      %v1685 = vmax.f32 %v1683, %v1634
      %v1686 = vmax.f32 %v1684, %v1636
      %v1687 = vmax.f32 %v1685, %v1638
      %v1688 = vmax.f32 %v1686, %v1640
      %v1689 = vmax.f32 %v1687, %v1642
      %v1690 = vmax.f32 %v1688, %v1644
      %v1691 = vmax.f32 %v1689, %v1646
      %v1692 = vmax.f32 %v1690, %v1648
      %v1693 = vmax.f32 %v1691, %v1650
      %v1694 = vmax.f32 %v1692, %v1652
      %v1695 = vmax.f32 %v1693, %v1654
      %v1696 = vmax.f32 %v1694, %v1656
      %v1697 = vmax.f32 %v1695, %v1658
      %v1698 = vmax.f32 %v1696, %v1660
      %v1699 = vmax.f32 %v1697, %v1662
      %v1700 = vmax.f32 %v1698, %v1664
      %v1701 = vmax.f32 %v1699, %v1666
      %v1702 = vmax.f32 %v1700, %v1668
      %v1703 = vmax.f32 %v1701, %v1670
      %v1704 = vmax.f32 %v1702, %v1672
      %v1705 = vmax.f32 %v1703, %v1674
      %v1706 = vmax.f32 %v1704, %v1705
      %v1707 = vrot.slane %v1706, 4
      %v1708 = vmax.f32 %v1706, %v1707
      %v1709 = vrot.slane %v1708, 2
      %v1710 = vmax.f32 %v1708, %v1709
      %v1711 = vrot.slane %v1710, 1
      %v1712 = vmax.f32 %v1710, %v1711
      %v1713 = vmax.f32 %v1613, %v1617
      %v1714 = vmax.f32 %v1615, %v1619
      %v1715 = vmax.f32 %v1713, %v1621
      %v1716 = vmax.f32 %v1714, %v1623
      %v1717 = vmax.f32 %v1715, %v1625
      %v1718 = vmax.f32 %v1716, %v1627
      %v1719 = vmax.f32 %v1717, %v1629
      %v1720 = vmax.f32 %v1718, %v1631
      %v1721 = vmax.f32 %v1719, %v1633
      %v1722 = vmax.f32 %v1720, %v1635
      %v1723 = vmax.f32 %v1721, %v1637
      %v1724 = vmax.f32 %v1722, %v1639
      %v1725 = vmax.f32 %v1723, %v1641
      %v1726 = vmax.f32 %v1724, %v1643
      %v1727 = vmax.f32 %v1725, %v1645
      %v1728 = vmax.f32 %v1726, %v1647
      %v1729 = vmax.f32 %v1727, %v1649
      %v1730 = vmax.f32 %v1728, %v1651
      %v1731 = vmax.f32 %v1729, %v1653
      %v1732 = vmax.f32 %v1730, %v1655
      %v1733 = vmax.f32 %v1731, %v1657
      %v1734 = vmax.f32 %v1732, %v1659
      %v1735 = vmax.f32 %v1733, %v1661
      %v1736 = vmax.f32 %v1734, %v1663
      %v1737 = vmax.f32 %v1735, %v1665
      %v1738 = vmax.f32 %v1736, %v1667
      %v1739 = vmax.f32 %v1737, %v1669
      %v1740 = vmax.f32 %v1738, %v1671
      %v1741 = vmax.f32 %v1739, %v1673
      %v1742 = vmax.f32 %v1740, %v1675
      %v1743 = vmax.f32 %v1741, %v1742
      %v1744 = vrot.slane %v1743, 4
      %v1745 = vmax.f32 %v1743, %v1744
      %v1746 = vrot.slane %v1745, 2
      %v1747 = vmax.f32 %v1745, %v1746
      %v1748 = vrot.slane %v1747, 1
      %v1749 = vmax.f32 %v1747, %v1748
      %vm1750 = vcmp.eq.f32.partialorder %v1612, %v1712
      %vm1751 = vcmp.eq.f32.partialorder %v1613, %v1749
      %vm1752 = vcmp.eq.f32.partialorder %v1614, %v1712
      %vm1753 = vcmp.eq.f32.partialorder %v1615, %v1749
      %vm1754 = vcmp.eq.f32.partialorder %v1616, %v1712
      %vm1755 = vcmp.eq.f32.partialorder %v1617, %v1749
      %vm1756 = vcmp.eq.f32.partialorder %v1618, %v1712
      %vm1757 = vcmp.eq.f32.partialorder %v1619, %v1749
      %vm1758 = vcmp.eq.f32.partialorder %v1620, %v1712
      %vm1759 = vcmp.eq.f32.partialorder %v1621, %v1749
      %vm1760 = vcmp.eq.f32.partialorder %v1622, %v1712
      %vm1761 = vcmp.eq.f32.partialorder %v1623, %v1749
      %vm1762 = vcmp.eq.f32.partialorder %v1624, %v1712
      %vm1763 = vcmp.eq.f32.partialorder %v1625, %v1749
      %vm1764 = vcmp.eq.f32.partialorder %v1626, %v1712
      %vm1765 = vcmp.eq.f32.partialorder %v1627, %v1749
      %vm1766 = vcmp.eq.f32.partialorder %v1628, %v1712
      %vm1767 = vcmp.eq.f32.partialorder %v1629, %v1749
      %vm1768 = vcmp.eq.f32.partialorder %v1630, %v1712
      %vm1769 = vcmp.eq.f32.partialorder %v1631, %v1749
      %vm1770 = vcmp.eq.f32.partialorder %v1632, %v1712
      %vm1771 = vcmp.eq.f32.partialorder %v1633, %v1749
      %vm1772 = vcmp.eq.f32.partialorder %v1634, %v1712
      %vm1773 = vcmp.eq.f32.partialorder %v1635, %v1749
      %vm1774 = vcmp.eq.f32.partialorder %v1636, %v1712
      %vm1775 = vcmp.eq.f32.partialorder %v1637, %v1749
      %vm1776 = vcmp.eq.f32.partialorder %v1638, %v1712
      %vm1777 = vcmp.eq.f32.partialorder %v1639, %v1749
      %vm1778 = vcmp.eq.f32.partialorder %v1640, %v1712
      %vm1779 = vcmp.eq.f32.partialorder %v1641, %v1749
      %vm1780 = vcmp.eq.f32.partialorder %v1642, %v1712
      %vm1781 = vcmp.eq.f32.partialorder %v1643, %v1749
      %vm1782 = vcmp.eq.f32.partialorder %v1644, %v1712
      %vm1783 = vcmp.eq.f32.partialorder %v1645, %v1749
      %vm1784 = vcmp.eq.f32.partialorder %v1646, %v1712
      %vm1785 = vcmp.eq.f32.partialorder %v1647, %v1749
      %vm1786 = vcmp.eq.f32.partialorder %v1648, %v1712
      %vm1787 = vcmp.eq.f32.partialorder %v1649, %v1749
      %vm1788 = vcmp.eq.f32.partialorder %v1650, %v1712
      %vm1789 = vcmp.eq.f32.partialorder %v1651, %v1749
      %vm1790 = vcmp.eq.f32.partialorder %v1652, %v1712
      %vm1791 = vcmp.eq.f32.partialorder %v1653, %v1749
      %vm1792 = vcmp.eq.f32.partialorder %v1654, %v1712
      %vm1793 = vcmp.eq.f32.partialorder %v1655, %v1749
      %vm1794 = vcmp.eq.f32.partialorder %v1656, %v1712
      %vm1795 = vcmp.eq.f32.partialorder %v1657, %v1749
      %vm1796 = vcmp.eq.f32.partialorder %v1658, %v1712
      %vm1797 = vcmp.eq.f32.partialorder %v1659, %v1749
      %vm1798 = vcmp.eq.f32.partialorder %v1660, %v1712
      %vm1799 = vcmp.eq.f32.partialorder %v1661, %v1749
      %vm1800 = vcmp.eq.f32.partialorder %v1662, %v1712
      %vm1801 = vcmp.eq.f32.partialorder %v1663, %v1749
      %vm1802 = vcmp.eq.f32.partialorder %v1664, %v1712
      %vm1803 = vcmp.eq.f32.partialorder %v1665, %v1749
      %vm1804 = vcmp.eq.f32.partialorder %v1666, %v1712
      %vm1805 = vcmp.eq.f32.partialorder %v1667, %v1749
      %vm1806 = vcmp.eq.f32.partialorder %v1668, %v1712
      %vm1807 = vcmp.eq.f32.partialorder %v1669, %v1749
      %vm1808 = vcmp.eq.f32.partialorder %v1670, %v1712
      %vm1809 = vcmp.eq.f32.partialorder %v1671, %v1749
      %vm1810 = vcmp.eq.f32.partialorder %v1672, %v1712
      %vm1811 = vcmp.eq.f32.partialorder %v1673, %v1749
      %vm1812 = vcmp.eq.f32.partialorder %v1674, %v1712
      %vm1813 = vcmp.eq.f32.partialorder %v1675, %v1749
      %v1814 = vsel %vm1750, %v700, 256
      %v1815 = vsel %vm1751, %v700, 256
      %v1816 = vsel %vm1752, %v701, 256
      %v1817 = vsel %vm1753, %v701, 256
      %v1818 = vsel %vm1754, %v702, 256
      %v1819 = vsel %vm1755, %v702, 256
      %v1820 = vsel %vm1756, %v703, 256
      %v1821 = vsel %vm1757, %v703, 256
      %v1822 = vsel %vm1758, %v704, 256
      %v1823 = vsel %vm1759, %v704, 256
      %v1824 = vsel %vm1760, %v705, 256
      %v1825 = vsel %vm1761, %v705, 256
      %v1826 = vsel %vm1762, %v706, 256
      %v1827 = vsel %vm1763, %v706, 256
      %v1828 = vsel %vm1764, %v707, 256
      %v1829 = vsel %vm1765, %v707, 256
      %v1830 = vsel %vm1766, %v708, 256
      %v1831 = vsel %vm1767, %v708, 256
      %v1832 = vsel %vm1768, %v709, 256
      %v1833 = vsel %vm1769, %v709, 256
      %v1834 = vsel %vm1770, %v710, 256
      %v1835 = vsel %vm1771, %v710, 256
      %v1836 = vsel %vm1772, %v711, 256
      %v1837 = vsel %vm1773, %v711, 256
      %v1838 = vsel %vm1774, %v712, 256
      %v1839 = vsel %vm1775, %v712, 256
      %v1840 = vsel %vm1776, %v713, 256
      %v1841 = vsel %vm1777, %v713, 256
      %v1842 = vsel %vm1778, %v714, 256
      %v1843 = vsel %vm1779, %v714, 256
      %v1844 = vsel %vm1780, %v715, 256
      %v1845 = vsel %vm1781, %v715, 256
      %v1846 = vsel %vm1782, %v716, 256
      %v1847 = vsel %vm1783, %v716, 256
      %v1848 = vsel %vm1784, %v717, 256
      %v1849 = vsel %vm1785, %v717, 256
      %v1850 = vsel %vm1786, %v718, 256
      %v1851 = vsel %vm1787, %v718, 256
      %v1852 = vsel %vm1788, %v719, 256
      %v1853 = vsel %vm1789, %v719, 256
      %v1854 = vsel %vm1790, %v720, 256
      %v1855 = vsel %vm1791, %v720, 256
      %v1856 = vsel %vm1792, %v721, 256
      %v1857 = vsel %vm1793, %v721, 256
      %v1858 = vsel %vm1794, %v722, 256
      %v1859 = vsel %vm1795, %v722, 256
      %v1860 = vsel %vm1796, %v723, 256
      %v1861 = vsel %vm1797, %v723, 256
      %v1862 = vsel %vm1798, %v724, 256
      %v1863 = vsel %vm1799, %v724, 256
      %v1864 = vsel %vm1800, %v725, 256
      %v1865 = vsel %vm1801, %v725, 256
      %v1866 = vsel %vm1802, %v726, 256
      %v1867 = vsel %vm1803, %v726, 256
      %v1868 = vsel %vm1804, %v727, 256
      %v1869 = vsel %vm1805, %v727, 256
      %v1870 = vsel %vm1806, %v728, 256
      %v1871 = vsel %vm1807, %v728, 256
      %v1872 = vsel %vm1808, %v729, 256
      %v1873 = vsel %vm1809, %v729, 256
      %v1874 = vsel %vm1810, %v730, 256
      %v1875 = vsel %vm1811, %v730, 256
      %v1876 = vsel %vm1812, %v731, 256
      %v1877 = vsel %vm1813, %v731, 256
      %vm1878 = vcmp.lt.s32.totalorder %v1814, %v1818
      %v1879 = vsel %vm1878, %v1814, %v1818
      %vm1880 = vcmp.lt.s32.totalorder %v1816, %v1820
      %v1881 = vsel %vm1880, %v1816, %v1820
      %vm1882 = vcmp.lt.s32.totalorder %v1879, %v1822
      %v1883 = vsel %vm1882, %v1879, %v1822
      %vm1884 = vcmp.lt.s32.totalorder %v1881, %v1824
      %v1885 = vsel %vm1884, %v1881, %v1824
      %vm1886 = vcmp.lt.s32.totalorder %v1883, %v1826
      %v1887 = vsel %vm1886, %v1883, %v1826
      %vm1888 = vcmp.lt.s32.totalorder %v1885, %v1828
      %v1889 = vsel %vm1888, %v1885, %v1828
      %vm1890 = vcmp.lt.s32.totalorder %v1887, %v1830
      %v1891 = vsel %vm1890, %v1887, %v1830
      %vm1892 = vcmp.lt.s32.totalorder %v1889, %v1832
      %v1893 = vsel %vm1892, %v1889, %v1832
      %vm1894 = vcmp.lt.s32.totalorder %v1891, %v1834
      %v1895 = vsel %vm1894, %v1891, %v1834
      %vm1896 = vcmp.lt.s32.totalorder %v1893, %v1836
      %v1897 = vsel %vm1896, %v1893, %v1836
      %vm1898 = vcmp.lt.s32.totalorder %v1895, %v1838
      %v1899 = vsel %vm1898, %v1895, %v1838
      %vm1900 = vcmp.lt.s32.totalorder %v1897, %v1840
      %v1901 = vsel %vm1900, %v1897, %v1840
      %vm1902 = vcmp.lt.s32.totalorder %v1899, %v1842
      %v1903 = vsel %vm1902, %v1899, %v1842
      %vm1904 = vcmp.lt.s32.totalorder %v1901, %v1844
      %v1905 = vsel %vm1904, %v1901, %v1844
      %vm1906 = vcmp.lt.s32.totalorder %v1903, %v1846
      %v1907 = vsel %vm1906, %v1903, %v1846
      %vm1908 = vcmp.lt.s32.totalorder %v1905, %v1848
      %v1909 = vsel %vm1908, %v1905, %v1848
      %vm1910 = vcmp.lt.s32.totalorder %v1907, %v1850
      %v1911 = vsel %vm1910, %v1907, %v1850
      %vm1912 = vcmp.lt.s32.totalorder %v1909, %v1852
      %v1913 = vsel %vm1912, %v1909, %v1852
      %vm1914 = vcmp.lt.s32.totalorder %v1911, %v1854
      %v1915 = vsel %vm1914, %v1911, %v1854
      %vm1916 = vcmp.lt.s32.totalorder %v1913, %v1856
      %v1917 = vsel %vm1916, %v1913, %v1856
      %vm1918 = vcmp.lt.s32.totalorder %v1915, %v1858
      %v1919 = vsel %vm1918, %v1915, %v1858
      %vm1920 = vcmp.lt.s32.totalorder %v1917, %v1860
      %v1921 = vsel %vm1920, %v1917, %v1860
      %vm1922 = vcmp.lt.s32.totalorder %v1919, %v1862
      %v1923 = vsel %vm1922, %v1919, %v1862
      %vm1924 = vcmp.lt.s32.totalorder %v1921, %v1864
      %v1925 = vsel %vm1924, %v1921, %v1864
      %vm1926 = vcmp.lt.s32.totalorder %v1923, %v1866
      %v1927 = vsel %vm1926, %v1923, %v1866
      %vm1928 = vcmp.lt.s32.totalorder %v1925, %v1868
      %v1929 = vsel %vm1928, %v1925, %v1868
      %vm1930 = vcmp.lt.s32.totalorder %v1927, %v1870
      %v1931 = vsel %vm1930, %v1927, %v1870
      %vm1932 = vcmp.lt.s32.totalorder %v1929, %v1872
      %v1933 = vsel %vm1932, %v1929, %v1872
      %vm1934 = vcmp.lt.s32.totalorder %v1931, %v1874
      %v1935 = vsel %vm1934, %v1931, %v1874
      %vm1936 = vcmp.lt.s32.totalorder %v1933, %v1876
      %v1937 = vsel %vm1936, %v1933, %v1876
      %vm1938 = vcmp.lt.s32.totalorder %v1935, %v1937
      %v1939 = vsel %vm1938, %v1935, %v1937
      %v1940 = vrot.slane %v1939, 4
      %vm1941 = vcmp.lt.s32.totalorder %v1939, %v1940
      %v1942 = vsel %vm1941, %v1939, %v1940
      %v1943 = vrot.slane %v1942, 2
      %vm1944 = vcmp.lt.s32.totalorder %v1942, %v1943
      %v1945 = vsel %vm1944, %v1942, %v1943
      %v1946 = vrot.slane %v1945, 1
      %vm1947 = vcmp.lt.s32.totalorder %v1945, %v1946
      %v1948 = vsel %vm1947, %v1945, %v1946
      %vm1949 = vcmp.lt.s32.totalorder %v1815, %v1819
      %v1950 = vsel %vm1949, %v1815, %v1819
      %vm1951 = vcmp.lt.s32.totalorder %v1817, %v1821
      %v1952 = vsel %vm1951, %v1817, %v1821
      %vm1953 = vcmp.lt.s32.totalorder %v1950, %v1823
      %v1954 = vsel %vm1953, %v1950, %v1823
      %vm1955 = vcmp.lt.s32.totalorder %v1952, %v1825
      %v1956 = vsel %vm1955, %v1952, %v1825
      %vm1957 = vcmp.lt.s32.totalorder %v1954, %v1827
      %v1958 = vsel %vm1957, %v1954, %v1827
      %vm1959 = vcmp.lt.s32.totalorder %v1956, %v1829
      %v1960 = vsel %vm1959, %v1956, %v1829
      %vm1961 = vcmp.lt.s32.totalorder %v1958, %v1831
      %v1962 = vsel %vm1961, %v1958, %v1831
      %vm1963 = vcmp.lt.s32.totalorder %v1960, %v1833
      %v1964 = vsel %vm1963, %v1960, %v1833
      %vm1965 = vcmp.lt.s32.totalorder %v1962, %v1835
      %v1966 = vsel %vm1965, %v1962, %v1835
      %vm1967 = vcmp.lt.s32.totalorder %v1964, %v1837
      %v1968 = vsel %vm1967, %v1964, %v1837
      %vm1969 = vcmp.lt.s32.totalorder %v1966, %v1839
      %v1970 = vsel %vm1969, %v1966, %v1839
      %vm1971 = vcmp.lt.s32.totalorder %v1968, %v1841
      %v1972 = vsel %vm1971, %v1968, %v1841
      %vm1973 = vcmp.lt.s32.totalorder %v1970, %v1843
      %v1974 = vsel %vm1973, %v1970, %v1843
      %vm1975 = vcmp.lt.s32.totalorder %v1972, %v1845
      %v1976 = vsel %vm1975, %v1972, %v1845
      %vm1977 = vcmp.lt.s32.totalorder %v1974, %v1847
      %v1978 = vsel %vm1977, %v1974, %v1847
      %vm1979 = vcmp.lt.s32.totalorder %v1976, %v1849
      %v1980 = vsel %vm1979, %v1976, %v1849
      %vm1981 = vcmp.lt.s32.totalorder %v1978, %v1851
      %v1982 = vsel %vm1981, %v1978, %v1851
      %vm1983 = vcmp.lt.s32.totalorder %v1980, %v1853
      %v1984 = vsel %vm1983, %v1980, %v1853
      %vm1985 = vcmp.lt.s32.totalorder %v1982, %v1855
      %v1986 = vsel %vm1985, %v1982, %v1855
      %vm1987 = vcmp.lt.s32.totalorder %v1984, %v1857
      %v1988 = vsel %vm1987, %v1984, %v1857
      %vm1989 = vcmp.lt.s32.totalorder %v1986, %v1859
      %v1990 = vsel %vm1989, %v1986, %v1859
      %vm1991 = vcmp.lt.s32.totalorder %v1988, %v1861
      %v1992 = vsel %vm1991, %v1988, %v1861
      %vm1993 = vcmp.lt.s32.totalorder %v1990, %v1863
      %v1994 = vsel %vm1993, %v1990, %v1863
      %vm1995 = vcmp.lt.s32.totalorder %v1992, %v1865
      %v1996 = vsel %vm1995, %v1992, %v1865
      %vm1997 = vcmp.lt.s32.totalorder %v1994, %v1867
      %v1998 = vsel %vm1997, %v1994, %v1867
      %vm1999 = vcmp.lt.s32.totalorder %v1996, %v1869
      %v2000 = vsel %vm1999, %v1996, %v1869
      %vm2001 = vcmp.lt.s32.totalorder %v1998, %v1871
      %v2002 = vsel %vm2001, %v1998, %v1871
      %vm2003 = vcmp.lt.s32.totalorder %v2000, %v1873
      %v2004 = vsel %vm2003, %v2000, %v1873
      %vm2005 = vcmp.lt.s32.totalorder %v2002, %v1875
      %v2006 = vsel %vm2005, %v2002, %v1875
      %vm2007 = vcmp.lt.s32.totalorder %v2004, %v1877
      %v2008 = vsel %vm2007, %v2004, %v1877
      %vm2009 = vcmp.lt.s32.totalorder %v2006, %v2008
      %v2010 = vsel %vm2009, %v2006, %v2008
      %v2011 = vrot.slane %v2010, 4
      %vm2012 = vcmp.lt.s32.totalorder %v2010, %v2011
      %v2013 = vsel %vm2012, %v2010, %v2011
      %v2014 = vrot.slane %v2013, 2
      %vm2015 = vcmp.lt.s32.totalorder %v2013, %v2014
      %v2016 = vsel %vm2015, %v2013, %v2014
      %v2017 = vrot.slane %v2016, 1
      %vm2018 = vcmp.lt.s32.totalorder %v2016, %v2017
      %v2019 = vsel %vm2018, %v2016, %v2017
      %vm2020 = vcmp.eq.s32.totalorder %v700, %v1948
      %vm2021 = vcmp.eq.s32.totalorder %v700, %v2019
      %vm2022 = vcmp.eq.s32.totalorder %v701, %v1948
      %vm2023 = vcmp.eq.s32.totalorder %v701, %v2019
      %vm2024 = vcmp.eq.s32.totalorder %v702, %v1948
      %vm2025 = vcmp.eq.s32.totalorder %v702, %v2019
      %vm2026 = vcmp.eq.s32.totalorder %v703, %v1948
      %vm2027 = vcmp.eq.s32.totalorder %v703, %v2019
      %vm2028 = vcmp.eq.s32.totalorder %v704, %v1948
      %vm2029 = vcmp.eq.s32.totalorder %v704, %v2019
      %vm2030 = vcmp.eq.s32.totalorder %v705, %v1948
      %vm2031 = vcmp.eq.s32.totalorder %v705, %v2019
      %vm2032 = vcmp.eq.s32.totalorder %v706, %v1948
      %vm2033 = vcmp.eq.s32.totalorder %v706, %v2019
      %vm2034 = vcmp.eq.s32.totalorder %v707, %v1948
      %vm2035 = vcmp.eq.s32.totalorder %v707, %v2019
      %vm2036 = vcmp.eq.s32.totalorder %v708, %v1948
      %vm2037 = vcmp.eq.s32.totalorder %v708, %v2019
      %vm2038 = vcmp.eq.s32.totalorder %v709, %v1948
      %vm2039 = vcmp.eq.s32.totalorder %v709, %v2019
      %vm2040 = vcmp.eq.s32.totalorder %v710, %v1948
      %vm2041 = vcmp.eq.s32.totalorder %v710, %v2019
      %vm2042 = vcmp.eq.s32.totalorder %v711, %v1948
      %vm2043 = vcmp.eq.s32.totalorder %v711, %v2019
      %vm2044 = vcmp.eq.s32.totalorder %v712, %v1948
      %vm2045 = vcmp.eq.s32.totalorder %v712, %v2019
      %vm2046 = vcmp.eq.s32.totalorder %v713, %v1948
      %vm2047 = vcmp.eq.s32.totalorder %v713, %v2019
      %vm2048 = vcmp.eq.s32.totalorder %v714, %v1948
      %vm2049 = vcmp.eq.s32.totalorder %v714, %v2019
      %vm2050 = vcmp.eq.s32.totalorder %v715, %v1948
      %vm2051 = vcmp.eq.s32.totalorder %v715, %v2019
      %vm2052 = vcmp.eq.s32.totalorder %v716, %v1948
      %vm2053 = vcmp.eq.s32.totalorder %v716, %v2019
      %vm2054 = vcmp.eq.s32.totalorder %v717, %v1948
      %vm2055 = vcmp.eq.s32.totalorder %v717, %v2019
      %vm2056 = vcmp.eq.s32.totalorder %v718, %v1948
      %vm2057 = vcmp.eq.s32.totalorder %v718, %v2019
      %vm2058 = vcmp.eq.s32.totalorder %v719, %v1948
      %vm2059 = vcmp.eq.s32.totalorder %v719, %v2019
      %vm2060 = vcmp.eq.s32.totalorder %v720, %v1948
      %vm2061 = vcmp.eq.s32.totalorder %v720, %v2019
      %vm2062 = vcmp.eq.s32.totalorder %v721, %v1948
      %vm2063 = vcmp.eq.s32.totalorder %v721, %v2019
      %vm2064 = vcmp.eq.s32.totalorder %v722, %v1948
      %vm2065 = vcmp.eq.s32.totalorder %v722, %v2019
      %vm2066 = vcmp.eq.s32.totalorder %v723, %v1948
      %vm2067 = vcmp.eq.s32.totalorder %v723, %v2019
      %vm2068 = vcmp.eq.s32.totalorder %v724, %v1948
      %vm2069 = vcmp.eq.s32.totalorder %v724, %v2019
      %vm2070 = vcmp.eq.s32.totalorder %v725, %v1948
      %vm2071 = vcmp.eq.s32.totalorder %v725, %v2019
      %vm2072 = vcmp.eq.s32.totalorder %v726, %v1948
      %vm2073 = vcmp.eq.s32.totalorder %v726, %v2019
      %vm2074 = vcmp.eq.s32.totalorder %v727, %v1948
      %vm2075 = vcmp.eq.s32.totalorder %v727, %v2019
      %vm2076 = vcmp.eq.s32.totalorder %v728, %v1948
      %vm2077 = vcmp.eq.s32.totalorder %v728, %v2019
      %vm2078 = vcmp.eq.s32.totalorder %v729, %v1948
      %vm2079 = vcmp.eq.s32.totalorder %v729, %v2019
      %vm2080 = vcmp.eq.s32.totalorder %v730, %v1948
      %vm2081 = vcmp.eq.s32.totalorder %v730, %v2019
      %vm2082 = vcmp.eq.s32.totalorder %v731, %v1948
      %vm2083 = vcmp.eq.s32.totalorder %v731, %v2019
      %v2084 = vsel %vm2020, -inf, %v1612
      %v2085 = vsel %vm2021, -inf, %v1613
      %v2086 = vsel %vm2022, -inf, %v1614
      %v2087 = vsel %vm2023, -inf, %v1615
      %v2088 = vsel %vm2024, -inf, %v1616
      %v2089 = vsel %vm2025, -inf, %v1617
      %v2090 = vsel %vm2026, -inf, %v1618
      %v2091 = vsel %vm2027, -inf, %v1619
      %v2092 = vsel %vm2028, -inf, %v1620
      %v2093 = vsel %vm2029, -inf, %v1621
      %v2094 = vsel %vm2030, -inf, %v1622
      %v2095 = vsel %vm2031, -inf, %v1623
      %v2096 = vsel %vm2032, -inf, %v1624
      %v2097 = vsel %vm2033, -inf, %v1625
      %v2098 = vsel %vm2034, -inf, %v1626
      %v2099 = vsel %vm2035, -inf, %v1627
      %v2100 = vsel %vm2036, -inf, %v1628
      %v2101 = vsel %vm2037, -inf, %v1629
      %v2102 = vsel %vm2038, -inf, %v1630
      %v2103 = vsel %vm2039, -inf, %v1631
      %v2104 = vsel %vm2040, -inf, %v1632
      %v2105 = vsel %vm2041, -inf, %v1633
      %v2106 = vsel %vm2042, -inf, %v1634
      %v2107 = vsel %vm2043, -inf, %v1635
      %v2108 = vsel %vm2044, -inf, %v1636
      %v2109 = vsel %vm2045, -inf, %v1637
      %v2110 = vsel %vm2046, -inf, %v1638
      %v2111 = vsel %vm2047, -inf, %v1639
      %v2112 = vsel %vm2048, -inf, %v1640
      %v2113 = vsel %vm2049, -inf, %v1641
      %v2114 = vsel %vm2050, -inf, %v1642
      %v2115 = vsel %vm2051, -inf, %v1643
      %v2116 = vsel %vm2052, -inf, %v1644
      %v2117 = vsel %vm2053, -inf, %v1645
      %v2118 = vsel %vm2054, -inf, %v1646
      %v2119 = vsel %vm2055, -inf, %v1647
      %v2120 = vsel %vm2056, -inf, %v1648
      %v2121 = vsel %vm2057, -inf, %v1649
      %v2122 = vsel %vm2058, -inf, %v1650
      %v2123 = vsel %vm2059, -inf, %v1651
      %v2124 = vsel %vm2060, -inf, %v1652
      %v2125 = vsel %vm2061, -inf, %v1653
      %v2126 = vsel %vm2062, -inf, %v1654
      %v2127 = vsel %vm2063, -inf, %v1655
      %v2128 = vsel %vm2064, -inf, %v1656
      %v2129 = vsel %vm2065, -inf, %v1657
      %v2130 = vsel %vm2066, -inf, %v1658
      %v2131 = vsel %vm2067, -inf, %v1659
      %v2132 = vsel %vm2068, -inf, %v1660
      %v2133 = vsel %vm2069, -inf, %v1661
      %v2134 = vsel %vm2070, -inf, %v1662
      %v2135 = vsel %vm2071, -inf, %v1663
      %v2136 = vsel %vm2072, -inf, %v1664
      %v2137 = vsel %vm2073, -inf, %v1665
      %v2138 = vsel %vm2074, -inf, %v1666
      %v2139 = vsel %vm2075, -inf, %v1667
      %v2140 = vsel %vm2076, -inf, %v1668
      %v2141 = vsel %vm2077, -inf, %v1669
      %v2142 = vsel %vm2078, -inf, %v1670
      %v2143 = vsel %vm2079, -inf, %v1671
      %v2144 = vsel %vm2080, -inf, %v1672
      %v2145 = vsel %vm2081, -inf, %v1673
      %v2146 = vsel %vm2082, -inf, %v1674
      %v2147 = vsel %vm2083, -inf, %v1675
      %v2148 = vmax.f32 %v2084, %v2088
      %v2149 = vmax.f32 %v2086, %v2090
      %v2150 = vmax.f32 %v2148, %v2092
      %v2151 = vmax.f32 %v2149, %v2094
      %v2152 = vmax.f32 %v2150, %v2096
      %v2153 = vmax.f32 %v2151, %v2098
      %v2154 = vmax.f32 %v2152, %v2100
      %v2155 = vmax.f32 %v2153, %v2102
      %v2156 = vmax.f32 %v2154, %v2104
      %v2157 = vmax.f32 %v2155, %v2106
      %v2158 = vmax.f32 %v2156, %v2108
      %v2159 = vmax.f32 %v2157, %v2110
      %v2160 = vmax.f32 %v2158, %v2112
      %v2161 = vmax.f32 %v2159, %v2114
      %v2162 = vmax.f32 %v2160, %v2116
      %v2163 = vmax.f32 %v2161, %v2118
      %v2164 = vmax.f32 %v2162, %v2120
      %v2165 = vmax.f32 %v2163, %v2122
      %v2166 = vmax.f32 %v2164, %v2124
      %v2167 = vmax.f32 %v2165, %v2126
      %v2168 = vmax.f32 %v2166, %v2128
      %v2169 = vmax.f32 %v2167, %v2130
      %v2170 = vmax.f32 %v2168, %v2132
      %v2171 = vmax.f32 %v2169, %v2134
      %v2172 = vmax.f32 %v2170, %v2136
      %v2173 = vmax.f32 %v2171, %v2138
      %v2174 = vmax.f32 %v2172, %v2140
      %v2175 = vmax.f32 %v2173, %v2142
      %v2176 = vmax.f32 %v2174, %v2144
      %v2177 = vmax.f32 %v2175, %v2146
      %v2178 = vmax.f32 %v2176, %v2177
      %v2179 = vrot.slane %v2178, 4
      %v2180 = vmax.f32 %v2178, %v2179
      %v2181 = vrot.slane %v2180, 2
      %v2182 = vmax.f32 %v2180, %v2181
      %v2183 = vrot.slane %v2182, 1
      %v2184 = vmax.f32 %v2182, %v2183
      %v2185 = vmax.f32 %v2085, %v2089
      %v2186 = vmax.f32 %v2087, %v2091
      %v2187 = vmax.f32 %v2185, %v2093
      %v2188 = vmax.f32 %v2186, %v2095
      %v2189 = vmax.f32 %v2187, %v2097
      %v2190 = vmax.f32 %v2188, %v2099
      %v2191 = vmax.f32 %v2189, %v2101
      %v2192 = vmax.f32 %v2190, %v2103
      %v2193 = vmax.f32 %v2191, %v2105
      %v2194 = vmax.f32 %v2192, %v2107
      %v2195 = vmax.f32 %v2193, %v2109
      %v2196 = vmax.f32 %v2194, %v2111
      %v2197 = vmax.f32 %v2195, %v2113
      %v2198 = vmax.f32 %v2196, %v2115
      %v2199 = vmax.f32 %v2197, %v2117
      %v2200 = vmax.f32 %v2198, %v2119
      %v2201 = vmax.f32 %v2199, %v2121
      %v2202 = vmax.f32 %v2200, %v2123
      %v2203 = vmax.f32 %v2201, %v2125
      %v2204 = vmax.f32 %v2202, %v2127
      %v2205 = vmax.f32 %v2203, %v2129
      %v2206 = vmax.f32 %v2204, %v2131
      %v2207 = vmax.f32 %v2205, %v2133
      %v2208 = vmax.f32 %v2206, %v2135
      %v2209 = vmax.f32 %v2207, %v2137
      %v2210 = vmax.f32 %v2208, %v2139
      %v2211 = vmax.f32 %v2209, %v2141
      %v2212 = vmax.f32 %v2210, %v2143
      %v2213 = vmax.f32 %v2211, %v2145
      %v2214 = vmax.f32 %v2212, %v2147
      %v2215 = vmax.f32 %v2213, %v2214
      %v2216 = vrot.slane %v2215, 4
      %v2217 = vmax.f32 %v2215, %v2216
      %v2218 = vrot.slane %v2217, 2
      %v2219 = vmax.f32 %v2217, %v2218
      %v2220 = vrot.slane %v2219, 1
      %v2221 = vmax.f32 %v2219, %v2220
      %vm2222 = vcmp.eq.f32.partialorder %v2084, %v2184
      %vm2223 = vcmp.eq.f32.partialorder %v2085, %v2221
      %vm2224 = vcmp.eq.f32.partialorder %v2086, %v2184
      %vm2225 = vcmp.eq.f32.partialorder %v2087, %v2221
      %vm2226 = vcmp.eq.f32.partialorder %v2088, %v2184
      %vm2227 = vcmp.eq.f32.partialorder %v2089, %v2221
      %vm2228 = vcmp.eq.f32.partialorder %v2090, %v2184
      %vm2229 = vcmp.eq.f32.partialorder %v2091, %v2221
      %vm2230 = vcmp.eq.f32.partialorder %v2092, %v2184
      %vm2231 = vcmp.eq.f32.partialorder %v2093, %v2221
      %vm2232 = vcmp.eq.f32.partialorder %v2094, %v2184
      %vm2233 = vcmp.eq.f32.partialorder %v2095, %v2221
      %vm2234 = vcmp.eq.f32.partialorder %v2096, %v2184
      %vm2235 = vcmp.eq.f32.partialorder %v2097, %v2221
      %vm2236 = vcmp.eq.f32.partialorder %v2098, %v2184
      %vm2237 = vcmp.eq.f32.partialorder %v2099, %v2221
      %vm2238 = vcmp.eq.f32.partialorder %v2100, %v2184
      %vm2239 = vcmp.eq.f32.partialorder %v2101, %v2221
      %vm2240 = vcmp.eq.f32.partialorder %v2102, %v2184
      %vm2241 = vcmp.eq.f32.partialorder %v2103, %v2221
      %vm2242 = vcmp.eq.f32.partialorder %v2104, %v2184
      %vm2243 = vcmp.eq.f32.partialorder %v2105, %v2221
      %vm2244 = vcmp.eq.f32.partialorder %v2106, %v2184
      %vm2245 = vcmp.eq.f32.partialorder %v2107, %v2221
      %vm2246 = vcmp.eq.f32.partialorder %v2108, %v2184
      %vm2247 = vcmp.eq.f32.partialorder %v2109, %v2221
      %vm2248 = vcmp.eq.f32.partialorder %v2110, %v2184
      %vm2249 = vcmp.eq.f32.partialorder %v2111, %v2221
      %vm2250 = vcmp.eq.f32.partialorder %v2112, %v2184
      %vm2251 = vcmp.eq.f32.partialorder %v2113, %v2221
      %vm2252 = vcmp.eq.f32.partialorder %v2114, %v2184
      %vm2253 = vcmp.eq.f32.partialorder %v2115, %v2221
      %vm2254 = vcmp.eq.f32.partialorder %v2116, %v2184
      %vm2255 = vcmp.eq.f32.partialorder %v2117, %v2221
      %vm2256 = vcmp.eq.f32.partialorder %v2118, %v2184
      %vm2257 = vcmp.eq.f32.partialorder %v2119, %v2221
      %vm2258 = vcmp.eq.f32.partialorder %v2120, %v2184
      %vm2259 = vcmp.eq.f32.partialorder %v2121, %v2221
      %vm2260 = vcmp.eq.f32.partialorder %v2122, %v2184
      %vm2261 = vcmp.eq.f32.partialorder %v2123, %v2221
      %vm2262 = vcmp.eq.f32.partialorder %v2124, %v2184
      %vm2263 = vcmp.eq.f32.partialorder %v2125, %v2221
      %vm2264 = vcmp.eq.f32.partialorder %v2126, %v2184
      %vm2265 = vcmp.eq.f32.partialorder %v2127, %v2221
      %vm2266 = vcmp.eq.f32.partialorder %v2128, %v2184
      %vm2267 = vcmp.eq.f32.partialorder %v2129, %v2221
      %vm2268 = vcmp.eq.f32.partialorder %v2130, %v2184
      %vm2269 = vcmp.eq.f32.partialorder %v2131, %v2221
      %vm2270 = vcmp.eq.f32.partialorder %v2132, %v2184
      %vm2271 = vcmp.eq.f32.partialorder %v2133, %v2221
      %vm2272 = vcmp.eq.f32.partialorder %v2134, %v2184
      %vm2273 = vcmp.eq.f32.partialorder %v2135, %v2221
      %vm2274 = vcmp.eq.f32.partialorder %v2136, %v2184
      %vm2275 = vcmp.eq.f32.partialorder %v2137, %v2221
      %vm2276 = vcmp.eq.f32.partialorder %v2138, %v2184
      %vm2277 = vcmp.eq.f32.partialorder %v2139, %v2221
      %vm2278 = vcmp.eq.f32.partialorder %v2140, %v2184
      %vm2279 = vcmp.eq.f32.partialorder %v2141, %v2221
      %vm2280 = vcmp.eq.f32.partialorder %v2142, %v2184
      %vm2281 = vcmp.eq.f32.partialorder %v2143, %v2221
      %vm2282 = vcmp.eq.f32.partialorder %v2144, %v2184
      %vm2283 = vcmp.eq.f32.partialorder %v2145, %v2221
      %vm2284 = vcmp.eq.f32.partialorder %v2146, %v2184
      %vm2285 = vcmp.eq.f32.partialorder %v2147, %v2221
      %v2286 = vsel %vm2222, %v700, 256
      %v2287 = vsel %vm2223, %v700, 256
      %v2288 = vsel %vm2224, %v701, 256
      %v2289 = vsel %vm2225, %v701, 256
      %v2290 = vsel %vm2226, %v702, 256
      %v2291 = vsel %vm2227, %v702, 256
      %v2292 = vsel %vm2228, %v703, 256
      %v2293 = vsel %vm2229, %v703, 256
      %v2294 = vsel %vm2230, %v704, 256
      %v2295 = vsel %vm2231, %v704, 256
      %v2296 = vsel %vm2232, %v705, 256
      %v2297 = vsel %vm2233, %v705, 256
      %v2298 = vsel %vm2234, %v706, 256
      %v2299 = vsel %vm2235, %v706, 256
      %v2300 = vsel %vm2236, %v707, 256
      %v2301 = vsel %vm2237, %v707, 256
      %v2302 = vsel %vm2238, %v708, 256
      %v2303 = vsel %vm2239, %v708, 256
      %v2304 = vsel %vm2240, %v709, 256
      %v2305 = vsel %vm2241, %v709, 256
      %v2306 = vsel %vm2242, %v710, 256
      %v2307 = vsel %vm2243, %v710, 256
      %v2308 = vsel %vm2244, %v711, 256
      %v2309 = vsel %vm2245, %v711, 256
      %v2310 = vsel %vm2246, %v712, 256
      %v2311 = vsel %vm2247, %v712, 256
      %v2312 = vsel %vm2248, %v713, 256
      %v2313 = vsel %vm2249, %v713, 256
      %v2314 = vsel %vm2250, %v714, 256
      %v2315 = vsel %vm2251, %v714, 256
      %v2316 = vsel %vm2252, %v715, 256
      %v2317 = vsel %vm2253, %v715, 256
      %v2318 = vsel %vm2254, %v716, 256
      %v2319 = vsel %vm2255, %v716, 256
      %v2320 = vsel %vm2256, %v717, 256
      %v2321 = vsel %vm2257, %v717, 256
      %v2322 = vsel %vm2258, %v718, 256
      %v2323 = vsel %vm2259, %v718, 256
      %v2324 = vsel %vm2260, %v719, 256
      %v2325 = vsel %vm2261, %v719, 256
      %v2326 = vsel %vm2262, %v720, 256
      %v2327 = vsel %vm2263, %v720, 256
      %v2328 = vsel %vm2264, %v721, 256
      %v2329 = vsel %vm2265, %v721, 256
      %v2330 = vsel %vm2266, %v722, 256
      %v2331 = vsel %vm2267, %v722, 256
      %v2332 = vsel %vm2268, %v723, 256
      %v2333 = vsel %vm2269, %v723, 256
      %v2334 = vsel %vm2270, %v724, 256
      %v2335 = vsel %vm2271, %v724, 256
      %v2336 = vsel %vm2272, %v725, 256
      %v2337 = vsel %vm2273, %v725, 256
      %v2338 = vsel %vm2274, %v726, 256
      %v2339 = vsel %vm2275, %v726, 256
      %v2340 = vsel %vm2276, %v727, 256
      %v2341 = vsel %vm2277, %v727, 256
      %v2342 = vsel %vm2278, %v728, 256
      %v2343 = vsel %vm2279, %v728, 256
      %v2344 = vsel %vm2280, %v729, 256
      %v2345 = vsel %vm2281, %v729, 256
      %v2346 = vsel %vm2282, %v730, 256
      %v2347 = vsel %vm2283, %v730, 256
      %v2348 = vsel %vm2284, %v731, 256
      %v2349 = vsel %vm2285, %v731, 256
      %vm2350 = vcmp.lt.s32.totalorder %v2286, %v2290
      %v2351 = vsel %vm2350, %v2286, %v2290
      %vm2352 = vcmp.lt.s32.totalorder %v2288, %v2292
      %v2353 = vsel %vm2352, %v2288, %v2292
      %vm2354 = vcmp.lt.s32.totalorder %v2351, %v2294
      %v2355 = vsel %vm2354, %v2351, %v2294
      %vm2356 = vcmp.lt.s32.totalorder %v2353, %v2296
      %v2357 = vsel %vm2356, %v2353, %v2296
      %vm2358 = vcmp.lt.s32.totalorder %v2355, %v2298
      %v2359 = vsel %vm2358, %v2355, %v2298
      %vm2360 = vcmp.lt.s32.totalorder %v2357, %v2300
      %v2361 = vsel %vm2360, %v2357, %v2300
      %vm2362 = vcmp.lt.s32.totalorder %v2359, %v2302
      %v2363 = vsel %vm2362, %v2359, %v2302
      %vm2364 = vcmp.lt.s32.totalorder %v2361, %v2304
      %v2365 = vsel %vm2364, %v2361, %v2304
      %vm2366 = vcmp.lt.s32.totalorder %v2363, %v2306
      %v2367 = vsel %vm2366, %v2363, %v2306
      %vm2368 = vcmp.lt.s32.totalorder %v2365, %v2308
      %v2369 = vsel %vm2368, %v2365, %v2308
      %vm2370 = vcmp.lt.s32.totalorder %v2367, %v2310
      %v2371 = vsel %vm2370, %v2367, %v2310
      %vm2372 = vcmp.lt.s32.totalorder %v2369, %v2312
      %v2373 = vsel %vm2372, %v2369, %v2312
      %vm2374 = vcmp.lt.s32.totalorder %v2371, %v2314
      %v2375 = vsel %vm2374, %v2371, %v2314
      %vm2376 = vcmp.lt.s32.totalorder %v2373, %v2316
      %v2377 = vsel %vm2376, %v2373, %v2316
      %vm2378 = vcmp.lt.s32.totalorder %v2375, %v2318
      %v2379 = vsel %vm2378, %v2375, %v2318
      %vm2380 = vcmp.lt.s32.totalorder %v2377, %v2320
      %v2381 = vsel %vm2380, %v2377, %v2320
      %vm2382 = vcmp.lt.s32.totalorder %v2379, %v2322
      %v2383 = vsel %vm2382, %v2379, %v2322
      %vm2384 = vcmp.lt.s32.totalorder %v2381, %v2324
      %v2385 = vsel %vm2384, %v2381, %v2324
      %vm2386 = vcmp.lt.s32.totalorder %v2383, %v2326
      %v2387 = vsel %vm2386, %v2383, %v2326
      %vm2388 = vcmp.lt.s32.totalorder %v2385, %v2328
      %v2389 = vsel %vm2388, %v2385, %v2328
      %vm2390 = vcmp.lt.s32.totalorder %v2387, %v2330
      %v2391 = vsel %vm2390, %v2387, %v2330
      %vm2392 = vcmp.lt.s32.totalorder %v2389, %v2332
      %v2393 = vsel %vm2392, %v2389, %v2332
      %vm2394 = vcmp.lt.s32.totalorder %v2391, %v2334
      %v2395 = vsel %vm2394, %v2391, %v2334
      %vm2396 = vcmp.lt.s32.totalorder %v2393, %v2336
      %v2397 = vsel %vm2396, %v2393, %v2336
      %vm2398 = vcmp.lt.s32.totalorder %v2395, %v2338
      %v2399 = vsel %vm2398, %v2395, %v2338
      %vm2400 = vcmp.lt.s32.totalorder %v2397, %v2340
      %v2401 = vsel %vm2400, %v2397, %v2340
      %vm2402 = vcmp.lt.s32.totalorder %v2399, %v2342
      %v2403 = vsel %vm2402, %v2399, %v2342
      %vm2404 = vcmp.lt.s32.totalorder %v2401, %v2344
      %v2405 = vsel %vm2404, %v2401, %v2344
      %vm2406 = vcmp.lt.s32.totalorder %v2403, %v2346
      %v2407 = vsel %vm2406, %v2403, %v2346
      %vm2408 = vcmp.lt.s32.totalorder %v2405, %v2348
      %v2409 = vsel %vm2408, %v2405, %v2348
      %vm2410 = vcmp.lt.s32.totalorder %v2407, %v2409
      %v2411 = vsel %vm2410, %v2407, %v2409
      %v2412 = vrot.slane %v2411, 4
      %vm2413 = vcmp.lt.s32.totalorder %v2411, %v2412
      %v2414 = vsel %vm2413, %v2411, %v2412
      %v2415 = vrot.slane %v2414, 2
      %vm2416 = vcmp.lt.s32.totalorder %v2414, %v2415
      %v2417 = vsel %vm2416, %v2414, %v2415
      %v2418 = vrot.slane %v2417, 1
      %vm2419 = vcmp.lt.s32.totalorder %v2417, %v2418
      %v2420 = vsel %vm2419, %v2417, %v2418
      %vm2421 = vcmp.lt.s32.totalorder %v2287, %v2291
      %v2422 = vsel %vm2421, %v2287, %v2291
      %vm2423 = vcmp.lt.s32.totalorder %v2289, %v2293
      %v2424 = vsel %vm2423, %v2289, %v2293
      %vm2425 = vcmp.lt.s32.totalorder %v2422, %v2295
      %v2426 = vsel %vm2425, %v2422, %v2295
      %vm2427 = vcmp.lt.s32.totalorder %v2424, %v2297
      %v2428 = vsel %vm2427, %v2424, %v2297
      %vm2429 = vcmp.lt.s32.totalorder %v2426, %v2299
      %v2430 = vsel %vm2429, %v2426, %v2299
      %vm2431 = vcmp.lt.s32.totalorder %v2428, %v2301
      %v2432 = vsel %vm2431, %v2428, %v2301
      %vm2433 = vcmp.lt.s32.totalorder %v2430, %v2303
      %v2434 = vsel %vm2433, %v2430, %v2303
      %vm2435 = vcmp.lt.s32.totalorder %v2432, %v2305
      %v2436 = vsel %vm2435, %v2432, %v2305
      %vm2437 = vcmp.lt.s32.totalorder %v2434, %v2307
      %v2438 = vsel %vm2437, %v2434, %v2307
      %vm2439 = vcmp.lt.s32.totalorder %v2436, %v2309
      %v2440 = vsel %vm2439, %v2436, %v2309
      %vm2441 = vcmp.lt.s32.totalorder %v2438, %v2311
      %v2442 = vsel %vm2441, %v2438, %v2311
      %vm2443 = vcmp.lt.s32.totalorder %v2440, %v2313
      %v2444 = vsel %vm2443, %v2440, %v2313
      %vm2445 = vcmp.lt.s32.totalorder %v2442, %v2315
      %v2446 = vsel %vm2445, %v2442, %v2315
      %vm2447 = vcmp.lt.s32.totalorder %v2444, %v2317
      %v2448 = vsel %vm2447, %v2444, %v2317
      %vm2449 = vcmp.lt.s32.totalorder %v2446, %v2319
      %v2450 = vsel %vm2449, %v2446, %v2319
      %vm2451 = vcmp.lt.s32.totalorder %v2448, %v2321
      %v2452 = vsel %vm2451, %v2448, %v2321
      %vm2453 = vcmp.lt.s32.totalorder %v2450, %v2323
      %v2454 = vsel %vm2453, %v2450, %v2323
      %vm2455 = vcmp.lt.s32.totalorder %v2452, %v2325
      %v2456 = vsel %vm2455, %v2452, %v2325
      %vm2457 = vcmp.lt.s32.totalorder %v2454, %v2327
      %v2458 = vsel %vm2457, %v2454, %v2327
      %vm2459 = vcmp.lt.s32.totalorder %v2456, %v2329
      %v2460 = vsel %vm2459, %v2456, %v2329
      %vm2461 = vcmp.lt.s32.totalorder %v2458, %v2331
      %v2462 = vsel %vm2461, %v2458, %v2331
      %vm2463 = vcmp.lt.s32.totalorder %v2460, %v2333
      %v2464 = vsel %vm2463, %v2460, %v2333
      %vm2465 = vcmp.lt.s32.totalorder %v2462, %v2335
      %v2466 = vsel %vm2465, %v2462, %v2335
      %vm2467 = vcmp.lt.s32.totalorder %v2464, %v2337
      %v2468 = vsel %vm2467, %v2464, %v2337
      %vm2469 = vcmp.lt.s32.totalorder %v2466, %v2339
      %v2470 = vsel %vm2469, %v2466, %v2339
      %vm2471 = vcmp.lt.s32.totalorder %v2468, %v2341
      %v2472 = vsel %vm2471, %v2468, %v2341
      %vm2473 = vcmp.lt.s32.totalorder %v2470, %v2343
      %v2474 = vsel %vm2473, %v2470, %v2343
      %vm2475 = vcmp.lt.s32.totalorder %v2472, %v2345
      %v2476 = vsel %vm2475, %v2472, %v2345
      %vm2477 = vcmp.lt.s32.totalorder %v2474, %v2347
      %v2478 = vsel %vm2477, %v2474, %v2347
      %vm2479 = vcmp.lt.s32.totalorder %v2476, %v2349
      %v2480 = vsel %vm2479, %v2476, %v2349
      %vm2481 = vcmp.lt.s32.totalorder %v2478, %v2480
      %v2482 = vsel %vm2481, %v2478, %v2480
      %v2483 = vrot.slane %v2482, 4
      %vm2484 = vcmp.lt.s32.totalorder %v2482, %v2483
      %v2485 = vsel %vm2484, %v2482, %v2483
      %v2486 = vrot.slane %v2485, 2
      %vm2487 = vcmp.lt.s32.totalorder %v2485, %v2486
      %v2488 = vsel %vm2487, %v2485, %v2486
      %v2489 = vrot.slane %v2488, 1
      %vm2490 = vcmp.lt.s32.totalorder %v2488, %v2489
      %v2491 = vsel %vm2490, %v2488, %v2489
      %vm2492 = vcmp.eq.s32.totalorder %v700, %v2420
      %vm2493 = vcmp.eq.s32.totalorder %v700, %v2491
      %vm2494 = vcmp.eq.s32.totalorder %v701, %v2420
      %vm2495 = vcmp.eq.s32.totalorder %v701, %v2491
      %vm2496 = vcmp.eq.s32.totalorder %v702, %v2420
      %vm2497 = vcmp.eq.s32.totalorder %v702, %v2491
      %vm2498 = vcmp.eq.s32.totalorder %v703, %v2420
      %vm2499 = vcmp.eq.s32.totalorder %v703, %v2491
      %vm2500 = vcmp.eq.s32.totalorder %v704, %v2420
      %vm2501 = vcmp.eq.s32.totalorder %v704, %v2491
      %vm2502 = vcmp.eq.s32.totalorder %v705, %v2420
      %vm2503 = vcmp.eq.s32.totalorder %v705, %v2491
      %vm2504 = vcmp.eq.s32.totalorder %v706, %v2420
      %vm2505 = vcmp.eq.s32.totalorder %v706, %v2491
      %vm2506 = vcmp.eq.s32.totalorder %v707, %v2420
      %vm2507 = vcmp.eq.s32.totalorder %v707, %v2491
      %vm2508 = vcmp.eq.s32.totalorder %v708, %v2420
      %vm2509 = vcmp.eq.s32.totalorder %v708, %v2491
      %vm2510 = vcmp.eq.s32.totalorder %v709, %v2420
      %vm2511 = vcmp.eq.s32.totalorder %v709, %v2491
      %vm2512 = vcmp.eq.s32.totalorder %v710, %v2420
      %vm2513 = vcmp.eq.s32.totalorder %v710, %v2491
      %vm2514 = vcmp.eq.s32.totalorder %v711, %v2420
      %vm2515 = vcmp.eq.s32.totalorder %v711, %v2491
      %vm2516 = vcmp.eq.s32.totalorder %v712, %v2420
      %vm2517 = vcmp.eq.s32.totalorder %v712, %v2491
      %vm2518 = vcmp.eq.s32.totalorder %v713, %v2420
      %vm2519 = vcmp.eq.s32.totalorder %v713, %v2491
      %vm2520 = vcmp.eq.s32.totalorder %v714, %v2420
      %vm2521 = vcmp.eq.s32.totalorder %v714, %v2491
      %vm2522 = vcmp.eq.s32.totalorder %v715, %v2420
      %vm2523 = vcmp.eq.s32.totalorder %v715, %v2491
      %vm2524 = vcmp.eq.s32.totalorder %v716, %v2420
      %vm2525 = vcmp.eq.s32.totalorder %v716, %v2491
      %vm2526 = vcmp.eq.s32.totalorder %v717, %v2420
      %vm2527 = vcmp.eq.s32.totalorder %v717, %v2491
      %vm2528 = vcmp.eq.s32.totalorder %v718, %v2420
      %vm2529 = vcmp.eq.s32.totalorder %v718, %v2491
      %vm2530 = vcmp.eq.s32.totalorder %v719, %v2420
      %vm2531 = vcmp.eq.s32.totalorder %v719, %v2491
      %vm2532 = vcmp.eq.s32.totalorder %v720, %v2420
      %vm2533 = vcmp.eq.s32.totalorder %v720, %v2491
      %vm2534 = vcmp.eq.s32.totalorder %v721, %v2420
      %vm2535 = vcmp.eq.s32.totalorder %v721, %v2491
      %vm2536 = vcmp.eq.s32.totalorder %v722, %v2420
      %vm2537 = vcmp.eq.s32.totalorder %v722, %v2491
      %vm2538 = vcmp.eq.s32.totalorder %v723, %v2420
      %vm2539 = vcmp.eq.s32.totalorder %v723, %v2491
      %vm2540 = vcmp.eq.s32.totalorder %v724, %v2420
      %vm2541 = vcmp.eq.s32.totalorder %v724, %v2491
      %vm2542 = vcmp.eq.s32.totalorder %v725, %v2420
      %vm2543 = vcmp.eq.s32.totalorder %v725, %v2491
      %vm2544 = vcmp.eq.s32.totalorder %v726, %v2420
      %vm2545 = vcmp.eq.s32.totalorder %v726, %v2491
      %vm2546 = vcmp.eq.s32.totalorder %v727, %v2420
      %vm2547 = vcmp.eq.s32.totalorder %v727, %v2491
      %vm2548 = vcmp.eq.s32.totalorder %v728, %v2420
      %vm2549 = vcmp.eq.s32.totalorder %v728, %v2491
      %vm2550 = vcmp.eq.s32.totalorder %v729, %v2420
      %vm2551 = vcmp.eq.s32.totalorder %v729, %v2491
      %vm2552 = vcmp.eq.s32.totalorder %v730, %v2420
      %vm2553 = vcmp.eq.s32.totalorder %v730, %v2491
      %vm2554 = vcmp.eq.s32.totalorder %v731, %v2420
      %vm2555 = vcmp.eq.s32.totalorder %v731, %v2491
      %v2556 = vsel %vm2492, -inf, %v2084
      %v2557 = vsel %vm2493, -inf, %v2085
      %v2558 = vsel %vm2494, -inf, %v2086
      %v2559 = vsel %vm2495, -inf, %v2087
      %v2560 = vsel %vm2496, -inf, %v2088
      %v2561 = vsel %vm2497, -inf, %v2089
      %v2562 = vsel %vm2498, -inf, %v2090
      %v2563 = vsel %vm2499, -inf, %v2091
      %v2564 = vsel %vm2500, -inf, %v2092
      %v2565 = vsel %vm2501, -inf, %v2093
      %v2566 = vsel %vm2502, -inf, %v2094
      %v2567 = vsel %vm2503, -inf, %v2095
      %v2568 = vsel %vm2504, -inf, %v2096
      %v2569 = vsel %vm2505, -inf, %v2097
      %v2570 = vsel %vm2506, -inf, %v2098
      %v2571 = vsel %vm2507, -inf, %v2099
      %v2572 = vsel %vm2508, -inf, %v2100
      %v2573 = vsel %vm2509, -inf, %v2101
      %v2574 = vsel %vm2510, -inf, %v2102
      %v2575 = vsel %vm2511, -inf, %v2103
      %v2576 = vsel %vm2512, -inf, %v2104
      %v2577 = vsel %vm2513, -inf, %v2105
      %v2578 = vsel %vm2514, -inf, %v2106
      %v2579 = vsel %vm2515, -inf, %v2107
      %v2580 = vsel %vm2516, -inf, %v2108
      %v2581 = vsel %vm2517, -inf, %v2109
      %v2582 = vsel %vm2518, -inf, %v2110
      %v2583 = vsel %vm2519, -inf, %v2111
      %v2584 = vsel %vm2520, -inf, %v2112
      %v2585 = vsel %vm2521, -inf, %v2113
      %v2586 = vsel %vm2522, -inf, %v2114
      %v2587 = vsel %vm2523, -inf, %v2115
      %v2588 = vsel %vm2524, -inf, %v2116
      %v2589 = vsel %vm2525, -inf, %v2117
      %v2590 = vsel %vm2526, -inf, %v2118
      %v2591 = vsel %vm2527, -inf, %v2119
      %v2592 = vsel %vm2528, -inf, %v2120
      %v2593 = vsel %vm2529, -inf, %v2121
      %v2594 = vsel %vm2530, -inf, %v2122
      %v2595 = vsel %vm2531, -inf, %v2123
      %v2596 = vsel %vm2532, -inf, %v2124
      %v2597 = vsel %vm2533, -inf, %v2125
      %v2598 = vsel %vm2534, -inf, %v2126
      %v2599 = vsel %vm2535, -inf, %v2127
      %v2600 = vsel %vm2536, -inf, %v2128
      %v2601 = vsel %vm2537, -inf, %v2129
      %v2602 = vsel %vm2538, -inf, %v2130
      %v2603 = vsel %vm2539, -inf, %v2131
      %v2604 = vsel %vm2540, -inf, %v2132
      %v2605 = vsel %vm2541, -inf, %v2133
      %v2606 = vsel %vm2542, -inf, %v2134
      %v2607 = vsel %vm2543, -inf, %v2135
      %v2608 = vsel %vm2544, -inf, %v2136
      %v2609 = vsel %vm2545, -inf, %v2137
      %v2610 = vsel %vm2546, -inf, %v2138
      %v2611 = vsel %vm2547, -inf, %v2139
      %v2612 = vsel %vm2548, -inf, %v2140
      %v2613 = vsel %vm2549, -inf, %v2141
      %v2614 = vsel %vm2550, -inf, %v2142
      %v2615 = vsel %vm2551, -inf, %v2143
      %v2616 = vsel %vm2552, -inf, %v2144
      %v2617 = vsel %vm2553, -inf, %v2145
      %v2618 = vsel %vm2554, -inf, %v2146
      %v2619 = vsel %vm2555, -inf, %v2147
      %v2620 = vmax.f32 %v2556, %v2560
      %v2621 = vmax.f32 %v2558, %v2562
      %v2622 = vmax.f32 %v2620, %v2564
      %v2623 = vmax.f32 %v2621, %v2566
      %v2624 = vmax.f32 %v2622, %v2568
      %v2625 = vmax.f32 %v2623, %v2570
      %v2626 = vmax.f32 %v2624, %v2572
      %v2627 = vmax.f32 %v2625, %v2574
      %v2628 = vmax.f32 %v2626, %v2576
      %v2629 = vmax.f32 %v2627, %v2578
      %v2630 = vmax.f32 %v2628, %v2580
      %v2631 = vmax.f32 %v2629, %v2582
      %v2632 = vmax.f32 %v2630, %v2584
      %v2633 = vmax.f32 %v2631, %v2586
      %v2634 = vmax.f32 %v2632, %v2588
      %v2635 = vmax.f32 %v2633, %v2590
      %v2636 = vmax.f32 %v2634, %v2592
      %v2637 = vmax.f32 %v2635, %v2594
      %v2638 = vmax.f32 %v2636, %v2596
      %v2639 = vmax.f32 %v2637, %v2598
      %v2640 = vmax.f32 %v2638, %v2600
      %v2641 = vmax.f32 %v2639, %v2602
      %v2642 = vmax.f32 %v2640, %v2604
      %v2643 = vmax.f32 %v2641, %v2606
      %v2644 = vmax.f32 %v2642, %v2608
      %v2645 = vmax.f32 %v2643, %v2610
      %v2646 = vmax.f32 %v2644, %v2612
      %v2647 = vmax.f32 %v2645, %v2614
      %v2648 = vmax.f32 %v2646, %v2616
      %v2649 = vmax.f32 %v2647, %v2618
      %v2650 = vmax.f32 %v2648, %v2649
      %v2651 = vrot.slane %v2650, 4
      %v2652 = vmax.f32 %v2650, %v2651
      %v2653 = vrot.slane %v2652, 2
      %v2654 = vmax.f32 %v2652, %v2653
      %v2655 = vrot.slane %v2654, 1
      %v2656 = vmax.f32 %v2654, %v2655
      %v2657 = vmax.f32 %v2557, %v2561
      %v2658 = vmax.f32 %v2559, %v2563
      %v2659 = vmax.f32 %v2657, %v2565
      %v2660 = vmax.f32 %v2658, %v2567
      %v2661 = vmax.f32 %v2659, %v2569
      %v2662 = vmax.f32 %v2660, %v2571
      %v2663 = vmax.f32 %v2661, %v2573
      %v2664 = vmax.f32 %v2662, %v2575
      %v2665 = vmax.f32 %v2663, %v2577
      %v2666 = vmax.f32 %v2664, %v2579
      %v2667 = vmax.f32 %v2665, %v2581
      %v2668 = vmax.f32 %v2666, %v2583
      %v2669 = vmax.f32 %v2667, %v2585
      %v2670 = vmax.f32 %v2668, %v2587
      %v2671 = vmax.f32 %v2669, %v2589
      %v2672 = vmax.f32 %v2670, %v2591
      %v2673 = vmax.f32 %v2671, %v2593
      %v2674 = vmax.f32 %v2672, %v2595
      %v2675 = vmax.f32 %v2673, %v2597
      %v2676 = vmax.f32 %v2674, %v2599
      %v2677 = vmax.f32 %v2675, %v2601
      %v2678 = vmax.f32 %v2676, %v2603
      %v2679 = vmax.f32 %v2677, %v2605
      %v2680 = vmax.f32 %v2678, %v2607
      %v2681 = vmax.f32 %v2679, %v2609
      %v2682 = vmax.f32 %v2680, %v2611
      %v2683 = vmax.f32 %v2681, %v2613
      %v2684 = vmax.f32 %v2682, %v2615
      %v2685 = vmax.f32 %v2683, %v2617
      %v2686 = vmax.f32 %v2684, %v2619
      %v2687 = vmax.f32 %v2685, %v2686
      %v2688 = vrot.slane %v2687, 4
      %v2689 = vmax.f32 %v2687, %v2688
      %v2690 = vrot.slane %v2689, 2
      %v2691 = vmax.f32 %v2689, %v2690
      %v2692 = vrot.slane %v2691, 1
      %v2693 = vmax.f32 %v2691, %v2692
      %vm2694 = vcmp.eq.f32.partialorder %v2556, %v2656
      %vm2695 = vcmp.eq.f32.partialorder %v2557, %v2693
      %vm2696 = vcmp.eq.f32.partialorder %v2558, %v2656
      %vm2697 = vcmp.eq.f32.partialorder %v2559, %v2693
      %vm2698 = vcmp.eq.f32.partialorder %v2560, %v2656
      %vm2699 = vcmp.eq.f32.partialorder %v2561, %v2693
      %vm2700 = vcmp.eq.f32.partialorder %v2562, %v2656
      %vm2701 = vcmp.eq.f32.partialorder %v2563, %v2693
      %vm2702 = vcmp.eq.f32.partialorder %v2564, %v2656
      %vm2703 = vcmp.eq.f32.partialorder %v2565, %v2693
      %vm2704 = vcmp.eq.f32.partialorder %v2566, %v2656
      %vm2705 = vcmp.eq.f32.partialorder %v2567, %v2693
      %vm2706 = vcmp.eq.f32.partialorder %v2568, %v2656
      %vm2707 = vcmp.eq.f32.partialorder %v2569, %v2693
      %vm2708 = vcmp.eq.f32.partialorder %v2570, %v2656
      %vm2709 = vcmp.eq.f32.partialorder %v2571, %v2693
      %vm2710 = vcmp.eq.f32.partialorder %v2572, %v2656
      %vm2711 = vcmp.eq.f32.partialorder %v2573, %v2693
      %vm2712 = vcmp.eq.f32.partialorder %v2574, %v2656
      %vm2713 = vcmp.eq.f32.partialorder %v2575, %v2693
      %vm2714 = vcmp.eq.f32.partialorder %v2576, %v2656
      %vm2715 = vcmp.eq.f32.partialorder %v2577, %v2693
      %vm2716 = vcmp.eq.f32.partialorder %v2578, %v2656
      %vm2717 = vcmp.eq.f32.partialorder %v2579, %v2693
      %vm2718 = vcmp.eq.f32.partialorder %v2580, %v2656
      %vm2719 = vcmp.eq.f32.partialorder %v2581, %v2693
      %vm2720 = vcmp.eq.f32.partialorder %v2582, %v2656
      %vm2721 = vcmp.eq.f32.partialorder %v2583, %v2693
      %vm2722 = vcmp.eq.f32.partialorder %v2584, %v2656
      %vm2723 = vcmp.eq.f32.partialorder %v2585, %v2693
      %vm2724 = vcmp.eq.f32.partialorder %v2586, %v2656
      %vm2725 = vcmp.eq.f32.partialorder %v2587, %v2693
      %vm2726 = vcmp.eq.f32.partialorder %v2588, %v2656
      %vm2727 = vcmp.eq.f32.partialorder %v2589, %v2693
      %vm2728 = vcmp.eq.f32.partialorder %v2590, %v2656
      %vm2729 = vcmp.eq.f32.partialorder %v2591, %v2693
      %vm2730 = vcmp.eq.f32.partialorder %v2592, %v2656
      %vm2731 = vcmp.eq.f32.partialorder %v2593, %v2693
      %vm2732 = vcmp.eq.f32.partialorder %v2594, %v2656
      %vm2733 = vcmp.eq.f32.partialorder %v2595, %v2693
      %vm2734 = vcmp.eq.f32.partialorder %v2596, %v2656
      %vm2735 = vcmp.eq.f32.partialorder %v2597, %v2693
      %vm2736 = vcmp.eq.f32.partialorder %v2598, %v2656
      %vm2737 = vcmp.eq.f32.partialorder %v2599, %v2693
      %vm2738 = vcmp.eq.f32.partialorder %v2600, %v2656
      %vm2739 = vcmp.eq.f32.partialorder %v2601, %v2693
      %vm2740 = vcmp.eq.f32.partialorder %v2602, %v2656
      %vm2741 = vcmp.eq.f32.partialorder %v2603, %v2693
      %vm2742 = vcmp.eq.f32.partialorder %v2604, %v2656
      %vm2743 = vcmp.eq.f32.partialorder %v2605, %v2693
      %vm2744 = vcmp.eq.f32.partialorder %v2606, %v2656
      %vm2745 = vcmp.eq.f32.partialorder %v2607, %v2693
      %vm2746 = vcmp.eq.f32.partialorder %v2608, %v2656
      %vm2747 = vcmp.eq.f32.partialorder %v2609, %v2693
      %vm2748 = vcmp.eq.f32.partialorder %v2610, %v2656
      %vm2749 = vcmp.eq.f32.partialorder %v2611, %v2693
      %vm2750 = vcmp.eq.f32.partialorder %v2612, %v2656
      %vm2751 = vcmp.eq.f32.partialorder %v2613, %v2693
      %vm2752 = vcmp.eq.f32.partialorder %v2614, %v2656
      %vm2753 = vcmp.eq.f32.partialorder %v2615, %v2693
      %vm2754 = vcmp.eq.f32.partialorder %v2616, %v2656
      %vm2755 = vcmp.eq.f32.partialorder %v2617, %v2693
      %vm2756 = vcmp.eq.f32.partialorder %v2618, %v2656
      %vm2757 = vcmp.eq.f32.partialorder %v2619, %v2693
      %v2758 = vsel %vm2694, %v700, 256
      %v2759 = vsel %vm2695, %v700, 256
      %v2760 = vsel %vm2696, %v701, 256
      %v2761 = vsel %vm2697, %v701, 256
      %v2762 = vsel %vm2698, %v702, 256
      %v2763 = vsel %vm2699, %v702, 256
      %v2764 = vsel %vm2700, %v703, 256
      %v2765 = vsel %vm2701, %v703, 256
      %v2766 = vsel %vm2702, %v704, 256
      %v2767 = vsel %vm2703, %v704, 256
      %v2768 = vsel %vm2704, %v705, 256
      %v2769 = vsel %vm2705, %v705, 256
      %v2770 = vsel %vm2706, %v706, 256
      %v2771 = vsel %vm2707, %v706, 256
      %v2772 = vsel %vm2708, %v707, 256
      %v2773 = vsel %vm2709, %v707, 256
      %v2774 = vsel %vm2710, %v708, 256
      %v2775 = vsel %vm2711, %v708, 256
      %v2776 = vsel %vm2712, %v709, 256
      %v2777 = vsel %vm2713, %v709, 256
      %v2778 = vsel %vm2714, %v710, 256
      %v2779 = vsel %vm2715, %v710, 256
      %v2780 = vsel %vm2716, %v711, 256
      %v2781 = vsel %vm2717, %v711, 256
      %v2782 = vsel %vm2718, %v712, 256
      %v2783 = vsel %vm2719, %v712, 256
      %v2784 = vsel %vm2720, %v713, 256
      %v2785 = vsel %vm2721, %v713, 256
      %v2786 = vsel %vm2722, %v714, 256
      %v2787 = vsel %vm2723, %v714, 256
      %v2788 = vsel %vm2724, %v715, 256
      %v2789 = vsel %vm2725, %v715, 256
      %v2790 = vsel %vm2726, %v716, 256
      %v2791 = vsel %vm2727, %v716, 256
      %v2792 = vsel %vm2728, %v717, 256
      %v2793 = vsel %vm2729, %v717, 256
      %v2794 = vsel %vm2730, %v718, 256
      %v2795 = vsel %vm2731, %v718, 256
      %v2796 = vsel %vm2732, %v719, 256
      %v2797 = vsel %vm2733, %v719, 256
      %v2798 = vsel %vm2734, %v720, 256
      %v2799 = vsel %vm2735, %v720, 256
      %v2800 = vsel %vm2736, %v721, 256
      %v2801 = vsel %vm2737, %v721, 256
      %v2802 = vsel %vm2738, %v722, 256
      %v2803 = vsel %vm2739, %v722, 256
      %v2804 = vsel %vm2740, %v723, 256
      %v2805 = vsel %vm2741, %v723, 256
      %v2806 = vsel %vm2742, %v724, 256
      %v2807 = vsel %vm2743, %v724, 256
      %v2808 = vsel %vm2744, %v725, 256
      %v2809 = vsel %vm2745, %v725, 256
      %v2810 = vsel %vm2746, %v726, 256
      %v2811 = vsel %vm2747, %v726, 256
      %v2812 = vsel %vm2748, %v727, 256
      %v2813 = vsel %vm2749, %v727, 256
      %v2814 = vsel %vm2750, %v728, 256
      %v2815 = vsel %vm2751, %v728, 256
      %v2816 = vsel %vm2752, %v729, 256
      %v2817 = vsel %vm2753, %v729, 256
      %v2818 = vsel %vm2754, %v730, 256
      %v2819 = vsel %vm2755, %v730, 256
      %v2820 = vsel %vm2756, %v731, 256
      %v2821 = vsel %vm2757, %v731, 256
      %vm2822 = vcmp.lt.s32.totalorder %v2758, %v2762
      %v2823 = vsel %vm2822, %v2758, %v2762
      %vm2824 = vcmp.lt.s32.totalorder %v2760, %v2764
      %v2825 = vsel %vm2824, %v2760, %v2764
      %vm2826 = vcmp.lt.s32.totalorder %v2823, %v2766
      %v2827 = vsel %vm2826, %v2823, %v2766
      %vm2828 = vcmp.lt.s32.totalorder %v2825, %v2768
      %v2829 = vsel %vm2828, %v2825, %v2768
      %vm2830 = vcmp.lt.s32.totalorder %v2827, %v2770
      %v2831 = vsel %vm2830, %v2827, %v2770
      %vm2832 = vcmp.lt.s32.totalorder %v2829, %v2772
      %v2833 = vsel %vm2832, %v2829, %v2772
      %vm2834 = vcmp.lt.s32.totalorder %v2831, %v2774
      %v2835 = vsel %vm2834, %v2831, %v2774
      %vm2836 = vcmp.lt.s32.totalorder %v2833, %v2776
      %v2837 = vsel %vm2836, %v2833, %v2776
      %vm2838 = vcmp.lt.s32.totalorder %v2835, %v2778
      %v2839 = vsel %vm2838, %v2835, %v2778
      %vm2840 = vcmp.lt.s32.totalorder %v2837, %v2780
      %v2841 = vsel %vm2840, %v2837, %v2780
      %vm2842 = vcmp.lt.s32.totalorder %v2839, %v2782
      %v2843 = vsel %vm2842, %v2839, %v2782
      %vm2844 = vcmp.lt.s32.totalorder %v2841, %v2784
      %v2845 = vsel %vm2844, %v2841, %v2784
      %vm2846 = vcmp.lt.s32.totalorder %v2843, %v2786
      %v2847 = vsel %vm2846, %v2843, %v2786
      %vm2848 = vcmp.lt.s32.totalorder %v2845, %v2788
      %v2849 = vsel %vm2848, %v2845, %v2788
      %vm2850 = vcmp.lt.s32.totalorder %v2847, %v2790
      %v2851 = vsel %vm2850, %v2847, %v2790
      %vm2852 = vcmp.lt.s32.totalorder %v2849, %v2792
      %v2853 = vsel %vm2852, %v2849, %v2792
      %vm2854 = vcmp.lt.s32.totalorder %v2851, %v2794
      %v2855 = vsel %vm2854, %v2851, %v2794
      %vm2856 = vcmp.lt.s32.totalorder %v2853, %v2796
      %v2857 = vsel %vm2856, %v2853, %v2796
      %vm2858 = vcmp.lt.s32.totalorder %v2855, %v2798
      %v2859 = vsel %vm2858, %v2855, %v2798
      %vm2860 = vcmp.lt.s32.totalorder %v2857, %v2800
      %v2861 = vsel %vm2860, %v2857, %v2800
      %vm2862 = vcmp.lt.s32.totalorder %v2859, %v2802
      %v2863 = vsel %vm2862, %v2859, %v2802
      %vm2864 = vcmp.lt.s32.totalorder %v2861, %v2804
      %v2865 = vsel %vm2864, %v2861, %v2804
      %vm2866 = vcmp.lt.s32.totalorder %v2863, %v2806
      %v2867 = vsel %vm2866, %v2863, %v2806
      %vm2868 = vcmp.lt.s32.totalorder %v2865, %v2808
      %v2869 = vsel %vm2868, %v2865, %v2808
      %vm2870 = vcmp.lt.s32.totalorder %v2867, %v2810
      %v2871 = vsel %vm2870, %v2867, %v2810
      %vm2872 = vcmp.lt.s32.totalorder %v2869, %v2812
      %v2873 = vsel %vm2872, %v2869, %v2812
      %vm2874 = vcmp.lt.s32.totalorder %v2871, %v2814
      %v2875 = vsel %vm2874, %v2871, %v2814
      %vm2876 = vcmp.lt.s32.totalorder %v2873, %v2816
      %v2877 = vsel %vm2876, %v2873, %v2816
      %vm2878 = vcmp.lt.s32.totalorder %v2875, %v2818
      %v2879 = vsel %vm2878, %v2875, %v2818
      %vm2880 = vcmp.lt.s32.totalorder %v2877, %v2820
      %v2881 = vsel %vm2880, %v2877, %v2820
      %vm2882 = vcmp.lt.s32.totalorder %v2879, %v2881
      %v2883 = vsel %vm2882, %v2879, %v2881
      %v2884 = vrot.slane %v2883, 4
      %vm2885 = vcmp.lt.s32.totalorder %v2883, %v2884
      %v2886 = vsel %vm2885, %v2883, %v2884
      %v2887 = vrot.slane %v2886, 2
      %vm2888 = vcmp.lt.s32.totalorder %v2886, %v2887
      %v2889 = vsel %vm2888, %v2886, %v2887
      %v2890 = vrot.slane %v2889, 1
      %vm2891 = vcmp.lt.s32.totalorder %v2889, %v2890
      %v2892 = vsel %vm2891, %v2889, %v2890
      %vm2893 = vcmp.lt.s32.totalorder %v2759, %v2763
      %v2894 = vsel %vm2893, %v2759, %v2763
      %vm2895 = vcmp.lt.s32.totalorder %v2761, %v2765
      %v2896 = vsel %vm2895, %v2761, %v2765
      %vm2897 = vcmp.lt.s32.totalorder %v2894, %v2767
      %v2898 = vsel %vm2897, %v2894, %v2767
      %vm2899 = vcmp.lt.s32.totalorder %v2896, %v2769
      %v2900 = vsel %vm2899, %v2896, %v2769
      %vm2901 = vcmp.lt.s32.totalorder %v2898, %v2771
      %v2902 = vsel %vm2901, %v2898, %v2771
      %vm2903 = vcmp.lt.s32.totalorder %v2900, %v2773
      %v2904 = vsel %vm2903, %v2900, %v2773
      %vm2905 = vcmp.lt.s32.totalorder %v2902, %v2775
      %v2906 = vsel %vm2905, %v2902, %v2775
      %vm2907 = vcmp.lt.s32.totalorder %v2904, %v2777
      %v2908 = vsel %vm2907, %v2904, %v2777
      %vm2909 = vcmp.lt.s32.totalorder %v2906, %v2779
      %v2910 = vsel %vm2909, %v2906, %v2779
      %vm2911 = vcmp.lt.s32.totalorder %v2908, %v2781
      %v2912 = vsel %vm2911, %v2908, %v2781
      %vm2913 = vcmp.lt.s32.totalorder %v2910, %v2783
      %v2914 = vsel %vm2913, %v2910, %v2783
      %vm2915 = vcmp.lt.s32.totalorder %v2912, %v2785
      %v2916 = vsel %vm2915, %v2912, %v2785
      %vm2917 = vcmp.lt.s32.totalorder %v2914, %v2787
      %v2918 = vsel %vm2917, %v2914, %v2787
      %vm2919 = vcmp.lt.s32.totalorder %v2916, %v2789
      %v2920 = vsel %vm2919, %v2916, %v2789
      %vm2921 = vcmp.lt.s32.totalorder %v2918, %v2791
      %v2922 = vsel %vm2921, %v2918, %v2791
      %vm2923 = vcmp.lt.s32.totalorder %v2920, %v2793
      %v2924 = vsel %vm2923, %v2920, %v2793
      %vm2925 = vcmp.lt.s32.totalorder %v2922, %v2795
      %v2926 = vsel %vm2925, %v2922, %v2795
      %vm2927 = vcmp.lt.s32.totalorder %v2924, %v2797
      %v2928 = vsel %vm2927, %v2924, %v2797
      %vm2929 = vcmp.lt.s32.totalorder %v2926, %v2799
      %v2930 = vsel %vm2929, %v2926, %v2799
      %vm2931 = vcmp.lt.s32.totalorder %v2928, %v2801
      %v2932 = vsel %vm2931, %v2928, %v2801
      %vm2933 = vcmp.lt.s32.totalorder %v2930, %v2803
      %v2934 = vsel %vm2933, %v2930, %v2803
      %vm2935 = vcmp.lt.s32.totalorder %v2932, %v2805
      %v2936 = vsel %vm2935, %v2932, %v2805
      %vm2937 = vcmp.lt.s32.totalorder %v2934, %v2807
      %v2938 = vsel %vm2937, %v2934, %v2807
      %vm2939 = vcmp.lt.s32.totalorder %v2936, %v2809
      %v2940 = vsel %vm2939, %v2936, %v2809
      %vm2941 = vcmp.lt.s32.totalorder %v2938, %v2811
      %v2942 = vsel %vm2941, %v2938, %v2811
      %vm2943 = vcmp.lt.s32.totalorder %v2940, %v2813
      %v2944 = vsel %vm2943, %v2940, %v2813
      %vm2945 = vcmp.lt.s32.totalorder %v2942, %v2815
      %v2946 = vsel %vm2945, %v2942, %v2815
      %vm2947 = vcmp.lt.s32.totalorder %v2944, %v2817
      %v2948 = vsel %vm2947, %v2944, %v2817
      %vm2949 = vcmp.lt.s32.totalorder %v2946, %v2819
      %v2950 = vsel %vm2949, %v2946, %v2819
      %vm2951 = vcmp.lt.s32.totalorder %v2948, %v2821
      %v2952 = vsel %vm2951, %v2948, %v2821
      %vm2953 = vcmp.lt.s32.totalorder %v2950, %v2952
      %v2954 = vsel %vm2953, %v2950, %v2952
      %v2955 = vrot.slane %v2954, 4
      %vm2956 = vcmp.lt.s32.totalorder %v2954, %v2955
      %v2957 = vsel %vm2956, %v2954, %v2955
      %v2958 = vrot.slane %v2957, 2
      %vm2959 = vcmp.lt.s32.totalorder %v2957, %v2958
      %v2960 = vsel %vm2959, %v2957, %v2958
      %v2961 = vrot.slane %v2960, 1
      %vm2962 = vcmp.lt.s32.totalorder %v2960, %v2961
      %v2963 = vsel %vm2962, %v2960, %v2961
      %vm2964 = vcmask 1040384
      %v2965 = vsel %vm2964, %v768, %v1240
      %v2966 = vsel %vm2964, %v805, %v1277
      %vm2967 = vcmask 1041408
      %v2968 = vsel %vm2967, %v2965, %v1712
      %v2969 = vsel %vm2967, %v2966, %v1749
      %vm2970 = vcmask 1042432
      %v2971 = vsel %vm2970, %v2968, %v2184
      %v2972 = vsel %vm2970, %v2969, %v2221
      %v2973 = vsel %vm466, %v2971, %v2656
      %v2974 = vsel %vm466, %v2972, %v2693
      %vm2975 = vcmask 1044480
      %v2976 = vsel %vm2975, %v2973, 0.0
      %v2977 = vsel %vm2975, %v2974, 0.0
      %vm2978 = vcmask 1045504
      %v2979 = vsel %vm2978, %v2976, 0.0
      %v2980 = vsel %vm2978, %v2977, 0.0
      %vm2981 = vcmask 1046528
      %v2982 = vsel %vm2981, %v2979, 0.0
      %v2983 = vsel %vm2981, %v2980, 0.0
      %2984 = vst [vmem:[%s179] sm:$0xff] %v2982
      %2985 = vst [vmem:[%s179 + $0x8] sm:$0xff] %v2983
      %v2986 = vsel %vm2964, %v1004, %v1476
      %v2987 = vsel %vm2964, %v1075, %v1547
      %v2988 = vsel %vm2967, %v2986, %v1948
      %v2989 = vsel %vm2967, %v2987, %v2019
      %v2990 = vsel %vm2970, %v2988, %v2420
      %v2991 = vsel %vm2970, %v2989, %v2491
      %v2992 = vsel %vm466, %v2990, %v2892
      %v2993 = vsel %vm466, %v2991, %v2963
      %v2994 = vsel %vm2975, %v2992, 0
      %v2995 = vsel %vm2975, %v2993, 0
      %v2996 = vsel %vm2978, %v2994, 0
      %v2997 = vsel %vm2978, %v2995, 0
      %v2998 = vsel %vm2981, %v2996, 0
      %v2999 = vsel %vm2981, %v2997, 0
      %3000 = vst [vmem:[%s189] sm:$0xff] %v2998
      %3001 = vst [vmem:[%s189 + $0x8] sm:$0xff] %v2999
      %s3002 = smul.u32 2, %s19
      %p3003 = scmp.lt.s32.totalorder %s18, 1
      %s3004 = scalar_select %p3003, %s18, 1
      %p3005 = scmp.lt.s32.totalorder %s3002, 1
      %s3006 = scalar_select %p3005, %s3002, 1
      %s3007 = smul.addr %s3004, 2
      %s3008 = sadd.s32 %s3006, %s3007
      %s3009 = smul.addr %s3008, 8
      %s3010 = scalar_lea.vmem %s1, %s3009
      %s3011 = smul.u32 2, %s19
      %p3012 = scmp.lt.s32.totalorder %s18, 1
      %s3013 = scalar_select %p3012, %s18, 1
      %p3014 = scmp.lt.s32.totalorder %s3011, 1
      %s3015 = scalar_select %p3014, %s3011, 1
      %s3016 = smul.addr %s3013, 2
      %s3017 = sadd.s32 %s3015, %s3016
      %s3018 = smul.addr %s3017, 8
      %s3019 = scalar_lea.vmem %s2, %s3018
      // Predicated region
      $region29: #{transformer_v5_forward.6} parent=23 // pred_check
        %p3020 = pneg %p72
      $region30: #{transformer_v5_forward.6} parent=23 // pred_check_branch
        %3022 = sbr.rel (%p3020) target = $region32
      $region31: #{transformer_v5_forward.6} parent=23 // pred_region
        %s3023 = smul.u32 2, %s19
      $region32: #{transformer_v5_forward.6} parent=23 // pred_fallthru
        _
      // Predicated region
      $region33: #{transformer_v5_forward.6} parent=23 // pred_check
        %p3024 = pneg %p100
      $region34: #{transformer_v5_forward.6} parent=23 // pred_check_branch
        %3026 = sbr.rel (%p3024) target = $region36
      $region35: #{transformer_v5_forward.6} parent=23 // pred_region
        %s3027 = smul.u32 2, %s19
      $region36: #{transformer_v5_forward.6} parent=23 // pred_fallthru
        _
    $region24: #{transformer_v5_forward.6} parent=5 // pred_fallthru
      _
    %p3028 = scmp.le.s32.totalorder 2, %s9
    // Predicated region
    $region37: #{transformer_v5_forward.6} parent=5 // pred_check
      %p3029 = pneg %p3028
    $region38: #{transformer_v5_forward.6} parent=5 // pred_check_branch
      %3031 = sbr.rel (%p3029) target = $region40
    $region39: #{transformer_v5_forward.6} parent=5 // pred_region
      %s3032 = ssub.s32 %s9, 2
      // Predicated region
      $region41: #{transformer_v5_forward.6} parent=39 // pred_check
        %p3033 = pneg %p78
      $region42: #{transformer_v5_forward.6} parent=39 // pred_check_branch
        %3035 = sbr.rel (%p3033) target = $region44
      $region43: #{transformer_v5_forward.6} parent=39 // pred_region
        %s3036 = smul.u32 2, %s21
        %p3037 = scmp.lt.s32.totalorder %s20, 1
        %s3038 = scalar_select %p3037, %s20, 1
        %p3039 = scmp.lt.s32.totalorder %s3036, 1
        %s3040 = scalar_select %p3039, %s3036, 1
        %s3041 = smul.addr %s3038, 2
        %s3042 = sadd.s32 %s3040, %s3041
        %s3043 = smul.addr %s3042, 8
        %s3044 = scalar_lea.vmem %s1, %s3043
      $region44: #{transformer_v5_forward.6} parent=39 // pred_fallthru
        _
      // Predicated region
      $region45: #{transformer_v5_forward.6} parent=39 // pred_check
        %p3045 = pneg %p106
      $region46: #{transformer_v5_forward.6} parent=39 // pred_check_branch
        %3047 = sbr.rel (%p3045) target = $region48
      $region47: #{transformer_v5_forward.6} parent=39 // pred_region
        %s3048 = smul.u32 2, %s21
        %p3049 = scmp.lt.s32.totalorder %s20, 1
        %s3050 = scalar_select %p3049, %s20, 1
        %p3051 = scmp.lt.s32.totalorder %s3048, 1
        %s3052 = scalar_select %p3051, %s3048, 1
        %s3053 = smul.addr %s3050, 2
        %s3054 = sadd.s32 %s3052, %s3053
        %s3055 = smul.addr %s3054, 8
        %s3056 = scalar_lea.vmem %s2, %s3055
      $region48: #{transformer_v5_forward.6} parent=39 // pred_fallthru
        _
    $region40: #{transformer_v5_forward.6} parent=5 // pred_fallthru
      _
  $region6: #{transformer_v5_forward.6} parent=0 // loop_footer
    %s13 = sadd.s32 1, %s9
  $region7: #{transformer_v5_forward.6} parent=0 // loop_footer_branch
    %8 = sbr.rel target = $region3
  $region8: #{transformer_v5_forward.6} parent=0 // loop_exit
    _

// kernel: transformer_v5_forward.5
$region0: #{transformer_v5_forward.5}
  #allocation0 [shape = 'u32[]', space=smem, size = 0x4, offset = 0x4, fixed_abs, tag = 'smem constant byte address 0x4 - core index']
  #allocation1 [shape = 'u32[72,128]{1,0:T(1,128)}', space=vmem, size = 0x9000, scoped, tag = 'internal scratch']
  %s0 = inlined_call_operand.vmem [shape: bf16[4,36], index: 0, kind: input, shape index: {}]
  %s1 = inlined_call_operand.vmem [shape: f32[4,1], index: 1, kind: input, shape index: {}]
  %s2 = inlined_call_operand.vmem [shape: bf16[36,512], index: 2, kind: input, shape index: {}]
  %s3 = inlined_call_operand.vmem [shape: f32[4,512], index: 3, kind: output, shape index: {}]
  %s4 = sld [smem:[#allocation0]]
  $region22: #{transformer_v5_forward.5} parent=0
    _
  %s6 = ssub.s32 1, %s4
  %s7 = scalar_select 0, %s6, %s4
  // Predicated region
  $region2: #{transformer_v5_forward.5} parent=0 // pred_check
    _
  $region3: #{transformer_v5_forward.5} parent=0 // pred_check_branch
    %9 = sbr.rel (0) target = $region5
  $region4: #{transformer_v5_forward.5} parent=0 // pred_region
    _
  $region5: #{transformer_v5_forward.5} parent=0 // pred_fallthru
    _
  // Predicated region
  $region6: #{transformer_v5_forward.5} parent=0 // pred_check
    _
  $region7: #{transformer_v5_forward.5} parent=0 // pred_check_branch
    %11 = sbr.rel (0) target = $region9
  $region8: #{transformer_v5_forward.5} parent=0 // pred_region
    _
  $region9: #{transformer_v5_forward.5} parent=0 // pred_fallthru
    _
  // Predicated region
  $region10: #{transformer_v5_forward.5} parent=0 // pred_check
    _
  $region11: #{transformer_v5_forward.5} parent=0 // pred_check_branch
    %13 = sbr.rel (0) target = $region13
  $region12: #{transformer_v5_forward.5} parent=0 // pred_region
    _
  $region13: #{transformer_v5_forward.5} parent=0 // pred_fallthru
    _
  %v15 = vld [vmem:[%s0] sm:$0x3]
  %v16 = vld [vmem:[%s2] sm:$0xff]
  %v17 = vld [vmem:[%s2 + $0x8] sm:$0xff]
  %v18 = vld [vmem:[%s2 + $0x10] sm:$0xff]
  %v19 = vld [vmem:[%s2 + $0x18] sm:$0xff]
  %v20 = vld [vmem:[%s2 + $0x20] sm:$0xff]
  %v21 = vld [vmem:[%s2 + $0x28] sm:$0xff]
  %v22 = vld [vmem:[%s2 + $0x30] sm:$0xff]
  %v23 = vld [vmem:[%s2 + $0x38] sm:$0xff]
  %v24 = vld [vmem:[%s2 + $0x40] sm:$0x33]
  %v25 = vld [vmem:[%s2 + $0x48] sm:$0x33]
  %v26 = vld [vmem:[%s1] sm:$0xf]
  %28 = vset.pattern.permute.xlu0 0
  %29 = vperm.xlu0 %28, %v26
  %v30 = vpop.permute.xlu0 %29
  %v42 = vunpack.c.l.b16 %v16
  %v43 = vunpack.c.h.b16 %v16
  %v44 = vunpack.c.l.b16 %v17
  %v45 = vunpack.c.h.b16 %v17
  %v46 = vunpack.c.l.b16 %v18
  %v47 = vunpack.c.h.b16 %v18
  %v48 = vunpack.c.l.b16 %v19
  %v49 = vunpack.c.h.b16 %v19
  %v50 = vunpack.c.l.b16 %v20
  %v51 = vunpack.c.h.b16 %v20
  %v52 = vunpack.c.l.b16 %v21
  %v53 = vunpack.c.h.b16 %v21
  %v54 = vunpack.c.l.b16 %v22
  %v55 = vunpack.c.h.b16 %v22
  %v56 = vunpack.c.l.b16 %v23
  %v57 = vunpack.c.h.b16 %v23
  %v58 = vunpack.c.l.b16 %v24
  %v59 = vunpack.c.h.b16 %v24
  %v60 = vunpack.c.l.b16 %v25
  %v61 = vunpack.c.h.b16 %v25
  %v62 = vpack.c.b16 %v46, %v42
  %v63 = vpack.c.b16 %v47, %v43
  %v64 = vpack.c.b16 %v48, %v44
  %v65 = vpack.c.b16 %v49, %v45
  %v66 = vpack.c.b16 %v54, %v50
  %v67 = vpack.c.b16 %v55, %v51
  %v68 = vpack.c.b16 %v56, %v52
  %v69 = vpack.c.b16 %v57, %v53
  %v70 = vpack.c.b16 %v58, %v58
  %v71 = vpack.c.b16 %v59, %v59
  %v72 = vpack.c.b16 %v60, %v60
  %v73 = vpack.c.b16 %v61, %v61
  %vm82 = vcmask 293888
  %v84 = vsel %vm82, %v15, 0
  %vm86 = vcmask 1041408
  %v88 = vsel %vm86, %v70, 0
  %v91 = vsel %vm86, %v71, 0
  %v94 = vsel %vm86, %v72, 0
  %v97 = vsel %vm86, %v73, 0
  %99 = vmatpush.bf16.msra.mxu0 0
  %100 = vmatpush.bf16.msra.mxu0 0
  %101 = vmatpush.bf16.msra.mxu0 0
  %102 = vmatpush.bf16.msra.mxu0 0
  %103 = vmatpush.bf16.msra.mxu0 0
  %104 = vmatpush.bf16.msra.mxu0 %v88
  %105 = vmatpush.bf16.msra.mxu0 %v66
  %106 = vmatpush.bf16.msra.mxu0 %v62
  %107 = vmatmul.bf16.gmra.mxu0 %v84
  %v108 = vpop.f32.mrf.mxu0
  %v109 = vadd.f32 %v30, %v108
  %v110 = vpop.f32.mrf.mxu0
  %111 = vdwg.mxu0
  %112 = vmatpush.bf16.msra.mxu0 0
  %113 = vmatpush.bf16.msra.mxu0 0
  %114 = vmatpush.bf16.msra.mxu0 0
  %115 = vmatpush.bf16.msra.mxu0 0
  %116 = vmatpush.bf16.msra.mxu0 0
  %117 = vmatpush.bf16.msra.mxu0 %v91
  %118 = vmatpush.bf16.msra.mxu0 %v67
  %119 = vmatpush.bf16.msra.mxu0 %v63
  %120 = vmatmul.bf16.gmra.mxu0 %v84
  %v121 = vpop.f32.mrf.mxu0
  %v122 = vadd.f32 %v30, %v121
  %v123 = vpop.f32.mrf.mxu0
  %124 = vdwg.mxu0
  %125 = vmatpush.bf16.msra.mxu0 0
  %126 = vmatpush.bf16.msra.mxu0 0
  %127 = vmatpush.bf16.msra.mxu0 0
  %128 = vmatpush.bf16.msra.mxu0 0
  %129 = vmatpush.bf16.msra.mxu0 0
  %130 = vmatpush.bf16.msra.mxu0 %v94
  %131 = vmatpush.bf16.msra.mxu0 %v68
  %132 = vmatpush.bf16.msra.mxu0 %v64
  %133 = vmatmul.bf16.gmra.mxu0 %v84
  %v134 = vpop.f32.mrf.mxu0
  %v135 = vadd.f32 %v30, %v134
  %v136 = vpop.f32.mrf.mxu0
  %137 = vdwg.mxu0
  %138 = vmatpush.bf16.msra.mxu0 0
  %139 = vmatpush.bf16.msra.mxu0 0
  %140 = vmatpush.bf16.msra.mxu0 0
  %141 = vmatpush.bf16.msra.mxu0 0
  %142 = vmatpush.bf16.msra.mxu0 0
  %143 = vmatpush.bf16.msra.mxu0 %v97
  %144 = vmatpush.bf16.msra.mxu0 %v69
  %145 = vmatpush.bf16.msra.mxu0 %v65
  %146 = vmatmul.bf16.gmra.mxu0 %v84
  %v147 = vpop.f32.mrf.mxu0
  %v148 = vadd.f32 %v30, %v147
  %v149 = vpop.f32.mrf.mxu0
  %150 = vdwg.mxu0
  %v155 = vrot.slane %v122, 4
  %v156 = vrot.slane %v148, 4
  %vm157 = vcmask 1043456
  %v158 = vsel %vm157, %v109, %v155
  %v159 = vsel %vm157, %v135, %v156
  %162 = vst [vmem:[%s3] sm:$0xff] %v158
  %163 = vst [vmem:[%s3 + $0x8] sm:$0xff] %v159
  // Predicated region
  $region14: #{transformer_v5_forward.5} parent=0 // pred_check
    _
  $region15: #{transformer_v5_forward.5} parent=0 // pred_check_branch
    %165 = sbr.rel (0) target = $region17
  $region16: #{transformer_v5_forward.5} parent=0 // pred_region
    _
  $region17: #{transformer_v5_forward.5} parent=0 // pred_fallthru
    _
  // Predicated region
  $region18: #{transformer_v5_forward.5} parent=0 // pred_check
    _
  $region19: #{transformer_v5_forward.5} parent=0 // pred_check_branch
    %167 = sbr.rel (0) target = $region21
  $region20: #{transformer_v5_forward.5} parent=0 // pred_region
    _
  $region21: #{transformer_v5_forward.5} parent=0 // pred_fallthru
    _

// kernel: transformer_v5_forward.7
$region0: #{transformer_v5_forward.7}
  #allocation0 [shape = 'u32[]', space=smem, size = 0x4, offset = 0x4, fixed_abs, tag = 'smem constant byte address 0x4 - core index']
  #allocation1 [shape = 'u32[72,128]{1,0:T(1,128)}', space=vmem, size = 0x9000, scoped, tag = 'internal scratch']
  %s0 = inlined_call_operand.vmem [shape: f32[2,36,256], index: 0, kind: input, shape index: {}]
  %s1 = inlined_call_operand.vmem [shape: s32[2,8,256], index: 1, kind: input, shape index: {}]
  %s2 = inlined_call_operand.vmem [shape: f32[2,8,256], index: 2, kind: input, shape index: {}]
  %s3 = inlined_call_operand.vmem [shape: f32[2,4,256], index: 3, kind: input, shape index: {}]
  %s4 = inlined_call_operand.vmem [shape: f32[2,4,256], index: 4, kind: input, shape index: {}]
  %s5 = inlined_call_operand.vmem [shape: f32[9,256], index: 5, kind: input, shape index: {}]
  %s6 = inlined_call_operand.vmem [shape: f32[4,16], index: 6, kind: input, shape index: {}]
  %s7 = inlined_call_operand.vmem [shape: f32[4,1], index: 7, kind: input, shape index: {}]
  %s8 = inlined_call_operand.vmem [shape: f32[4,12], index: 8, kind: input, shape index: {}]
  %s9 = inlined_call_operand.vmem [shape: f32[4,1], index: 9, kind: input, shape index: {}]
  %s10 = inlined_call_operand.vmem [shape: f32[2,4,256], index: 10, kind: output, shape index: {}]
  %s11 = sld [smem:[#allocation0]]
  $region73: #{transformer_v5_forward.7} parent=0
    _
  %s13 = ssub.s32 1, %s11
  %s14 = scalar_select 0, %s13, %s11
  loop: start=0, step=1, limit=4
  $region2: #{transformer_v5_forward.7} parent=0 // loop_pre_header
    _
  $region3: #{transformer_v5_forward.7} parent=0 // loop_header
    %s16 = sphi 0, %s20
    %p17 = scmp.ge.s32.totalorder %s16, 4
    %s26 = sphi 0, %s28
    %s29 = sphi 0, %s26
    %s30 = sphi 0, %s29
    %s46 = sphi 0, %s30
    %s52 = sphi 0, %s54
    %s55 = sphi 0, %s52
    %s56 = sphi 0, %s55
    %s72 = sphi 0, %s56
    %s78 = sphi 0, %s80
    %s81 = sphi 0, %s78
    %s82 = sphi 0, %s81
    %s98 = sphi 0, %s82
    %s104 = sphi 0, %s106
    %s107 = sphi 0, %s104
    %s108 = sphi 0, %s107
    %s124 = sphi 0, %s108
    %s130 = sphi 0, %s132
    %s133 = sphi 0, %s130
    %s134 = sphi 0, %s133
    %s150 = sphi 0, %s134
    %s154 = sphi 0, %s154
    %s156 = sphi 0, %s154
    %s157 = sphi 0, %s156
    %s171 = sphi 0, %s157
    %s175 = sphi 0, %s175
    %s177 = sphi 0, %s175
    %s178 = sphi 0, %s177
    %s192 = sphi 0, %s178
    %s196 = sphi 0, %s196
    %s198 = sphi 0, %s196
    %s199 = sphi 0, %s198
    %s213 = sphi 0, %s199
    %s217 = sphi 0, %s217
    %s219 = sphi 0, %s217
    %s220 = sphi 0, %s219
    %s234 = sphi 0, %s220
    %s238 = sphi 0, %s238
    %s240 = sphi 0, %s238
    %s241 = sphi 0, %s240
    %s255 = sphi 0, %s241
    %s261 = sphi 0, %s263
    %s264 = sphi 0, %s261
    %s265 = sphi 0, %s264
    %s281 = sphi 0, %s265
  $region4: #{transformer_v5_forward.7} parent=0 // loop_header_branch
    %19 = sbr.rel (%p17) target = $region8
  $region5: #{transformer_v5_forward.7} parent=0 // loop_body
    %s21 = ssub.s32 %s16, 1
    %s22 = ssub.s32 %s16, 2
    %s23 = sadd.s32 %s16, 1
    %s24 = ssub.s32 %s16, %s23
    %p25 = scmp.eq.s32.totalorder %s24, 0
    %s27 = sadd.s32 %s26, 1
    %s28 = scalar_select %p25, %s26, %s27
    %p31 = pneg %p25
    %p32 = scmp.eq.s32.totalorder %s16, 1
    %p33 = por %p31, %p32
    %p34 = scmp.ne.s32.totalorder %s26, %s29
    %p35 = scmp.eq.s32.totalorder %s16, 0
    %p36 = por %p34, %p35
    %p37 = scmp.ne.s32.totalorder %s26, %s29
    %p38 = scmp.eq.s32.totalorder %s21, 1
    %p39 = por %p37, %p38
    %p40 = scmp.ne.s32.totalorder %s29, %s30
    %p41 = scmp.eq.s32.totalorder %s21, 0
    %p42 = por %p40, %p41
    %p43 = scmp.ne.s32.totalorder %s29, %s30
    %p44 = scmp.eq.s32.totalorder %s22, 1
    %p45 = por %p43, %p44
    %p47 = scmp.ne.s32.totalorder %s30, %s46
    %p48 = scmp.eq.s32.totalorder %s22, 0
    %p49 = por %p47, %p48
    %s50 = ssub.s32 %s16, %s23
    %p51 = scmp.eq.s32.totalorder %s50, 0
    %s53 = sadd.s32 %s52, 1
    %s54 = scalar_select %p51, %s52, %s53
    %p57 = pneg %p51
    %p58 = scmp.eq.s32.totalorder %s16, 1
    %p59 = por %p57, %p58
    %p60 = scmp.ne.s32.totalorder %s52, %s55
    %p61 = scmp.eq.s32.totalorder %s16, 0
    %p62 = por %p60, %p61
    %p63 = scmp.ne.s32.totalorder %s52, %s55
    %p64 = scmp.eq.s32.totalorder %s21, 1
    %p65 = por %p63, %p64
    %p66 = scmp.ne.s32.totalorder %s55, %s56
    %p67 = scmp.eq.s32.totalorder %s21, 0
    %p68 = por %p66, %p67
    %p69 = scmp.ne.s32.totalorder %s55, %s56
    %p70 = scmp.eq.s32.totalorder %s22, 1
    %p71 = por %p69, %p70
    %p73 = scmp.ne.s32.totalorder %s56, %s72
    %p74 = scmp.eq.s32.totalorder %s22, 0
    %p75 = por %p73, %p74
    %s76 = ssub.s32 %s16, %s23
    %p77 = scmp.eq.s32.totalorder %s76, 0
    %s79 = sadd.s32 %s78, 1
    %s80 = scalar_select %p77, %s78, %s79
    %p83 = pneg %p77
    %p84 = scmp.eq.s32.totalorder %s16, 1
    %p85 = por %p83, %p84
    %p86 = scmp.ne.s32.totalorder %s78, %s81
    %p87 = scmp.eq.s32.totalorder %s16, 0
    %p88 = por %p86, %p87
    %p89 = scmp.ne.s32.totalorder %s78, %s81
    %p90 = scmp.eq.s32.totalorder %s21, 1
    %p91 = por %p89, %p90
    %p92 = scmp.ne.s32.totalorder %s81, %s82
    %p93 = scmp.eq.s32.totalorder %s21, 0
    %p94 = por %p92, %p93
    %p95 = scmp.ne.s32.totalorder %s81, %s82
    %p96 = scmp.eq.s32.totalorder %s22, 1
    %p97 = por %p95, %p96
    %p99 = scmp.ne.s32.totalorder %s82, %s98
    %p100 = scmp.eq.s32.totalorder %s22, 0
    %p101 = por %p99, %p100
    %s102 = ssub.s32 %s16, %s23
    %p103 = scmp.eq.s32.totalorder %s102, 0
    %s105 = sadd.s32 %s104, 1
    %s106 = scalar_select %p103, %s104, %s105
    %p109 = pneg %p103
    %p110 = scmp.eq.s32.totalorder %s16, 1
    %p111 = por %p109, %p110
    %p112 = scmp.ne.s32.totalorder %s104, %s107
    %p113 = scmp.eq.s32.totalorder %s16, 0
    %p114 = por %p112, %p113
    %p115 = scmp.ne.s32.totalorder %s104, %s107
    %p116 = scmp.eq.s32.totalorder %s21, 1
    %p117 = por %p115, %p116
    %p118 = scmp.ne.s32.totalorder %s107, %s108
    %p119 = scmp.eq.s32.totalorder %s21, 0
    %p120 = por %p118, %p119
    %p121 = scmp.ne.s32.totalorder %s107, %s108
    %p122 = scmp.eq.s32.totalorder %s22, 1
    %p123 = por %p121, %p122
    %p125 = scmp.ne.s32.totalorder %s108, %s124
    %p126 = scmp.eq.s32.totalorder %s22, 0
    %p127 = por %p125, %p126
    %s128 = ssub.s32 %s16, %s23
    %p129 = scmp.eq.s32.totalorder %s128, 0
    %s131 = sadd.s32 %s130, 1
    %s132 = scalar_select %p129, %s130, %s131
    %p135 = pneg %p129
    %p136 = scmp.eq.s32.totalorder %s16, 1
    %p137 = por %p135, %p136
    %p138 = scmp.ne.s32.totalorder %s130, %s133
    %p139 = scmp.eq.s32.totalorder %s16, 0
    %p140 = por %p138, %p139
    %p141 = scmp.ne.s32.totalorder %s130, %s133
    %p142 = scmp.eq.s32.totalorder %s21, 1
    %p143 = por %p141, %p142
    %p144 = scmp.ne.s32.totalorder %s133, %s134
    %p145 = scmp.eq.s32.totalorder %s21, 0
    %p146 = por %p144, %p145
    %p147 = scmp.ne.s32.totalorder %s133, %s134
    %p148 = scmp.eq.s32.totalorder %s22, 1
    %p149 = por %p147, %p148
    %p151 = scmp.ne.s32.totalorder %s134, %s150
    %p152 = scmp.eq.s32.totalorder %s22, 0
    %p153 = por %p151, %p152
    %s155 = sadd.s32 %s154, 1
    %p158 = scmp.eq.s32.totalorder %s16, 1
    %p159 = scmp.ne.s32.totalorder %s154, %s156
    %p160 = scmp.eq.s32.totalorder %s16, 0
    %p161 = por %p159, %p160
    %p162 = scmp.ne.s32.totalorder %s154, %s156
    %p163 = scmp.eq.s32.totalorder %s21, 1
    %p164 = por %p162, %p163
    %p165 = scmp.ne.s32.totalorder %s156, %s157
    %p166 = scmp.eq.s32.totalorder %s21, 0
    %p167 = por %p165, %p166
    %p168 = scmp.ne.s32.totalorder %s156, %s157
    %p169 = scmp.eq.s32.totalorder %s22, 1
    %p170 = por %p168, %p169
    %p172 = scmp.ne.s32.totalorder %s157, %s171
    %p173 = scmp.eq.s32.totalorder %s22, 0
    %p174 = por %p172, %p173
    %s176 = sadd.s32 %s175, 1
    %p179 = scmp.eq.s32.totalorder %s16, 1
    %p180 = scmp.ne.s32.totalorder %s175, %s177
    %p181 = scmp.eq.s32.totalorder %s16, 0
    %p182 = por %p180, %p181
    %p183 = scmp.ne.s32.totalorder %s175, %s177
    %p184 = scmp.eq.s32.totalorder %s21, 1
    %p185 = por %p183, %p184
    %p186 = scmp.ne.s32.totalorder %s177, %s178
    %p187 = scmp.eq.s32.totalorder %s21, 0
    %p188 = por %p186, %p187
    %p189 = scmp.ne.s32.totalorder %s177, %s178
    %p190 = scmp.eq.s32.totalorder %s22, 1
    %p191 = por %p189, %p190
    %p193 = scmp.ne.s32.totalorder %s178, %s192
    %p194 = scmp.eq.s32.totalorder %s22, 0
    %p195 = por %p193, %p194
    %s197 = sadd.s32 %s196, 1
    %p200 = scmp.eq.s32.totalorder %s16, 1
    %p201 = scmp.ne.s32.totalorder %s196, %s198
    %p202 = scmp.eq.s32.totalorder %s16, 0
    %p203 = por %p201, %p202
    %p204 = scmp.ne.s32.totalorder %s196, %s198
    %p205 = scmp.eq.s32.totalorder %s21, 1
    %p206 = por %p204, %p205
    %p207 = scmp.ne.s32.totalorder %s198, %s199
    %p208 = scmp.eq.s32.totalorder %s21, 0
    %p209 = por %p207, %p208
    %p210 = scmp.ne.s32.totalorder %s198, %s199
    %p211 = scmp.eq.s32.totalorder %s22, 1
    %p212 = por %p210, %p211
    %p214 = scmp.ne.s32.totalorder %s199, %s213
    %p215 = scmp.eq.s32.totalorder %s22, 0
    %p216 = por %p214, %p215
    %s218 = sadd.s32 %s217, 1
    %p221 = scmp.eq.s32.totalorder %s16, 1
    %p222 = scmp.ne.s32.totalorder %s217, %s219
    %p223 = scmp.eq.s32.totalorder %s16, 0
    %p224 = por %p222, %p223
    %p225 = scmp.ne.s32.totalorder %s217, %s219
    %p226 = scmp.eq.s32.totalorder %s21, 1
    %p227 = por %p225, %p226
    %p228 = scmp.ne.s32.totalorder %s219, %s220
    %p229 = scmp.eq.s32.totalorder %s21, 0
    %p230 = por %p228, %p229
    %p231 = scmp.ne.s32.totalorder %s219, %s220
    %p232 = scmp.eq.s32.totalorder %s22, 1
    %p233 = por %p231, %p232
    %p235 = scmp.ne.s32.totalorder %s220, %s234
    %p236 = scmp.eq.s32.totalorder %s22, 0
    %p237 = por %p235, %p236
    %s239 = sadd.s32 %s238, 1
    %p242 = scmp.eq.s32.totalorder %s16, 1
    %p243 = scmp.ne.s32.totalorder %s238, %s240
    %p244 = scmp.eq.s32.totalorder %s16, 0
    %p245 = por %p243, %p244
    %p246 = scmp.ne.s32.totalorder %s238, %s240
    %p247 = scmp.eq.s32.totalorder %s21, 1
    %p248 = por %p246, %p247
    %p249 = scmp.ne.s32.totalorder %s240, %s241
    %p250 = scmp.eq.s32.totalorder %s21, 0
    %p251 = por %p249, %p250
    %p252 = scmp.ne.s32.totalorder %s240, %s241
    %p253 = scmp.eq.s32.totalorder %s22, 1
    %p254 = por %p252, %p253
    %p256 = scmp.ne.s32.totalorder %s241, %s255
    %p257 = scmp.eq.s32.totalorder %s22, 0
    %p258 = por %p256, %p257
    %s259 = ssub.s32 %s16, %s23
    %p260 = scmp.eq.s32.totalorder %s259, 0
    %s262 = sadd.s32 %s261, 1
    %s263 = scalar_select %p260, %s261, %s262
    %p266 = pneg %p260
    %p267 = scmp.eq.s32.totalorder %s16, 1
    %p268 = por %p266, %p267
    %p269 = scmp.ne.s32.totalorder %s261, %s264
    %p270 = scmp.eq.s32.totalorder %s16, 0
    %p271 = por %p269, %p270
    %p272 = scmp.ne.s32.totalorder %s261, %s264
    %p273 = scmp.eq.s32.totalorder %s21, 1
    %p274 = por %p272, %p273
    %p275 = scmp.ne.s32.totalorder %s264, %s265
    %p276 = scmp.eq.s32.totalorder %s21, 0
    %p277 = por %p275, %p276
    %p278 = scmp.ne.s32.totalorder %s264, %s265
    %p279 = scmp.eq.s32.totalorder %s22, 1
    %p280 = por %p278, %p279
    %p282 = scmp.ne.s32.totalorder %s265, %s281
    %p283 = scmp.eq.s32.totalorder %s22, 0
    %p284 = por %p282, %p283
    %p285 = scmp.le.s32.totalorder 1, %s16
    %p286 = scmp.lt.s32.totalorder %s16, 3
    %p287 = pnand %p285, %p286
    %p288 = pneg %p287
    // Predicated region
    $region9: #{transformer_v5_forward.7} parent=5 // pred_check
      _
    $region10: #{transformer_v5_forward.7} parent=5 // pred_check_branch
      %290 = sbr.rel (%p287) target = $region12
    $region11: #{transformer_v5_forward.7} parent=5 // pred_region
      %s291 = ssub.s32 %s16, 1
      // Predicated region
      $region13: #{transformer_v5_forward.7} parent=11 // pred_check
        %p292 = pneg %p167
      $region14: #{transformer_v5_forward.7} parent=11 // pred_check_branch
        %294 = sbr.rel (%p292) target = $region16
      $region15: #{transformer_v5_forward.7} parent=11 // pred_region
        _
      $region16: #{transformer_v5_forward.7} parent=11 // pred_fallthru
        _
      // Predicated region
      $region17: #{transformer_v5_forward.7} parent=11 // pred_check
        %p295 = pneg %p188
      $region18: #{transformer_v5_forward.7} parent=11 // pred_check_branch
        %297 = sbr.rel (%p295) target = $region20
      $region19: #{transformer_v5_forward.7} parent=11 // pred_region
        _
      $region20: #{transformer_v5_forward.7} parent=11 // pred_fallthru
        _
      // Predicated region
      $region21: #{transformer_v5_forward.7} parent=11 // pred_check
        %p298 = pneg %p209
      $region22: #{transformer_v5_forward.7} parent=11 // pred_check_branch
        %300 = sbr.rel (%p298) target = $region24
      $region23: #{transformer_v5_forward.7} parent=11 // pred_region
        _
      $region24: #{transformer_v5_forward.7} parent=11 // pred_fallthru
        _
      // Predicated region
      $region25: #{transformer_v5_forward.7} parent=11 // pred_check
        %p301 = pneg %p230
      $region26: #{transformer_v5_forward.7} parent=11 // pred_check_branch
        %303 = sbr.rel (%p301) target = $region28
      $region27: #{transformer_v5_forward.7} parent=11 // pred_region
        _
      $region28: #{transformer_v5_forward.7} parent=11 // pred_fallthru
        _
      // Predicated region
      $region29: #{transformer_v5_forward.7} parent=11 // pred_check
        %p304 = pneg %p251
      $region30: #{transformer_v5_forward.7} parent=11 // pred_check_branch
        %306 = sbr.rel (%p304) target = $region32
      $region31: #{transformer_v5_forward.7} parent=11 // pred_region
        _
      $region32: #{transformer_v5_forward.7} parent=11 // pred_fallthru
        _
    $region12: #{transformer_v5_forward.7} parent=5 // pred_fallthru
      _
    %p307 = scmp.lt.s32.totalorder %s16, 2
    // Predicated region
    $region33: #{transformer_v5_forward.7} parent=5 // pred_check
      %p308 = pneg %p307
    $region34: #{transformer_v5_forward.7} parent=5 // pred_check_branch
      %310 = sbr.rel (%p308) target = $region36
    $region35: #{transformer_v5_forward.7} parent=5 // pred_region
      // Predicated region
      $region37: #{transformer_v5_forward.7} parent=35 // pred_check
        %p311 = pneg %p36
      $region38: #{transformer_v5_forward.7} parent=35 // pred_check_branch
        %313 = sbr.rel (%p311) target = $region40
      $region39: #{transformer_v5_forward.7} parent=35 // pred_region
        %p314 = scmp.lt.s32.totalorder %s16, 1
        %s315 = scalar_select %p314, %s16, 1
        %s316 = smul.addr %s315, 10
        %s317 = smul.addr %s316, 8
        %s318 = scalar_lea.vmem %s0, %s317
      $region40: #{transformer_v5_forward.7} parent=35 // pred_fallthru
        _
      // Predicated region
      $region41: #{transformer_v5_forward.7} parent=35 // pred_check
        %p319 = pneg %p62
      $region42: #{transformer_v5_forward.7} parent=35 // pred_check_branch
        %321 = sbr.rel (%p319) target = $region44
      $region43: #{transformer_v5_forward.7} parent=35 // pred_region
        %p322 = scmp.lt.s32.totalorder %s16, 1
        %s323 = scalar_select %p322, %s16, 1
        %s324 = smul.addr %s323, 2
        %s325 = smul.addr %s324, 8
        %s326 = scalar_lea.vmem %s1, %s325
      $region44: #{transformer_v5_forward.7} parent=35 // pred_fallthru
        _
      // Predicated region
      $region45: #{transformer_v5_forward.7} parent=35 // pred_check
        %p327 = pneg %p88
      $region46: #{transformer_v5_forward.7} parent=35 // pred_check_branch
        %329 = sbr.rel (%p327) target = $region48
      $region47: #{transformer_v5_forward.7} parent=35 // pred_region
        %p330 = scmp.lt.s32.totalorder %s16, 1
        %s331 = scalar_select %p330, %s16, 1
        %s332 = smul.addr %s331, 2
        %s333 = smul.addr %s332, 8
        %s334 = scalar_lea.vmem %s2, %s333
      $region48: #{transformer_v5_forward.7} parent=35 // pred_fallthru
        _
      // Predicated region
      $region49: #{transformer_v5_forward.7} parent=35 // pred_check
        %p335 = pneg %p114
      $region50: #{transformer_v5_forward.7} parent=35 // pred_check_branch
        %337 = sbr.rel (%p335) target = $region52
      $region51: #{transformer_v5_forward.7} parent=35 // pred_region
        %p338 = scmp.lt.s32.totalorder %s16, 1
        %s339 = scalar_select %p338, %s16, 1
        %s340 = smul.addr %s339, 2
        %s341 = smul.addr %s340, 4
        %s342 = scalar_lea.vmem %s3, %s341
      $region52: #{transformer_v5_forward.7} parent=35 // pred_fallthru
        _
      // Predicated region
      $region53: #{transformer_v5_forward.7} parent=35 // pred_check
        %p343 = pneg %p140
      $region54: #{transformer_v5_forward.7} parent=35 // pred_check_branch
        %345 = sbr.rel (%p343) target = $region56
      $region55: #{transformer_v5_forward.7} parent=35 // pred_region
        %p346 = scmp.lt.s32.totalorder %s16, 1
        %s347 = scalar_select %p346, %s16, 1
        %s348 = smul.addr %s347, 2
        %s349 = smul.addr %s348, 4
        %s350 = scalar_lea.vmem %s4, %s349
      $region56: #{transformer_v5_forward.7} parent=35 // pred_fallthru
        _
    $region36: #{transformer_v5_forward.7} parent=5 // pred_fallthru
      _
    %p351 = scmp.le.s32.totalorder 1, %s16
    %p352 = scmp.lt.s32.totalorder %s16, 3
    %p353 = pnand %p351, %p352
    %p354 = pneg %p353
    // Predicated region
    $region57: #{transformer_v5_forward.7} parent=5 // pred_check
      _
    $region58: #{transformer_v5_forward.7} parent=5 // pred_check_branch
      %356 = sbr.rel (%p353) target = $region60
    $region59: #{transformer_v5_forward.7} parent=5 // pred_region
      %s357 = ssub.s32 %s16, 1
      %p358 = scmp.lt.s32.totalorder %s21, 1
      %s359 = scalar_select %p358, %s21, 1
      %s360 = smul.addr %s359, 10
      %s361 = smul.addr %s360, 8
      %s362 = scalar_lea.vmem %s0, %s361
      %p363 = pneg %p42
      %p364 = pneg %p39
      %p365 = scmp.lt.s32.totalorder %s21, 1
      %s366 = scalar_select %p365, %s21, 1
      %s367 = smul.addr %s366, 2
      %s368 = smul.addr %s367, 8
      %s369 = scalar_lea.vmem %s1, %s368
      %p370 = pneg %p68
      %p371 = pneg %p65
      %p372 = scmp.lt.s32.totalorder %s21, 1
      %s373 = scalar_select %p372, %s21, 1
      %s374 = smul.addr %s373, 2
      %s375 = smul.addr %s374, 8
      %s376 = scalar_lea.vmem %s2, %s375
      %p377 = pneg %p94
      %p378 = pneg %p91
      %p379 = scmp.lt.s32.totalorder %s21, 1
      %s380 = scalar_select %p379, %s21, 1
      %s381 = smul.addr %s380, 2
      %s382 = smul.addr %s381, 4
      %s383 = scalar_lea.vmem %s3, %s382
      %p384 = pneg %p120
      %p385 = pneg %p117
      %p386 = scmp.lt.s32.totalorder %s21, 1
      %s387 = scalar_select %p386, %s21, 1
      %s388 = smul.addr %s387, 2
      %s389 = smul.addr %s388, 4
      %s390 = scalar_lea.vmem %s4, %s389
      %p391 = pneg %p146
      %p392 = pneg %p143
      %p393 = pneg %p167
      %p394 = pneg %p164
      %p395 = pneg %p188
      %p396 = pneg %p185
      %p397 = pneg %p209
      %p398 = pneg %p206
      %p399 = pneg %p230
      %p400 = pneg %p227
      %p401 = pneg %p251
      %p402 = pneg %p248
      %p403 = pneg %p277
      %p404 = pneg %p274
      %p405 = scmp.lt.s32.totalorder %s21, 1
      %s406 = scalar_select %p405, %s21, 1
      %s407 = smul.addr %s406, 2
      %s408 = smul.addr %s407, 4
      %s409 = scalar_lea.vmem %s10, %s408
      %p410 = scmp.lt.s32.totalorder %s21, 1
      %s411 = scalar_select %p410, %s21, 1
      %s412 = smul.addr %s411, 10
      %s413 = smul.addr %s412, 8
      %s414 = scalar_lea.vmem %s0, %s413
      %p415 = scmp.lt.s32.totalorder %s21, 1
      %s416 = scalar_select %p415, %s21, 1
      %s417 = smul.addr %s416, 2
      %s418 = smul.addr %s417, 8
      %s419 = scalar_lea.vmem %s1, %s418
      %p420 = scmp.lt.s32.totalorder %s21, 1
      %s421 = scalar_select %p420, %s21, 1
      %s422 = smul.addr %s421, 2
      %s423 = smul.addr %s422, 8
      %s424 = scalar_lea.vmem %s2, %s423
      %p425 = scmp.lt.s32.totalorder %s21, 1
      %s426 = scalar_select %p425, %s21, 1
      %s427 = smul.addr %s426, 2
      %s428 = smul.addr %s427, 4
      %s429 = scalar_lea.vmem %s3, %s428
      %p430 = scmp.lt.s32.totalorder %s21, 1
      %s431 = scalar_select %p430, %s21, 1
      %s432 = smul.addr %s431, 2
      %s433 = smul.addr %s432, 4
      %s434 = scalar_lea.vmem %s4, %s433
      %p435 = scmp.lt.s32.totalorder %s21, 1
      %s436 = scalar_select %p435, %s21, 1
      %s437 = smul.addr %s436, 2
      %s438 = smul.addr %s437, 4
      %s439 = scalar_lea.vmem %s10, %s438
      %v440 = vld [vmem:[%s414] sm:$0xff]
      %v441 = vld [vmem:[%s414 + $0x8] sm:$0xff]
      %v442 = vld [vmem:[%s414 + $0x10] sm:$0xff]
      %v443 = vld [vmem:[%s414 + $0x18] sm:$0xff]
      %v444 = vld [vmem:[%s414 + $0x20] sm:$0xff]
      %v445 = vld [vmem:[%s414 + $0x28] sm:$0xff]
      %v446 = vld [vmem:[%s414 + $0x30] sm:$0xff]
      %v447 = vld [vmem:[%s414 + $0x38] sm:$0xff]
      %v448 = vld [vmem:[%s414 + $0x40] sm:$0xf]
      %v449 = vld [vmem:[%s414 + $0x48] sm:$0xf]
      %v450 = vpack.c.bf16 %v442, %v440
      %v451 = vpack.c.bf16 %v443, %v441
      %v452 = vpack.c.bf16 %v446, %v444
      %v453 = vpack.c.bf16 %v447, %v445
      %v454 = vpack.c.bf16 %v448, %v448
      %v455 = vpack.c.bf16 %v449, %v449
      %v456 = vlaneseq
      %v457 = vshrl.u32 %v456, 7
      %v458 = vadd.s32 %v457, 8
      %v459 = vadd.s32 %v457, 16
      %v460 = vadd.s32 %v457, 24
      %v461 = vadd.s32 %v457, 32
      %v462 = vadd.s32 %v457, 40
      %v463 = vadd.s32 %v457, 48
      %v464 = vadd.s32 %v457, 56
      %v465 = vadd.s32 %v457, 64
      %v466 = vadd.s32 %v457, 72
      %v467 = vadd.s32 %v457, 80
      %v468 = vadd.s32 %v457, 88
      %v469 = vadd.s32 %v457, 96
      %v470 = vadd.s32 %v457, 104
      %v471 = vadd.s32 %v457, 112
      %v472 = vadd.s32 %v457, 120
      %v473 = vadd.s32 %v457, 128
      %v474 = vadd.s32 %v457, 136
      %v475 = vadd.s32 %v457, 144
      %v476 = vadd.s32 %v457, 152
      %v477 = vadd.s32 %v457, 160
      %v478 = vadd.s32 %v457, 168
      %v479 = vadd.s32 %v457, 176
      %v480 = vadd.s32 %v457, 184
      %v481 = vadd.s32 %v457, 192
      %v482 = vadd.s32 %v457, 200
      %v483 = vadd.s32 %v457, 208
      %v484 = vadd.s32 %v457, 216
      %v485 = vadd.s32 %v457, 224
      %v486 = vadd.s32 %v457, 232
      %v487 = vadd.s32 %v457, 240
      %v488 = vadd.s32 %v457, 248
      %s489 = scalar_lea.vmem %s419, 1
      %v490 = vld [vmem:[%s489] ss:$8 sm:$0x3]
      %v491 = vperm.slane %v490, 0
      %v492 = vperm.slane %v490, 1
      %vm493 = vcmp.eq.s32.totalorder %v457, %v491
      %vm494 = vcmp.eq.s32.totalorder %v457, %v492
      %vm495 = vcmp.eq.s32.totalorder %v458, %v491
      %vm496 = vcmp.eq.s32.totalorder %v458, %v492
      %vm497 = vcmp.eq.s32.totalorder %v459, %v491
      %vm498 = vcmp.eq.s32.totalorder %v459, %v492
      %vm499 = vcmp.eq.s32.totalorder %v460, %v491
      %vm500 = vcmp.eq.s32.totalorder %v460, %v492
      %vm501 = vcmp.eq.s32.totalorder %v461, %v491
      %vm502 = vcmp.eq.s32.totalorder %v461, %v492
      %vm503 = vcmp.eq.s32.totalorder %v462, %v491
      %vm504 = vcmp.eq.s32.totalorder %v462, %v492
      %vm505 = vcmp.eq.s32.totalorder %v463, %v491
      %vm506 = vcmp.eq.s32.totalorder %v463, %v492
      %vm507 = vcmp.eq.s32.totalorder %v464, %v491
      %vm508 = vcmp.eq.s32.totalorder %v464, %v492
      %vm509 = vcmp.eq.s32.totalorder %v465, %v491
      %vm510 = vcmp.eq.s32.totalorder %v465, %v492
      %vm511 = vcmp.eq.s32.totalorder %v466, %v491
      %vm512 = vcmp.eq.s32.totalorder %v466, %v492
      %vm513 = vcmp.eq.s32.totalorder %v467, %v491
      %vm514 = vcmp.eq.s32.totalorder %v467, %v492
      %vm515 = vcmp.eq.s32.totalorder %v468, %v491
      %vm516 = vcmp.eq.s32.totalorder %v468, %v492
      %vm517 = vcmp.eq.s32.totalorder %v469, %v491
      %vm518 = vcmp.eq.s32.totalorder %v469, %v492
      %vm519 = vcmp.eq.s32.totalorder %v470, %v491
      %vm520 = vcmp.eq.s32.totalorder %v470, %v492
      %vm521 = vcmp.eq.s32.totalorder %v471, %v491
      %vm522 = vcmp.eq.s32.totalorder %v471, %v492
      %vm523 = vcmp.eq.s32.totalorder %v472, %v491
      %vm524 = vcmp.eq.s32.totalorder %v472, %v492
      %vm525 = vcmp.eq.s32.totalorder %v473, %v491
      %vm526 = vcmp.eq.s32.totalorder %v473, %v492
      %vm527 = vcmp.eq.s32.totalorder %v474, %v491
      %vm528 = vcmp.eq.s32.totalorder %v474, %v492
      %vm529 = vcmp.eq.s32.totalorder %v475, %v491
      %vm530 = vcmp.eq.s32.totalorder %v475, %v492
      %vm531 = vcmp.eq.s32.totalorder %v476, %v491
      %vm532 = vcmp.eq.s32.totalorder %v476, %v492
      %vm533 = vcmp.eq.s32.totalorder %v477, %v491
      %vm534 = vcmp.eq.s32.totalorder %v477, %v492
      %vm535 = vcmp.eq.s32.totalorder %v478, %v491
      %vm536 = vcmp.eq.s32.totalorder %v478, %v492
      %vm537 = vcmp.eq.s32.totalorder %v479, %v491
      %vm538 = vcmp.eq.s32.totalorder %v479, %v492
      %vm539 = vcmp.eq.s32.totalorder %v480, %v491
      %vm540 = vcmp.eq.s32.totalorder %v480, %v492
      %vm541 = vcmp.eq.s32.totalorder %v481, %v491
      %vm542 = vcmp.eq.s32.totalorder %v481, %v492
      %vm543 = vcmp.eq.s32.totalorder %v482, %v491
      %vm544 = vcmp.eq.s32.totalorder %v482, %v492
      %vm545 = vcmp.eq.s32.totalorder %v483, %v491
      %vm546 = vcmp.eq.s32.totalorder %v483, %v492
      %vm547 = vcmp.eq.s32.totalorder %v484, %v491
      %vm548 = vcmp.eq.s32.totalorder %v484, %v492
      %vm549 = vcmp.eq.s32.totalorder %v485, %v491
      %vm550 = vcmp.eq.s32.totalorder %v485, %v492
      %vm551 = vcmp.eq.s32.totalorder %v486, %v491
      %vm552 = vcmp.eq.s32.totalorder %v486, %v492
      %vm553 = vcmp.eq.s32.totalorder %v487, %v491
      %vm554 = vcmp.eq.s32.totalorder %v487, %v492
      %vm555 = vcmp.eq.s32.totalorder %v488, %v491
      %vm556 = vcmp.eq.s32.totalorder %v488, %v492
      %v557 = vsel %vm493, 1, 0
      %v558 = vsel %vm494, 1, 0
      %v559 = vsel %vm495, 1, 0
      %v560 = vsel %vm496, 1, 0
      %v561 = vsel %vm497, 1, 0
      %v562 = vsel %vm498, 1, 0
      %v563 = vsel %vm499, 1, 0
      %v564 = vsel %vm500, 1, 0
      %v565 = vsel %vm501, 1, 0
      %v566 = vsel %vm502, 1, 0
      %v567 = vsel %vm503, 1, 0
      %v568 = vsel %vm504, 1, 0
      %v569 = vsel %vm505, 1, 0
      %v570 = vsel %vm506, 1, 0
      %v571 = vsel %vm507, 1, 0
      %v572 = vsel %vm508, 1, 0
      %v573 = vsel %vm509, 1, 0
      %v574 = vsel %vm510, 1, 0
      %v575 = vsel %vm511, 1, 0
      %v576 = vsel %vm512, 1, 0
      %v577 = vsel %vm513, 1, 0
      %v578 = vsel %vm514, 1, 0
      %v579 = vsel %vm515, 1, 0
      %v580 = vsel %vm516, 1, 0
      %v581 = vsel %vm517, 1, 0
      %v582 = vsel %vm518, 1, 0
      %v583 = vsel %vm519, 1, 0
      %v584 = vsel %vm520, 1, 0
      %v585 = vsel %vm521, 1, 0
      %v586 = vsel %vm522, 1, 0
      %v587 = vsel %vm523, 1, 0
      %v588 = vsel %vm524, 1, 0
      %v589 = vsel %vm525, 1, 0
      %v590 = vsel %vm526, 1, 0
      %v591 = vsel %vm527, 1, 0
      %v592 = vsel %vm528, 1, 0
      %v593 = vsel %vm529, 1, 0
      %v594 = vsel %vm530, 1, 0
      %v595 = vsel %vm531, 1, 0
      %v596 = vsel %vm532, 1, 0
      %v597 = vsel %vm533, 1, 0
      %v598 = vsel %vm534, 1, 0
      %v599 = vsel %vm535, 1, 0
      %v600 = vsel %vm536, 1, 0
      %v601 = vsel %vm537, 1, 0
      %v602 = vsel %vm538, 1, 0
      %v603 = vsel %vm539, 1, 0
      %v604 = vsel %vm540, 1, 0
      %v605 = vsel %vm541, 1, 0
      %v606 = vsel %vm542, 1, 0
      %v607 = vsel %vm543, 1, 0
      %v608 = vsel %vm544, 1, 0
      %v609 = vsel %vm545, 1, 0
      %v610 = vsel %vm546, 1, 0
      %v611 = vsel %vm547, 1, 0
      %v612 = vsel %vm548, 1, 0
      %v613 = vsel %vm549, 1, 0
      %v614 = vsel %vm550, 1, 0
      %v615 = vsel %vm551, 1, 0
      %v616 = vsel %vm552, 1, 0
      %v617 = vsel %vm553, 1, 0
      %v618 = vsel %vm554, 1, 0
      %v619 = vsel %vm555, 1, 0
      %v620 = vsel %vm556, 1, 0
      %v621 = vcvt.s32.f32 %v557
      %v622 = vcvt.s32.f32 %v558
      %v623 = vcvt.s32.f32 %v559
      %v624 = vcvt.s32.f32 %v560
      %v625 = vcvt.s32.f32 %v561
      %v626 = vcvt.s32.f32 %v562
      %v627 = vcvt.s32.f32 %v563
      %v628 = vcvt.s32.f32 %v564
      %v629 = vcvt.s32.f32 %v565
      %v630 = vcvt.s32.f32 %v566
      %v631 = vcvt.s32.f32 %v567
      %v632 = vcvt.s32.f32 %v568
      %v633 = vcvt.s32.f32 %v569
      %v634 = vcvt.s32.f32 %v570
      %v635 = vcvt.s32.f32 %v571
      %v636 = vcvt.s32.f32 %v572
      %v637 = vcvt.s32.f32 %v573
      %v638 = vcvt.s32.f32 %v574
      %v639 = vcvt.s32.f32 %v575
      %v640 = vcvt.s32.f32 %v576
      %v641 = vcvt.s32.f32 %v577
      %v642 = vcvt.s32.f32 %v578
      %v643 = vcvt.s32.f32 %v579
      %v644 = vcvt.s32.f32 %v580
      %v645 = vcvt.s32.f32 %v581
      %v646 = vcvt.s32.f32 %v582
      %v647 = vcvt.s32.f32 %v583
      %v648 = vcvt.s32.f32 %v584
      %v649 = vcvt.s32.f32 %v585
      %v650 = vcvt.s32.f32 %v586
      %v651 = vcvt.s32.f32 %v587
      %v652 = vcvt.s32.f32 %v588
      %v653 = vcvt.s32.f32 %v589
      %v654 = vcvt.s32.f32 %v590
      %v655 = vcvt.s32.f32 %v591
      %v656 = vcvt.s32.f32 %v592
      %v657 = vcvt.s32.f32 %v593
      %v658 = vcvt.s32.f32 %v594
      %v659 = vcvt.s32.f32 %v595
      %v660 = vcvt.s32.f32 %v596
      %v661 = vcvt.s32.f32 %v597
      %v662 = vcvt.s32.f32 %v598
      %v663 = vcvt.s32.f32 %v599
      %v664 = vcvt.s32.f32 %v600
      %v665 = vcvt.s32.f32 %v601
      %v666 = vcvt.s32.f32 %v602
      %v667 = vcvt.s32.f32 %v603
      %v668 = vcvt.s32.f32 %v604
      %v669 = vcvt.s32.f32 %v605
      %v670 = vcvt.s32.f32 %v606
      %v671 = vcvt.s32.f32 %v607
      %v672 = vcvt.s32.f32 %v608
      %v673 = vcvt.s32.f32 %v609
      %v674 = vcvt.s32.f32 %v610
      %v675 = vcvt.s32.f32 %v611
      %v676 = vcvt.s32.f32 %v612
      %v677 = vcvt.s32.f32 %v613
      %v678 = vcvt.s32.f32 %v614
      %v679 = vcvt.s32.f32 %v615
      %v680 = vcvt.s32.f32 %v616
      %v681 = vcvt.s32.f32 %v617
      %v682 = vcvt.s32.f32 %v618
      %v683 = vcvt.s32.f32 %v619
      %v684 = vcvt.s32.f32 %v620
      %v685 = vpack.c.bf16 %v623, %v621
      %v686 = vpack.c.bf16 %v624, %v622
      %v687 = vpack.c.bf16 %v627, %v625
      %v688 = vpack.c.bf16 %v628, %v626
      %v689 = vpack.c.bf16 %v631, %v629
      %v690 = vpack.c.bf16 %v632, %v630
      %v691 = vpack.c.bf16 %v635, %v633
      %v692 = vpack.c.bf16 %v636, %v634
      %v693 = vpack.c.bf16 %v639, %v637
      %v694 = vpack.c.bf16 %v640, %v638
      %v695 = vpack.c.bf16 %v643, %v641
      %v696 = vpack.c.bf16 %v644, %v642
      %v697 = vpack.c.bf16 %v647, %v645
      %v698 = vpack.c.bf16 %v648, %v646
      %v699 = vpack.c.bf16 %v651, %v649
      %v700 = vpack.c.bf16 %v652, %v650
      %v701 = vpack.c.bf16 %v655, %v653
      %v702 = vpack.c.bf16 %v656, %v654
      %v703 = vpack.c.bf16 %v659, %v657
      %v704 = vpack.c.bf16 %v660, %v658
      %v705 = vpack.c.bf16 %v663, %v661
      %v706 = vpack.c.bf16 %v664, %v662
      %v707 = vpack.c.bf16 %v667, %v665
      %v708 = vpack.c.bf16 %v668, %v666
      %v709 = vpack.c.bf16 %v671, %v669
      %v710 = vpack.c.bf16 %v672, %v670
      %v711 = vpack.c.bf16 %v675, %v673
      %v712 = vpack.c.bf16 %v676, %v674
      %v713 = vpack.c.bf16 %v679, %v677
      %v714 = vpack.c.bf16 %v680, %v678
      %v715 = vpack.c.bf16 %v683, %v681
      %v716 = vpack.c.bf16 %v684, %v682
      %717 = vmatpush.bf16.msra.mxu0 %v699
      %718 = vmatpush.bf16.msra.mxu0 %v697
      %719 = vmatpush.bf16.msra.mxu0 %v695
      %720 = vmatpush.bf16.msra.mxu0 %v693
      %721 = vmatpush.bf16.msra.mxu0 %v691
      %722 = vmatpush.bf16.msra.mxu0 %v689
      %723 = vmatpush.bf16.msra.mxu0 %v687
      %724 = vmatpush.bf16.msra.mxu0 %v685
      %725 = vmatmul.bf16.gmra.mxu0 %v450
      %v726 = vpop.f32.mrf.mxu0
      %v727 = vadd.f32 0.0, %v726
      %v728 = vpop.f32.mrf.mxu0
      %v729 = vadd.f32 0.0, %v728
      %730 = vmatmul.bf16.gmra.mxu0 %v452
      %v731 = vpop.f32.mrf.mxu0
      %v732 = vadd.f32 0.0, %v731
      %v733 = vpop.f32.mrf.mxu0
      %v734 = vadd.f32 0.0, %v733
      %735 = vmatmul.bf16.gmra.mxu0 %v454
      %v736 = vpop.f32.mrf.mxu0
      %v737 = vadd.f32 0.0, %v736
      %v738 = vpop.f32.mrf.mxu0
      %739 = vdwg.mxu0
      %740 = vmatpush.bf16.msra.mxu0 %v715
      %741 = vmatpush.bf16.msra.mxu0 %v713
      %742 = vmatpush.bf16.msra.mxu0 %v711
      %743 = vmatpush.bf16.msra.mxu0 %v709
      %744 = vmatpush.bf16.msra.mxu0 %v707
      %745 = vmatpush.bf16.msra.mxu0 %v705
      %746 = vmatpush.bf16.msra.mxu0 %v703
      %747 = vmatpush.bf16.msra.mxu0 %v701
      %748 = vmatmul.bf16.gmra.mxu0 %v451
      %v749 = vpop.f32.mrf.mxu0
      %v750 = vadd.f32 %v727, %v749
      %v751 = vpop.f32.mrf.mxu0
      %v752 = vadd.f32 %v729, %v751
      %753 = vmatmul.bf16.gmra.mxu0 %v453
      %v754 = vpop.f32.mrf.mxu0
      %v755 = vadd.f32 %v732, %v754
      %v756 = vpop.f32.mrf.mxu0
      %v757 = vadd.f32 %v734, %v756
      %758 = vmatmul.bf16.gmra.mxu0 %v455
      %v759 = vpop.f32.mrf.mxu0
      %v760 = vadd.f32 %v737, %v759
      %v761 = vpop.f32.mrf.mxu0
      %762 = vdwg.mxu0
      %763 = vmatpush.bf16.msra.mxu0 %v700
      %764 = vmatpush.bf16.msra.mxu0 %v698
      %765 = vmatpush.bf16.msra.mxu0 %v696
      %766 = vmatpush.bf16.msra.mxu0 %v694
      %767 = vmatpush.bf16.msra.mxu0 %v692
      %768 = vmatpush.bf16.msra.mxu0 %v690
      %769 = vmatpush.bf16.msra.mxu0 %v688
      %770 = vmatpush.bf16.msra.mxu0 %v686
      %771 = vmatmul.bf16.gmra.mxu0 %v450
      %v772 = vpop.f32.mrf.mxu0
      %v773 = vadd.f32 0.0, %v772
      %v774 = vpop.f32.mrf.mxu0
      %v775 = vadd.f32 0.0, %v774
      %776 = vmatmul.bf16.gmra.mxu0 %v452
      %v777 = vpop.f32.mrf.mxu0
      %v778 = vadd.f32 0.0, %v777
      %v779 = vpop.f32.mrf.mxu0
      %v780 = vadd.f32 0.0, %v779
      %781 = vmatmul.bf16.gmra.mxu0 %v454
      %v782 = vpop.f32.mrf.mxu0
      %v783 = vadd.f32 0.0, %v782
      %v784 = vpop.f32.mrf.mxu0
      %785 = vdwg.mxu0
      %786 = vmatpush.bf16.msra.mxu0 %v716
      %787 = vmatpush.bf16.msra.mxu0 %v714
      %788 = vmatpush.bf16.msra.mxu0 %v712
      %789 = vmatpush.bf16.msra.mxu0 %v710
      %790 = vmatpush.bf16.msra.mxu0 %v708
      %791 = vmatpush.bf16.msra.mxu0 %v706
      %792 = vmatpush.bf16.msra.mxu0 %v704
      %793 = vmatpush.bf16.msra.mxu0 %v702
      %794 = vmatmul.bf16.gmra.mxu0 %v451
      %v795 = vpop.f32.mrf.mxu0
      %v796 = vadd.f32 %v773, %v795
      %v797 = vpop.f32.mrf.mxu0
      %v798 = vadd.f32 %v775, %v797
      %799 = vmatmul.bf16.gmra.mxu0 %v453
      %v800 = vpop.f32.mrf.mxu0
      %v801 = vadd.f32 %v778, %v800
      %v802 = vpop.f32.mrf.mxu0
      %v803 = vadd.f32 %v780, %v802
      %804 = vmatmul.bf16.gmra.mxu0 %v455
      %v805 = vpop.f32.mrf.mxu0
      %v806 = vadd.f32 %v783, %v805
      %v807 = vpop.f32.mrf.mxu0
      %808 = vdwg.mxu0
      %v809 = vld [vmem:[%s5] ss:$8 sm:$0x3]
      %v811 = vperm.slane %v809, 0
      %v812 = vperm.slane %v809, 1
      %v815 = vmul.f32 %v750, %v811
      %v816 = vmul.f32 %v796, %v812
      %817 = vrot.lane.b32.xlu0 %v815, 111
      %v818 = vpop.permute.xlu0 %817
      %819 = vrot.lane.b32.xlu0 %v816, 111
      %v820 = vpop.permute.xlu0 %819
      %v821 = vlaneseq
      %v822 = vand.u32 %v821, 127
      %vm823 = vcmp.lt.s32.totalorder %v822, 111
      %v824 = vsel %vm823, %v818, %v820
      %v825 = vsel %vm823, %v820, %v818
      %v826 = vadd.f32 %v824, 0.0
      %v827 = vadd.f32 %v825, 0.0
      %s828 = scalar_lea.vmem %s5, 1
      %v829 = vld [vmem:[%s828] ss:$8 sm:$0x3]
      %v831 = vperm.slane %v829, 0
      %v832 = vperm.slane %v829, 1
      %v835 = vmul.f32 %v750, %v831
      %v836 = vmul.f32 %v796, %v832
      %v839 = vrot.slane %v835, 4
      %v840 = vrot.slane %v836, 4
      %843 = vrot.lane.b32.xlu0 %v839, 112
      %v844 = vpop.permute.xlu0 %843
      %845 = vrot.lane.b32.xlu0 %v840, 112
      %v846 = vpop.permute.xlu0 %845
      %vm847 = vcmp.lt.s32.totalorder %v822, 112
      %v848 = vsel %vm847, %v844, %v846
      %v849 = vsel %vm847, %v846, %v844
      %v850 = vadd.f32 %v826, %v848
      %v851 = vadd.f32 %v827, %v849
      %s852 = scalar_lea.vmem %s5, 2
      %v853 = vld [vmem:[%s852] ss:$8 sm:$0x3]
      %v855 = vperm.slane %v853, 0
      %v856 = vperm.slane %v853, 1
      %v859 = vmul.f32 %v752, %v855
      %v860 = vmul.f32 %v798, %v856
      %861 = vrot.lane.b32.xlu0 %v859, 113
      %v862 = vpop.permute.xlu0 %861
      %863 = vrot.lane.b32.xlu0 %v860, 113
      %v864 = vpop.permute.xlu0 %863
      %vm865 = vcmp.lt.s32.totalorder %v822, 113
      %v866 = vsel %vm865, %v862, %v864
      %v867 = vsel %vm865, %v864, %v862
      %v868 = vadd.f32 %v850, %v866
      %v869 = vadd.f32 %v851, %v867
      %s870 = scalar_lea.vmem %s5, 3
      %v871 = vld [vmem:[%s870] ss:$8 sm:$0x3]
      %v873 = vperm.slane %v871, 0
      %v874 = vperm.slane %v871, 1
      %v877 = vmul.f32 %v752, %v873
      %v878 = vmul.f32 %v798, %v874
      %v881 = vrot.slane %v877, 4
      %v882 = vrot.slane %v878, 4
      %885 = vrot.lane.b32.xlu0 %v881, 127
      %v886 = vpop.permute.xlu0 %885
      %887 = vrot.lane.b32.xlu0 %v882, 127
      %v888 = vpop.permute.xlu0 %887
      %vm889 = vcmp.lt.s32.totalorder %v822, 127
      %v890 = vsel %vm889, %v886, %v888
      %v891 = vsel %vm889, %v888, %v886
      %v892 = vadd.f32 %v868, %v890
      %v893 = vadd.f32 %v869, %v891
      %v894 = vadd.f32 %v892, %v755
      %v895 = vadd.f32 %v893, %v801
      %s896 = scalar_lea.vmem %s5, 5
      %v897 = vld [vmem:[%s896] ss:$8 sm:$0x3]
      %v899 = vperm.slane %v897, 0
      %v900 = vperm.slane %v897, 1
      %v903 = vmul.f32 %v755, %v899
      %v904 = vmul.f32 %v801, %v900
      %v907 = vrot.slane %v903, 4
      %v908 = vrot.slane %v904, 4
      %911 = vrot.lane.b32.xlu0 %v907, 1
      %v912 = vpop.permute.xlu0 %911
      %913 = vrot.lane.b32.xlu0 %v908, 1
      %v914 = vpop.permute.xlu0 %913
      %vm915 = vcmp.lt.s32.totalorder %v822, 1
      %v916 = vsel %vm915, %v912, %v914
      %v917 = vsel %vm915, %v914, %v912
      %v918 = vadd.f32 %v894, %v917
      %v919 = vadd.f32 %v895, %v916
      %s920 = scalar_lea.vmem %s5, 6
      %v921 = vld [vmem:[%s920] ss:$8 sm:$0x3]
      %v923 = vperm.slane %v921, 0
      %v924 = vperm.slane %v921, 1
      %v927 = vmul.f32 %v757, %v923
      %v928 = vmul.f32 %v803, %v924
      %929 = vrot.lane.b32.xlu0 %v927, 15
      %v930 = vpop.permute.xlu0 %929
      %931 = vrot.lane.b32.xlu0 %v928, 15
      %v932 = vpop.permute.xlu0 %931
      %vm933 = vcmp.lt.s32.totalorder %v822, 15
      %v934 = vsel %vm933, %v930, %v932
      %v935 = vsel %vm933, %v932, %v930
      %v936 = vadd.f32 %v918, %v935
      %v937 = vadd.f32 %v919, %v934
      %s938 = scalar_lea.vmem %s5, 7
      %v939 = vld [vmem:[%s938] ss:$8 sm:$0x3]
      %v941 = vperm.slane %v939, 0
      %v942 = vperm.slane %v939, 1
      %v945 = vmul.f32 %v757, %v941
      %v946 = vmul.f32 %v803, %v942
      %v949 = vrot.slane %v945, 4
      %v950 = vrot.slane %v946, 4
      %953 = vrot.lane.b32.xlu0 %v949, 16
      %v954 = vpop.permute.xlu0 %953
      %955 = vrot.lane.b32.xlu0 %v950, 16
      %v956 = vpop.permute.xlu0 %955
      %vm957 = vcmp.lt.s32.totalorder %v822, 16
      %v958 = vsel %vm957, %v954, %v956
      %v959 = vsel %vm957, %v956, %v954
      %v960 = vadd.f32 %v936, %v959
      %v961 = vadd.f32 %v937, %v958
      %s962 = scalar_lea.vmem %s5, 16
      %v963 = vld [vmem:[%s962] ss:$8 sm:$0x3]
      %v965 = vperm.slane %v963, 0
      %v966 = vperm.slane %v963, 1
      %v969 = vmul.f32 %v760, %v965
      %v970 = vmul.f32 %v806, %v966
      %971 = vrot.lane.b32.xlu0 %v969, 17
      %v972 = vpop.permute.xlu0 %971
      %973 = vrot.lane.b32.xlu0 %v970, 17
      %v974 = vpop.permute.xlu0 %973
      %vm975 = vcmp.lt.s32.totalorder %v822, 17
      %v976 = vsel %vm975, %v972, %v974
      %v977 = vsel %vm975, %v974, %v972
      %v978 = vadd.f32 %v960, %v977
      %v979 = vadd.f32 %v961, %v976
      %s980 = scalar_lea.vmem %s424, 1
      %v981 = vld [vmem:[%s980] ss:$8 sm:$0x3]
      %v983 = vperm.slane %v981, 0
      %v984 = vperm.slane %v981, 1
      %v987 = vmul.f32 %v978, %v983
      %v988 = vmul.f32 %v979, %v984
      %v989 = vld [vmem:[%s6] sm:$0xf]
      %s990 = scalar_lea.vmem %s419, 2
      %v991 = vld [vmem:[%s990] ss:$8 sm:$0x3]
      %v992 = vperm.slane %v991, 0
      %v993 = vperm.slane %v991, 1
      %vm994 = vcmp.eq.s32.totalorder %v457, %v992
      %vm995 = vcmp.eq.s32.totalorder %v457, %v993
      %vm996 = vcmp.eq.s32.totalorder %v458, %v992
      %vm997 = vcmp.eq.s32.totalorder %v458, %v993
      %vm998 = vcmp.eq.s32.totalorder %v459, %v992
      %vm999 = vcmp.eq.s32.totalorder %v459, %v993
      %vm1000 = vcmp.eq.s32.totalorder %v460, %v992
      %vm1001 = vcmp.eq.s32.totalorder %v460, %v993
      %vm1002 = vcmp.eq.s32.totalorder %v461, %v992
      %vm1003 = vcmp.eq.s32.totalorder %v461, %v993
      %vm1004 = vcmp.eq.s32.totalorder %v462, %v992
      %vm1005 = vcmp.eq.s32.totalorder %v462, %v993
      %vm1006 = vcmp.eq.s32.totalorder %v463, %v992
      %vm1007 = vcmp.eq.s32.totalorder %v463, %v993
      %vm1008 = vcmp.eq.s32.totalorder %v464, %v992
      %vm1009 = vcmp.eq.s32.totalorder %v464, %v993
      %vm1010 = vcmp.eq.s32.totalorder %v465, %v992
      %vm1011 = vcmp.eq.s32.totalorder %v465, %v993
      %vm1012 = vcmp.eq.s32.totalorder %v466, %v992
      %vm1013 = vcmp.eq.s32.totalorder %v466, %v993
      %vm1014 = vcmp.eq.s32.totalorder %v467, %v992
      %vm1015 = vcmp.eq.s32.totalorder %v467, %v993
      %vm1016 = vcmp.eq.s32.totalorder %v468, %v992
      %vm1017 = vcmp.eq.s32.totalorder %v468, %v993
      %vm1018 = vcmp.eq.s32.totalorder %v469, %v992
      %vm1019 = vcmp.eq.s32.totalorder %v469, %v993
      %vm1020 = vcmp.eq.s32.totalorder %v470, %v992
      %vm1021 = vcmp.eq.s32.totalorder %v470, %v993
      %vm1022 = vcmp.eq.s32.totalorder %v471, %v992
      %vm1023 = vcmp.eq.s32.totalorder %v471, %v993
      %vm1024 = vcmp.eq.s32.totalorder %v472, %v992
      %vm1025 = vcmp.eq.s32.totalorder %v472, %v993
      %vm1026 = vcmp.eq.s32.totalorder %v473, %v992
      %vm1027 = vcmp.eq.s32.totalorder %v473, %v993
      %vm1028 = vcmp.eq.s32.totalorder %v474, %v992
      %vm1029 = vcmp.eq.s32.totalorder %v474, %v993
      %vm1030 = vcmp.eq.s32.totalorder %v475, %v992
      %vm1031 = vcmp.eq.s32.totalorder %v475, %v993
      %vm1032 = vcmp.eq.s32.totalorder %v476, %v992
      %vm1033 = vcmp.eq.s32.totalorder %v476, %v993
      %vm1034 = vcmp.eq.s32.totalorder %v477, %v992
      %vm1035 = vcmp.eq.s32.totalorder %v477, %v993
      %vm1036 = vcmp.eq.s32.totalorder %v478, %v992
      %vm1037 = vcmp.eq.s32.totalorder %v478, %v993
      %vm1038 = vcmp.eq.s32.totalorder %v479, %v992
      %vm1039 = vcmp.eq.s32.totalorder %v479, %v993
      %vm1040 = vcmp.eq.s32.totalorder %v480, %v992
      %vm1041 = vcmp.eq.s32.totalorder %v480, %v993
      %vm1042 = vcmp.eq.s32.totalorder %v481, %v992
      %vm1043 = vcmp.eq.s32.totalorder %v481, %v993
      %vm1044 = vcmp.eq.s32.totalorder %v482, %v992
      %vm1045 = vcmp.eq.s32.totalorder %v482, %v993
      %vm1046 = vcmp.eq.s32.totalorder %v483, %v992
      %vm1047 = vcmp.eq.s32.totalorder %v483, %v993
      %vm1048 = vcmp.eq.s32.totalorder %v484, %v992
      %vm1049 = vcmp.eq.s32.totalorder %v484, %v993
      %vm1050 = vcmp.eq.s32.totalorder %v485, %v992
      %vm1051 = vcmp.eq.s32.totalorder %v485, %v993
      %vm1052 = vcmp.eq.s32.totalorder %v486, %v992
      %vm1053 = vcmp.eq.s32.totalorder %v486, %v993
      %vm1054 = vcmp.eq.s32.totalorder %v487, %v992
      %vm1055 = vcmp.eq.s32.totalorder %v487, %v993
      %vm1056 = vcmp.eq.s32.totalorder %v488, %v992
      %vm1057 = vcmp.eq.s32.totalorder %v488, %v993
      %v1058 = vsel %vm994, 1, 0
      %v1059 = vsel %vm995, 1, 0
      %v1060 = vsel %vm996, 1, 0
      %v1061 = vsel %vm997, 1, 0
      %v1062 = vsel %vm998, 1, 0
      %v1063 = vsel %vm999, 1, 0
      %v1064 = vsel %vm1000, 1, 0
      %v1065 = vsel %vm1001, 1, 0
      %v1066 = vsel %vm1002, 1, 0
      %v1067 = vsel %vm1003, 1, 0
      %v1068 = vsel %vm1004, 1, 0
      %v1069 = vsel %vm1005, 1, 0
      %v1070 = vsel %vm1006, 1, 0
      %v1071 = vsel %vm1007, 1, 0
      %v1072 = vsel %vm1008, 1, 0
      %v1073 = vsel %vm1009, 1, 0
      %v1074 = vsel %vm1010, 1, 0
      %v1075 = vsel %vm1011, 1, 0
      %v1076 = vsel %vm1012, 1, 0
      %v1077 = vsel %vm1013, 1, 0
      %v1078 = vsel %vm1014, 1, 0
      %v1079 = vsel %vm1015, 1, 0
      %v1080 = vsel %vm1016, 1, 0
      %v1081 = vsel %vm1017, 1, 0
      %v1082 = vsel %vm1018, 1, 0
      %v1083 = vsel %vm1019, 1, 0
      %v1084 = vsel %vm1020, 1, 0
      %v1085 = vsel %vm1021, 1, 0
      %v1086 = vsel %vm1022, 1, 0
      %v1087 = vsel %vm1023, 1, 0
      %v1088 = vsel %vm1024, 1, 0
      %v1089 = vsel %vm1025, 1, 0
      %v1090 = vsel %vm1026, 1, 0
      %v1091 = vsel %vm1027, 1, 0
      %v1092 = vsel %vm1028, 1, 0
      %v1093 = vsel %vm1029, 1, 0
      %v1094 = vsel %vm1030, 1, 0
      %v1095 = vsel %vm1031, 1, 0
      %v1096 = vsel %vm1032, 1, 0
      %v1097 = vsel %vm1033, 1, 0
      %v1098 = vsel %vm1034, 1, 0
      %v1099 = vsel %vm1035, 1, 0
      %v1100 = vsel %vm1036, 1, 0
      %v1101 = vsel %vm1037, 1, 0
      %v1102 = vsel %vm1038, 1, 0
      %v1103 = vsel %vm1039, 1, 0
      %v1104 = vsel %vm1040, 1, 0
      %v1105 = vsel %vm1041, 1, 0
      %v1106 = vsel %vm1042, 1, 0
      %v1107 = vsel %vm1043, 1, 0
      %v1108 = vsel %vm1044, 1, 0
      %v1109 = vsel %vm1045, 1, 0
      %v1110 = vsel %vm1046, 1, 0
      %v1111 = vsel %vm1047, 1, 0
      %v1112 = vsel %vm1048, 1, 0
      %v1113 = vsel %vm1049, 1, 0
      %v1114 = vsel %vm1050, 1, 0
      %v1115 = vsel %vm1051, 1, 0
      %v1116 = vsel %vm1052, 1, 0
      %v1117 = vsel %vm1053, 1, 0
      %v1118 = vsel %vm1054, 1, 0
      %v1119 = vsel %vm1055, 1, 0
      %v1120 = vsel %vm1056, 1, 0
      %v1121 = vsel %vm1057, 1, 0
      %v1122 = vcvt.s32.f32 %v1058
      %v1123 = vcvt.s32.f32 %v1059
      %v1124 = vcvt.s32.f32 %v1060
      %v1125 = vcvt.s32.f32 %v1061
      %v1126 = vcvt.s32.f32 %v1062
      %v1127 = vcvt.s32.f32 %v1063
      %v1128 = vcvt.s32.f32 %v1064
      %v1129 = vcvt.s32.f32 %v1065
      %v1130 = vcvt.s32.f32 %v1066
      %v1131 = vcvt.s32.f32 %v1067
      %v1132 = vcvt.s32.f32 %v1068
      %v1133 = vcvt.s32.f32 %v1069
      %v1134 = vcvt.s32.f32 %v1070
      %v1135 = vcvt.s32.f32 %v1071
      %v1136 = vcvt.s32.f32 %v1072
      %v1137 = vcvt.s32.f32 %v1073
      %v1138 = vcvt.s32.f32 %v1074
      %v1139 = vcvt.s32.f32 %v1075
      %v1140 = vcvt.s32.f32 %v1076
      %v1141 = vcvt.s32.f32 %v1077
      %v1142 = vcvt.s32.f32 %v1078
      %v1143 = vcvt.s32.f32 %v1079
      %v1144 = vcvt.s32.f32 %v1080
      %v1145 = vcvt.s32.f32 %v1081
      %v1146 = vcvt.s32.f32 %v1082
      %v1147 = vcvt.s32.f32 %v1083
      %v1148 = vcvt.s32.f32 %v1084
      %v1149 = vcvt.s32.f32 %v1085
      %v1150 = vcvt.s32.f32 %v1086
      %v1151 = vcvt.s32.f32 %v1087
      %v1152 = vcvt.s32.f32 %v1088
      %v1153 = vcvt.s32.f32 %v1089
      %v1154 = vcvt.s32.f32 %v1090
      %v1155 = vcvt.s32.f32 %v1091
      %v1156 = vcvt.s32.f32 %v1092
      %v1157 = vcvt.s32.f32 %v1093
      %v1158 = vcvt.s32.f32 %v1094
      %v1159 = vcvt.s32.f32 %v1095
      %v1160 = vcvt.s32.f32 %v1096
      %v1161 = vcvt.s32.f32 %v1097
      %v1162 = vcvt.s32.f32 %v1098
      %v1163 = vcvt.s32.f32 %v1099
      %v1164 = vcvt.s32.f32 %v1100
      %v1165 = vcvt.s32.f32 %v1101
      %v1166 = vcvt.s32.f32 %v1102
      %v1167 = vcvt.s32.f32 %v1103
      %v1168 = vcvt.s32.f32 %v1104
      %v1169 = vcvt.s32.f32 %v1105
      %v1170 = vcvt.s32.f32 %v1106
      %v1171 = vcvt.s32.f32 %v1107
      %v1172 = vcvt.s32.f32 %v1108
      %v1173 = vcvt.s32.f32 %v1109
      %v1174 = vcvt.s32.f32 %v1110
      %v1175 = vcvt.s32.f32 %v1111
      %v1176 = vcvt.s32.f32 %v1112
      %v1177 = vcvt.s32.f32 %v1113
      %v1178 = vcvt.s32.f32 %v1114
      %v1179 = vcvt.s32.f32 %v1115
      %v1180 = vcvt.s32.f32 %v1116
      %v1181 = vcvt.s32.f32 %v1117
      %v1182 = vcvt.s32.f32 %v1118
      %v1183 = vcvt.s32.f32 %v1119
      %v1184 = vcvt.s32.f32 %v1120
      %v1185 = vcvt.s32.f32 %v1121
      %v1186 = vpack.c.bf16 %v1124, %v1122
      %v1187 = vpack.c.bf16 %v1125, %v1123
      %v1188 = vpack.c.bf16 %v1128, %v1126
      %v1189 = vpack.c.bf16 %v1129, %v1127
      %v1190 = vpack.c.bf16 %v1132, %v1130
      %v1191 = vpack.c.bf16 %v1133, %v1131
      %v1192 = vpack.c.bf16 %v1136, %v1134
      %v1193 = vpack.c.bf16 %v1137, %v1135
      %v1194 = vpack.c.bf16 %v1140, %v1138
      %v1195 = vpack.c.bf16 %v1141, %v1139
      %v1196 = vpack.c.bf16 %v1144, %v1142
      %v1197 = vpack.c.bf16 %v1145, %v1143
      %v1198 = vpack.c.bf16 %v1148, %v1146
      %v1199 = vpack.c.bf16 %v1149, %v1147
      %v1200 = vpack.c.bf16 %v1152, %v1150
      %v1201 = vpack.c.bf16 %v1153, %v1151
      %v1202 = vpack.c.bf16 %v1156, %v1154
      %v1203 = vpack.c.bf16 %v1157, %v1155
      %v1204 = vpack.c.bf16 %v1160, %v1158
      %v1205 = vpack.c.bf16 %v1161, %v1159
      %v1206 = vpack.c.bf16 %v1164, %v1162
      %v1207 = vpack.c.bf16 %v1165, %v1163
      %v1208 = vpack.c.bf16 %v1168, %v1166
      %v1209 = vpack.c.bf16 %v1169, %v1167
      %v1210 = vpack.c.bf16 %v1172, %v1170
      %v1211 = vpack.c.bf16 %v1173, %v1171
      %v1212 = vpack.c.bf16 %v1176, %v1174
      %v1213 = vpack.c.bf16 %v1177, %v1175
      %v1214 = vpack.c.bf16 %v1180, %v1178
      %v1215 = vpack.c.bf16 %v1181, %v1179
      %v1216 = vpack.c.bf16 %v1184, %v1182
      %v1217 = vpack.c.bf16 %v1185, %v1183
      %1218 = vmatpush.bf16.msra.mxu0 %v1200
      %1219 = vmatpush.bf16.msra.mxu0 %v1198
      %1220 = vmatpush.bf16.msra.mxu0 %v1196
      %1221 = vmatpush.bf16.msra.mxu0 %v1194
      %1222 = vmatpush.bf16.msra.mxu0 %v1192
      %1223 = vmatpush.bf16.msra.mxu0 %v1190
      %1224 = vmatpush.bf16.msra.mxu0 %v1188
      %1225 = vmatpush.bf16.msra.mxu0 %v1186
      %1226 = vmatmul.bf16.gmra.mxu0 %v450
      %v1227 = vpop.f32.mrf.mxu0
      %v1228 = vadd.f32 0.0, %v1227
      %v1229 = vpop.f32.mrf.mxu0
      %v1230 = vadd.f32 0.0, %v1229
      %1231 = vmatmul.bf16.gmra.mxu0 %v452
      %v1232 = vpop.f32.mrf.mxu0
      %v1233 = vadd.f32 0.0, %v1232
      %v1234 = vpop.f32.mrf.mxu0
      %v1235 = vadd.f32 0.0, %v1234
      %1236 = vmatmul.bf16.gmra.mxu0 %v454
      %v1237 = vpop.f32.mrf.mxu0
      %v1238 = vadd.f32 0.0, %v1237
      %v1239 = vpop.f32.mrf.mxu0
      %1240 = vdwg.mxu0
      %1241 = vmatpush.bf16.msra.mxu0 %v1216
      %1242 = vmatpush.bf16.msra.mxu0 %v1214
      %1243 = vmatpush.bf16.msra.mxu0 %v1212
      %1244 = vmatpush.bf16.msra.mxu0 %v1210
      %1245 = vmatpush.bf16.msra.mxu0 %v1208
      %1246 = vmatpush.bf16.msra.mxu0 %v1206
      %1247 = vmatpush.bf16.msra.mxu0 %v1204
      %1248 = vmatpush.bf16.msra.mxu0 %v1202
      %1249 = vmatmul.bf16.gmra.mxu0 %v451
      %v1250 = vpop.f32.mrf.mxu0
      %v1251 = vadd.f32 %v1228, %v1250
      %v1252 = vpop.f32.mrf.mxu0
      %v1253 = vadd.f32 %v1230, %v1252
      %1254 = vmatmul.bf16.gmra.mxu0 %v453
      %v1255 = vpop.f32.mrf.mxu0
      %v1256 = vadd.f32 %v1233, %v1255
      %v1257 = vpop.f32.mrf.mxu0
      %v1258 = vadd.f32 %v1235, %v1257
      %1259 = vmatmul.bf16.gmra.mxu0 %v455
      %v1260 = vpop.f32.mrf.mxu0
      %v1261 = vadd.f32 %v1238, %v1260
      %v1262 = vpop.f32.mrf.mxu0
      %1263 = vdwg.mxu0
      %1264 = vmatpush.bf16.msra.mxu0 %v1201
      %1265 = vmatpush.bf16.msra.mxu0 %v1199
      %1266 = vmatpush.bf16.msra.mxu0 %v1197
      %1267 = vmatpush.bf16.msra.mxu0 %v1195
      %1268 = vmatpush.bf16.msra.mxu0 %v1193
      %1269 = vmatpush.bf16.msra.mxu0 %v1191
      %1270 = vmatpush.bf16.msra.mxu0 %v1189
      %1271 = vmatpush.bf16.msra.mxu0 %v1187
      %1272 = vmatmul.bf16.gmra.mxu0 %v450
      %v1273 = vpop.f32.mrf.mxu0
      %v1274 = vadd.f32 0.0, %v1273
      %v1275 = vpop.f32.mrf.mxu0
      %v1276 = vadd.f32 0.0, %v1275
      %1277 = vmatmul.bf16.gmra.mxu0 %v452
      %v1278 = vpop.f32.mrf.mxu0
      %v1279 = vadd.f32 0.0, %v1278
      %v1280 = vpop.f32.mrf.mxu0
      %v1281 = vadd.f32 0.0, %v1280
      %1282 = vmatmul.bf16.gmra.mxu0 %v454
      %v1283 = vpop.f32.mrf.mxu0
      %v1284 = vadd.f32 0.0, %v1283
      %v1285 = vpop.f32.mrf.mxu0
      %1286 = vdwg.mxu0
      %1287 = vmatpush.bf16.msra.mxu0 %v1217
      %1288 = vmatpush.bf16.msra.mxu0 %v1215
      %1289 = vmatpush.bf16.msra.mxu0 %v1213
      %1290 = vmatpush.bf16.msra.mxu0 %v1211
      %1291 = vmatpush.bf16.msra.mxu0 %v1209
      %1292 = vmatpush.bf16.msra.mxu0 %v1207
      %1293 = vmatpush.bf16.msra.mxu0 %v1205
      %1294 = vmatpush.bf16.msra.mxu0 %v1203
      %1295 = vmatmul.bf16.gmra.mxu0 %v451
      %v1296 = vpop.f32.mrf.mxu0
      %v1297 = vadd.f32 %v1274, %v1296
      %v1298 = vpop.f32.mrf.mxu0
      %v1299 = vadd.f32 %v1276, %v1298
      %1300 = vmatmul.bf16.gmra.mxu0 %v453
      %v1301 = vpop.f32.mrf.mxu0
      %v1302 = vadd.f32 %v1279, %v1301
      %v1303 = vpop.f32.mrf.mxu0
      %v1304 = vadd.f32 %v1281, %v1303
      %1305 = vmatmul.bf16.gmra.mxu0 %v455
      %v1306 = vpop.f32.mrf.mxu0
      %v1307 = vadd.f32 %v1284, %v1306
      %v1308 = vpop.f32.mrf.mxu0
      %1309 = vdwg.mxu0
      %v1310 = vmul.f32 %v1251, %v811
      %v1311 = vmul.f32 %v1297, %v812
      %1312 = vrot.lane.b32.xlu0 %v1310, 111
      %v1313 = vpop.permute.xlu0 %1312
      %1314 = vrot.lane.b32.xlu0 %v1311, 111
      %v1315 = vpop.permute.xlu0 %1314
      %v1316 = vsel %vm823, %v1313, %v1315
      %v1317 = vsel %vm823, %v1315, %v1313
      %v1318 = vadd.f32 %v1316, 0.0
      %v1319 = vadd.f32 %v1317, 0.0
      %v1320 = vmul.f32 %v1251, %v831
      %v1321 = vmul.f32 %v1297, %v832
      %v1324 = vrot.slane %v1320, 4
      %v1325 = vrot.slane %v1321, 4
      %1328 = vrot.lane.b32.xlu0 %v1324, 112
      %v1329 = vpop.permute.xlu0 %1328
      %1330 = vrot.lane.b32.xlu0 %v1325, 112
      %v1331 = vpop.permute.xlu0 %1330
      %v1332 = vsel %vm847, %v1329, %v1331
      %v1333 = vsel %vm847, %v1331, %v1329
      %v1334 = vadd.f32 %v1318, %v1332
      %v1335 = vadd.f32 %v1319, %v1333
      %v1336 = vmul.f32 %v1253, %v855
      %v1337 = vmul.f32 %v1299, %v856
      %1338 = vrot.lane.b32.xlu0 %v1336, 113
      %v1339 = vpop.permute.xlu0 %1338
      %1340 = vrot.lane.b32.xlu0 %v1337, 113
      %v1341 = vpop.permute.xlu0 %1340
      %v1342 = vsel %vm865, %v1339, %v1341
      %v1343 = vsel %vm865, %v1341, %v1339
      %v1344 = vadd.f32 %v1334, %v1342
      %v1345 = vadd.f32 %v1335, %v1343
      %v1346 = vmul.f32 %v1253, %v873
      %v1347 = vmul.f32 %v1299, %v874
      %v1350 = vrot.slane %v1346, 4
      %v1351 = vrot.slane %v1347, 4
      %1354 = vrot.lane.b32.xlu0 %v1350, 127
      %v1355 = vpop.permute.xlu0 %1354
      %1356 = vrot.lane.b32.xlu0 %v1351, 127
      %v1357 = vpop.permute.xlu0 %1356
      %v1358 = vsel %vm889, %v1355, %v1357
      %v1359 = vsel %vm889, %v1357, %v1355
      %v1360 = vadd.f32 %v1344, %v1358
      %v1361 = vadd.f32 %v1345, %v1359
      %v1362 = vadd.f32 %v1360, %v1256
      %v1363 = vadd.f32 %v1361, %v1302
      %v1364 = vmul.f32 %v1256, %v899
      %v1365 = vmul.f32 %v1302, %v900
      %v1368 = vrot.slane %v1364, 4
      %v1369 = vrot.slane %v1365, 4
      %1372 = vrot.lane.b32.xlu0 %v1368, 1
      %v1373 = vpop.permute.xlu0 %1372
      %1374 = vrot.lane.b32.xlu0 %v1369, 1
      %v1375 = vpop.permute.xlu0 %1374
      %v1376 = vsel %vm915, %v1373, %v1375
      %v1377 = vsel %vm915, %v1375, %v1373
      %v1378 = vadd.f32 %v1362, %v1377
      %v1379 = vadd.f32 %v1363, %v1376
      %v1380 = vmul.f32 %v1258, %v923
      %v1381 = vmul.f32 %v1304, %v924
      %1382 = vrot.lane.b32.xlu0 %v1380, 15
      %v1383 = vpop.permute.xlu0 %1382
      %1384 = vrot.lane.b32.xlu0 %v1381, 15
      %v1385 = vpop.permute.xlu0 %1384
      %v1386 = vsel %vm933, %v1383, %v1385
      %v1387 = vsel %vm933, %v1385, %v1383
      %v1388 = vadd.f32 %v1378, %v1387
      %v1389 = vadd.f32 %v1379, %v1386
      %v1390 = vmul.f32 %v1258, %v941
      %v1391 = vmul.f32 %v1304, %v942
      %v1394 = vrot.slane %v1390, 4
      %v1395 = vrot.slane %v1391, 4
      %1398 = vrot.lane.b32.xlu0 %v1394, 16
      %v1399 = vpop.permute.xlu0 %1398
      %1400 = vrot.lane.b32.xlu0 %v1395, 16
      %v1401 = vpop.permute.xlu0 %1400
      %v1402 = vsel %vm957, %v1399, %v1401
      %v1403 = vsel %vm957, %v1401, %v1399
      %v1404 = vadd.f32 %v1388, %v1403
      %v1405 = vadd.f32 %v1389, %v1402
      %v1406 = vmul.f32 %v1261, %v965
      %v1407 = vmul.f32 %v1307, %v966
      %1408 = vrot.lane.b32.xlu0 %v1406, 17
      %v1409 = vpop.permute.xlu0 %1408
      %1410 = vrot.lane.b32.xlu0 %v1407, 17
      %v1411 = vpop.permute.xlu0 %1410
      %v1412 = vsel %vm975, %v1409, %v1411
      %v1413 = vsel %vm975, %v1411, %v1409
      %v1414 = vadd.f32 %v1404, %v1413
      %v1415 = vadd.f32 %v1405, %v1412
      %s1416 = scalar_lea.vmem %s424, 2
      %v1417 = vld [vmem:[%s1416] ss:$8 sm:$0x3]
      %v1419 = vperm.slane %v1417, 0
      %v1420 = vperm.slane %v1417, 1
      %v1423 = vmul.f32 %v1414, %v1419
      %v1424 = vmul.f32 %v1415, %v1420
      %1426 = vrot.lane.b32.xlu0 %v989, 124
      %v1427 = vpop.permute.xlu0 %1426
      %vm1428 = vcmask 31744
      %v1429 = vsel %vm1428, %v1427, 0
      %vm1431 = vcmask 1043456
      %v1433 = vsel %vm1431, %v1423, 0
      %v1436 = vsel %vm1431, %v1424, 0
      %1438 = vmatpush.msra.mxu0 0.0
      %1439 = vmatpush.msra.mxu0 0.0
      %1440 = vmatpush.msra.mxu0 0.0
      %1441 = vmatpush.msra.mxu0 0.0
      %1442 = vmatpush.msra.mxu0 0.0
      %1443 = vmatpush.msra.mxu0 0.0
      %1444 = vmatpush.msra.mxu0 0.0
      %1445 = vmatpush.msra.mxu0 0.0
      %1446 = vmatpush.msra.mxu0 0.0
      %1447 = vmatpush.msra.mxu0 0.0
      %1448 = vmatpush.msra.mxu0 0.0
      %1449 = vmatpush.msra.mxu0 0.0
      %1450 = vmatpush.msra.mxu0 0.0
      %1451 = vmatpush.msra.mxu0 0.0
      %1452 = vmatpush.msra.mxu0 0.0
      %1453 = vmatpush.msra.mxu0 %v1433
      %1454 = vmatmul.f32.gmra.mxu0 %v1429
      %v1455 = vpop.f32.mrf.mxu0
      %v1456 = vadd.f32 0.0, %v1455
      %1457 = vdwg.mxu0
      %1458 = vmatpush.msra.mxu0 0.0
      %1459 = vmatpush.msra.mxu0 0.0
      %1460 = vmatpush.msra.mxu0 0.0
      %1461 = vmatpush.msra.mxu0 0.0
      %1462 = vmatpush.msra.mxu0 0.0
      %1463 = vmatpush.msra.mxu0 0.0
      %1464 = vmatpush.msra.mxu0 0.0
      %1465 = vmatpush.msra.mxu0 0.0
      %1466 = vmatpush.msra.mxu0 0.0
      %1467 = vmatpush.msra.mxu0 0.0
      %1468 = vmatpush.msra.mxu0 0.0
      %1469 = vmatpush.msra.mxu0 0.0
      %1470 = vmatpush.msra.mxu0 0.0
      %1471 = vmatpush.msra.mxu0 0.0
      %1472 = vmatpush.msra.mxu0 0.0
      %1473 = vmatpush.msra.mxu0 %v1436
      %1474 = vmatmul.f32.gmra.mxu0 %v1429
      %v1475 = vpop.f32.mrf.mxu0
      %v1476 = vadd.f32 0.0, %v1475
      %1477 = vdwg.mxu0
      %v1478 = vsel %vm1428, %v989, 0
      %v1481 = vsel %vm1431, %v987, 0
      %v1484 = vsel %vm1431, %v988, 0
      %1486 = vmatpush.msra.mxu0 0.0
      %1487 = vmatpush.msra.mxu0 0.0
      %1488 = vmatpush.msra.mxu0 0.0
      %1489 = vmatpush.msra.mxu0 0.0
      %1490 = vmatpush.msra.mxu0 0.0
      %1491 = vmatpush.msra.mxu0 0.0
      %1492 = vmatpush.msra.mxu0 0.0
      %1493 = vmatpush.msra.mxu0 0.0
      %1494 = vmatpush.msra.mxu0 0.0
      %1495 = vmatpush.msra.mxu0 0.0
      %1496 = vmatpush.msra.mxu0 0.0
      %1497 = vmatpush.msra.mxu0 0.0
      %1498 = vmatpush.msra.mxu0 0.0
      %1499 = vmatpush.msra.mxu0 0.0
      %1500 = vmatpush.msra.mxu0 0.0
      %1501 = vmatpush.msra.mxu0 %v1481
      %1502 = vmatmul.f32.gmra.mxu0 %v1478
      %v1503 = vpop.f32.mrf.mxu0
      %v1504 = vadd.f32 %v1456, %v1503
      %1505 = vdwg.mxu0
      %1506 = vmatpush.msra.mxu0 0.0
      %1507 = vmatpush.msra.mxu0 0.0
      %1508 = vmatpush.msra.mxu0 0.0
      %1509 = vmatpush.msra.mxu0 0.0
      %1510 = vmatpush.msra.mxu0 0.0
      %1511 = vmatpush.msra.mxu0 0.0
      %1512 = vmatpush.msra.mxu0 0.0
      %1513 = vmatpush.msra.mxu0 0.0
      %1514 = vmatpush.msra.mxu0 0.0
      %1515 = vmatpush.msra.mxu0 0.0
      %1516 = vmatpush.msra.mxu0 0.0
      %1517 = vmatpush.msra.mxu0 0.0
      %1518 = vmatpush.msra.mxu0 0.0
      %1519 = vmatpush.msra.mxu0 0.0
      %1520 = vmatpush.msra.mxu0 0.0
      %1521 = vmatpush.msra.mxu0 %v1484
      %1522 = vmatmul.f32.gmra.mxu0 %v1478
      %v1523 = vpop.f32.mrf.mxu0
      %v1524 = vadd.f32 %v1476, %v1523
      %1525 = vdwg.mxu0
      %s1526 = scalar_lea.vmem %s419, 3
      %v1527 = vld [vmem:[%s1526] ss:$8 sm:$0x3]
      %v1528 = vperm.slane %v1527, 0
      %v1529 = vperm.slane %v1527, 1
      %vm1530 = vcmp.eq.s32.totalorder %v457, %v1528
      %vm1531 = vcmp.eq.s32.totalorder %v457, %v1529
      %vm1532 = vcmp.eq.s32.totalorder %v458, %v1528
      %vm1533 = vcmp.eq.s32.totalorder %v458, %v1529
      %vm1534 = vcmp.eq.s32.totalorder %v459, %v1528
      %vm1535 = vcmp.eq.s32.totalorder %v459, %v1529
      %vm1536 = vcmp.eq.s32.totalorder %v460, %v1528
      %vm1537 = vcmp.eq.s32.totalorder %v460, %v1529
      %vm1538 = vcmp.eq.s32.totalorder %v461, %v1528
      %vm1539 = vcmp.eq.s32.totalorder %v461, %v1529
      %vm1540 = vcmp.eq.s32.totalorder %v462, %v1528
      %vm1541 = vcmp.eq.s32.totalorder %v462, %v1529
      %vm1542 = vcmp.eq.s32.totalorder %v463, %v1528
      %vm1543 = vcmp.eq.s32.totalorder %v463, %v1529
      %vm1544 = vcmp.eq.s32.totalorder %v464, %v1528
      %vm1545 = vcmp.eq.s32.totalorder %v464, %v1529
      %vm1546 = vcmp.eq.s32.totalorder %v465, %v1528
      %vm1547 = vcmp.eq.s32.totalorder %v465, %v1529
      %vm1548 = vcmp.eq.s32.totalorder %v466, %v1528
      %vm1549 = vcmp.eq.s32.totalorder %v466, %v1529
      %vm1550 = vcmp.eq.s32.totalorder %v467, %v1528
      %vm1551 = vcmp.eq.s32.totalorder %v467, %v1529
      %vm1552 = vcmp.eq.s32.totalorder %v468, %v1528
      %vm1553 = vcmp.eq.s32.totalorder %v468, %v1529
      %vm1554 = vcmp.eq.s32.totalorder %v469, %v1528
      %vm1555 = vcmp.eq.s32.totalorder %v469, %v1529
      %vm1556 = vcmp.eq.s32.totalorder %v470, %v1528
      %vm1557 = vcmp.eq.s32.totalorder %v470, %v1529
      %vm1558 = vcmp.eq.s32.totalorder %v471, %v1528
      %vm1559 = vcmp.eq.s32.totalorder %v471, %v1529
      %vm1560 = vcmp.eq.s32.totalorder %v472, %v1528
      %vm1561 = vcmp.eq.s32.totalorder %v472, %v1529
      %vm1562 = vcmp.eq.s32.totalorder %v473, %v1528
      %vm1563 = vcmp.eq.s32.totalorder %v473, %v1529
      %vm1564 = vcmp.eq.s32.totalorder %v474, %v1528
      %vm1565 = vcmp.eq.s32.totalorder %v474, %v1529
      %vm1566 = vcmp.eq.s32.totalorder %v475, %v1528
      %vm1567 = vcmp.eq.s32.totalorder %v475, %v1529
      %vm1568 = vcmp.eq.s32.totalorder %v476, %v1528
      %vm1569 = vcmp.eq.s32.totalorder %v476, %v1529
      %vm1570 = vcmp.eq.s32.totalorder %v477, %v1528
      %vm1571 = vcmp.eq.s32.totalorder %v477, %v1529
      %vm1572 = vcmp.eq.s32.totalorder %v478, %v1528
      %vm1573 = vcmp.eq.s32.totalorder %v478, %v1529
      %vm1574 = vcmp.eq.s32.totalorder %v479, %v1528
      %vm1575 = vcmp.eq.s32.totalorder %v479, %v1529
      %vm1576 = vcmp.eq.s32.totalorder %v480, %v1528
      %vm1577 = vcmp.eq.s32.totalorder %v480, %v1529
      %vm1578 = vcmp.eq.s32.totalorder %v481, %v1528
      %vm1579 = vcmp.eq.s32.totalorder %v481, %v1529
      %vm1580 = vcmp.eq.s32.totalorder %v482, %v1528
      %vm1581 = vcmp.eq.s32.totalorder %v482, %v1529
      %vm1582 = vcmp.eq.s32.totalorder %v483, %v1528
      %vm1583 = vcmp.eq.s32.totalorder %v483, %v1529
      %vm1584 = vcmp.eq.s32.totalorder %v484, %v1528
      %vm1585 = vcmp.eq.s32.totalorder %v484, %v1529
      %vm1586 = vcmp.eq.s32.totalorder %v485, %v1528
      %vm1587 = vcmp.eq.s32.totalorder %v485, %v1529
      %vm1588 = vcmp.eq.s32.totalorder %v486, %v1528
      %vm1589 = vcmp.eq.s32.totalorder %v486, %v1529
      %vm1590 = vcmp.eq.s32.totalorder %v487, %v1528
      %vm1591 = vcmp.eq.s32.totalorder %v487, %v1529
      %vm1592 = vcmp.eq.s32.totalorder %v488, %v1528
      %vm1593 = vcmp.eq.s32.totalorder %v488, %v1529
      %v1594 = vsel %vm1530, 1, 0
      %v1595 = vsel %vm1531, 1, 0
      %v1596 = vsel %vm1532, 1, 0
      %v1597 = vsel %vm1533, 1, 0
      %v1598 = vsel %vm1534, 1, 0
      %v1599 = vsel %vm1535, 1, 0
      %v1600 = vsel %vm1536, 1, 0
      %v1601 = vsel %vm1537, 1, 0
      %v1602 = vsel %vm1538, 1, 0
      %v1603 = vsel %vm1539, 1, 0
      %v1604 = vsel %vm1540, 1, 0
      %v1605 = vsel %vm1541, 1, 0
      %v1606 = vsel %vm1542, 1, 0
      %v1607 = vsel %vm1543, 1, 0
      %v1608 = vsel %vm1544, 1, 0
      %v1609 = vsel %vm1545, 1, 0
      %v1610 = vsel %vm1546, 1, 0
      %v1611 = vsel %vm1547, 1, 0
      %v1612 = vsel %vm1548, 1, 0
      %v1613 = vsel %vm1549, 1, 0
      %v1614 = vsel %vm1550, 1, 0
      %v1615 = vsel %vm1551, 1, 0
      %v1616 = vsel %vm1552, 1, 0
      %v1617 = vsel %vm1553, 1, 0
      %v1618 = vsel %vm1554, 1, 0
      %v1619 = vsel %vm1555, 1, 0
      %v1620 = vsel %vm1556, 1, 0
      %v1621 = vsel %vm1557, 1, 0
      %v1622 = vsel %vm1558, 1, 0
      %v1623 = vsel %vm1559, 1, 0
      %v1624 = vsel %vm1560, 1, 0
      %v1625 = vsel %vm1561, 1, 0
      %v1626 = vsel %vm1562, 1, 0
      %v1627 = vsel %vm1563, 1, 0
      %v1628 = vsel %vm1564, 1, 0
      %v1629 = vsel %vm1565, 1, 0
      %v1630 = vsel %vm1566, 1, 0
      %v1631 = vsel %vm1567, 1, 0
      %v1632 = vsel %vm1568, 1, 0
      %v1633 = vsel %vm1569, 1, 0
      %v1634 = vsel %vm1570, 1, 0
      %v1635 = vsel %vm1571, 1, 0
      %v1636 = vsel %vm1572, 1, 0
      %v1637 = vsel %vm1573, 1, 0
      %v1638 = vsel %vm1574, 1, 0
      %v1639 = vsel %vm1575, 1, 0
      %v1640 = vsel %vm1576, 1, 0
      %v1641 = vsel %vm1577, 1, 0
      %v1642 = vsel %vm1578, 1, 0
      %v1643 = vsel %vm1579, 1, 0
      %v1644 = vsel %vm1580, 1, 0
      %v1645 = vsel %vm1581, 1, 0
      %v1646 = vsel %vm1582, 1, 0
      %v1647 = vsel %vm1583, 1, 0
      %v1648 = vsel %vm1584, 1, 0
      %v1649 = vsel %vm1585, 1, 0
      %v1650 = vsel %vm1586, 1, 0
      %v1651 = vsel %vm1587, 1, 0
      %v1652 = vsel %vm1588, 1, 0
      %v1653 = vsel %vm1589, 1, 0
      %v1654 = vsel %vm1590, 1, 0
      %v1655 = vsel %vm1591, 1, 0
      %v1656 = vsel %vm1592, 1, 0
      %v1657 = vsel %vm1593, 1, 0
      %v1658 = vcvt.s32.f32 %v1594
      %v1659 = vcvt.s32.f32 %v1595
      %v1660 = vcvt.s32.f32 %v1596
      %v1661 = vcvt.s32.f32 %v1597
      %v1662 = vcvt.s32.f32 %v1598
      %v1663 = vcvt.s32.f32 %v1599
      %v1664 = vcvt.s32.f32 %v1600
      %v1665 = vcvt.s32.f32 %v1601
      %v1666 = vcvt.s32.f32 %v1602
      %v1667 = vcvt.s32.f32 %v1603
      %v1668 = vcvt.s32.f32 %v1604
      %v1669 = vcvt.s32.f32 %v1605
      %v1670 = vcvt.s32.f32 %v1606
      %v1671 = vcvt.s32.f32 %v1607
      %v1672 = vcvt.s32.f32 %v1608
      %v1673 = vcvt.s32.f32 %v1609
      %v1674 = vcvt.s32.f32 %v1610
      %v1675 = vcvt.s32.f32 %v1611
      %v1676 = vcvt.s32.f32 %v1612
      %v1677 = vcvt.s32.f32 %v1613
      %v1678 = vcvt.s32.f32 %v1614
      %v1679 = vcvt.s32.f32 %v1615
      %v1680 = vcvt.s32.f32 %v1616
      %v1681 = vcvt.s32.f32 %v1617
      %v1682 = vcvt.s32.f32 %v1618
      %v1683 = vcvt.s32.f32 %v1619
      %v1684 = vcvt.s32.f32 %v1620
      %v1685 = vcvt.s32.f32 %v1621
      %v1686 = vcvt.s32.f32 %v1622
      %v1687 = vcvt.s32.f32 %v1623
      %v1688 = vcvt.s32.f32 %v1624
      %v1689 = vcvt.s32.f32 %v1625
      %v1690 = vcvt.s32.f32 %v1626
      %v1691 = vcvt.s32.f32 %v1627
      %v1692 = vcvt.s32.f32 %v1628
      %v1693 = vcvt.s32.f32 %v1629
      %v1694 = vcvt.s32.f32 %v1630
      %v1695 = vcvt.s32.f32 %v1631
      %v1696 = vcvt.s32.f32 %v1632
      %v1697 = vcvt.s32.f32 %v1633
      %v1698 = vcvt.s32.f32 %v1634
      %v1699 = vcvt.s32.f32 %v1635
      %v1700 = vcvt.s32.f32 %v1636
      %v1701 = vcvt.s32.f32 %v1637
      %v1702 = vcvt.s32.f32 %v1638
      %v1703 = vcvt.s32.f32 %v1639
      %v1704 = vcvt.s32.f32 %v1640
      %v1705 = vcvt.s32.f32 %v1641
      %v1706 = vcvt.s32.f32 %v1642
      %v1707 = vcvt.s32.f32 %v1643
      %v1708 = vcvt.s32.f32 %v1644
      %v1709 = vcvt.s32.f32 %v1645
      %v1710 = vcvt.s32.f32 %v1646
      %v1711 = vcvt.s32.f32 %v1647
      %v1712 = vcvt.s32.f32 %v1648
      %v1713 = vcvt.s32.f32 %v1649
      %v1714 = vcvt.s32.f32 %v1650
      %v1715 = vcvt.s32.f32 %v1651
      %v1716 = vcvt.s32.f32 %v1652
      %v1717 = vcvt.s32.f32 %v1653
      %v1718 = vcvt.s32.f32 %v1654
      %v1719 = vcvt.s32.f32 %v1655
      %v1720 = vcvt.s32.f32 %v1656
      %v1721 = vcvt.s32.f32 %v1657
      %v1722 = vpack.c.bf16 %v1660, %v1658
      %v1723 = vpack.c.bf16 %v1661, %v1659
      %v1724 = vpack.c.bf16 %v1664, %v1662
      %v1725 = vpack.c.bf16 %v1665, %v1663
      %v1726 = vpack.c.bf16 %v1668, %v1666
      %v1727 = vpack.c.bf16 %v1669, %v1667
      %v1728 = vpack.c.bf16 %v1672, %v1670
      %v1729 = vpack.c.bf16 %v1673, %v1671
      %v1730 = vpack.c.bf16 %v1676, %v1674
      %v1731 = vpack.c.bf16 %v1677, %v1675
      %v1732 = vpack.c.bf16 %v1680, %v1678
      %v1733 = vpack.c.bf16 %v1681, %v1679
      %v1734 = vpack.c.bf16 %v1684, %v1682
      %v1735 = vpack.c.bf16 %v1685, %v1683
      %v1736 = vpack.c.bf16 %v1688, %v1686
      %v1737 = vpack.c.bf16 %v1689, %v1687
      %v1738 = vpack.c.bf16 %v1692, %v1690
      %v1739 = vpack.c.bf16 %v1693, %v1691
      %v1740 = vpack.c.bf16 %v1696, %v1694
      %v1741 = vpack.c.bf16 %v1697, %v1695
      %v1742 = vpack.c.bf16 %v1700, %v1698
      %v1743 = vpack.c.bf16 %v1701, %v1699
      %v1744 = vpack.c.bf16 %v1704, %v1702
      %v1745 = vpack.c.bf16 %v1705, %v1703
      %v1746 = vpack.c.bf16 %v1708, %v1706
      %v1747 = vpack.c.bf16 %v1709, %v1707
      %v1748 = vpack.c.bf16 %v1712, %v1710
      %v1749 = vpack.c.bf16 %v1713, %v1711
      %v1750 = vpack.c.bf16 %v1716, %v1714
      %v1751 = vpack.c.bf16 %v1717, %v1715
      %v1752 = vpack.c.bf16 %v1720, %v1718
      %v1753 = vpack.c.bf16 %v1721, %v1719
      %1754 = vmatpush.bf16.msra.mxu0 %v1736
      %1755 = vmatpush.bf16.msra.mxu0 %v1734
      %1756 = vmatpush.bf16.msra.mxu0 %v1732
      %1757 = vmatpush.bf16.msra.mxu0 %v1730
      %1758 = vmatpush.bf16.msra.mxu0 %v1728
      %1759 = vmatpush.bf16.msra.mxu0 %v1726
      %1760 = vmatpush.bf16.msra.mxu0 %v1724
      %1761 = vmatpush.bf16.msra.mxu0 %v1722
      %1762 = vmatmul.bf16.gmra.mxu0 %v450
      %v1763 = vpop.f32.mrf.mxu0
      %v1764 = vadd.f32 0.0, %v1763
      %v1765 = vpop.f32.mrf.mxu0
      %v1766 = vadd.f32 0.0, %v1765
      %1767 = vmatmul.bf16.gmra.mxu0 %v452
      %v1768 = vpop.f32.mrf.mxu0
      %v1769 = vadd.f32 0.0, %v1768
      %v1770 = vpop.f32.mrf.mxu0
      %v1771 = vadd.f32 0.0, %v1770
      %1772 = vmatmul.bf16.gmra.mxu0 %v454
      %v1773 = vpop.f32.mrf.mxu0
      %v1774 = vadd.f32 0.0, %v1773
      %v1775 = vpop.f32.mrf.mxu0
      %1776 = vdwg.mxu0
      %1777 = vmatpush.bf16.msra.mxu0 %v1752
      %1778 = vmatpush.bf16.msra.mxu0 %v1750
      %1779 = vmatpush.bf16.msra.mxu0 %v1748
      %1780 = vmatpush.bf16.msra.mxu0 %v1746
      %1781 = vmatpush.bf16.msra.mxu0 %v1744
      %1782 = vmatpush.bf16.msra.mxu0 %v1742
      %1783 = vmatpush.bf16.msra.mxu0 %v1740
      %1784 = vmatpush.bf16.msra.mxu0 %v1738
      %1785 = vmatmul.bf16.gmra.mxu0 %v451
      %v1786 = vpop.f32.mrf.mxu0
      %v1787 = vadd.f32 %v1764, %v1786
      %v1788 = vpop.f32.mrf.mxu0
      %v1789 = vadd.f32 %v1766, %v1788
      %1790 = vmatmul.bf16.gmra.mxu0 %v453
      %v1791 = vpop.f32.mrf.mxu0
      %v1792 = vadd.f32 %v1769, %v1791
      %v1793 = vpop.f32.mrf.mxu0
      %v1794 = vadd.f32 %v1771, %v1793
      %1795 = vmatmul.bf16.gmra.mxu0 %v455
      %v1796 = vpop.f32.mrf.mxu0
      %v1797 = vadd.f32 %v1774, %v1796
      %v1798 = vpop.f32.mrf.mxu0
      %1799 = vdwg.mxu0
      %1800 = vmatpush.bf16.msra.mxu0 %v1737
      %1801 = vmatpush.bf16.msra.mxu0 %v1735
      %1802 = vmatpush.bf16.msra.mxu0 %v1733
      %1803 = vmatpush.bf16.msra.mxu0 %v1731
      %1804 = vmatpush.bf16.msra.mxu0 %v1729
      %1805 = vmatpush.bf16.msra.mxu0 %v1727
      %1806 = vmatpush.bf16.msra.mxu0 %v1725
      %1807 = vmatpush.bf16.msra.mxu0 %v1723
      %1808 = vmatmul.bf16.gmra.mxu0 %v450
      %v1809 = vpop.f32.mrf.mxu0
      %v1810 = vadd.f32 0.0, %v1809
      %v1811 = vpop.f32.mrf.mxu0
      %v1812 = vadd.f32 0.0, %v1811
      %1813 = vmatmul.bf16.gmra.mxu0 %v452
      %v1814 = vpop.f32.mrf.mxu0
      %v1815 = vadd.f32 0.0, %v1814
      %v1816 = vpop.f32.mrf.mxu0
      %v1817 = vadd.f32 0.0, %v1816
      %1818 = vmatmul.bf16.gmra.mxu0 %v454
      %v1819 = vpop.f32.mrf.mxu0
      %v1820 = vadd.f32 0.0, %v1819
      %v1821 = vpop.f32.mrf.mxu0
      %1822 = vdwg.mxu0
      %1823 = vmatpush.bf16.msra.mxu0 %v1753
      %1824 = vmatpush.bf16.msra.mxu0 %v1751
      %1825 = vmatpush.bf16.msra.mxu0 %v1749
      %1826 = vmatpush.bf16.msra.mxu0 %v1747
      %1827 = vmatpush.bf16.msra.mxu0 %v1745
      %1828 = vmatpush.bf16.msra.mxu0 %v1743
      %1829 = vmatpush.bf16.msra.mxu0 %v1741
      %1830 = vmatpush.bf16.msra.mxu0 %v1739
      %1831 = vmatmul.bf16.gmra.mxu0 %v451
      %v1832 = vpop.f32.mrf.mxu0
      %v1833 = vadd.f32 %v1810, %v1832
      %v1834 = vpop.f32.mrf.mxu0
      %v1835 = vadd.f32 %v1812, %v1834
      %1836 = vmatmul.bf16.gmra.mxu0 %v453
      %v1837 = vpop.f32.mrf.mxu0
      %v1838 = vadd.f32 %v1815, %v1837
      %v1839 = vpop.f32.mrf.mxu0
      %v1840 = vadd.f32 %v1817, %v1839
      %1841 = vmatmul.bf16.gmra.mxu0 %v455
      %v1842 = vpop.f32.mrf.mxu0
      %v1843 = vadd.f32 %v1820, %v1842
      %v1844 = vpop.f32.mrf.mxu0
      %1845 = vdwg.mxu0
      %v1846 = vmul.f32 %v1787, %v811
      %v1847 = vmul.f32 %v1833, %v812
      %1848 = vrot.lane.b32.xlu0 %v1846, 111
      %v1849 = vpop.permute.xlu0 %1848
      %1850 = vrot.lane.b32.xlu0 %v1847, 111
      %v1851 = vpop.permute.xlu0 %1850
      %v1852 = vsel %vm823, %v1849, %v1851
      %v1853 = vsel %vm823, %v1851, %v1849
      %v1854 = vadd.f32 %v1852, 0.0
      %v1855 = vadd.f32 %v1853, 0.0
      %v1856 = vmul.f32 %v1787, %v831
      %v1857 = vmul.f32 %v1833, %v832
      %v1860 = vrot.slane %v1856, 4
      %v1861 = vrot.slane %v1857, 4
      %1864 = vrot.lane.b32.xlu0 %v1860, 112
      %v1865 = vpop.permute.xlu0 %1864
      %1866 = vrot.lane.b32.xlu0 %v1861, 112
      %v1867 = vpop.permute.xlu0 %1866
      %v1868 = vsel %vm847, %v1865, %v1867
      %v1869 = vsel %vm847, %v1867, %v1865
      %v1870 = vadd.f32 %v1854, %v1868
      %v1871 = vadd.f32 %v1855, %v1869
      %v1872 = vmul.f32 %v1789, %v855
      %v1873 = vmul.f32 %v1835, %v856
      %1874 = vrot.lane.b32.xlu0 %v1872, 113
      %v1875 = vpop.permute.xlu0 %1874
      %1876 = vrot.lane.b32.xlu0 %v1873, 113
      %v1877 = vpop.permute.xlu0 %1876
      %v1878 = vsel %vm865, %v1875, %v1877
      %v1879 = vsel %vm865, %v1877, %v1875
      %v1880 = vadd.f32 %v1870, %v1878
      %v1881 = vadd.f32 %v1871, %v1879
      %v1882 = vmul.f32 %v1789, %v873
      %v1883 = vmul.f32 %v1835, %v874
      %v1886 = vrot.slane %v1882, 4
      %v1887 = vrot.slane %v1883, 4
      %1890 = vrot.lane.b32.xlu0 %v1886, 127
      %v1891 = vpop.permute.xlu0 %1890
      %1892 = vrot.lane.b32.xlu0 %v1887, 127
      %v1893 = vpop.permute.xlu0 %1892
      %v1894 = vsel %vm889, %v1891, %v1893
      %v1895 = vsel %vm889, %v1893, %v1891
      %v1896 = vadd.f32 %v1880, %v1894
      %v1897 = vadd.f32 %v1881, %v1895
      %v1898 = vadd.f32 %v1896, %v1792
      %v1899 = vadd.f32 %v1897, %v1838
      %v1900 = vmul.f32 %v1792, %v899
      %v1901 = vmul.f32 %v1838, %v900
      %v1904 = vrot.slane %v1900, 4
      %v1905 = vrot.slane %v1901, 4
      %1908 = vrot.lane.b32.xlu0 %v1904, 1
      %v1909 = vpop.permute.xlu0 %1908
      %1910 = vrot.lane.b32.xlu0 %v1905, 1
      %v1911 = vpop.permute.xlu0 %1910
      %v1912 = vsel %vm915, %v1909, %v1911
      %v1913 = vsel %vm915, %v1911, %v1909
      %v1914 = vadd.f32 %v1898, %v1913
      %v1915 = vadd.f32 %v1899, %v1912
      %v1916 = vmul.f32 %v1794, %v923
      %v1917 = vmul.f32 %v1840, %v924
      %1918 = vrot.lane.b32.xlu0 %v1916, 15
      %v1919 = vpop.permute.xlu0 %1918
      %1920 = vrot.lane.b32.xlu0 %v1917, 15
      %v1921 = vpop.permute.xlu0 %1920
      %v1922 = vsel %vm933, %v1919, %v1921
      %v1923 = vsel %vm933, %v1921, %v1919
      %v1924 = vadd.f32 %v1914, %v1923
      %v1925 = vadd.f32 %v1915, %v1922
      %v1926 = vmul.f32 %v1794, %v941
      %v1927 = vmul.f32 %v1840, %v942
      %v1930 = vrot.slane %v1926, 4
      %v1931 = vrot.slane %v1927, 4
      %1934 = vrot.lane.b32.xlu0 %v1930, 16
      %v1935 = vpop.permute.xlu0 %1934
      %1936 = vrot.lane.b32.xlu0 %v1931, 16
      %v1937 = vpop.permute.xlu0 %1936
      %v1938 = vsel %vm957, %v1935, %v1937
      %v1939 = vsel %vm957, %v1937, %v1935
      %v1940 = vadd.f32 %v1924, %v1939
      %v1941 = vadd.f32 %v1925, %v1938
      %v1942 = vmul.f32 %v1797, %v965
      %v1943 = vmul.f32 %v1843, %v966
      %1944 = vrot.lane.b32.xlu0 %v1942, 17
      %v1945 = vpop.permute.xlu0 %1944
      %1946 = vrot.lane.b32.xlu0 %v1943, 17
      %v1947 = vpop.permute.xlu0 %1946
      %v1948 = vsel %vm975, %v1945, %v1947
      %v1949 = vsel %vm975, %v1947, %v1945
      %v1950 = vadd.f32 %v1940, %v1949
      %v1951 = vadd.f32 %v1941, %v1948
      %s1952 = scalar_lea.vmem %s424, 3
      %v1953 = vld [vmem:[%s1952] ss:$8 sm:$0x3]
      %v1955 = vperm.slane %v1953, 0
      %v1956 = vperm.slane %v1953, 1
      %v1959 = vmul.f32 %v1950, %v1955
      %v1960 = vmul.f32 %v1951, %v1956
      %1961 = vrot.lane.b32.xlu0 %v989, 120
      %v1962 = vpop.permute.xlu0 %1961
      %v1963 = vsel %vm1428, %v1962, 0
      %v1966 = vsel %vm1431, %v1959, 0
      %v1969 = vsel %vm1431, %v1960, 0
      %1971 = vmatpush.msra.mxu0 0.0
      %1972 = vmatpush.msra.mxu0 0.0
      %1973 = vmatpush.msra.mxu0 0.0
      %1974 = vmatpush.msra.mxu0 0.0
      %1975 = vmatpush.msra.mxu0 0.0
      %1976 = vmatpush.msra.mxu0 0.0
      %1977 = vmatpush.msra.mxu0 0.0
      %1978 = vmatpush.msra.mxu0 0.0
      %1979 = vmatpush.msra.mxu0 0.0
      %1980 = vmatpush.msra.mxu0 0.0
      %1981 = vmatpush.msra.mxu0 0.0
      %1982 = vmatpush.msra.mxu0 0.0
      %1983 = vmatpush.msra.mxu0 0.0
      %1984 = vmatpush.msra.mxu0 0.0
      %1985 = vmatpush.msra.mxu0 0.0
      %1986 = vmatpush.msra.mxu0 %v1966
      %1987 = vmatmul.f32.gmra.mxu0 %v1963
      %v1988 = vpop.f32.mrf.mxu0
      %v1989 = vadd.f32 0.0, %v1988
      %1990 = vdwg.mxu0
      %1991 = vmatpush.msra.mxu0 0.0
      %1992 = vmatpush.msra.mxu0 0.0
      %1993 = vmatpush.msra.mxu0 0.0
      %1994 = vmatpush.msra.mxu0 0.0
      %1995 = vmatpush.msra.mxu0 0.0
      %1996 = vmatpush.msra.mxu0 0.0
      %1997 = vmatpush.msra.mxu0 0.0
      %1998 = vmatpush.msra.mxu0 0.0
      %1999 = vmatpush.msra.mxu0 0.0
      %2000 = vmatpush.msra.mxu0 0.0
      %2001 = vmatpush.msra.mxu0 0.0
      %2002 = vmatpush.msra.mxu0 0.0
      %2003 = vmatpush.msra.mxu0 0.0
      %2004 = vmatpush.msra.mxu0 0.0
      %2005 = vmatpush.msra.mxu0 0.0
      %2006 = vmatpush.msra.mxu0 %v1969
      %2007 = vmatmul.f32.gmra.mxu0 %v1963
      %v2008 = vpop.f32.mrf.mxu0
      %v2009 = vadd.f32 0.0, %v2008
      %2010 = vdwg.mxu0
      %v2011 = vadd.f32 %v1504, %v1989
      %v2012 = vadd.f32 %v1524, %v2009
      %s2013 = scalar_lea.vmem %s419, 4
      %v2014 = vld [vmem:[%s2013] ss:$8 sm:$0x3]
      %v2015 = vperm.slane %v2014, 0
      %v2016 = vperm.slane %v2014, 1
      %vm2017 = vcmp.eq.s32.totalorder %v457, %v2015
      %vm2018 = vcmp.eq.s32.totalorder %v457, %v2016
      %vm2019 = vcmp.eq.s32.totalorder %v458, %v2015
      %vm2020 = vcmp.eq.s32.totalorder %v458, %v2016
      %vm2021 = vcmp.eq.s32.totalorder %v459, %v2015
      %vm2022 = vcmp.eq.s32.totalorder %v459, %v2016
      %vm2023 = vcmp.eq.s32.totalorder %v460, %v2015
      %vm2024 = vcmp.eq.s32.totalorder %v460, %v2016
      %vm2025 = vcmp.eq.s32.totalorder %v461, %v2015
      %vm2026 = vcmp.eq.s32.totalorder %v461, %v2016
      %vm2027 = vcmp.eq.s32.totalorder %v462, %v2015
      %vm2028 = vcmp.eq.s32.totalorder %v462, %v2016
      %vm2029 = vcmp.eq.s32.totalorder %v463, %v2015
      %vm2030 = vcmp.eq.s32.totalorder %v463, %v2016
      %vm2031 = vcmp.eq.s32.totalorder %v464, %v2015
      %vm2032 = vcmp.eq.s32.totalorder %v464, %v2016
      %vm2033 = vcmp.eq.s32.totalorder %v465, %v2015
      %vm2034 = vcmp.eq.s32.totalorder %v465, %v2016
      %vm2035 = vcmp.eq.s32.totalorder %v466, %v2015
      %vm2036 = vcmp.eq.s32.totalorder %v466, %v2016
      %vm2037 = vcmp.eq.s32.totalorder %v467, %v2015
      %vm2038 = vcmp.eq.s32.totalorder %v467, %v2016
      %vm2039 = vcmp.eq.s32.totalorder %v468, %v2015
      %vm2040 = vcmp.eq.s32.totalorder %v468, %v2016
      %vm2041 = vcmp.eq.s32.totalorder %v469, %v2015
      %vm2042 = vcmp.eq.s32.totalorder %v469, %v2016
      %vm2043 = vcmp.eq.s32.totalorder %v470, %v2015
      %vm2044 = vcmp.eq.s32.totalorder %v470, %v2016
      %vm2045 = vcmp.eq.s32.totalorder %v471, %v2015
      %vm2046 = vcmp.eq.s32.totalorder %v471, %v2016
      %vm2047 = vcmp.eq.s32.totalorder %v472, %v2015
      %vm2048 = vcmp.eq.s32.totalorder %v472, %v2016
      %vm2049 = vcmp.eq.s32.totalorder %v473, %v2015
      %vm2050 = vcmp.eq.s32.totalorder %v473, %v2016
      %vm2051 = vcmp.eq.s32.totalorder %v474, %v2015
      %vm2052 = vcmp.eq.s32.totalorder %v474, %v2016
      %vm2053 = vcmp.eq.s32.totalorder %v475, %v2015
      %vm2054 = vcmp.eq.s32.totalorder %v475, %v2016
      %vm2055 = vcmp.eq.s32.totalorder %v476, %v2015
      %vm2056 = vcmp.eq.s32.totalorder %v476, %v2016
      %vm2057 = vcmp.eq.s32.totalorder %v477, %v2015
      %vm2058 = vcmp.eq.s32.totalorder %v477, %v2016
      %vm2059 = vcmp.eq.s32.totalorder %v478, %v2015
      %vm2060 = vcmp.eq.s32.totalorder %v478, %v2016
      %vm2061 = vcmp.eq.s32.totalorder %v479, %v2015
      %vm2062 = vcmp.eq.s32.totalorder %v479, %v2016
      %vm2063 = vcmp.eq.s32.totalorder %v480, %v2015
      %vm2064 = vcmp.eq.s32.totalorder %v480, %v2016
      %vm2065 = vcmp.eq.s32.totalorder %v481, %v2015
      %vm2066 = vcmp.eq.s32.totalorder %v481, %v2016
      %vm2067 = vcmp.eq.s32.totalorder %v482, %v2015
      %vm2068 = vcmp.eq.s32.totalorder %v482, %v2016
      %vm2069 = vcmp.eq.s32.totalorder %v483, %v2015
      %vm2070 = vcmp.eq.s32.totalorder %v483, %v2016
      %vm2071 = vcmp.eq.s32.totalorder %v484, %v2015
      %vm2072 = vcmp.eq.s32.totalorder %v484, %v2016
      %vm2073 = vcmp.eq.s32.totalorder %v485, %v2015
      %vm2074 = vcmp.eq.s32.totalorder %v485, %v2016
      %vm2075 = vcmp.eq.s32.totalorder %v486, %v2015
      %vm2076 = vcmp.eq.s32.totalorder %v486, %v2016
      %vm2077 = vcmp.eq.s32.totalorder %v487, %v2015
      %vm2078 = vcmp.eq.s32.totalorder %v487, %v2016
      %vm2079 = vcmp.eq.s32.totalorder %v488, %v2015
      %vm2080 = vcmp.eq.s32.totalorder %v488, %v2016
      %v2081 = vsel %vm2017, 1, 0
      %v2082 = vsel %vm2018, 1, 0
      %v2083 = vsel %vm2019, 1, 0
      %v2084 = vsel %vm2020, 1, 0
      %v2085 = vsel %vm2021, 1, 0
      %v2086 = vsel %vm2022, 1, 0
      %v2087 = vsel %vm2023, 1, 0
      %v2088 = vsel %vm2024, 1, 0
      %v2089 = vsel %vm2025, 1, 0
      %v2090 = vsel %vm2026, 1, 0
      %v2091 = vsel %vm2027, 1, 0
      %v2092 = vsel %vm2028, 1, 0
      %v2093 = vsel %vm2029, 1, 0
      %v2094 = vsel %vm2030, 1, 0
      %v2095 = vsel %vm2031, 1, 0
      %v2096 = vsel %vm2032, 1, 0
      %v2097 = vsel %vm2033, 1, 0
      %v2098 = vsel %vm2034, 1, 0
      %v2099 = vsel %vm2035, 1, 0
      %v2100 = vsel %vm2036, 1, 0
      %v2101 = vsel %vm2037, 1, 0
      %v2102 = vsel %vm2038, 1, 0
      %v2103 = vsel %vm2039, 1, 0
      %v2104 = vsel %vm2040, 1, 0
      %v2105 = vsel %vm2041, 1, 0
      %v2106 = vsel %vm2042, 1, 0
      %v2107 = vsel %vm2043, 1, 0
      %v2108 = vsel %vm2044, 1, 0
      %v2109 = vsel %vm2045, 1, 0
      %v2110 = vsel %vm2046, 1, 0
      %v2111 = vsel %vm2047, 1, 0
      %v2112 = vsel %vm2048, 1, 0
      %v2113 = vsel %vm2049, 1, 0
      %v2114 = vsel %vm2050, 1, 0
      %v2115 = vsel %vm2051, 1, 0
      %v2116 = vsel %vm2052, 1, 0
      %v2117 = vsel %vm2053, 1, 0
      %v2118 = vsel %vm2054, 1, 0
      %v2119 = vsel %vm2055, 1, 0
      %v2120 = vsel %vm2056, 1, 0
      %v2121 = vsel %vm2057, 1, 0
      %v2122 = vsel %vm2058, 1, 0
      %v2123 = vsel %vm2059, 1, 0
      %v2124 = vsel %vm2060, 1, 0
      %v2125 = vsel %vm2061, 1, 0
      %v2126 = vsel %vm2062, 1, 0
      %v2127 = vsel %vm2063, 1, 0
      %v2128 = vsel %vm2064, 1, 0
      %v2129 = vsel %vm2065, 1, 0
      %v2130 = vsel %vm2066, 1, 0
      %v2131 = vsel %vm2067, 1, 0
      %v2132 = vsel %vm2068, 1, 0
      %v2133 = vsel %vm2069, 1, 0
      %v2134 = vsel %vm2070, 1, 0
      %v2135 = vsel %vm2071, 1, 0
      %v2136 = vsel %vm2072, 1, 0
      %v2137 = vsel %vm2073, 1, 0
      %v2138 = vsel %vm2074, 1, 0
      %v2139 = vsel %vm2075, 1, 0
      %v2140 = vsel %vm2076, 1, 0
      %v2141 = vsel %vm2077, 1, 0
      %v2142 = vsel %vm2078, 1, 0
      %v2143 = vsel %vm2079, 1, 0
      %v2144 = vsel %vm2080, 1, 0
      %v2145 = vcvt.s32.f32 %v2081
      %v2146 = vcvt.s32.f32 %v2082
      %v2147 = vcvt.s32.f32 %v2083
      %v2148 = vcvt.s32.f32 %v2084
      %v2149 = vcvt.s32.f32 %v2085
      %v2150 = vcvt.s32.f32 %v2086
      %v2151 = vcvt.s32.f32 %v2087
      %v2152 = vcvt.s32.f32 %v2088
      %v2153 = vcvt.s32.f32 %v2089
      %v2154 = vcvt.s32.f32 %v2090
      %v2155 = vcvt.s32.f32 %v2091
      %v2156 = vcvt.s32.f32 %v2092
      %v2157 = vcvt.s32.f32 %v2093
      %v2158 = vcvt.s32.f32 %v2094
      %v2159 = vcvt.s32.f32 %v2095
      %v2160 = vcvt.s32.f32 %v2096
      %v2161 = vcvt.s32.f32 %v2097
      %v2162 = vcvt.s32.f32 %v2098
      %v2163 = vcvt.s32.f32 %v2099
      %v2164 = vcvt.s32.f32 %v2100
      %v2165 = vcvt.s32.f32 %v2101
      %v2166 = vcvt.s32.f32 %v2102
      %v2167 = vcvt.s32.f32 %v2103
      %v2168 = vcvt.s32.f32 %v2104
      %v2169 = vcvt.s32.f32 %v2105
      %v2170 = vcvt.s32.f32 %v2106
      %v2171 = vcvt.s32.f32 %v2107
      %v2172 = vcvt.s32.f32 %v2108
      %v2173 = vcvt.s32.f32 %v2109
      %v2174 = vcvt.s32.f32 %v2110
      %v2175 = vcvt.s32.f32 %v2111
      %v2176 = vcvt.s32.f32 %v2112
      %v2177 = vcvt.s32.f32 %v2113
      %v2178 = vcvt.s32.f32 %v2114
      %v2179 = vcvt.s32.f32 %v2115
      %v2180 = vcvt.s32.f32 %v2116
      %v2181 = vcvt.s32.f32 %v2117
      %v2182 = vcvt.s32.f32 %v2118
      %v2183 = vcvt.s32.f32 %v2119
      %v2184 = vcvt.s32.f32 %v2120
      %v2185 = vcvt.s32.f32 %v2121
      %v2186 = vcvt.s32.f32 %v2122
      %v2187 = vcvt.s32.f32 %v2123
      %v2188 = vcvt.s32.f32 %v2124
      %v2189 = vcvt.s32.f32 %v2125
      %v2190 = vcvt.s32.f32 %v2126
      %v2191 = vcvt.s32.f32 %v2127
      %v2192 = vcvt.s32.f32 %v2128
      %v2193 = vcvt.s32.f32 %v2129
      %v2194 = vcvt.s32.f32 %v2130
      %v2195 = vcvt.s32.f32 %v2131
      %v2196 = vcvt.s32.f32 %v2132
      %v2197 = vcvt.s32.f32 %v2133
      %v2198 = vcvt.s32.f32 %v2134
      %v2199 = vcvt.s32.f32 %v2135
      %v2200 = vcvt.s32.f32 %v2136
      %v2201 = vcvt.s32.f32 %v2137
      %v2202 = vcvt.s32.f32 %v2138
      %v2203 = vcvt.s32.f32 %v2139
      %v2204 = vcvt.s32.f32 %v2140
      %v2205 = vcvt.s32.f32 %v2141
      %v2206 = vcvt.s32.f32 %v2142
      %v2207 = vcvt.s32.f32 %v2143
      %v2208 = vcvt.s32.f32 %v2144
      %v2209 = vpack.c.bf16 %v2147, %v2145
      %v2210 = vpack.c.bf16 %v2148, %v2146
      %v2211 = vpack.c.bf16 %v2151, %v2149
      %v2212 = vpack.c.bf16 %v2152, %v2150
      %v2213 = vpack.c.bf16 %v2155, %v2153
      %v2214 = vpack.c.bf16 %v2156, %v2154
      %v2215 = vpack.c.bf16 %v2159, %v2157
      %v2216 = vpack.c.bf16 %v2160, %v2158
      %v2217 = vpack.c.bf16 %v2163, %v2161
      %v2218 = vpack.c.bf16 %v2164, %v2162
      %v2219 = vpack.c.bf16 %v2167, %v2165
      %v2220 = vpack.c.bf16 %v2168, %v2166
      %v2221 = vpack.c.bf16 %v2171, %v2169
      %v2222 = vpack.c.bf16 %v2172, %v2170
      %v2223 = vpack.c.bf16 %v2175, %v2173
      %v2224 = vpack.c.bf16 %v2176, %v2174
      %v2225 = vpack.c.bf16 %v2179, %v2177
      %v2226 = vpack.c.bf16 %v2180, %v2178
      %v2227 = vpack.c.bf16 %v2183, %v2181
      %v2228 = vpack.c.bf16 %v2184, %v2182
      %v2229 = vpack.c.bf16 %v2187, %v2185
      %v2230 = vpack.c.bf16 %v2188, %v2186
      %v2231 = vpack.c.bf16 %v2191, %v2189
      %v2232 = vpack.c.bf16 %v2192, %v2190
      %v2233 = vpack.c.bf16 %v2195, %v2193
      %v2234 = vpack.c.bf16 %v2196, %v2194
      %v2235 = vpack.c.bf16 %v2199, %v2197
      %v2236 = vpack.c.bf16 %v2200, %v2198
      %v2237 = vpack.c.bf16 %v2203, %v2201
      %v2238 = vpack.c.bf16 %v2204, %v2202
      %v2239 = vpack.c.bf16 %v2207, %v2205
      %v2240 = vpack.c.bf16 %v2208, %v2206
      %2241 = vmatpush.bf16.msra.mxu0 %v2223
      %2242 = vmatpush.bf16.msra.mxu0 %v2221
      %2243 = vmatpush.bf16.msra.mxu0 %v2219
      %2244 = vmatpush.bf16.msra.mxu0 %v2217
      %2245 = vmatpush.bf16.msra.mxu0 %v2215
      %2246 = vmatpush.bf16.msra.mxu0 %v2213
      %2247 = vmatpush.bf16.msra.mxu0 %v2211
      %2248 = vmatpush.bf16.msra.mxu0 %v2209
      %2249 = vmatmul.bf16.gmra.mxu0 %v450
      %v2250 = vpop.f32.mrf.mxu0
      %v2251 = vadd.f32 0.0, %v2250
      %v2252 = vpop.f32.mrf.mxu0
      %v2253 = vadd.f32 0.0, %v2252
      %2254 = vmatmul.bf16.gmra.mxu0 %v452
      %v2255 = vpop.f32.mrf.mxu0
      %v2256 = vadd.f32 0.0, %v2255
      %v2257 = vpop.f32.mrf.mxu0
      %v2258 = vadd.f32 0.0, %v2257
      %2259 = vmatmul.bf16.gmra.mxu0 %v454
      %v2260 = vpop.f32.mrf.mxu0
      %v2261 = vadd.f32 0.0, %v2260
      %v2262 = vpop.f32.mrf.mxu0
      %2263 = vdwg.mxu0
      %2264 = vmatpush.bf16.msra.mxu0 %v2239
      %2265 = vmatpush.bf16.msra.mxu0 %v2237
      %2266 = vmatpush.bf16.msra.mxu0 %v2235
      %2267 = vmatpush.bf16.msra.mxu0 %v2233
      %2268 = vmatpush.bf16.msra.mxu0 %v2231
      %2269 = vmatpush.bf16.msra.mxu0 %v2229
      %2270 = vmatpush.bf16.msra.mxu0 %v2227
      %2271 = vmatpush.bf16.msra.mxu0 %v2225
      %2272 = vmatmul.bf16.gmra.mxu0 %v451
      %v2273 = vpop.f32.mrf.mxu0
      %v2274 = vadd.f32 %v2251, %v2273
      %v2275 = vpop.f32.mrf.mxu0
      %v2276 = vadd.f32 %v2253, %v2275
      %2277 = vmatmul.bf16.gmra.mxu0 %v453
      %v2278 = vpop.f32.mrf.mxu0
      %v2279 = vadd.f32 %v2256, %v2278
      %v2280 = vpop.f32.mrf.mxu0
      %v2281 = vadd.f32 %v2258, %v2280
      %2282 = vmatmul.bf16.gmra.mxu0 %v455
      %v2283 = vpop.f32.mrf.mxu0
      %v2284 = vadd.f32 %v2261, %v2283
      %v2285 = vpop.f32.mrf.mxu0
      %2286 = vdwg.mxu0
      %2287 = vmatpush.bf16.msra.mxu0 %v2224
      %2288 = vmatpush.bf16.msra.mxu0 %v2222
      %2289 = vmatpush.bf16.msra.mxu0 %v2220
      %2290 = vmatpush.bf16.msra.mxu0 %v2218
      %2291 = vmatpush.bf16.msra.mxu0 %v2216
      %2292 = vmatpush.bf16.msra.mxu0 %v2214
      %2293 = vmatpush.bf16.msra.mxu0 %v2212
      %2294 = vmatpush.bf16.msra.mxu0 %v2210
      %2295 = vmatmul.bf16.gmra.mxu0 %v450
      %v2296 = vpop.f32.mrf.mxu0
      %v2297 = vadd.f32 0.0, %v2296
      %v2298 = vpop.f32.mrf.mxu0
      %v2299 = vadd.f32 0.0, %v2298
      %2300 = vmatmul.bf16.gmra.mxu0 %v452
      %v2301 = vpop.f32.mrf.mxu0
      %v2302 = vadd.f32 0.0, %v2301
      %v2303 = vpop.f32.mrf.mxu0
      %v2304 = vadd.f32 0.0, %v2303
      %2305 = vmatmul.bf16.gmra.mxu0 %v454
      %v2306 = vpop.f32.mrf.mxu0
      %v2307 = vadd.f32 0.0, %v2306
      %v2308 = vpop.f32.mrf.mxu0
      %2309 = vdwg.mxu0
      %2310 = vmatpush.bf16.msra.mxu0 %v2240
      %2311 = vmatpush.bf16.msra.mxu0 %v2238
      %2312 = vmatpush.bf16.msra.mxu0 %v2236
      %2313 = vmatpush.bf16.msra.mxu0 %v2234
      %2314 = vmatpush.bf16.msra.mxu0 %v2232
      %2315 = vmatpush.bf16.msra.mxu0 %v2230
      %2316 = vmatpush.bf16.msra.mxu0 %v2228
      %2317 = vmatpush.bf16.msra.mxu0 %v2226
      %2318 = vmatmul.bf16.gmra.mxu0 %v451
      %v2319 = vpop.f32.mrf.mxu0
      %v2320 = vadd.f32 %v2297, %v2319
      %v2321 = vpop.f32.mrf.mxu0
      %v2322 = vadd.f32 %v2299, %v2321
      %2323 = vmatmul.bf16.gmra.mxu0 %v453
      %v2324 = vpop.f32.mrf.mxu0
      %v2325 = vadd.f32 %v2302, %v2324
      %v2326 = vpop.f32.mrf.mxu0
      %v2327 = vadd.f32 %v2304, %v2326
      %2328 = vmatmul.bf16.gmra.mxu0 %v455
      %v2329 = vpop.f32.mrf.mxu0
      %v2330 = vadd.f32 %v2307, %v2329
      %v2331 = vpop.f32.mrf.mxu0
      %2332 = vdwg.mxu0
      %v2333 = vmul.f32 %v2274, %v811
      %v2334 = vmul.f32 %v2320, %v812
      %2335 = vrot.lane.b32.xlu0 %v2333, 111
      %v2336 = vpop.permute.xlu0 %2335
      %2337 = vrot.lane.b32.xlu0 %v2334, 111
      %v2338 = vpop.permute.xlu0 %2337
      %v2339 = vsel %vm823, %v2336, %v2338
      %v2340 = vsel %vm823, %v2338, %v2336
      %v2341 = vadd.f32 %v2339, 0.0
      %v2342 = vadd.f32 %v2340, 0.0
      %v2343 = vmul.f32 %v2274, %v831
      %v2344 = vmul.f32 %v2320, %v832
      %v2347 = vrot.slane %v2343, 4
      %v2348 = vrot.slane %v2344, 4
      %2351 = vrot.lane.b32.xlu0 %v2347, 112
      %v2352 = vpop.permute.xlu0 %2351
      %2353 = vrot.lane.b32.xlu0 %v2348, 112
      %v2354 = vpop.permute.xlu0 %2353
      %v2355 = vsel %vm847, %v2352, %v2354
      %v2356 = vsel %vm847, %v2354, %v2352
      %v2357 = vadd.f32 %v2341, %v2355
      %v2358 = vadd.f32 %v2342, %v2356
      %v2359 = vmul.f32 %v2276, %v855
      %v2360 = vmul.f32 %v2322, %v856
      %2361 = vrot.lane.b32.xlu0 %v2359, 113
      %v2362 = vpop.permute.xlu0 %2361
      %2363 = vrot.lane.b32.xlu0 %v2360, 113
      %v2364 = vpop.permute.xlu0 %2363
      %v2365 = vsel %vm865, %v2362, %v2364
      %v2366 = vsel %vm865, %v2364, %v2362
      %v2367 = vadd.f32 %v2357, %v2365
      %v2368 = vadd.f32 %v2358, %v2366
      %v2369 = vmul.f32 %v2276, %v873
      %v2370 = vmul.f32 %v2322, %v874
      %v2373 = vrot.slane %v2369, 4
      %v2374 = vrot.slane %v2370, 4
      %2377 = vrot.lane.b32.xlu0 %v2373, 127
      %v2378 = vpop.permute.xlu0 %2377
      %2379 = vrot.lane.b32.xlu0 %v2374, 127
      %v2380 = vpop.permute.xlu0 %2379
      %v2381 = vsel %vm889, %v2378, %v2380
      %v2382 = vsel %vm889, %v2380, %v2378
      %v2383 = vadd.f32 %v2367, %v2381
      %v2384 = vadd.f32 %v2368, %v2382
      %v2385 = vadd.f32 %v2383, %v2279
      %v2386 = vadd.f32 %v2384, %v2325
      %v2387 = vmul.f32 %v2279, %v899
      %v2388 = vmul.f32 %v2325, %v900
      %v2391 = vrot.slane %v2387, 4
      %v2392 = vrot.slane %v2388, 4
      %2395 = vrot.lane.b32.xlu0 %v2391, 1
      %v2396 = vpop.permute.xlu0 %2395
      %2397 = vrot.lane.b32.xlu0 %v2392, 1
      %v2398 = vpop.permute.xlu0 %2397
      %v2399 = vsel %vm915, %v2396, %v2398
      %v2400 = vsel %vm915, %v2398, %v2396
      %v2401 = vadd.f32 %v2385, %v2400
      %v2402 = vadd.f32 %v2386, %v2399
      %v2403 = vmul.f32 %v2281, %v923
      %v2404 = vmul.f32 %v2327, %v924
      %2405 = vrot.lane.b32.xlu0 %v2403, 15
      %v2406 = vpop.permute.xlu0 %2405
      %2407 = vrot.lane.b32.xlu0 %v2404, 15
      %v2408 = vpop.permute.xlu0 %2407
      %v2409 = vsel %vm933, %v2406, %v2408
      %v2410 = vsel %vm933, %v2408, %v2406
      %v2411 = vadd.f32 %v2401, %v2410
      %v2412 = vadd.f32 %v2402, %v2409
      %v2413 = vmul.f32 %v2281, %v941
      %v2414 = vmul.f32 %v2327, %v942
      %v2417 = vrot.slane %v2413, 4
      %v2418 = vrot.slane %v2414, 4
      %2421 = vrot.lane.b32.xlu0 %v2417, 16
      %v2422 = vpop.permute.xlu0 %2421
      %2423 = vrot.lane.b32.xlu0 %v2418, 16
      %v2424 = vpop.permute.xlu0 %2423
      %v2425 = vsel %vm957, %v2422, %v2424
      %v2426 = vsel %vm957, %v2424, %v2422
      %v2427 = vadd.f32 %v2411, %v2426
      %v2428 = vadd.f32 %v2412, %v2425
      %v2429 = vmul.f32 %v2284, %v965
      %v2430 = vmul.f32 %v2330, %v966
      %2431 = vrot.lane.b32.xlu0 %v2429, 17
      %v2432 = vpop.permute.xlu0 %2431
      %2433 = vrot.lane.b32.xlu0 %v2430, 17
      %v2434 = vpop.permute.xlu0 %2433
      %v2435 = vsel %vm975, %v2432, %v2434
      %v2436 = vsel %vm975, %v2434, %v2432
      %v2437 = vadd.f32 %v2427, %v2436
      %v2438 = vadd.f32 %v2428, %v2435
      %s2439 = scalar_lea.vmem %s424, 4
      %v2440 = vld [vmem:[%s2439] ss:$8 sm:$0x3]
      %v2442 = vperm.slane %v2440, 0
      %v2443 = vperm.slane %v2440, 1
      %v2446 = vmul.f32 %v2437, %v2442
      %v2447 = vmul.f32 %v2438, %v2443
      %2448 = vrot.lane.b32.xlu0 %v989, 116
      %v2449 = vpop.permute.xlu0 %2448
      %v2450 = vsel %vm1428, %v2449, 0
      %v2453 = vsel %vm1431, %v2446, 0
      %v2456 = vsel %vm1431, %v2447, 0
      %2458 = vmatpush.msra.mxu0 0.0
      %2459 = vmatpush.msra.mxu0 0.0
      %2460 = vmatpush.msra.mxu0 0.0
      %2461 = vmatpush.msra.mxu0 0.0
      %2462 = vmatpush.msra.mxu0 0.0
      %2463 = vmatpush.msra.mxu0 0.0
      %2464 = vmatpush.msra.mxu0 0.0
      %2465 = vmatpush.msra.mxu0 0.0
      %2466 = vmatpush.msra.mxu0 0.0
      %2467 = vmatpush.msra.mxu0 0.0
      %2468 = vmatpush.msra.mxu0 0.0
      %2469 = vmatpush.msra.mxu0 0.0
      %2470 = vmatpush.msra.mxu0 0.0
      %2471 = vmatpush.msra.mxu0 0.0
      %2472 = vmatpush.msra.mxu0 0.0
      %2473 = vmatpush.msra.mxu0 %v2453
      %2474 = vmatmul.f32.gmra.mxu0 %v2450
      %v2475 = vpop.f32.mrf.mxu0
      %v2476 = vadd.f32 0.0, %v2475
      %2477 = vdwg.mxu0
      %2478 = vmatpush.msra.mxu0 0.0
      %2479 = vmatpush.msra.mxu0 0.0
      %2480 = vmatpush.msra.mxu0 0.0
      %2481 = vmatpush.msra.mxu0 0.0
      %2482 = vmatpush.msra.mxu0 0.0
      %2483 = vmatpush.msra.mxu0 0.0
      %2484 = vmatpush.msra.mxu0 0.0
      %2485 = vmatpush.msra.mxu0 0.0
      %2486 = vmatpush.msra.mxu0 0.0
      %2487 = vmatpush.msra.mxu0 0.0
      %2488 = vmatpush.msra.mxu0 0.0
      %2489 = vmatpush.msra.mxu0 0.0
      %2490 = vmatpush.msra.mxu0 0.0
      %2491 = vmatpush.msra.mxu0 0.0
      %2492 = vmatpush.msra.mxu0 0.0
      %2493 = vmatpush.msra.mxu0 %v2456
      %2494 = vmatmul.f32.gmra.mxu0 %v2450
      %v2495 = vpop.f32.mrf.mxu0
      %v2496 = vadd.f32 0.0, %v2495
      %2497 = vdwg.mxu0
      %v2498 = vadd.f32 %v2011, %v2476
      %v2499 = vadd.f32 %v2012, %v2496
      %v2500 = vld [vmem:[%s7] sm:$0xf]
      %2502 = vset.pattern.permute.xlu0 0
      %2503 = vperm.xlu0 %2502, %v2500
      %v2504 = vpop.permute.xlu0 %2503
      %v2506 = vadd.f32 %v2498, %v2504
      %v2507 = vadd.f32 %v2499, %v2504
      %v2508 = vld [vmem:[%s8] sm:$0xf]
      %v2509 = vld [vmem:[%s429] sm:$0xff]
      %v2510 = vld [vmem:[%s434] sm:$0xff]
      %2512 = vrot.lane.b32.xlu0 %v2508, 124
      %v2513 = vpop.permute.xlu0 %2512
      %2515 = vst [vmem:[#allocation1] ss:$2 sm:$0xff] %v2510
      %v2516 = vld.sshfl [vmem:[#allocation1] sm:$0xff pattern:$0x75316420]
      %v2517 = vld.sshfl [vmem:[#allocation1 + $0x8] sm:$0xff pattern:$0x75316420]
      %v2518 = vsel %vm1428, %v2513, 0
      %v2520 = vsel %vm1431, %v2516, 0
      %v2522 = vsel %vm1431, %v2517, 0
      %2524 = vmatpush.msra.mxu0 0.0
      %2525 = vmatpush.msra.mxu0 0.0
      %2526 = vmatpush.msra.mxu0 0.0
      %2527 = vmatpush.msra.mxu0 0.0
      %2528 = vmatpush.msra.mxu0 0.0
      %2529 = vmatpush.msra.mxu0 0.0
      %2530 = vmatpush.msra.mxu0 0.0
      %2531 = vmatpush.msra.mxu0 0.0
      %2532 = vmatpush.msra.mxu0 0.0
      %2533 = vmatpush.msra.mxu0 0.0
      %2534 = vmatpush.msra.mxu0 0.0
      %2535 = vmatpush.msra.mxu0 0.0
      %2536 = vmatpush.msra.mxu0 0.0
      %2537 = vmatpush.msra.mxu0 0.0
      %2538 = vmatpush.msra.mxu0 0.0
      %2539 = vmatpush.msra.mxu0 %v2520
      %2540 = vmatmul.f32.gmra.mxu0 %v2518
      %v2541 = vpop.f32.mrf.mxu0
      %v2542 = vadd.f32 0.0, %v2541
      %2543 = vdwg.mxu0
      %2544 = vmatpush.msra.mxu0 0.0
      %2545 = vmatpush.msra.mxu0 0.0
      %2546 = vmatpush.msra.mxu0 0.0
      %2547 = vmatpush.msra.mxu0 0.0
      %2548 = vmatpush.msra.mxu0 0.0
      %2549 = vmatpush.msra.mxu0 0.0
      %2550 = vmatpush.msra.mxu0 0.0
      %2551 = vmatpush.msra.mxu0 0.0
      %2552 = vmatpush.msra.mxu0 0.0
      %2553 = vmatpush.msra.mxu0 0.0
      %2554 = vmatpush.msra.mxu0 0.0
      %2555 = vmatpush.msra.mxu0 0.0
      %2556 = vmatpush.msra.mxu0 0.0
      %2557 = vmatpush.msra.mxu0 0.0
      %2558 = vmatpush.msra.mxu0 0.0
      %2559 = vmatpush.msra.mxu0 %v2522
      %2560 = vmatmul.f32.gmra.mxu0 %v2518
      %v2561 = vpop.f32.mrf.mxu0
      %v2562 = vadd.f32 0.0, %v2561
      %2563 = vdwg.mxu0
      %2565 = vst [vmem:[#allocation1] ss:$2 sm:$0xff] %v2509
      %v2566 = vld.sshfl [vmem:[#allocation1] sm:$0xff pattern:$0x75316420]
      %v2567 = vld.sshfl [vmem:[#allocation1 + $0x8] sm:$0xff pattern:$0x75316420]
      %v2568 = vsel %vm1428, %v2508, 0
      %v2570 = vsel %vm1431, %v2566, 0
      %v2572 = vsel %vm1431, %v2567, 0
      %2574 = vmatpush.msra.mxu0 0.0
      %2575 = vmatpush.msra.mxu0 0.0
      %2576 = vmatpush.msra.mxu0 0.0
      %2577 = vmatpush.msra.mxu0 0.0
      %2578 = vmatpush.msra.mxu0 0.0
      %2579 = vmatpush.msra.mxu0 0.0
      %2580 = vmatpush.msra.mxu0 0.0
      %2581 = vmatpush.msra.mxu0 0.0
      %2582 = vmatpush.msra.mxu0 0.0
      %2583 = vmatpush.msra.mxu0 0.0
      %2584 = vmatpush.msra.mxu0 0.0
      %2585 = vmatpush.msra.mxu0 0.0
      %2586 = vmatpush.msra.mxu0 0.0
      %2587 = vmatpush.msra.mxu0 0.0
      %2588 = vmatpush.msra.mxu0 0.0
      %2589 = vmatpush.msra.mxu0 %v2570
      %2590 = vmatmul.f32.gmra.mxu0 %v2568
      %v2591 = vpop.f32.mrf.mxu0
      %v2592 = vadd.f32 %v2542, %v2591
      %2593 = vdwg.mxu0
      %2594 = vmatpush.msra.mxu0 0.0
      %2595 = vmatpush.msra.mxu0 0.0
      %2596 = vmatpush.msra.mxu0 0.0
      %2597 = vmatpush.msra.mxu0 0.0
      %2598 = vmatpush.msra.mxu0 0.0
      %2599 = vmatpush.msra.mxu0 0.0
      %2600 = vmatpush.msra.mxu0 0.0
      %2601 = vmatpush.msra.mxu0 0.0
      %2602 = vmatpush.msra.mxu0 0.0
      %2603 = vmatpush.msra.mxu0 0.0
      %2604 = vmatpush.msra.mxu0 0.0
      %2605 = vmatpush.msra.mxu0 0.0
      %2606 = vmatpush.msra.mxu0 0.0
      %2607 = vmatpush.msra.mxu0 0.0
      %2608 = vmatpush.msra.mxu0 0.0
      %2609 = vmatpush.msra.mxu0 %v2572
      %2610 = vmatmul.f32.gmra.mxu0 %v2568
      %v2611 = vpop.f32.mrf.mxu0
      %v2612 = vadd.f32 %v2562, %v2611
      %2613 = vdwg.mxu0
      %v2614 = vld [vmem:[%s8] sm:$0xf]
      %2616 = vrot.lane.b32.xlu0 %v2614, 120
      %v2617 = vpop.permute.xlu0 %2616
      %v2618 = vsel %vm1428, %v2617, 0
      %v2621 = vsel %vm1431, %v2506, 0
      %v2624 = vsel %vm1431, %v2507, 0
      %2626 = vmatpush.msra.mxu0 0.0
      %2627 = vmatpush.msra.mxu0 0.0
      %2628 = vmatpush.msra.mxu0 0.0
      %2629 = vmatpush.msra.mxu0 0.0
      %2630 = vmatpush.msra.mxu0 0.0
      %2631 = vmatpush.msra.mxu0 0.0
      %2632 = vmatpush.msra.mxu0 0.0
      %2633 = vmatpush.msra.mxu0 0.0
      %2634 = vmatpush.msra.mxu0 0.0
      %2635 = vmatpush.msra.mxu0 0.0
      %2636 = vmatpush.msra.mxu0 0.0
      %2637 = vmatpush.msra.mxu0 0.0
      %2638 = vmatpush.msra.mxu0 0.0
      %2639 = vmatpush.msra.mxu0 0.0
      %2640 = vmatpush.msra.mxu0 0.0
      %2641 = vmatpush.msra.mxu0 %v2621
      %2642 = vmatmul.f32.gmra.mxu0 %v2618
      %v2643 = vpop.f32.mrf.mxu0
      %v2644 = vadd.f32 0.0, %v2643
      %2645 = vdwg.mxu0
      %2646 = vmatpush.msra.mxu0 0.0
      %2647 = vmatpush.msra.mxu0 0.0
      %2648 = vmatpush.msra.mxu0 0.0
      %2649 = vmatpush.msra.mxu0 0.0
      %2650 = vmatpush.msra.mxu0 0.0
      %2651 = vmatpush.msra.mxu0 0.0
      %2652 = vmatpush.msra.mxu0 0.0
      %2653 = vmatpush.msra.mxu0 0.0
      %2654 = vmatpush.msra.mxu0 0.0
      %2655 = vmatpush.msra.mxu0 0.0
      %2656 = vmatpush.msra.mxu0 0.0
      %2657 = vmatpush.msra.mxu0 0.0
      %2658 = vmatpush.msra.mxu0 0.0
      %2659 = vmatpush.msra.mxu0 0.0
      %2660 = vmatpush.msra.mxu0 0.0
      %2661 = vmatpush.msra.mxu0 %v2624
      %2662 = vmatmul.f32.gmra.mxu0 %v2618
      %v2663 = vpop.f32.mrf.mxu0
      %v2664 = vadd.f32 0.0, %v2663
      %2665 = vdwg.mxu0
      %v2666 = vadd.f32 %v2592, %v2644
      %v2667 = vadd.f32 %v2612, %v2664
      %v2668 = vld [vmem:[%s9] sm:$0xf]
      %2670 = vset.pattern.permute.xlu0 0
      %2671 = vperm.xlu0 %2670, %v2668
      %v2672 = vpop.permute.xlu0 %2671
      %v2674 = vadd.f32 %v2666, %v2672
      %v2675 = vadd.f32 %v2667, %v2672
      %v2678 = vrot.slane %v2675, 4
      %v2679 = vsel %vm1431, %v2674, %v2678
      %2681 = vst [vmem:[%s439] sm:$0xff] %v2679
      %p2682 = scmp.lt.s32.totalorder %s21, 1
      %s2683 = scalar_select %p2682, %s21, 1
      %s2684 = smul.addr %s2683, 2
      %s2685 = smul.addr %s2684, 4
      %s2686 = scalar_lea.vmem %s10, %s2685
      // Predicated region
      $region61: #{transformer_v5_forward.7} parent=59 // pred_check
        %p2687 = pneg %p274
      $region62: #{transformer_v5_forward.7} parent=59 // pred_check_branch
        %2689 = sbr.rel (%p2687) target = $region64
      $region63: #{transformer_v5_forward.7} parent=59 // pred_region
        _
      $region64: #{transformer_v5_forward.7} parent=59 // pred_fallthru
        _
    $region60: #{transformer_v5_forward.7} parent=5 // pred_fallthru
      _
    %p2690 = scmp.le.s32.totalorder 2, %s16
    // Predicated region
    $region65: #{transformer_v5_forward.7} parent=5 // pred_check
      %p2691 = pneg %p2690
    $region66: #{transformer_v5_forward.7} parent=5 // pred_check_branch
      %2693 = sbr.rel (%p2691) target = $region68
    $region67: #{transformer_v5_forward.7} parent=5 // pred_region
      %s2694 = ssub.s32 %s16, 2
      // Predicated region
      $region69: #{transformer_v5_forward.7} parent=67 // pred_check
        %p2695 = pneg %p280
      $region70: #{transformer_v5_forward.7} parent=67 // pred_check_branch
        %2697 = sbr.rel (%p2695) target = $region72
      $region71: #{transformer_v5_forward.7} parent=67 // pred_region
        %p2698 = scmp.lt.s32.totalorder %s22, 1
        %s2699 = scalar_select %p2698, %s22, 1
        %s2700 = smul.addr %s2699, 2
        %s2701 = smul.addr %s2700, 4
        %s2702 = scalar_lea.vmem %s10, %s2701
      $region72: #{transformer_v5_forward.7} parent=67 // pred_fallthru
        _
    $region68: #{transformer_v5_forward.7} parent=5 // pred_fallthru
      _
  $region6: #{transformer_v5_forward.7} parent=0 // loop_footer
    %s20 = sadd.s32 1, %s16
  $region7: #{transformer_v5_forward.7} parent=0 // loop_footer_branch
    %15 = sbr.rel target = $region3
  $region8: #{transformer_v5_forward.7} parent=0 // loop_exit
    _

</llo_original>
